<compile_context>
chip_gen: v6e
topology: v6e:2x2x1
jax: 0.10.0
libtpu: 0.0.40
codegen_flags: <defaults>
</compile_context>

<pallas_src>
import math

import jax
import jax.numpy as jnp
from jax.experimental import pallas as pl
from jax.experimental.pallas import tpu as pltpu

# ---- Hyperparameters consistent with the module's __init__ ----
VOCAB = 100
VOCAB_PAD = 128               # embedding table padded to one full 128-lane tile
EMB = 64                      # embedding_dim (d_model)
HID = 32                      # hidden_dim
NUM_LAYERS = 2
NUM_CLASSES = 8
NUM_HEADS = 8                 # default
HEAD_DIM = EMB // NUM_HEADS   # 8
MLP_RATIO = 4                 # default
EXTRA_MLP_RATIO = 4           # default, use_extra_mlp=True
FF = HID * MLP_RATIO          # dim_feedforward = 128
EXTRA = EMB * EXTRA_MLP_RATIO # 256
MAX_LEN = 16                  # pos-encoding add requires seq_len == max_len
BATCH = 2
LN_EPS = 1e-5                 # PyTorch LayerNorm default

# Order of the weight arguments handed to the fused kernel.
_ARG_ORDER = ("emb", "pos", "wqkv", "bqkv", "wo", "bo",
              "ln1g", "ln1b", "w1", "b1", "w2", "b2", "ln2g", "ln2b",
              "wm1", "bm1", "wm2", "bm2")


def _layer_norm(x, g, b):
    mu = jnp.mean(x, axis=-1, keepdims=True)
    var = jnp.mean((x - mu) ** 2, axis=-1, keepdims=True)
    return (x - mu) * jax.lax.rsqrt(var + LN_EPS) * g + b


def _erf(z):
    # TODO(synk): stands in for lax.erf (exact-GELU erf); Abramowitz-Stegun 7.1.26,
    # max abs error ~1.5e-7 (float32-level), built only from exp/mul/add/select so
    # it is guaranteed to lower on the VPU/EUP.
    p = 0.3275911
    a1, a2, a3, a4, a5 = (0.254829592, -0.284496736, 1.421413741,
                          -1.453152027, 1.061405429)
    sgn = jnp.where(z >= 0.0, 1.0, -1.0)
    az = jnp.abs(z)
    t = 1.0 / (1.0 + p * az)
    poly = ((((a5 * t + a4) * t + a3) * t + a2) * t + a1) * t
    return sgn * (1.0 - poly * jnp.exp(-az * az))


def _gelu_exact(x):
    return 0.5 * x * (1.0 + _erf(x * (1.0 / math.sqrt(2.0))))


# ------------------------- single fused forward kernel -------------------------
def fused_transformer_kernel(
        tok_ref, maskf_ref, emb_ref, pos_ref,
        wqkv_ref, bqkv_ref, wo_ref, bo_ref,
        ln1g_ref, ln1b_ref, w1_ref, b1_ref, w2_ref, b2_ref, ln2g_ref, ln2b_ref,
        wm1_ref, bm1_ref, wm2_ref, bm2_ref,
        logits_ref, probs_ref,
        ctx_buf):
    """embed -> [MHA + FFN + post-LN] x L -> MLP head -> softmax, all in VMEM."""
    f32 = jnp.float32
    L, E, _ = wqkv_ref.shape           # (layers, d_model, 3*d_model)
    H, Dh = NUM_HEADS, EMB // NUM_HEADS
    S = pos_ref.shape[0]
    BS = tok_ref.shape[0]
    B = BS // S
    V = emb_ref.shape[0]               # padded vocab (128)
    scale = 1.0 / math.sqrt(Dh)

    # ---- embedding lookup as a one-hot matmul (full 128-wide K tile) ----
    tok = tok_ref[...]                                           # (BS, 1) int32
    vocab_ids = jax.lax.broadcasted_iota(jnp.int32, (BS, V), 1)
    onehot = (vocab_ids == tok).astype(f32)                      # (BS, V)
    x = jnp.dot(onehot, emb_ref[...], preferred_element_type=f32)     # (BS, E)
    # positional encoding: broadcast add on a (B,S,E) view (no concat/tile copy)
    x = (x.reshape(B, S, E) + pos_ref[...]).reshape(BS, E)
    # embedding_dropout / dropout -> identity (eval semantics)

    # key-padding mask (1.0 = pad) -> additive bias (B, 1, S), built once.
    bias = maskf_ref[...] * f32(-1e9)
    # TODO(synk): a query row whose keys are ALL padded yields ~uniform attention
    # here, whereas PyTorch's masked_fill(-inf) yields NaN; unreachable with a
    # valid mask.

    for l in range(L):
        # ---- fused QKV projection: ONE wide matmul (BS,E)@(E,3E) + bias ----
        qkv = jnp.dot(x, wqkv_ref[l], preferred_element_type=f32) + bqkv_ref[l]

        # ---- attention: batched over B; heads stay as static lane slices ----
        for h in range(H):
            q = qkv[:, h * Dh:(h + 1) * Dh].reshape(B, S, Dh)
            k = qkv[:, E + h * Dh:E + (h + 1) * Dh].reshape(B, S, Dh)
            v = qkv[:, 2 * E + h * Dh:2 * E + (h + 1) * Dh].reshape(B, S, Dh)
            s = jnp.einsum('bqd,bkd->bqk', q, k,
                           preferred_element_type=f32) * scale   # (B, S, S)
            s = s + bias                                         # (B,1,S) bcast
            s = s - jnp.max(s, axis=-1, keepdims=True)
            p = jnp.exp(s)
            p = p / jnp.sum(p, axis=-1, keepdims=True)           # exact softmax
            ctx = jnp.einsum('bqk,bkd->bqd', p, v,
                             preferred_element_type=f32)         # (B, S, Dh)
            ctx_buf[:, h * Dh:(h + 1) * Dh] = ctx.reshape(BS, Dh)

        # ---- output projection: ONE matmul; head-sum folded into contraction ----
        attn = jnp.dot(ctx_buf[...], wo_ref[l],
                       preferred_element_type=f32) + bo_ref[l]   # (BS, E)

        # residual + post-LayerNorm (norm_first=False)
        x = _layer_norm(x + attn, ln1g_ref[l], ln1b_ref[l])

        # ---- feed-forward (exact-erf GELU), full-width on (BS, E) ----
        h1 = jnp.dot(x, w1_ref[l], preferred_element_type=f32) + b1_ref[l]
        h1 = _gelu_exact(h1)
        ff = jnp.dot(h1, w2_ref[l], preferred_element_type=f32) + b2_ref[l]
        x = _layer_norm(x + ff, ln2g_ref[l], ln2b_ref[l])

    # ---- classification head on the last position of every sequence ----
    # Matches the reference `self.mlp(x[:, -1, :])` (last position regardless of padding).
    x_last = x.reshape(B, S, E)[:, S - 1, :]                     # (B, E)
    hm = jnp.dot(x_last, wm1_ref[...], preferred_element_type=f32) + bm1_ref[...]
    hm = jnp.maximum(hm, 0.0)                                    # ReLU (dropout=identity)
    logits = jnp.dot(hm, wm2_ref[...], preferred_element_type=f32) + bm2_ref[...]
    logits_ref[...] = logits
    e = jnp.exp(logits - jnp.max(logits, axis=-1, keepdims=True))
    probs_ref[...] = e / jnp.sum(e, axis=-1, keepdims=True)      # nn.Softmax(dim=1)


def transformer_forward(params, tokens, mask):
    """Full model forward in a single pallas_call (one launch, weights VMEM-resident)."""
    B, S = tokens.shape
    tok = tokens.reshape(B * S, 1).astype(jnp.int32)
    maskf = mask.astype(jnp.float32).reshape(B, 1, S)   # True(=pad) -> 1.0
    args = [params[name] for name in _ARG_ORDER]
    vmem = pl.BlockSpec(memory_space=pltpu.MemorySpace.VMEM)
    # TODO(synk): if batch grows, add a ("parallel",) batch grid axis so both v7x
    # TensorCores get work; at B=2 a single grid-less invocation is optimal.
    logits, probs = pl.pallas_call(
        fused_transformer_kernel,
        out_shape=(jax.ShapeDtypeStruct((B, NUM_CLASSES), jnp.float32),
                   jax.ShapeDtypeStruct((B, NUM_CLASSES), jnp.float32)),
        in_specs=[vmem] * (2 + len(args)),
        out_specs=(vmem, vmem),
        scratch_shapes=[pltpu.VMEM((B * S, EMB), jnp.float32)],  # ctx merge buffer
    )(tok, maskf, *args)
    return logits, probs


# ------------------------- parameters -------------------------
def xavier_uniform(key, shape):
    fan_in, fan_out = shape[0], shape[1]
    limit = math.sqrt(6.0 / (fan_in + fan_out))
    return jax.random.uniform(key, shape, jnp.float32, -limit, limit)


def init_params(key):
    ks = iter(jax.random.split(key, 64))

    emb = xavier_uniform(next(ks), (VOCAB, EMB))
    emb_pad = jnp.zeros((VOCAB_PAD, EMB), jnp.float32).at[:VOCAB].set(emb)
    pos = xavier_uniform(next(ks), (MAX_LEN, EMB))

    stk = {k: [] for k in ("wqkv", "bqkv", "wo", "bo", "ln1g", "ln1b",
                           "w1", "b1", "w2", "b2", "ln2g", "ln2b")}
    for _ in range(NUM_LAYERS):
        wq = xavier_uniform(next(ks), (EMB, EMB))
        wk = xavier_uniform(next(ks), (EMB, EMB))
        wv = xavier_uniform(next(ks), (EMB, EMB))
        # fused QKV weight (E, 3E): columns [Q | K | V], head-major within each.
        stk["wqkv"].append(jnp.concatenate([wq, wk, wv], axis=1))
        stk["bqkv"].append(jnp.zeros((1, 3 * EMB), jnp.float32))
        stk["wo"].append(xavier_uniform(next(ks), (EMB, EMB)))
        stk["bo"].append(jnp.zeros((1, EMB), jnp.float32))
        stk["ln1g"].append(jnp.ones((1, EMB), jnp.float32))
        stk["ln1b"].append(jnp.zeros((1, EMB), jnp.float32))
        stk["w1"].append(xavier_uniform(next(ks), (EMB, FF)))
        stk["b1"].append(jnp.zeros((1, FF), jnp.float32))
        stk["w2"].append(xavier_uniform(next(ks), (FF, EMB)))
        stk["b2"].append(jnp.zeros((1, EMB), jnp.float32))
        stk["ln2g"].append(jnp.ones((1, EMB), jnp.float32))
        stk["ln2b"].append(jnp.zeros((1, EMB), jnp.float32))

    params = {"emb": emb_pad, "pos": pos}
    params.update({k: jnp.stack(v) for k, v in stk.items()})
    params["wm1"] = xavier_uniform(next(ks), (EMB, EXTRA))
    params["bm1"] = jnp.zeros((1, EXTRA), jnp.float32)
    params["wm2"] = xavier_uniform(next(ks), (EXTRA, NUM_CLASSES))
    params["bm2"] = jnp.zeros((1, NUM_CLASSES), jnp.float32)
    return params


if __name__ == "__main__":
    key = jax.random.PRNGKey(0)
    pkey, tkey = jax.random.split(key)
    params = init_params(pkey)

    tokens = jax.random.randint(tkey, (BATCH, MAX_LEN), 0, VOCAB, dtype=jnp.int32)
    # src_key_padding_mask: True = padding; pad the tail of the second sequence.
    mask = jnp.zeros((BATCH, MAX_LEN), dtype=bool).at[1, MAX_LEN - 4:].set(True)

    fwd = jax.jit(transformer_forward)
    logits, probs = fwd(params, tokens, mask)
    jax.block_until_ready((logits, probs))

    assert logits.shape == (BATCH, NUM_CLASSES)
    assert probs.shape == (BATCH, NUM_CLASSES)
    assert bool(jnp.all(jnp.isfinite(logits)))
    assert bool(jnp.all(jnp.isfinite(probs)))
    assert bool(jnp.all(jnp.abs(jnp.sum(probs, axis=1) - 1.0) < 1e-4))
    print("KERNEL_OK")
</pallas_src>

<mosaic_0001>
module attributes {stable_mosaic.version = 11 : i64} {
  func.func @fused_transformer_kernel(%arg0: memref<32x1xi32, #tpu.memory_space<vmem>>, %arg1: memref<2x1x16xf32, #tpu.memory_space<vmem>>, %arg2: memref<128x64xf32, #tpu.memory_space<vmem>>, %arg3: memref<16x64xf32, #tpu.memory_space<vmem>>, %arg4: memref<2x64x192xf32, #tpu.memory_space<vmem>>, %arg5: memref<2x1x192xf32, #tpu.memory_space<vmem>>, %arg6: memref<2x64x64xf32, #tpu.memory_space<vmem>>, %arg7: memref<2x1x64xf32, #tpu.memory_space<vmem>>, %arg8: memref<2x1x64xf32, #tpu.memory_space<vmem>>, %arg9: memref<2x1x64xf32, #tpu.memory_space<vmem>>, %arg10: memref<2x64x128xf32, #tpu.memory_space<vmem>>, %arg11: memref<2x1x128xf32, #tpu.memory_space<vmem>>, %arg12: memref<2x128x64xf32, #tpu.memory_space<vmem>>, %arg13: memref<2x1x64xf32, #tpu.memory_space<vmem>>, %arg14: memref<2x1x64xf32, #tpu.memory_space<vmem>>, %arg15: memref<2x1x64xf32, #tpu.memory_space<vmem>>, %arg16: memref<64x256xf32, #tpu.memory_space<vmem>>, %arg17: memref<1x256xf32, #tpu.memory_space<vmem>>, %arg18: memref<256x8xf32, #tpu.memory_space<vmem>>, %arg19: memref<1x8xf32, #tpu.memory_space<vmem>>, %arg20: memref<2x8xf32, #tpu.memory_space<vmem>>, %arg21: memref<2x8xf32, #tpu.memory_space<vmem>>, %arg22: memref<32x64xf32, #tpu.memory_space<vmem>>) attributes {dimension_semantics = [], scalar_prefetch = 0 : i64, scratch_operands = 1 : i64, tpu.core_type = #tpu.core_type<tc>} {
    %c0 = arith.constant 0 : index
    %c0_0 = arith.constant 0 : index
    %0 = vector.load %arg0[%c0, %c0_0] : memref<32x1xi32, #tpu.memory_space<vmem>>, vector<32x1xi32>
    %1 = tpu.iota {dimensions = array<i32: 1>} : vector<32x128xi32>
    %2 = vector.broadcast %0 : vector<32x1xi32> to vector<32x128xi32>
    %3 = arith.cmpi eq, %1, %2 : vector<32x128xi32>
    %4 = arith.extui %3 : vector<32x128xi1> to vector<32x128xi32>
    %5 = arith.sitofp %4 : vector<32x128xi32> to vector<32x128xf32>
    %c0_1 = arith.constant 0 : index
    %c0_2 = arith.constant 0 : index
    %6 = vector.load %arg2[%c0_1, %c0_2] : memref<128x64xf32, #tpu.memory_space<vmem>>, vector<128x64xf32>
    %cst = arith.constant dense<0.000000e+00> : vector<32x64xf32>
    %7 = tpu.matmul %5, %6, %cst {dimension_numbers = #tpu.dot_dimension_numbers<[1], [0], [0], [1], [0, 0, 1, 1], [], []>} : vector<32x128xf32>, vector<128x64xf32>, vector<32x64xf32> -> vector<32x64xf32>
    %8 = vector.shape_cast %7 : vector<32x64xf32> to vector<2x16x64xf32>
    %c0_3 = arith.constant 0 : index
    %c0_4 = arith.constant 0 : index
    %9 = vector.load %arg3[%c0_3, %c0_4] : memref<16x64xf32, #tpu.memory_space<vmem>>, vector<16x64xf32>
    %10 = vector.shape_cast %9 : vector<16x64xf32> to vector<1x16x64xf32>
    %11 = vector.broadcast %10 : vector<1x16x64xf32> to vector<2x16x64xf32>
    %12 = arith.addf %8, %11 : vector<2x16x64xf32>
    %13 = vector.shape_cast %12 : vector<2x16x64xf32> to vector<32x64xf32>
    %c0_5 = arith.constant 0 : index
    %c0_6 = arith.constant 0 : index
    %c0_7 = arith.constant 0 : index
    %14 = vector.load %arg1[%c0_5, %c0_6, %c0_7] : memref<2x1x16xf32, #tpu.memory_space<vmem>>, vector<2x1x16xf32>
    %cst_8 = arith.constant -1.000000e+09 : f32
    %15 = vector.broadcast %cst_8 : f32 to vector<2x1x16xf32>
    %16 = arith.mulf %14, %15 : vector<2x1x16xf32>
    %c0_9 = arith.constant 0 : index
    %c0_10 = arith.constant 0 : index
    %c0_11 = arith.constant 0 : index
    %17 = vector.load %arg4[%c0_9, %c0_10, %c0_11] : memref<2x64x192xf32, #tpu.memory_space<vmem>>, vector<1x64x192xf32>
    %18 = vector.shape_cast %17 : vector<1x64x192xf32> to vector<64x192xf32>
    %cst_12 = arith.constant dense<0.000000e+00> : vector<32x192xf32>
    %19 = tpu.matmul %13, %18, %cst_12 {dimension_numbers = #tpu.dot_dimension_numbers<[1], [0], [0], [1], [0, 0, 1, 1], [], []>} : vector<32x64xf32>, vector<64x192xf32>, vector<32x192xf32> -> vector<32x192xf32>
    %c0_13 = arith.constant 0 : index
    %c0_14 = arith.constant 0 : index
    %c0_15 = arith.constant 0 : index
    %20 = vector.load %arg5[%c0_13, %c0_14, %c0_15] : memref<2x1x192xf32, #tpu.memory_space<vmem>>, vector<1x1x192xf32>
    %21 = vector.shape_cast %20 : vector<1x1x192xf32> to vector<1x192xf32>
    %22 = vector.broadcast %21 : vector<1x192xf32> to vector<32x192xf32>
    %23 = arith.addf %19, %22 : vector<32x192xf32>
    %24 = vector.extract_strided_slice %23 {offsets = [0, 0], sizes = [32, 8], strides = [1, 1]} : vector<32x192xf32> to vector<32x8xf32>
    %25 = vector.shape_cast %24 : vector<32x8xf32> to vector<2x16x8xf32>
    %26 = vector.extract_strided_slice %23 {offsets = [0, 64], sizes = [32, 8], strides = [1, 1]} : vector<32x192xf32> to vector<32x8xf32>
    %27 = vector.shape_cast %26 : vector<32x8xf32> to vector<2x16x8xf32>
    %28 = vector.extract_strided_slice %23 {offsets = [0, 128], sizes = [32, 8], strides = [1, 1]} : vector<32x192xf32> to vector<32x8xf32>
    %29 = vector.shape_cast %28 : vector<32x8xf32> to vector<2x16x8xf32>
    "tpu.trace_start"() <{level = 10 : i32, message = "bqd,bkd->bqk"}> : () -> ()
    %cst_16 = arith.constant dense<0.000000e+00> : vector<2x16x16xf32>
    %30 = tpu.matmul %25, %27, %cst_16 {dimension_numbers = #tpu.dot_dimension_numbers<[2], [2], [1], [1], [0, 0, 0, 1, 1, 1], [0], [0]>} : vector<2x16x8xf32>, vector<2x16x8xf32>, vector<2x16x16xf32> -> vector<2x16x16xf32>
    "tpu.trace_stop"() : () -> ()
    %cst_17 = arith.constant 0.353553385 : f32
    %31 = vector.broadcast %cst_17 : f32 to vector<2x16x16xf32>
    %32 = arith.mulf %30, %31 : vector<2x16x16xf32>
    %33 = vector.broadcast %16 : vector<2x1x16xf32> to vector<2x16x16xf32>
    %34 = arith.addf %32, %33 : vector<2x16x16xf32>
    %cst_18 = arith.constant dense<0xFF800000> : vector<2x16xf32>
    %35 = vector.multi_reduction <maximumf>, %34, %cst_18 [2] : vector<2x16x16xf32> to vector<2x16xf32>
    %36 = vector.shape_cast %35 : vector<2x16xf32> to vector<2x16x1xf32>
    %37 = vector.broadcast %36 : vector<2x16x1xf32> to vector<2x16x16xf32>
    %38 = arith.subf %34, %37 : vector<2x16x16xf32>
    %39 = math.exp %38 : vector<2x16x16xf32>
    %cst_19 = arith.constant dense<0.000000e+00> : vector<2x16xf32>
    %40 = vector.multi_reduction <add>, %39, %cst_19 [2] : vector<2x16x16xf32> to vector<2x16xf32>
    %41 = vector.shape_cast %40 : vector<2x16xf32> to vector<2x16x1xf32>
    %42 = vector.broadcast %41 : vector<2x16x1xf32> to vector<2x16x16xf32>
    %43 = arith.divf %39, %42 : vector<2x16x16xf32>
    "tpu.trace_start"() <{level = 10 : i32, message = "bqk,bkd->bqd"}> : () -> ()
    %cst_20 = arith.constant dense<0.000000e+00> : vector<2x16x8xf32>
    %44 = tpu.matmul %43, %29, %cst_20 {dimension_numbers = #tpu.dot_dimension_numbers<[2], [1], [1], [2], [0, 0, 0, 1, 1, 2], [0], [0]>} : vector<2x16x16xf32>, vector<2x16x8xf32>, vector<2x16x8xf32> -> vector<2x16x8xf32>
    "tpu.trace_stop"() : () -> ()
    %45 = vector.shape_cast %44 : vector<2x16x8xf32> to vector<32x8xf32>
    %c0_21 = arith.constant 0 : index
    %c0_22 = arith.constant 0 : index
    %46 = vector.load %arg22[%c0_21, %c0_22] : memref<32x64xf32, #tpu.memory_space<vmem>>, vector<32x8xf32>
    tpu.vector_store %arg22[%c0_21, %c0_22], %45 {strides = array<i32>} : memref<32x64xf32, #tpu.memory_space<vmem>>, vector<32x8xf32>,
    %47 = vector.extract_strided_slice %23 {offsets = [0, 8], sizes = [32, 8], strides = [1, 1]} : vector<32x192xf32> to vector<32x8xf32>
    %48 = vector.shape_cast %47 : vector<32x8xf32> to vector<2x16x8xf32>
    %49 = vector.extract_strided_slice %23 {offsets = [0, 72], sizes = [32, 8], strides = [1, 1]} : vector<32x192xf32> to vector<32x8xf32>
    %50 = vector.shape_cast %49 : vector<32x8xf32> to vector<2x16x8xf32>
    %51 = vector.extract_strided_slice %23 {offsets = [0, 136], sizes = [32, 8], strides = [1, 1]} : vector<32x192xf32> to vector<32x8xf32>
    %52 = vector.shape_cast %51 : vector<32x8xf32> to vector<2x16x8xf32>
    "tpu.trace_start"() <{level = 10 : i32, message = "bqd,bkd->bqk"}> : () -> ()
    %cst_23 = arith.constant dense<0.000000e+00> : vector<2x16x16xf32>
    %53 = tpu.matmul %48, %50, %cst_23 {dimension_numbers = #tpu.dot_dimension_numbers<[2], [2], [1], [1], [0, 0, 0, 1, 1, 1], [0], [0]>} : vector<2x16x8xf32>, vector<2x16x8xf32>, vector<2x16x16xf32> -> vector<2x16x16xf32>
    "tpu.trace_stop"() : () -> ()
    %cst_24 = arith.constant 0.353553385 : f32
    %54 = vector.broadcast %cst_24 : f32 to vector<2x16x16xf32>
    %55 = arith.mulf %53, %54 : vector<2x16x16xf32>
    %56 = vector.broadcast %16 : vector<2x1x16xf32> to vector<2x16x16xf32>
    %57 = arith.addf %55, %56 : vector<2x16x16xf32>
    %cst_25 = arith.constant dense<0xFF800000> : vector<2x16xf32>
    %58 = vector.multi_reduction <maximumf>, %57, %cst_25 [2] : vector<2x16x16xf32> to vector<2x16xf32>
    %59 = vector.shape_cast %58 : vector<2x16xf32> to vector<2x16x1xf32>
    %60 = vector.broadcast %59 : vector<2x16x1xf32> to vector<2x16x16xf32>
    %61 = arith.subf %57, %60 : vector<2x16x16xf32>
    %62 = math.exp %61 : vector<2x16x16xf32>
    %cst_26 = arith.constant dense<0.000000e+00> : vector<2x16xf32>
    %63 = vector.multi_reduction <add>, %62, %cst_26 [2] : vector<2x16x16xf32> to vector<2x16xf32>
    %64 = vector.shape_cast %63 : vector<2x16xf32> to vector<2x16x1xf32>
    %65 = vector.broadcast %64 : vector<2x16x1xf32> to vector<2x16x16xf32>
    %66 = arith.divf %62, %65 : vector<2x16x16xf32>
    "tpu.trace_start"() <{level = 10 : i32, message = "bqk,bkd->bqd"}> : () -> ()
    %cst_27 = arith.constant dense<0.000000e+00> : vector<2x16x8xf32>
    %67 = tpu.matmul %66, %52, %cst_27 {dimension_numbers = #tpu.dot_dimension_numbers<[2], [1], [1], [2], [0, 0, 0, 1, 1, 2], [0], [0]>} : vector<2x16x16xf32>, vector<2x16x8xf32>, vector<2x16x8xf32> -> vector<2x16x8xf32>
    "tpu.trace_stop"() : () -> ()
    %68 = vector.shape_cast %67 : vector<2x16x8xf32> to vector<32x8xf32>
    %c0_28 = arith.constant 0 : index
    %c8 = arith.constant 8 : index
    %69 = vector.load %arg22[%c0_28, %c8] : memref<32x64xf32, #tpu.memory_space<vmem>>, vector<32x8xf32>
    tpu.vector_store %arg22[%c0_28, %c8], %68 {strides = array<i32>} : memref<32x64xf32, #tpu.memory_space<vmem>>, vector<32x8xf32>,
    %70 = vector.extract_strided_slice %23 {offsets = [0, 16], sizes = [32, 8], strides = [1, 1]} : vector<32x192xf32> to vector<32x8xf32>
    %71 = vector.shape_cast %70 : vector<32x8xf32> to vector<2x16x8xf32>
    %72 = vector.extract_strided_slice %23 {offsets = [0, 80], sizes = [32, 8], strides = [1, 1]} : vector<32x192xf32> to vector<32x8xf32>
    %73 = vector.shape_cast %72 : vector<32x8xf32> to vector<2x16x8xf32>
    %74 = vector.extract_strided_slice %23 {offsets = [0, 144], sizes = [32, 8], strides = [1, 1]} : vector<32x192xf32> to vector<32x8xf32>
    %75 = vector.shape_cast %74 : vector<32x8xf32> to vector<2x16x8xf32>
    "tpu.trace_start"() <{level = 10 : i32, message = "bqd,bkd->bqk"}> : () -> ()
    %cst_29 = arith.constant dense<0.000000e+00> : vector<2x16x16xf32>
    %76 = tpu.matmul %71, %73, %cst_29 {dimension_numbers = #tpu.dot_dimension_numbers<[2], [2], [1], [1], [0, 0, 0, 1, 1, 1], [0], [0]>} : vector<2x16x8xf32>, vector<2x16x8xf32>, vector<2x16x16xf32> -> vector<2x16x16xf32>
    "tpu.trace_stop"() : () -> ()
    %cst_30 = arith.constant 0.353553385 : f32
    %77 = vector.broadcast %cst_30 : f32 to vector<2x16x16xf32>
    %78 = arith.mulf %76, %77 : vector<2x16x16xf32>
    %79 = vector.broadcast %16 : vector<2x1x16xf32> to vector<2x16x16xf32>
    %80 = arith.addf %78, %79 : vector<2x16x16xf32>
    %cst_31 = arith.constant dense<0xFF800000> : vector<2x16xf32>
    %81 = vector.multi_reduction <maximumf>, %80, %cst_31 [2] : vector<2x16x16xf32> to vector<2x16xf32>
    %82 = vector.shape_cast %81 : vector<2x16xf32> to vector<2x16x1xf32>
    %83 = vector.broadcast %82 : vector<2x16x1xf32> to vector<2x16x16xf32>
    %84 = arith.subf %80, %83 : vector<2x16x16xf32>
    %85 = math.exp %84 : vector<2x16x16xf32>
    %cst_32 = arith.constant dense<0.000000e+00> : vector<2x16xf32>
    %86 = vector.multi_reduction <add>, %85, %cst_32 [2] : vector<2x16x16xf32> to vector<2x16xf32>
    %87 = vector.shape_cast %86 : vector<2x16xf32> to vector<2x16x1xf32>
    %88 = vector.broadcast %87 : vector<2x16x1xf32> to vector<2x16x16xf32>
    %89 = arith.divf %85, %88 : vector<2x16x16xf32>
    "tpu.trace_start"() <{level = 10 : i32, message = "bqk,bkd->bqd"}> : () -> ()
    %cst_33 = arith.constant dense<0.000000e+00> : vector<2x16x8xf32>
    %90 = tpu.matmul %89, %75, %cst_33 {dimension_numbers = #tpu.dot_dimension_numbers<[2], [1], [1], [2], [0, 0, 0, 1, 1, 2], [0], [0]>} : vector<2x16x16xf32>, vector<2x16x8xf32>, vector<2x16x8xf32> -> vector<2x16x8xf32>
    "tpu.trace_stop"() : () -> ()
    %91 = vector.shape_cast %90 : vector<2x16x8xf32> to vector<32x8xf32>
    %c0_34 = arith.constant 0 : index
    %c16 = arith.constant 16 : index
    %92 = vector.load %arg22[%c0_34, %c16] : memref<32x64xf32, #tpu.memory_space<vmem>>, vector<32x8xf32>
    tpu.vector_store %arg22[%c0_34, %c16], %91 {strides = array<i32>} : memref<32x64xf32, #tpu.memory_space<vmem>>, vector<32x8xf32>,
    %93 = vector.extract_strided_slice %23 {offsets = [0, 24], sizes = [32, 8], strides = [1, 1]} : vector<32x192xf32> to vector<32x8xf32>
    %94 = vector.shape_cast %93 : vector<32x8xf32> to vector<2x16x8xf32>
    %95 = vector.extract_strided_slice %23 {offsets = [0, 88], sizes = [32, 8], strides = [1, 1]} : vector<32x192xf32> to vector<32x8xf32>
    %96 = vector.shape_cast %95 : vector<32x8xf32> to vector<2x16x8xf32>
    %97 = vector.extract_strided_slice %23 {offsets = [0, 152], sizes = [32, 8], strides = [1, 1]} : vector<32x192xf32> to vector<32x8xf32>
    %98 = vector.shape_cast %97 : vector<32x8xf32> to vector<2x16x8xf32>
    "tpu.trace_start"() <{level = 10 : i32, message = "bqd,bkd->bqk"}> : () -> ()
    %cst_35 = arith.constant dense<0.000000e+00> : vector<2x16x16xf32>
    %99 = tpu.matmul %94, %96, %cst_35 {dimension_numbers = #tpu.dot_dimension_numbers<[2], [2], [1], [1], [0, 0, 0, 1, 1, 1], [0], [0]>} : vector<2x16x8xf32>, vector<2x16x8xf32>, vector<2x16x16xf32> -> vector<2x16x16xf32>
    "tpu.trace_stop"() : () -> ()
    %cst_36 = arith.constant 0.353553385 : f32
    %100 = vector.broadcast %cst_36 : f32 to vector<2x16x16xf32>
    %101 = arith.mulf %99, %100 : vector<2x16x16xf32>
    %102 = vector.broadcast %16 : vector<2x1x16xf32> to vector<2x16x16xf32>
    %103 = arith.addf %101, %102 : vector<2x16x16xf32>
    %cst_37 = arith.constant dense<0xFF800000> : vector<2x16xf32>
    %104 = vector.multi_reduction <maximumf>, %103, %cst_37 [2] : vector<2x16x16xf32> to vector<2x16xf32>
    %105 = vector.shape_cast %104 : vector<2x16xf32> to vector<2x16x1xf32>
    %106 = vector.broadcast %105 : vector<2x16x1xf32> to vector<2x16x16xf32>
    %107 = arith.subf %103, %106 : vector<2x16x16xf32>
    %108 = math.exp %107 : vector<2x16x16xf32>
    %cst_38 = arith.constant dense<0.000000e+00> : vector<2x16xf32>
    %109 = vector.multi_reduction <add>, %108, %cst_38 [2] : vector<2x16x16xf32> to vector<2x16xf32>
    %110 = vector.shape_cast %109 : vector<2x16xf32> to vector<2x16x1xf32>
    %111 = vector.broadcast %110 : vector<2x16x1xf32> to vector<2x16x16xf32>
    %112 = arith.divf %108, %111 : vector<2x16x16xf32>
    "tpu.trace_start"() <{level = 10 : i32, message = "bqk,bkd->bqd"}> : () -> ()
    %cst_39 = arith.constant dense<0.000000e+00> : vector<2x16x8xf32>
    %113 = tpu.matmul %112, %98, %cst_39 {dimension_numbers = #tpu.dot_dimension_numbers<[2], [1], [1], [2], [0, 0, 0, 1, 1, 2], [0], [0]>} : vector<2x16x16xf32>, vector<2x16x8xf32>, vector<2x16x8xf32> -> vector<2x16x8xf32>
    "tpu.trace_stop"() : () -> ()
    %114 = vector.shape_cast %113 : vector<2x16x8xf32> to vector<32x8xf32>
    %c0_40 = arith.constant 0 : index
    %c24 = arith.constant 24 : index
    %115 = vector.load %arg22[%c0_40, %c24] : memref<32x64xf32, #tpu.memory_space<vmem>>, vector<32x8xf32>
    tpu.vector_store %arg22[%c0_40, %c24], %114 {strides = array<i32>} : memref<32x64xf32, #tpu.memory_space<vmem>>, vector<32x8xf32>,
    %116 = vector.extract_strided_slice %23 {offsets = [0, 32], sizes = [32, 8], strides = [1, 1]} : vector<32x192xf32> to vector<32x8xf32>
    %117 = vector.shape_cast %116 : vector<32x8xf32> to vector<2x16x8xf32>
    %118 = vector.extract_strided_slice %23 {offsets = [0, 96], sizes = [32, 8], strides = [1, 1]} : vector<32x192xf32> to vector<32x8xf32>
    %119 = vector.shape_cast %118 : vector<32x8xf32> to vector<2x16x8xf32>
    %120 = vector.extract_strided_slice %23 {offsets = [0, 160], sizes = [32, 8], strides = [1, 1]} : vector<32x192xf32> to vector<32x8xf32>
    %121 = vector.shape_cast %120 : vector<32x8xf32> to vector<2x16x8xf32>
    "tpu.trace_start"() <{level = 10 : i32, message = "bqd,bkd->bqk"}> : () -> ()
    %cst_41 = arith.constant dense<0.000000e+00> : vector<2x16x16xf32>
    %122 = tpu.matmul %117, %119, %cst_41 {dimension_numbers = #tpu.dot_dimension_numbers<[2], [2], [1], [1], [0, 0, 0, 1, 1, 1], [0], [0]>} : vector<2x16x8xf32>, vector<2x16x8xf32>, vector<2x16x16xf32> -> vector<2x16x16xf32>
    "tpu.trace_stop"() : () -> ()
    %cst_42 = arith.constant 0.353553385 : f32
    %123 = vector.broadcast %cst_42 : f32 to vector<2x16x16xf32>
    %124 = arith.mulf %122, %123 : vector<2x16x16xf32>
    %125 = vector.broadcast %16 : vector<2x1x16xf32> to vector<2x16x16xf32>
    %126 = arith.addf %124, %125 : vector<2x16x16xf32>
    %cst_43 = arith.constant dense<0xFF800000> : vector<2x16xf32>
    %127 = vector.multi_reduction <maximumf>, %126, %cst_43 [2] : vector<2x16x16xf32> to vector<2x16xf32>
    %128 = vector.shape_cast %127 : vector<2x16xf32> to vector<2x16x1xf32>
    %129 = vector.broadcast %128 : vector<2x16x1xf32> to vector<2x16x16xf32>
    %130 = arith.subf %126, %129 : vector<2x16x16xf32>
    %131 = math.exp %130 : vector<2x16x16xf32>
    %cst_44 = arith.constant dense<0.000000e+00> : vector<2x16xf32>
    %132 = vector.multi_reduction <add>, %131, %cst_44 [2] : vector<2x16x16xf32> to vector<2x16xf32>
    %133 = vector.shape_cast %132 : vector<2x16xf32> to vector<2x16x1xf32>
    %134 = vector.broadcast %133 : vector<2x16x1xf32> to vector<2x16x16xf32>
    %135 = arith.divf %131, %134 : vector<2x16x16xf32>
    "tpu.trace_start"() <{level = 10 : i32, message = "bqk,bkd->bqd"}> : () -> ()
    %cst_45 = arith.constant dense<0.000000e+00> : vector<2x16x8xf32>
    %136 = tpu.matmul %135, %121, %cst_45 {dimension_numbers = #tpu.dot_dimension_numbers<[2], [1], [1], [2], [0, 0, 0, 1, 1, 2], [0], [0]>} : vector<2x16x16xf32>, vector<2x16x8xf32>, vector<2x16x8xf32> -> vector<2x16x8xf32>
    "tpu.trace_stop"() : () -> ()
    %137 = vector.shape_cast %136 : vector<2x16x8xf32> to vector<32x8xf32>
    %c0_46 = arith.constant 0 : index
    %c32 = arith.constant 32 : index
    %138 = vector.load %arg22[%c0_46, %c32] : memref<32x64xf32, #tpu.memory_space<vmem>>, vector<32x8xf32>
    tpu.vector_store %arg22[%c0_46, %c32], %137 {strides = array<i32>} : memref<32x64xf32, #tpu.memory_space<vmem>>, vector<32x8xf32>,
    %139 = vector.extract_strided_slice %23 {offsets = [0, 40], sizes = [32, 8], strides = [1, 1]} : vector<32x192xf32> to vector<32x8xf32>
    %140 = vector.shape_cast %139 : vector<32x8xf32> to vector<2x16x8xf32>
    %141 = vector.extract_strided_slice %23 {offsets = [0, 104], sizes = [32, 8], strides = [1, 1]} : vector<32x192xf32> to vector<32x8xf32>
    %142 = vector.shape_cast %141 : vector<32x8xf32> to vector<2x16x8xf32>
    %143 = vector.extract_strided_slice %23 {offsets = [0, 168], sizes = [32, 8], strides = [1, 1]} : vector<32x192xf32> to vector<32x8xf32>
    %144 = vector.shape_cast %143 : vector<32x8xf32> to vector<2x16x8xf32>
    "tpu.trace_start"() <{level = 10 : i32, message = "bqd,bkd->bqk"}> : () -> ()
    %cst_47 = arith.constant dense<0.000000e+00> : vector<2x16x16xf32>
    %145 = tpu.matmul %140, %142, %cst_47 {dimension_numbers = #tpu.dot_dimension_numbers<[2], [2], [1], [1], [0, 0, 0, 1, 1, 1], [0], [0]>} : vector<2x16x8xf32>, vector<2x16x8xf32>, vector<2x16x16xf32> -> vector<2x16x16xf32>
    "tpu.trace_stop"() : () -> ()
    %cst_48 = arith.constant 0.353553385 : f32
    %146 = vector.broadcast %cst_48 : f32 to vector<2x16x16xf32>
    %147 = arith.mulf %145, %146 : vector<2x16x16xf32>
    %148 = vector.broadcast %16 : vector<2x1x16xf32> to vector<2x16x16xf32>
    %149 = arith.addf %147, %148 : vector<2x16x16xf32>
    %cst_49 = arith.constant dense<0xFF800000> : vector<2x16xf32>
    %150 = vector.multi_reduction <maximumf>, %149, %cst_49 [2] : vector<2x16x16xf32> to vector<2x16xf32>
    %151 = vector.shape_cast %150 : vector<2x16xf32> to vector<2x16x1xf32>
    %152 = vector.broadcast %151 : vector<2x16x1xf32> to vector<2x16x16xf32>
    %153 = arith.subf %149, %152 : vector<2x16x16xf32>
    %154 = math.exp %153 : vector<2x16x16xf32>
    %cst_50 = arith.constant dense<0.000000e+00> : vector<2x16xf32>
    %155 = vector.multi_reduction <add>, %154, %cst_50 [2] : vector<2x16x16xf32> to vector<2x16xf32>
    %156 = vector.shape_cast %155 : vector<2x16xf32> to vector<2x16x1xf32>
    %157 = vector.broadcast %156 : vector<2x16x1xf32> to vector<2x16x16xf32>
    %158 = arith.divf %154, %157 : vector<2x16x16xf32>
    "tpu.trace_start"() <{level = 10 : i32, message = "bqk,bkd->bqd"}> : () -> ()
    %cst_51 = arith.constant dense<0.000000e+00> : vector<2x16x8xf32>
    %159 = tpu.matmul %158, %144, %cst_51 {dimension_numbers = #tpu.dot_dimension_numbers<[2], [1], [1], [2], [0, 0, 0, 1, 1, 2], [0], [0]>} : vector<2x16x16xf32>, vector<2x16x8xf32>, vector<2x16x8xf32> -> vector<2x16x8xf32>
    "tpu.trace_stop"() : () -> ()
    %160 = vector.shape_cast %159 : vector<2x16x8xf32> to vector<32x8xf32>
    %c0_52 = arith.constant 0 : index
    %c40 = arith.constant 40 : index
    %161 = vector.load %arg22[%c0_52, %c40] : memref<32x64xf32, #tpu.memory_space<vmem>>, vector<32x8xf32>
    tpu.vector_store %arg22[%c0_52, %c40], %160 {strides = array<i32>} : memref<32x64xf32, #tpu.memory_space<vmem>>, vector<32x8xf32>,
    %162 = vector.extract_strided_slice %23 {offsets = [0, 48], sizes = [32, 8], strides = [1, 1]} : vector<32x192xf32> to vector<32x8xf32>
    %163 = vector.shape_cast %162 : vector<32x8xf32> to vector<2x16x8xf32>
    %164 = vector.extract_strided_slice %23 {offsets = [0, 112], sizes = [32, 8], strides = [1, 1]} : vector<32x192xf32> to vector<32x8xf32>
    %165 = vector.shape_cast %164 : vector<32x8xf32> to vector<2x16x8xf32>
    %166 = vector.extract_strided_slice %23 {offsets = [0, 176], sizes = [32, 8], strides = [1, 1]} : vector<32x192xf32> to vector<32x8xf32>
    %167 = vector.shape_cast %166 : vector<32x8xf32> to vector<2x16x8xf32>
    "tpu.trace_start"() <{level = 10 : i32, message = "bqd,bkd->bqk"}> : () -> ()
    %cst_53 = arith.constant dense<0.000000e+00> : vector<2x16x16xf32>
    %168 = tpu.matmul %163, %165, %cst_53 {dimension_numbers = #tpu.dot_dimension_numbers<[2], [2], [1], [1], [0, 0, 0, 1, 1, 1], [0], [0]>} : vector<2x16x8xf32>, vector<2x16x8xf32>, vector<2x16x16xf32> -> vector<2x16x16xf32>
    "tpu.trace_stop"() : () -> ()
    %cst_54 = arith.constant 0.353553385 : f32
    %169 = vector.broadcast %cst_54 : f32 to vector<2x16x16xf32>
    %170 = arith.mulf %168, %169 : vector<2x16x16xf32>
    %171 = vector.broadcast %16 : vector<2x1x16xf32> to vector<2x16x16xf32>
    %172 = arith.addf %170, %171 : vector<2x16x16xf32>
    %cst_55 = arith.constant dense<0xFF800000> : vector<2x16xf32>
    %173 = vector.multi_reduction <maximumf>, %172, %cst_55 [2] : vector<2x16x16xf32> to vector<2x16xf32>
    %174 = vector.shape_cast %173 : vector<2x16xf32> to vector<2x16x1xf32>
    %175 = vector.broadcast %174 : vector<2x16x1xf32> to vector<2x16x16xf32>
    %176 = arith.subf %172, %175 : vector<2x16x16xf32>
    %177 = math.exp %176 : vector<2x16x16xf32>
    %cst_56 = arith.constant dense<0.000000e+00> : vector<2x16xf32>
    %178 = vector.multi_reduction <add>, %177, %cst_56 [2] : vector<2x16x16xf32> to vector<2x16xf32>
    %179 = vector.shape_cast %178 : vector<2x16xf32> to vector<2x16x1xf32>
    %180 = vector.broadcast %179 : vector<2x16x1xf32> to vector<2x16x16xf32>
    %181 = arith.divf %177, %180 : vector<2x16x16xf32>
    "tpu.trace_start"() <{level = 10 : i32, message = "bqk,bkd->bqd"}> : () -> ()
    %cst_57 = arith.constant dense<0.000000e+00> : vector<2x16x8xf32>
    %182 = tpu.matmul %181, %167, %cst_57 {dimension_numbers = #tpu.dot_dimension_numbers<[2], [1], [1], [2], [0, 0, 0, 1, 1, 2], [0], [0]>} : vector<2x16x16xf32>, vector<2x16x8xf32>, vector<2x16x8xf32> -> vector<2x16x8xf32>
    "tpu.trace_stop"() : () -> ()
    %183 = vector.shape_cast %182 : vector<2x16x8xf32> to vector<32x8xf32>
    %c0_58 = arith.constant 0 : index
    %c48 = arith.constant 48 : index
    %184 = vector.load %arg22[%c0_58, %c48] : memref<32x64xf32, #tpu.memory_space<vmem>>, vector<32x8xf32>
    tpu.vector_store %arg22[%c0_58, %c48], %183 {strides = array<i32>} : memref<32x64xf32, #tpu.memory_space<vmem>>, vector<32x8xf32>,
    %185 = vector.extract_strided_slice %23 {offsets = [0, 56], sizes = [32, 8], strides = [1, 1]} : vector<32x192xf32> to vector<32x8xf32>
    %186 = vector.shape_cast %185 : vector<32x8xf32> to vector<2x16x8xf32>
    %187 = vector.extract_strided_slice %23 {offsets = [0, 120], sizes = [32, 8], strides = [1, 1]} : vector<32x192xf32> to vector<32x8xf32>
    %188 = vector.shape_cast %187 : vector<32x8xf32> to vector<2x16x8xf32>
    %189 = vector.extract_strided_slice %23 {offsets = [0, 184], sizes = [32, 8], strides = [1, 1]} : vector<32x192xf32> to vector<32x8xf32>
    %190 = vector.shape_cast %189 : vector<32x8xf32> to vector<2x16x8xf32>
    "tpu.trace_start"() <{level = 10 : i32, message = "bqd,bkd->bqk"}> : () -> ()
    %cst_59 = arith.constant dense<0.000000e+00> : vector<2x16x16xf32>
    %191 = tpu.matmul %186, %188, %cst_59 {dimension_numbers = #tpu.dot_dimension_numbers<[2], [2], [1], [1], [0, 0, 0, 1, 1, 1], [0], [0]>} : vector<2x16x8xf32>, vector<2x16x8xf32>, vector<2x16x16xf32> -> vector<2x16x16xf32>
    "tpu.trace_stop"() : () -> ()
    %cst_60 = arith.constant 0.353553385 : f32
    %192 = vector.broadcast %cst_60 : f32 to vector<2x16x16xf32>
    %193 = arith.mulf %191, %192 : vector<2x16x16xf32>
    %194 = vector.broadcast %16 : vector<2x1x16xf32> to vector<2x16x16xf32>
    %195 = arith.addf %193, %194 : vector<2x16x16xf32>
    %cst_61 = arith.constant dense<0xFF800000> : vector<2x16xf32>
    %196 = vector.multi_reduction <maximumf>, %195, %cst_61 [2] : vector<2x16x16xf32> to vector<2x16xf32>
    %197 = vector.shape_cast %196 : vector<2x16xf32> to vector<2x16x1xf32>
    %198 = vector.broadcast %197 : vector<2x16x1xf32> to vector<2x16x16xf32>
    %199 = arith.subf %195, %198 : vector<2x16x16xf32>
    %200 = math.exp %199 : vector<2x16x16xf32>
    %cst_62 = arith.constant dense<0.000000e+00> : vector<2x16xf32>
    %201 = vector.multi_reduction <add>, %200, %cst_62 [2] : vector<2x16x16xf32> to vector<2x16xf32>
    %202 = vector.shape_cast %201 : vector<2x16xf32> to vector<2x16x1xf32>
    %203 = vector.broadcast %202 : vector<2x16x1xf32> to vector<2x16x16xf32>
    %204 = arith.divf %200, %203 : vector<2x16x16xf32>
    "tpu.trace_start"() <{level = 10 : i32, message = "bqk,bkd->bqd"}> : () -> ()
    %cst_63 = arith.constant dense<0.000000e+00> : vector<2x16x8xf32>
    %205 = tpu.matmul %204, %190, %cst_63 {dimension_numbers = #tpu.dot_dimension_numbers<[2], [1], [1], [2], [0, 0, 0, 1, 1, 2], [0], [0]>} : vector<2x16x16xf32>, vector<2x16x8xf32>, vector<2x16x8xf32> -> vector<2x16x8xf32>
    "tpu.trace_stop"() : () -> ()
    %206 = vector.shape_cast %205 : vector<2x16x8xf32> to vector<32x8xf32>
    %c0_64 = arith.constant 0 : index
    %c56 = arith.constant 56 : index
    %207 = vector.load %arg22[%c0_64, %c56] : memref<32x64xf32, #tpu.memory_space<vmem>>, vector<32x8xf32>
    tpu.vector_store %arg22[%c0_64, %c56], %206 {strides = array<i32>} : memref<32x64xf32, #tpu.memory_space<vmem>>, vector<32x8xf32>,
    %c0_65 = arith.constant 0 : index
    %c0_66 = arith.constant 0 : index
    %208 = vector.load %arg22[%c0_65, %c0_66] : memref<32x64xf32, #tpu.memory_space<vmem>>, vector<32x64xf32>
    %c0_67 = arith.constant 0 : index
    %c0_68 = arith.constant 0 : index
    %c0_69 = arith.constant 0 : index
    %209 = vector.load %arg6[%c0_67, %c0_68, %c0_69] : memref<2x64x64xf32, #tpu.memory_space<vmem>>, vector<1x64x64xf32>
    %210 = vector.shape_cast %209 : vector<1x64x64xf32> to vector<64x64xf32>
    %cst_70 = arith.constant dense<0.000000e+00> : vector<32x64xf32>
    %211 = tpu.matmul %208, %210, %cst_70 {dimension_numbers = #tpu.dot_dimension_numbers<[1], [0], [0], [1], [0, 0, 1, 1], [], []>} : vector<32x64xf32>, vector<64x64xf32>, vector<32x64xf32> -> vector<32x64xf32>
    %c0_71 = arith.constant 0 : index
    %c0_72 = arith.constant 0 : index
    %c0_73 = arith.constant 0 : index
    %212 = vector.load %arg7[%c0_71, %c0_72, %c0_73] : memref<2x1x64xf32, #tpu.memory_space<vmem>>, vector<1x1x64xf32>
    %213 = vector.shape_cast %212 : vector<1x1x64xf32> to vector<1x64xf32>
    %214 = vector.broadcast %213 : vector<1x64xf32> to vector<32x64xf32>
    %215 = arith.addf %211, %214 : vector<32x64xf32>
    %216 = arith.addf %13, %215 : vector<32x64xf32>
    %c0_74 = arith.constant 0 : index
    %c0_75 = arith.constant 0 : index
    %c0_76 = arith.constant 0 : index
    %217 = vector.load %arg8[%c0_74, %c0_75, %c0_76] : memref<2x1x64xf32, #tpu.memory_space<vmem>>, vector<1x1x64xf32>
    %218 = vector.shape_cast %217 : vector<1x1x64xf32> to vector<1x64xf32>
    %c0_77 = arith.constant 0 : index
    %c0_78 = arith.constant 0 : index
    %c0_79 = arith.constant 0 : index
    %219 = vector.load %arg9[%c0_77, %c0_78, %c0_79] : memref<2x1x64xf32, #tpu.memory_space<vmem>>, vector<1x1x64xf32>
    %220 = vector.shape_cast %219 : vector<1x1x64xf32> to vector<1x64xf32>
    %cst_80 = arith.constant dense<0.000000e+00> : vector<32xf32>
    %221 = vector.multi_reduction <add>, %216, %cst_80 [1] : vector<32x64xf32> to vector<32xf32>
    %222 = vector.shape_cast %221 : vector<32xf32> to vector<32x1xf32>
    %cst_81 = arith.constant 6.400000e+01 : f32
    %223 = vector.broadcast %cst_81 : f32 to vector<32x1xf32>
    %224 = arith.divf %222, %223 : vector<32x1xf32>
    %225 = vector.broadcast %224 : vector<32x1xf32> to vector<32x64xf32>
    %226 = arith.subf %216, %225 : vector<32x64xf32>
    %227 = arith.mulf %226, %226 : vector<32x64xf32>
    %cst_82 = arith.constant dense<0.000000e+00> : vector<32xf32>
    %228 = vector.multi_reduction <add>, %227, %cst_82 [1] : vector<32x64xf32> to vector<32xf32>
    %229 = vector.shape_cast %228 : vector<32xf32> to vector<32x1xf32>
    %cst_83 = arith.constant 6.400000e+01 : f32
    %230 = vector.broadcast %cst_83 : f32 to vector<32x1xf32>
    %231 = arith.divf %229, %230 : vector<32x1xf32>
    %232 = vector.broadcast %224 : vector<32x1xf32> to vector<32x64xf32>
    %233 = arith.subf %216, %232 : vector<32x64xf32>
    %cst_84 = arith.constant 9.99999974E-6 : f32
    %234 = vector.broadcast %cst_84 : f32 to vector<32x1xf32>
    %235 = arith.addf %231, %234 : vector<32x1xf32>
    %236 = math.rsqrt %235 : vector<32x1xf32>
    %237 = vector.broadcast %236 : vector<32x1xf32> to vector<32x64xf32>
    %238 = arith.mulf %233, %237 : vector<32x64xf32>
    %239 = vector.broadcast %218 : vector<1x64xf32> to vector<32x64xf32>
    %240 = arith.mulf %238, %239 : vector<32x64xf32>
    %241 = vector.broadcast %220 : vector<1x64xf32> to vector<32x64xf32>
    %242 = arith.addf %240, %241 : vector<32x64xf32>
    %c0_85 = arith.constant 0 : index
    %c0_86 = arith.constant 0 : index
    %c0_87 = arith.constant 0 : index
    %243 = vector.load %arg10[%c0_85, %c0_86, %c0_87] : memref<2x64x128xf32, #tpu.memory_space<vmem>>, vector<1x64x128xf32>
    %244 = vector.shape_cast %243 : vector<1x64x128xf32> to vector<64x128xf32>
    %cst_88 = arith.constant dense<0.000000e+00> : vector<32x128xf32>
    %245 = tpu.matmul %242, %244, %cst_88 {dimension_numbers = #tpu.dot_dimension_numbers<[1], [0], [0], [1], [0, 0, 1, 1], [], []>} : vector<32x64xf32>, vector<64x128xf32>, vector<32x128xf32> -> vector<32x128xf32>
    %c0_89 = arith.constant 0 : index
    %c0_90 = arith.constant 0 : index
    %c0_91 = arith.constant 0 : index
    %246 = vector.load %arg11[%c0_89, %c0_90, %c0_91] : memref<2x1x128xf32, #tpu.memory_space<vmem>>, vector<1x1x128xf32>
    %247 = vector.shape_cast %246 : vector<1x1x128xf32> to vector<1x128xf32>
    %248 = vector.broadcast %247 : vector<1x128xf32> to vector<32x128xf32>
    %249 = arith.addf %245, %248 : vector<32x128xf32>
    %cst_92 = arith.constant 5.000000e-01 : f32
    %250 = vector.broadcast %cst_92 : f32 to vector<32x128xf32>
    %251 = arith.mulf %250, %249 : vector<32x128xf32>
    %cst_93 = arith.constant 0.707106769 : f32
    %252 = vector.broadcast %cst_93 : f32 to vector<32x128xf32>
    %253 = arith.mulf %249, %252 : vector<32x128xf32>
    %cst_94 = arith.constant 0.000000e+00 : f32
    %254 = vector.broadcast %cst_94 : f32 to vector<32x128xf32>
    %255 = arith.cmpf oge, %253, %254 : vector<32x128xf32>
    %cst_95 = arith.constant 1.000000e+00 : f32
    %cst_96 = arith.constant -1.000000e+00 : f32
    %256 = vector.broadcast %cst_95 : f32 to vector<32x128xf32>
    %257 = vector.broadcast %cst_96 : f32 to vector<32x128xf32>
    %258 = arith.select %255, %256, %257 : vector<32x128xi1>, vector<32x128xf32>
    %259 = math.absf %253 : vector<32x128xf32>
    %cst_97 = arith.constant 0.327591091 : f32
    %260 = vector.broadcast %cst_97 : f32 to vector<32x128xf32>
    %261 = arith.mulf %260, %259 : vector<32x128xf32>
    %cst_98 = arith.constant 1.000000e+00 : f32
    %262 = vector.broadcast %cst_98 : f32 to vector<32x128xf32>
    %263 = arith.addf %262, %261 : vector<32x128xf32>
    %cst_99 = arith.constant 1.000000e+00 : f32
    %264 = vector.broadcast %cst_99 : f32 to vector<32x128xf32>
    %265 = arith.divf %264, %263 : vector<32x128xf32>
    %cst_100 = arith.constant 1.06140542 : f32
    %266 = vector.broadcast %cst_100 : f32 to vector<32x128xf32>
    %267 = arith.mulf %266, %265 : vector<32x128xf32>
    %cst_101 = arith.constant -1.45315206 : f32
    %268 = vector.broadcast %cst_101 : f32 to vector<32x128xf32>
    %269 = arith.addf %267, %268 : vector<32x128xf32>
    %270 = arith.mulf %269, %265 : vector<32x128xf32>
    %cst_102 = arith.constant 1.42141378 : f32
    %271 = vector.broadcast %cst_102 : f32 to vector<32x128xf32>
    %272 = arith.addf %270, %271 : vector<32x128xf32>
    %273 = arith.mulf %272, %265 : vector<32x128xf32>
    %cst_103 = arith.constant -0.284496725 : f32
    %274 = vector.broadcast %cst_103 : f32 to vector<32x128xf32>
    %275 = arith.addf %273, %274 : vector<32x128xf32>
    %276 = arith.mulf %275, %265 : vector<32x128xf32>
    %cst_104 = arith.constant 0.254829586 : f32
    %277 = vector.broadcast %cst_104 : f32 to vector<32x128xf32>
    %278 = arith.addf %276, %277 : vector<32x128xf32>
    %279 = arith.mulf %278, %265 : vector<32x128xf32>
    %cst_105 = arith.constant 0.000000e+00 : f32
    %280 = vector.broadcast %cst_105 : f32 to vector<32x128xf32>
    %281 = arith.subf %280, %259 : vector<32x128xf32>
    %282 = arith.mulf %281, %259 : vector<32x128xf32>
    %283 = math.exp %282 : vector<32x128xf32>
    %284 = arith.mulf %279, %283 : vector<32x128xf32>
    %cst_106 = arith.constant 1.000000e+00 : f32
    %285 = vector.broadcast %cst_106 : f32 to vector<32x128xf32>
    %286 = arith.subf %285, %284 : vector<32x128xf32>
    %287 = arith.mulf %258, %286 : vector<32x128xf32>
    %cst_107 = arith.constant 1.000000e+00 : f32
    %288 = vector.broadcast %cst_107 : f32 to vector<32x128xf32>
    %289 = arith.addf %288, %287 : vector<32x128xf32>
    %290 = arith.mulf %251, %289 : vector<32x128xf32>
    %c0_108 = arith.constant 0 : index
    %c0_109 = arith.constant 0 : index
    %c0_110 = arith.constant 0 : index
    %291 = vector.load %arg12[%c0_108, %c0_109, %c0_110] : memref<2x128x64xf32, #tpu.memory_space<vmem>>, vector<1x128x64xf32>
    %292 = vector.shape_cast %291 : vector<1x128x64xf32> to vector<128x64xf32>
    %cst_111 = arith.constant dense<0.000000e+00> : vector<32x64xf32>
    %293 = tpu.matmul %290, %292, %cst_111 {dimension_numbers = #tpu.dot_dimension_numbers<[1], [0], [0], [1], [0, 0, 1, 1], [], []>} : vector<32x128xf32>, vector<128x64xf32>, vector<32x64xf32> -> vector<32x64xf32>
    %c0_112 = arith.constant 0 : index
    %c0_113 = arith.constant 0 : index
    %c0_114 = arith.constant 0 : index
    %294 = vector.load %arg13[%c0_112, %c0_113, %c0_114] : memref<2x1x64xf32, #tpu.memory_space<vmem>>, vector<1x1x64xf32>
    %295 = vector.shape_cast %294 : vector<1x1x64xf32> to vector<1x64xf32>
    %296 = vector.broadcast %295 : vector<1x64xf32> to vector<32x64xf32>
    %297 = arith.addf %293, %296 : vector<32x64xf32>
    %298 = arith.addf %242, %297 : vector<32x64xf32>
    %c0_115 = arith.constant 0 : index
    %c0_116 = arith.constant 0 : index
    %c0_117 = arith.constant 0 : index
    %299 = vector.load %arg14[%c0_115, %c0_116, %c0_117] : memref<2x1x64xf32, #tpu.memory_space<vmem>>, vector<1x1x64xf32>
    %300 = vector.shape_cast %299 : vector<1x1x64xf32> to vector<1x64xf32>
    %c0_118 = arith.constant 0 : index
    %c0_119 = arith.constant 0 : index
    %c0_120 = arith.constant 0 : index
    %301 = vector.load %arg15[%c0_118, %c0_119, %c0_120] : memref<2x1x64xf32, #tpu.memory_space<vmem>>, vector<1x1x64xf32>
    %302 = vector.shape_cast %301 : vector<1x1x64xf32> to vector<1x64xf32>
    %cst_121 = arith.constant dense<0.000000e+00> : vector<32xf32>
    %303 = vector.multi_reduction <add>, %298, %cst_121 [1] : vector<32x64xf32> to vector<32xf32>
    %304 = vector.shape_cast %303 : vector<32xf32> to vector<32x1xf32>
    %cst_122 = arith.constant 6.400000e+01 : f32
    %305 = vector.broadcast %cst_122 : f32 to vector<32x1xf32>
    %306 = arith.divf %304, %305 : vector<32x1xf32>
    %307 = vector.broadcast %306 : vector<32x1xf32> to vector<32x64xf32>
    %308 = arith.subf %298, %307 : vector<32x64xf32>
    %309 = arith.mulf %308, %308 : vector<32x64xf32>
    %cst_123 = arith.constant dense<0.000000e+00> : vector<32xf32>
    %310 = vector.multi_reduction <add>, %309, %cst_123 [1] : vector<32x64xf32> to vector<32xf32>
    %311 = vector.shape_cast %310 : vector<32xf32> to vector<32x1xf32>
    %cst_124 = arith.constant 6.400000e+01 : f32
    %312 = vector.broadcast %cst_124 : f32 to vector<32x1xf32>
    %313 = arith.divf %311, %312 : vector<32x1xf32>
    %314 = vector.broadcast %306 : vector<32x1xf32> to vector<32x64xf32>
    %315 = arith.subf %298, %314 : vector<32x64xf32>
    %cst_125 = arith.constant 9.99999974E-6 : f32
    %316 = vector.broadcast %cst_125 : f32 to vector<32x1xf32>
    %317 = arith.addf %313, %316 : vector<32x1xf32>
    %318 = math.rsqrt %317 : vector<32x1xf32>
    %319 = vector.broadcast %318 : vector<32x1xf32> to vector<32x64xf32>
    %320 = arith.mulf %315, %319 : vector<32x64xf32>
    %321 = vector.broadcast %300 : vector<1x64xf32> to vector<32x64xf32>
    %322 = arith.mulf %320, %321 : vector<32x64xf32>
    %323 = vector.broadcast %302 : vector<1x64xf32> to vector<32x64xf32>
    %324 = arith.addf %322, %323 : vector<32x64xf32>
    %c1 = arith.constant 1 : index
    %c0_126 = arith.constant 0 : index
    %c0_127 = arith.constant 0 : index
    %325 = vector.load %arg4[%c1, %c0_126, %c0_127] : memref<2x64x192xf32, #tpu.memory_space<vmem>>, vector<1x64x192xf32>
    %326 = vector.shape_cast %325 : vector<1x64x192xf32> to vector<64x192xf32>
    %cst_128 = arith.constant dense<0.000000e+00> : vector<32x192xf32>
    %327 = tpu.matmul %324, %326, %cst_128 {dimension_numbers = #tpu.dot_dimension_numbers<[1], [0], [0], [1], [0, 0, 1, 1], [], []>} : vector<32x64xf32>, vector<64x192xf32>, vector<32x192xf32> -> vector<32x192xf32>
    %c1_129 = arith.constant 1 : index
    %c0_130 = arith.constant 0 : index
    %c0_131 = arith.constant 0 : index
    %328 = vector.load %arg5[%c1_129, %c0_130, %c0_131] : memref<2x1x192xf32, #tpu.memory_space<vmem>>, vector<1x1x192xf32>
    %329 = vector.shape_cast %328 : vector<1x1x192xf32> to vector<1x192xf32>
    %330 = vector.broadcast %329 : vector<1x192xf32> to vector<32x192xf32>
    %331 = arith.addf %327, %330 : vector<32x192xf32>
    %332 = vector.extract_strided_slice %331 {offsets = [0, 0], sizes = [32, 8], strides = [1, 1]} : vector<32x192xf32> to vector<32x8xf32>
    %333 = vector.shape_cast %332 : vector<32x8xf32> to vector<2x16x8xf32>
    %334 = vector.extract_strided_slice %331 {offsets = [0, 64], sizes = [32, 8], strides = [1, 1]} : vector<32x192xf32> to vector<32x8xf32>
    %335 = vector.shape_cast %334 : vector<32x8xf32> to vector<2x16x8xf32>
    %336 = vector.extract_strided_slice %331 {offsets = [0, 128], sizes = [32, 8], strides = [1, 1]} : vector<32x192xf32> to vector<32x8xf32>
    %337 = vector.shape_cast %336 : vector<32x8xf32> to vector<2x16x8xf32>
    "tpu.trace_start"() <{level = 10 : i32, message = "bqd,bkd->bqk"}> : () -> ()
    %cst_132 = arith.constant dense<0.000000e+00> : vector<2x16x16xf32>
    %338 = tpu.matmul %333, %335, %cst_132 {dimension_numbers = #tpu.dot_dimension_numbers<[2], [2], [1], [1], [0, 0, 0, 1, 1, 1], [0], [0]>} : vector<2x16x8xf32>, vector<2x16x8xf32>, vector<2x16x16xf32> -> vector<2x16x16xf32>
    "tpu.trace_stop"() : () -> ()
    %cst_133 = arith.constant 0.353553385 : f32
    %339 = vector.broadcast %cst_133 : f32 to vector<2x16x16xf32>
    %340 = arith.mulf %338, %339 : vector<2x16x16xf32>
    %341 = vector.broadcast %16 : vector<2x1x16xf32> to vector<2x16x16xf32>
    %342 = arith.addf %340, %341 : vector<2x16x16xf32>
    %cst_134 = arith.constant dense<0xFF800000> : vector<2x16xf32>
    %343 = vector.multi_reduction <maximumf>, %342, %cst_134 [2] : vector<2x16x16xf32> to vector<2x16xf32>
    %344 = vector.shape_cast %343 : vector<2x16xf32> to vector<2x16x1xf32>
    %345 = vector.broadcast %344 : vector<2x16x1xf32> to vector<2x16x16xf32>
    %346 = arith.subf %342, %345 : vector<2x16x16xf32>
    %347 = math.exp %346 : vector<2x16x16xf32>
    %cst_135 = arith.constant dense<0.000000e+00> : vector<2x16xf32>
    %348 = vector.multi_reduction <add>, %347, %cst_135 [2] : vector<2x16x16xf32> to vector<2x16xf32>
    %349 = vector.shape_cast %348 : vector<2x16xf32> to vector<2x16x1xf32>
    %350 = vector.broadcast %349 : vector<2x16x1xf32> to vector<2x16x16xf32>
    %351 = arith.divf %347, %350 : vector<2x16x16xf32>
    "tpu.trace_start"() <{level = 10 : i32, message = "bqk,bkd->bqd"}> : () -> ()
    %cst_136 = arith.constant dense<0.000000e+00> : vector<2x16x8xf32>
    %352 = tpu.matmul %351, %337, %cst_136 {dimension_numbers = #tpu.dot_dimension_numbers<[2], [1], [1], [2], [0, 0, 0, 1, 1, 2], [0], [0]>} : vector<2x16x16xf32>, vector<2x16x8xf32>, vector<2x16x8xf32> -> vector<2x16x8xf32>
    "tpu.trace_stop"() : () -> ()
    %353 = vector.shape_cast %352 : vector<2x16x8xf32> to vector<32x8xf32>
    %c0_137 = arith.constant 0 : index
    %c0_138 = arith.constant 0 : index
    %354 = vector.load %arg22[%c0_137, %c0_138] : memref<32x64xf32, #tpu.memory_space<vmem>>, vector<32x8xf32>
    tpu.vector_store %arg22[%c0_137, %c0_138], %353 {strides = array<i32>} : memref<32x64xf32, #tpu.memory_space<vmem>>, vector<32x8xf32>,
    %355 = vector.extract_strided_slice %331 {offsets = [0, 8], sizes = [32, 8], strides = [1, 1]} : vector<32x192xf32> to vector<32x8xf32>
    %356 = vector.shape_cast %355 : vector<32x8xf32> to vector<2x16x8xf32>
    %357 = vector.extract_strided_slice %331 {offsets = [0, 72], sizes = [32, 8], strides = [1, 1]} : vector<32x192xf32> to vector<32x8xf32>
    %358 = vector.shape_cast %357 : vector<32x8xf32> to vector<2x16x8xf32>
    %359 = vector.extract_strided_slice %331 {offsets = [0, 136], sizes = [32, 8], strides = [1, 1]} : vector<32x192xf32> to vector<32x8xf32>
    %360 = vector.shape_cast %359 : vector<32x8xf32> to vector<2x16x8xf32>
    "tpu.trace_start"() <{level = 10 : i32, message = "bqd,bkd->bqk"}> : () -> ()
    %cst_139 = arith.constant dense<0.000000e+00> : vector<2x16x16xf32>
    %361 = tpu.matmul %356, %358, %cst_139 {dimension_numbers = #tpu.dot_dimension_numbers<[2], [2], [1], [1], [0, 0, 0, 1, 1, 1], [0], [0]>} : vector<2x16x8xf32>, vector<2x16x8xf32>, vector<2x16x16xf32> -> vector<2x16x16xf32>
    "tpu.trace_stop"() : () -> ()
    %cst_140 = arith.constant 0.353553385 : f32
    %362 = vector.broadcast %cst_140 : f32 to vector<2x16x16xf32>
    %363 = arith.mulf %361, %362 : vector<2x16x16xf32>
    %364 = vector.broadcast %16 : vector<2x1x16xf32> to vector<2x16x16xf32>
    %365 = arith.addf %363, %364 : vector<2x16x16xf32>
    %cst_141 = arith.constant dense<0xFF800000> : vector<2x16xf32>
    %366 = vector.multi_reduction <maximumf>, %365, %cst_141 [2] : vector<2x16x16xf32> to vector<2x16xf32>
    %367 = vector.shape_cast %366 : vector<2x16xf32> to vector<2x16x1xf32>
    %368 = vector.broadcast %367 : vector<2x16x1xf32> to vector<2x16x16xf32>
    %369 = arith.subf %365, %368 : vector<2x16x16xf32>
    %370 = math.exp %369 : vector<2x16x16xf32>
    %cst_142 = arith.constant dense<0.000000e+00> : vector<2x16xf32>
    %371 = vector.multi_reduction <add>, %370, %cst_142 [2] : vector<2x16x16xf32> to vector<2x16xf32>
    %372 = vector.shape_cast %371 : vector<2x16xf32> to vector<2x16x1xf32>
    %373 = vector.broadcast %372 : vector<2x16x1xf32> to vector<2x16x16xf32>
    %374 = arith.divf %370, %373 : vector<2x16x16xf32>
    "tpu.trace_start"() <{level = 10 : i32, message = "bqk,bkd->bqd"}> : () -> ()
    %cst_143 = arith.constant dense<0.000000e+00> : vector<2x16x8xf32>
    %375 = tpu.matmul %374, %360, %cst_143 {dimension_numbers = #tpu.dot_dimension_numbers<[2], [1], [1], [2], [0, 0, 0, 1, 1, 2], [0], [0]>} : vector<2x16x16xf32>, vector<2x16x8xf32>, vector<2x16x8xf32> -> vector<2x16x8xf32>
    "tpu.trace_stop"() : () -> ()
    %376 = vector.shape_cast %375 : vector<2x16x8xf32> to vector<32x8xf32>
    %c0_144 = arith.constant 0 : index
    %c8_145 = arith.constant 8 : index
    %377 = vector.load %arg22[%c0_144, %c8_145] : memref<32x64xf32, #tpu.memory_space<vmem>>, vector<32x8xf32>
    tpu.vector_store %arg22[%c0_144, %c8_145], %376 {strides = array<i32>} : memref<32x64xf32, #tpu.memory_space<vmem>>, vector<32x8xf32>,
    %378 = vector.extract_strided_slice %331 {offsets = [0, 16], sizes = [32, 8], strides = [1, 1]} : vector<32x192xf32> to vector<32x8xf32>
    %379 = vector.shape_cast %378 : vector<32x8xf32> to vector<2x16x8xf32>
    %380 = vector.extract_strided_slice %331 {offsets = [0, 80], sizes = [32, 8], strides = [1, 1]} : vector<32x192xf32> to vector<32x8xf32>
    %381 = vector.shape_cast %380 : vector<32x8xf32> to vector<2x16x8xf32>
    %382 = vector.extract_strided_slice %331 {offsets = [0, 144], sizes = [32, 8], strides = [1, 1]} : vector<32x192xf32> to vector<32x8xf32>
    %383 = vector.shape_cast %382 : vector<32x8xf32> to vector<2x16x8xf32>
    "tpu.trace_start"() <{level = 10 : i32, message = "bqd,bkd->bqk"}> : () -> ()
    %cst_146 = arith.constant dense<0.000000e+00> : vector<2x16x16xf32>
    %384 = tpu.matmul %379, %381, %cst_146 {dimension_numbers = #tpu.dot_dimension_numbers<[2], [2], [1], [1], [0, 0, 0, 1, 1, 1], [0], [0]>} : vector<2x16x8xf32>, vector<2x16x8xf32>, vector<2x16x16xf32> -> vector<2x16x16xf32>
    "tpu.trace_stop"() : () -> ()
    %cst_147 = arith.constant 0.353553385 : f32
    %385 = vector.broadcast %cst_147 : f32 to vector<2x16x16xf32>
    %386 = arith.mulf %384, %385 : vector<2x16x16xf32>
    %387 = vector.broadcast %16 : vector<2x1x16xf32> to vector<2x16x16xf32>
    %388 = arith.addf %386, %387 : vector<2x16x16xf32>
    %cst_148 = arith.constant dense<0xFF800000> : vector<2x16xf32>
    %389 = vector.multi_reduction <maximumf>, %388, %cst_148 [2] : vector<2x16x16xf32> to vector<2x16xf32>
    %390 = vector.shape_cast %389 : vector<2x16xf32> to vector<2x16x1xf32>
    %391 = vector.broadcast %390 : vector<2x16x1xf32> to vector<2x16x16xf32>
    %392 = arith.subf %388, %391 : vector<2x16x16xf32>
    %393 = math.exp %392 : vector<2x16x16xf32>
    %cst_149 = arith.constant dense<0.000000e+00> : vector<2x16xf32>
    %394 = vector.multi_reduction <add>, %393, %cst_149 [2] : vector<2x16x16xf32> to vector<2x16xf32>
    %395 = vector.shape_cast %394 : vector<2x16xf32> to vector<2x16x1xf32>
    %396 = vector.broadcast %395 : vector<2x16x1xf32> to vector<2x16x16xf32>
    %397 = arith.divf %393, %396 : vector<2x16x16xf32>
    "tpu.trace_start"() <{level = 10 : i32, message = "bqk,bkd->bqd"}> : () -> ()
    %cst_150 = arith.constant dense<0.000000e+00> : vector<2x16x8xf32>
    %398 = tpu.matmul %397, %383, %cst_150 {dimension_numbers = #tpu.dot_dimension_numbers<[2], [1], [1], [2], [0, 0, 0, 1, 1, 2], [0], [0]>} : vector<2x16x16xf32>, vector<2x16x8xf32>, vector<2x16x8xf32> -> vector<2x16x8xf32>
    "tpu.trace_stop"() : () -> ()
    %399 = vector.shape_cast %398 : vector<2x16x8xf32> to vector<32x8xf32>
    %c0_151 = arith.constant 0 : index
    %c16_152 = arith.constant 16 : index
    %400 = vector.load %arg22[%c0_151, %c16_152] : memref<32x64xf32, #tpu.memory_space<vmem>>, vector<32x8xf32>
    tpu.vector_store %arg22[%c0_151, %c16_152], %399 {strides = array<i32>} : memref<32x64xf32, #tpu.memory_space<vmem>>, vector<32x8xf32>,
    %401 = vector.extract_strided_slice %331 {offsets = [0, 24], sizes = [32, 8], strides = [1, 1]} : vector<32x192xf32> to vector<32x8xf32>
    %402 = vector.shape_cast %401 : vector<32x8xf32> to vector<2x16x8xf32>
    %403 = vector.extract_strided_slice %331 {offsets = [0, 88], sizes = [32, 8], strides = [1, 1]} : vector<32x192xf32> to vector<32x8xf32>
    %404 = vector.shape_cast %403 : vector<32x8xf32> to vector<2x16x8xf32>
    %405 = vector.extract_strided_slice %331 {offsets = [0, 152], sizes = [32, 8], strides = [1, 1]} : vector<32x192xf32> to vector<32x8xf32>
    %406 = vector.shape_cast %405 : vector<32x8xf32> to vector<2x16x8xf32>
    "tpu.trace_start"() <{level = 10 : i32, message = "bqd,bkd->bqk"}> : () -> ()
    %cst_153 = arith.constant dense<0.000000e+00> : vector<2x16x16xf32>
    %407 = tpu.matmul %402, %404, %cst_153 {dimension_numbers = #tpu.dot_dimension_numbers<[2], [2], [1], [1], [0, 0, 0, 1, 1, 1], [0], [0]>} : vector<2x16x8xf32>, vector<2x16x8xf32>, vector<2x16x16xf32> -> vector<2x16x16xf32>
    "tpu.trace_stop"() : () -> ()
    %cst_154 = arith.constant 0.353553385 : f32
    %408 = vector.broadcast %cst_154 : f32 to vector<2x16x16xf32>
    %409 = arith.mulf %407, %408 : vector<2x16x16xf32>
    %410 = vector.broadcast %16 : vector<2x1x16xf32> to vector<2x16x16xf32>
    %411 = arith.addf %409, %410 : vector<2x16x16xf32>
    %cst_155 = arith.constant dense<0xFF800000> : vector<2x16xf32>
    %412 = vector.multi_reduction <maximumf>, %411, %cst_155 [2] : vector<2x16x16xf32> to vector<2x16xf32>
    %413 = vector.shape_cast %412 : vector<2x16xf32> to vector<2x16x1xf32>
    %414 = vector.broadcast %413 : vector<2x16x1xf32> to vector<2x16x16xf32>
    %415 = arith.subf %411, %414 : vector<2x16x16xf32>
    %416 = math.exp %415 : vector<2x16x16xf32>
    %cst_156 = arith.constant dense<0.000000e+00> : vector<2x16xf32>
    %417 = vector.multi_reduction <add>, %416, %cst_156 [2] : vector<2x16x16xf32> to vector<2x16xf32>
    %418 = vector.shape_cast %417 : vector<2x16xf32> to vector<2x16x1xf32>
    %419 = vector.broadcast %418 : vector<2x16x1xf32> to vector<2x16x16xf32>
    %420 = arith.divf %416, %419 : vector<2x16x16xf32>
    "tpu.trace_start"() <{level = 10 : i32, message = "bqk,bkd->bqd"}> : () -> ()
    %cst_157 = arith.constant dense<0.000000e+00> : vector<2x16x8xf32>
    %421 = tpu.matmul %420, %406, %cst_157 {dimension_numbers = #tpu.dot_dimension_numbers<[2], [1], [1], [2], [0, 0, 0, 1, 1, 2], [0], [0]>} : vector<2x16x16xf32>, vector<2x16x8xf32>, vector<2x16x8xf32> -> vector<2x16x8xf32>
    "tpu.trace_stop"() : () -> ()
    %422 = vector.shape_cast %421 : vector<2x16x8xf32> to vector<32x8xf32>
    %c0_158 = arith.constant 0 : index
    %c24_159 = arith.constant 24 : index
    %423 = vector.load %arg22[%c0_158, %c24_159] : memref<32x64xf32, #tpu.memory_space<vmem>>, vector<32x8xf32>
    tpu.vector_store %arg22[%c0_158, %c24_159], %422 {strides = array<i32>} : memref<32x64xf32, #tpu.memory_space<vmem>>, vector<32x8xf32>,
    %424 = vector.extract_strided_slice %331 {offsets = [0, 32], sizes = [32, 8], strides = [1, 1]} : vector<32x192xf32> to vector<32x8xf32>
    %425 = vector.shape_cast %424 : vector<32x8xf32> to vector<2x16x8xf32>
    %426 = vector.extract_strided_slice %331 {offsets = [0, 96], sizes = [32, 8], strides = [1, 1]} : vector<32x192xf32> to vector<32x8xf32>
    %427 = vector.shape_cast %426 : vector<32x8xf32> to vector<2x16x8xf32>
    %428 = vector.extract_strided_slice %331 {offsets = [0, 160], sizes = [32, 8], strides = [1, 1]} : vector<32x192xf32> to vector<32x8xf32>
    %429 = vector.shape_cast %428 : vector<32x8xf32> to vector<2x16x8xf32>
    "tpu.trace_start"() <{level = 10 : i32, message = "bqd,bkd->bqk"}> : () -> ()
    %cst_160 = arith.constant dense<0.000000e+00> : vector<2x16x16xf32>
    %430 = tpu.matmul %425, %427, %cst_160 {dimension_numbers = #tpu.dot_dimension_numbers<[2], [2], [1], [1], [0, 0, 0, 1, 1, 1], [0], [0]>} : vector<2x16x8xf32>, vector<2x16x8xf32>, vector<2x16x16xf32> -> vector<2x16x16xf32>
    "tpu.trace_stop"() : () -> ()
    %cst_161 = arith.constant 0.353553385 : f32
    %431 = vector.broadcast %cst_161 : f32 to vector<2x16x16xf32>
    %432 = arith.mulf %430, %431 : vector<2x16x16xf32>
    %433 = vector.broadcast %16 : vector<2x1x16xf32> to vector<2x16x16xf32>
    %434 = arith.addf %432, %433 : vector<2x16x16xf32>
    %cst_162 = arith.constant dense<0xFF800000> : vector<2x16xf32>
    %435 = vector.multi_reduction <maximumf>, %434, %cst_162 [2] : vector<2x16x16xf32> to vector<2x16xf32>
    %436 = vector.shape_cast %435 : vector<2x16xf32> to vector<2x16x1xf32>
    %437 = vector.broadcast %436 : vector<2x16x1xf32> to vector<2x16x16xf32>
    %438 = arith.subf %434, %437 : vector<2x16x16xf32>
    %439 = math.exp %438 : vector<2x16x16xf32>
    %cst_163 = arith.constant dense<0.000000e+00> : vector<2x16xf32>
    %440 = vector.multi_reduction <add>, %439, %cst_163 [2] : vector<2x16x16xf32> to vector<2x16xf32>
    %441 = vector.shape_cast %440 : vector<2x16xf32> to vector<2x16x1xf32>
    %442 = vector.broadcast %441 : vector<2x16x1xf32> to vector<2x16x16xf32>
    %443 = arith.divf %439, %442 : vector<2x16x16xf32>
    "tpu.trace_start"() <{level = 10 : i32, message = "bqk,bkd->bqd"}> : () -> ()
    %cst_164 = arith.constant dense<0.000000e+00> : vector<2x16x8xf32>
    %444 = tpu.matmul %443, %429, %cst_164 {dimension_numbers = #tpu.dot_dimension_numbers<[2], [1], [1], [2], [0, 0, 0, 1, 1, 2], [0], [0]>} : vector<2x16x16xf32>, vector<2x16x8xf32>, vector<2x16x8xf32> -> vector<2x16x8xf32>
    "tpu.trace_stop"() : () -> ()
    %445 = vector.shape_cast %444 : vector<2x16x8xf32> to vector<32x8xf32>
    %c0_165 = arith.constant 0 : index
    %c32_166 = arith.constant 32 : index
    %446 = vector.load %arg22[%c0_165, %c32_166] : memref<32x64xf32, #tpu.memory_space<vmem>>, vector<32x8xf32>
    tpu.vector_store %arg22[%c0_165, %c32_166], %445 {strides = array<i32>} : memref<32x64xf32, #tpu.memory_space<vmem>>, vector<32x8xf32>,
    %447 = vector.extract_strided_slice %331 {offsets = [0, 40], sizes = [32, 8], strides = [1, 1]} : vector<32x192xf32> to vector<32x8xf32>
    %448 = vector.shape_cast %447 : vector<32x8xf32> to vector<2x16x8xf32>
    %449 = vector.extract_strided_slice %331 {offsets = [0, 104], sizes = [32, 8], strides = [1, 1]} : vector<32x192xf32> to vector<32x8xf32>
    %450 = vector.shape_cast %449 : vector<32x8xf32> to vector<2x16x8xf32>
    %451 = vector.extract_strided_slice %331 {offsets = [0, 168], sizes = [32, 8], strides = [1, 1]} : vector<32x192xf32> to vector<32x8xf32>
    %452 = vector.shape_cast %451 : vector<32x8xf32> to vector<2x16x8xf32>
    "tpu.trace_start"() <{level = 10 : i32, message = "bqd,bkd->bqk"}> : () -> ()
    %cst_167 = arith.constant dense<0.000000e+00> : vector<2x16x16xf32>
    %453 = tpu.matmul %448, %450, %cst_167 {dimension_numbers = #tpu.dot_dimension_numbers<[2], [2], [1], [1], [0, 0, 0, 1, 1, 1], [0], [0]>} : vector<2x16x8xf32>, vector<2x16x8xf32>, vector<2x16x16xf32> -> vector<2x16x16xf32>
    "tpu.trace_stop"() : () -> ()
    %cst_168 = arith.constant 0.353553385 : f32
    %454 = vector.broadcast %cst_168 : f32 to vector<2x16x16xf32>
    %455 = arith.mulf %453, %454 : vector<2x16x16xf32>
    %456 = vector.broadcast %16 : vector<2x1x16xf32> to vector<2x16x16xf32>
    %457 = arith.addf %455, %456 : vector<2x16x16xf32>
    %cst_169 = arith.constant dense<0xFF800000> : vector<2x16xf32>
    %458 = vector.multi_reduction <maximumf>, %457, %cst_169 [2] : vector<2x16x16xf32> to vector<2x16xf32>
    %459 = vector.shape_cast %458 : vector<2x16xf32> to vector<2x16x1xf32>
    %460 = vector.broadcast %459 : vector<2x16x1xf32> to vector<2x16x16xf32>
    %461 = arith.subf %457, %460 : vector<2x16x16xf32>
    %462 = math.exp %461 : vector<2x16x16xf32>
    %cst_170 = arith.constant dense<0.000000e+00> : vector<2x16xf32>
    %463 = vector.multi_reduction <add>, %462, %cst_170 [2] : vector<2x16x16xf32> to vector<2x16xf32>
    %464 = vector.shape_cast %463 : vector<2x16xf32> to vector<2x16x1xf32>
    %465 = vector.broadcast %464 : vector<2x16x1xf32> to vector<2x16x16xf32>
    %466 = arith.divf %462, %465 : vector<2x16x16xf32>
    "tpu.trace_start"() <{level = 10 : i32, message = "bqk,bkd->bqd"}> : () -> ()
    %cst_171 = arith.constant dense<0.000000e+00> : vector<2x16x8xf32>
    %467 = tpu.matmul %466, %452, %cst_171 {dimension_numbers = #tpu.dot_dimension_numbers<[2], [1], [1], [2], [0, 0, 0, 1, 1, 2], [0], [0]>} : vector<2x16x16xf32>, vector<2x16x8xf32>, vector<2x16x8xf32> -> vector<2x16x8xf32>
    "tpu.trace_stop"() : () -> ()
    %468 = vector.shape_cast %467 : vector<2x16x8xf32> to vector<32x8xf32>
    %c0_172 = arith.constant 0 : index
    %c40_173 = arith.constant 40 : index
    %469 = vector.load %arg22[%c0_172, %c40_173] : memref<32x64xf32, #tpu.memory_space<vmem>>, vector<32x8xf32>
    tpu.vector_store %arg22[%c0_172, %c40_173], %468 {strides = array<i32>} : memref<32x64xf32, #tpu.memory_space<vmem>>, vector<32x8xf32>,
    %470 = vector.extract_strided_slice %331 {offsets = [0, 48], sizes = [32, 8], strides = [1, 1]} : vector<32x192xf32> to vector<32x8xf32>
    %471 = vector.shape_cast %470 : vector<32x8xf32> to vector<2x16x8xf32>
    %472 = vector.extract_strided_slice %331 {offsets = [0, 112], sizes = [32, 8], strides = [1, 1]} : vector<32x192xf32> to vector<32x8xf32>
    %473 = vector.shape_cast %472 : vector<32x8xf32> to vector<2x16x8xf32>
    %474 = vector.extract_strided_slice %331 {offsets = [0, 176], sizes = [32, 8], strides = [1, 1]} : vector<32x192xf32> to vector<32x8xf32>
    %475 = vector.shape_cast %474 : vector<32x8xf32> to vector<2x16x8xf32>
    "tpu.trace_start"() <{level = 10 : i32, message = "bqd,bkd->bqk"}> : () -> ()
    %cst_174 = arith.constant dense<0.000000e+00> : vector<2x16x16xf32>
    %476 = tpu.matmul %471, %473, %cst_174 {dimension_numbers = #tpu.dot_dimension_numbers<[2], [2], [1], [1], [0, 0, 0, 1, 1, 1], [0], [0]>} : vector<2x16x8xf32>, vector<2x16x8xf32>, vector<2x16x16xf32> -> vector<2x16x16xf32>
    "tpu.trace_stop"() : () -> ()
    %cst_175 = arith.constant 0.353553385 : f32
    %477 = vector.broadcast %cst_175 : f32 to vector<2x16x16xf32>
    %478 = arith.mulf %476, %477 : vector<2x16x16xf32>
    %479 = vector.broadcast %16 : vector<2x1x16xf32> to vector<2x16x16xf32>
    %480 = arith.addf %478, %479 : vector<2x16x16xf32>
    %cst_176 = arith.constant dense<0xFF800000> : vector<2x16xf32>
    %481 = vector.multi_reduction <maximumf>, %480, %cst_176 [2] : vector<2x16x16xf32> to vector<2x16xf32>
    %482 = vector.shape_cast %481 : vector<2x16xf32> to vector<2x16x1xf32>
    %483 = vector.broadcast %482 : vector<2x16x1xf32> to vector<2x16x16xf32>
    %484 = arith.subf %480, %483 : vector<2x16x16xf32>
    %485 = math.exp %484 : vector<2x16x16xf32>
    %cst_177 = arith.constant dense<0.000000e+00> : vector<2x16xf32>
    %486 = vector.multi_reduction <add>, %485, %cst_177 [2] : vector<2x16x16xf32> to vector<2x16xf32>
    %487 = vector.shape_cast %486 : vector<2x16xf32> to vector<2x16x1xf32>
    %488 = vector.broadcast %487 : vector<2x16x1xf32> to vector<2x16x16xf32>
    %489 = arith.divf %485, %488 : vector<2x16x16xf32>
    "tpu.trace_start"() <{level = 10 : i32, message = "bqk,bkd->bqd"}> : () -> ()
    %cst_178 = arith.constant dense<0.000000e+00> : vector<2x16x8xf32>
    %490 = tpu.matmul %489, %475, %cst_178 {dimension_numbers = #tpu.dot_dimension_numbers<[2], [1], [1], [2], [0, 0, 0, 1, 1, 2], [0], [0]>} : vector<2x16x16xf32>, vector<2x16x8xf32>, vector<2x16x8xf32> -> vector<2x16x8xf32>
    "tpu.trace_stop"() : () -> ()
    %491 = vector.shape_cast %490 : vector<2x16x8xf32> to vector<32x8xf32>
    %c0_179 = arith.constant 0 : index
    %c48_180 = arith.constant 48 : index
    %492 = vector.load %arg22[%c0_179, %c48_180] : memref<32x64xf32, #tpu.memory_space<vmem>>, vector<32x8xf32>
    tpu.vector_store %arg22[%c0_179, %c48_180], %491 {strides = array<i32>} : memref<32x64xf32, #tpu.memory_space<vmem>>, vector<32x8xf32>,
    %493 = vector.extract_strided_slice %331 {offsets = [0, 56], sizes = [32, 8], strides = [1, 1]} : vector<32x192xf32> to vector<32x8xf32>
    %494 = vector.shape_cast %493 : vector<32x8xf32> to vector<2x16x8xf32>
    %495 = vector.extract_strided_slice %331 {offsets = [0, 120], sizes = [32, 8], strides = [1, 1]} : vector<32x192xf32> to vector<32x8xf32>
    %496 = vector.shape_cast %495 : vector<32x8xf32> to vector<2x16x8xf32>
    %497 = vector.extract_strided_slice %331 {offsets = [0, 184], sizes = [32, 8], strides = [1, 1]} : vector<32x192xf32> to vector<32x8xf32>
    %498 = vector.shape_cast %497 : vector<32x8xf32> to vector<2x16x8xf32>
    "tpu.trace_start"() <{level = 10 : i32, message = "bqd,bkd->bqk"}> : () -> ()
    %cst_181 = arith.constant dense<0.000000e+00> : vector<2x16x16xf32>
    %499 = tpu.matmul %494, %496, %cst_181 {dimension_numbers = #tpu.dot_dimension_numbers<[2], [2], [1], [1], [0, 0, 0, 1, 1, 1], [0], [0]>} : vector<2x16x8xf32>, vector<2x16x8xf32>, vector<2x16x16xf32> -> vector<2x16x16xf32>
    "tpu.trace_stop"() : () -> ()
    %cst_182 = arith.constant 0.353553385 : f32
    %500 = vector.broadcast %cst_182 : f32 to vector<2x16x16xf32>
    %501 = arith.mulf %499, %500 : vector<2x16x16xf32>
    %502 = vector.broadcast %16 : vector<2x1x16xf32> to vector<2x16x16xf32>
    %503 = arith.addf %501, %502 : vector<2x16x16xf32>
    %cst_183 = arith.constant dense<0xFF800000> : vector<2x16xf32>
    %504 = vector.multi_reduction <maximumf>, %503, %cst_183 [2] : vector<2x16x16xf32> to vector<2x16xf32>
    %505 = vector.shape_cast %504 : vector<2x16xf32> to vector<2x16x1xf32>
    %506 = vector.broadcast %505 : vector<2x16x1xf32> to vector<2x16x16xf32>
    %507 = arith.subf %503, %506 : vector<2x16x16xf32>
    %508 = math.exp %507 : vector<2x16x16xf32>
    %cst_184 = arith.constant dense<0.000000e+00> : vector<2x16xf32>
    %509 = vector.multi_reduction <add>, %508, %cst_184 [2] : vector<2x16x16xf32> to vector<2x16xf32>
    %510 = vector.shape_cast %509 : vector<2x16xf32> to vector<2x16x1xf32>
    %511 = vector.broadcast %510 : vector<2x16x1xf32> to vector<2x16x16xf32>
    %512 = arith.divf %508, %511 : vector<2x16x16xf32>
    "tpu.trace_start"() <{level = 10 : i32, message = "bqk,bkd->bqd"}> : () -> ()
    %cst_185 = arith.constant dense<0.000000e+00> : vector<2x16x8xf32>
    %513 = tpu.matmul %512, %498, %cst_185 {dimension_numbers = #tpu.dot_dimension_numbers<[2], [1], [1], [2], [0, 0, 0, 1, 1, 2], [0], [0]>} : vector<2x16x16xf32>, vector<2x16x8xf32>, vector<2x16x8xf32> -> vector<2x16x8xf32>
    "tpu.trace_stop"() : () -> ()
    %514 = vector.shape_cast %513 : vector<2x16x8xf32> to vector<32x8xf32>
    %c0_186 = arith.constant 0 : index
    %c56_187 = arith.constant 56 : index
    %515 = vector.load %arg22[%c0_186, %c56_187] : memref<32x64xf32, #tpu.memory_space<vmem>>, vector<32x8xf32>
    tpu.vector_store %arg22[%c0_186, %c56_187], %514 {strides = array<i32>} : memref<32x64xf32, #tpu.memory_space<vmem>>, vector<32x8xf32>,
    %c0_188 = arith.constant 0 : index
    %c0_189 = arith.constant 0 : index
    %516 = vector.load %arg22[%c0_188, %c0_189] : memref<32x64xf32, #tpu.memory_space<vmem>>, vector<32x64xf32>
    %c1_190 = arith.constant 1 : index
    %c0_191 = arith.constant 0 : index
    %c0_192 = arith.constant 0 : index
    %517 = vector.load %arg6[%c1_190, %c0_191, %c0_192] : memref<2x64x64xf32, #tpu.memory_space<vmem>>, vector<1x64x64xf32>
    %518 = vector.shape_cast %517 : vector<1x64x64xf32> to vector<64x64xf32>
    %cst_193 = arith.constant dense<0.000000e+00> : vector<32x64xf32>
    %519 = tpu.matmul %516, %518, %cst_193 {dimension_numbers = #tpu.dot_dimension_numbers<[1], [0], [0], [1], [0, 0, 1, 1], [], []>} : vector<32x64xf32>, vector<64x64xf32>, vector<32x64xf32> -> vector<32x64xf32>
    %c1_194 = arith.constant 1 : index
    %c0_195 = arith.constant 0 : index
    %c0_196 = arith.constant 0 : index
    %520 = vector.load %arg7[%c1_194, %c0_195, %c0_196] : memref<2x1x64xf32, #tpu.memory_space<vmem>>, vector<1x1x64xf32>
    %521 = vector.shape_cast %520 : vector<1x1x64xf32> to vector<1x64xf32>
    %522 = vector.broadcast %521 : vector<1x64xf32> to vector<32x64xf32>
    %523 = arith.addf %519, %522 : vector<32x64xf32>
    %524 = arith.addf %324, %523 : vector<32x64xf32>
    %c1_197 = arith.constant 1 : index
    %c0_198 = arith.constant 0 : index
    %c0_199 = arith.constant 0 : index
    %525 = vector.load %arg8[%c1_197, %c0_198, %c0_199] : memref<2x1x64xf32, #tpu.memory_space<vmem>>, vector<1x1x64xf32>
    %526 = vector.shape_cast %525 : vector<1x1x64xf32> to vector<1x64xf32>
    %c1_200 = arith.constant 1 : index
    %c0_201 = arith.constant 0 : index
    %c0_202 = arith.constant 0 : index
    %527 = vector.load %arg9[%c1_200, %c0_201, %c0_202] : memref<2x1x64xf32, #tpu.memory_space<vmem>>, vector<1x1x64xf32>
    %528 = vector.shape_cast %527 : vector<1x1x64xf32> to vector<1x64xf32>
    %cst_203 = arith.constant dense<0.000000e+00> : vector<32xf32>
    %529 = vector.multi_reduction <add>, %524, %cst_203 [1] : vector<32x64xf32> to vector<32xf32>
    %530 = vector.shape_cast %529 : vector<32xf32> to vector<32x1xf32>
    %cst_204 = arith.constant 6.400000e+01 : f32
    %531 = vector.broadcast %cst_204 : f32 to vector<32x1xf32>
    %532 = arith.divf %530, %531 : vector<32x1xf32>
    %533 = vector.broadcast %532 : vector<32x1xf32> to vector<32x64xf32>
    %534 = arith.subf %524, %533 : vector<32x64xf32>
    %535 = arith.mulf %534, %534 : vector<32x64xf32>
    %cst_205 = arith.constant dense<0.000000e+00> : vector<32xf32>
    %536 = vector.multi_reduction <add>, %535, %cst_205 [1] : vector<32x64xf32> to vector<32xf32>
    %537 = vector.shape_cast %536 : vector<32xf32> to vector<32x1xf32>
    %cst_206 = arith.constant 6.400000e+01 : f32
    %538 = vector.broadcast %cst_206 : f32 to vector<32x1xf32>
    %539 = arith.divf %537, %538 : vector<32x1xf32>
    %540 = vector.broadcast %532 : vector<32x1xf32> to vector<32x64xf32>
    %541 = arith.subf %524, %540 : vector<32x64xf32>
    %cst_207 = arith.constant 9.99999974E-6 : f32
    %542 = vector.broadcast %cst_207 : f32 to vector<32x1xf32>
    %543 = arith.addf %539, %542 : vector<32x1xf32>
    %544 = math.rsqrt %543 : vector<32x1xf32>
    %545 = vector.broadcast %544 : vector<32x1xf32> to vector<32x64xf32>
    %546 = arith.mulf %541, %545 : vector<32x64xf32>
    %547 = vector.broadcast %526 : vector<1x64xf32> to vector<32x64xf32>
    %548 = arith.mulf %546, %547 : vector<32x64xf32>
    %549 = vector.broadcast %528 : vector<1x64xf32> to vector<32x64xf32>
    %550 = arith.addf %548, %549 : vector<32x64xf32>
    %c1_208 = arith.constant 1 : index
    %c0_209 = arith.constant 0 : index
    %c0_210 = arith.constant 0 : index
    %551 = vector.load %arg10[%c1_208, %c0_209, %c0_210] : memref<2x64x128xf32, #tpu.memory_space<vmem>>, vector<1x64x128xf32>
    %552 = vector.shape_cast %551 : vector<1x64x128xf32> to vector<64x128xf32>
    %cst_211 = arith.constant dense<0.000000e+00> : vector<32x128xf32>
    %553 = tpu.matmul %550, %552, %cst_211 {dimension_numbers = #tpu.dot_dimension_numbers<[1], [0], [0], [1], [0, 0, 1, 1], [], []>} : vector<32x64xf32>, vector<64x128xf32>, vector<32x128xf32> -> vector<32x128xf32>
    %c1_212 = arith.constant 1 : index
    %c0_213 = arith.constant 0 : index
    %c0_214 = arith.constant 0 : index
    %554 = vector.load %arg11[%c1_212, %c0_213, %c0_214] : memref<2x1x128xf32, #tpu.memory_space<vmem>>, vector<1x1x128xf32>
    %555 = vector.shape_cast %554 : vector<1x1x128xf32> to vector<1x128xf32>
    %556 = vector.broadcast %555 : vector<1x128xf32> to vector<32x128xf32>
    %557 = arith.addf %553, %556 : vector<32x128xf32>
    %cst_215 = arith.constant 5.000000e-01 : f32
    %558 = vector.broadcast %cst_215 : f32 to vector<32x128xf32>
    %559 = arith.mulf %558, %557 : vector<32x128xf32>
    %cst_216 = arith.constant 0.707106769 : f32
    %560 = vector.broadcast %cst_216 : f32 to vector<32x128xf32>
    %561 = arith.mulf %557, %560 : vector<32x128xf32>
    %cst_217 = arith.constant 0.000000e+00 : f32
    %562 = vector.broadcast %cst_217 : f32 to vector<32x128xf32>
    %563 = arith.cmpf oge, %561, %562 : vector<32x128xf32>
    %cst_218 = arith.constant 1.000000e+00 : f32
    %cst_219 = arith.constant -1.000000e+00 : f32
    %564 = vector.broadcast %cst_218 : f32 to vector<32x128xf32>
    %565 = vector.broadcast %cst_219 : f32 to vector<32x128xf32>
    %566 = arith.select %563, %564, %565 : vector<32x128xi1>, vector<32x128xf32>
    %567 = math.absf %561 : vector<32x128xf32>
    %cst_220 = arith.constant 0.327591091 : f32
    %568 = vector.broadcast %cst_220 : f32 to vector<32x128xf32>
    %569 = arith.mulf %568, %567 : vector<32x128xf32>
    %cst_221 = arith.constant 1.000000e+00 : f32
    %570 = vector.broadcast %cst_221 : f32 to vector<32x128xf32>
    %571 = arith.addf %570, %569 : vector<32x128xf32>
    %cst_222 = arith.constant 1.000000e+00 : f32
    %572 = vector.broadcast %cst_222 : f32 to vector<32x128xf32>
    %573 = arith.divf %572, %571 : vector<32x128xf32>
    %cst_223 = arith.constant 1.06140542 : f32
    %574 = vector.broadcast %cst_223 : f32 to vector<32x128xf32>
    %575 = arith.mulf %574, %573 : vector<32x128xf32>
    %cst_224 = arith.constant -1.45315206 : f32
    %576 = vector.broadcast %cst_224 : f32 to vector<32x128xf32>
    %577 = arith.addf %575, %576 : vector<32x128xf32>
    %578 = arith.mulf %577, %573 : vector<32x128xf32>
    %cst_225 = arith.constant 1.42141378 : f32
    %579 = vector.broadcast %cst_225 : f32 to vector<32x128xf32>
    %580 = arith.addf %578, %579 : vector<32x128xf32>
    %581 = arith.mulf %580, %573 : vector<32x128xf32>
    %cst_226 = arith.constant -0.284496725 : f32
    %582 = vector.broadcast %cst_226 : f32 to vector<32x128xf32>
    %583 = arith.addf %581, %582 : vector<32x128xf32>
    %584 = arith.mulf %583, %573 : vector<32x128xf32>
    %cst_227 = arith.constant 0.254829586 : f32
    %585 = vector.broadcast %cst_227 : f32 to vector<32x128xf32>
    %586 = arith.addf %584, %585 : vector<32x128xf32>
    %587 = arith.mulf %586, %573 : vector<32x128xf32>
    %cst_228 = arith.constant 0.000000e+00 : f32
    %588 = vector.broadcast %cst_228 : f32 to vector<32x128xf32>
    %589 = arith.subf %588, %567 : vector<32x128xf32>
    %590 = arith.mulf %589, %567 : vector<32x128xf32>
    %591 = math.exp %590 : vector<32x128xf32>
    %592 = arith.mulf %587, %591 : vector<32x128xf32>
    %cst_229 = arith.constant 1.000000e+00 : f32
    %593 = vector.broadcast %cst_229 : f32 to vector<32x128xf32>
    %594 = arith.subf %593, %592 : vector<32x128xf32>
    %595 = arith.mulf %566, %594 : vector<32x128xf32>
    %cst_230 = arith.constant 1.000000e+00 : f32
    %596 = vector.broadcast %cst_230 : f32 to vector<32x128xf32>
    %597 = arith.addf %596, %595 : vector<32x128xf32>
    %598 = arith.mulf %559, %597 : vector<32x128xf32>
    %c1_231 = arith.constant 1 : index
    %c0_232 = arith.constant 0 : index
    %c0_233 = arith.constant 0 : index
    %599 = vector.load %arg12[%c1_231, %c0_232, %c0_233] : memref<2x128x64xf32, #tpu.memory_space<vmem>>, vector<1x128x64xf32>
    %600 = vector.shape_cast %599 : vector<1x128x64xf32> to vector<128x64xf32>
    %cst_234 = arith.constant dense<0.000000e+00> : vector<32x64xf32>
    %601 = tpu.matmul %598, %600, %cst_234 {dimension_numbers = #tpu.dot_dimension_numbers<[1], [0], [0], [1], [0, 0, 1, 1], [], []>} : vector<32x128xf32>, vector<128x64xf32>, vector<32x64xf32> -> vector<32x64xf32>
    %c1_235 = arith.constant 1 : index
    %c0_236 = arith.constant 0 : index
    %c0_237 = arith.constant 0 : index
    %602 = vector.load %arg13[%c1_235, %c0_236, %c0_237] : memref<2x1x64xf32, #tpu.memory_space<vmem>>, vector<1x1x64xf32>
    %603 = vector.shape_cast %602 : vector<1x1x64xf32> to vector<1x64xf32>
    %604 = vector.broadcast %603 : vector<1x64xf32> to vector<32x64xf32>
    %605 = arith.addf %601, %604 : vector<32x64xf32>
    %606 = arith.addf %550, %605 : vector<32x64xf32>
    %c1_238 = arith.constant 1 : index
    %c0_239 = arith.constant 0 : index
    %c0_240 = arith.constant 0 : index
    %607 = vector.load %arg14[%c1_238, %c0_239, %c0_240] : memref<2x1x64xf32, #tpu.memory_space<vmem>>, vector<1x1x64xf32>
    %608 = vector.shape_cast %607 : vector<1x1x64xf32> to vector<1x64xf32>
    %c1_241 = arith.constant 1 : index
    %c0_242 = arith.constant 0 : index
    %c0_243 = arith.constant 0 : index
    %609 = vector.load %arg15[%c1_241, %c0_242, %c0_243] : memref<2x1x64xf32, #tpu.memory_space<vmem>>, vector<1x1x64xf32>
    %610 = vector.shape_cast %609 : vector<1x1x64xf32> to vector<1x64xf32>
    %cst_244 = arith.constant dense<0.000000e+00> : vector<32xf32>
    %611 = vector.multi_reduction <add>, %606, %cst_244 [1] : vector<32x64xf32> to vector<32xf32>
    %612 = vector.shape_cast %611 : vector<32xf32> to vector<32x1xf32>
    %cst_245 = arith.constant 6.400000e+01 : f32
    %613 = vector.broadcast %cst_245 : f32 to vector<32x1xf32>
    %614 = arith.divf %612, %613 : vector<32x1xf32>
    %615 = vector.broadcast %614 : vector<32x1xf32> to vector<32x64xf32>
    %616 = arith.subf %606, %615 : vector<32x64xf32>
    %617 = arith.mulf %616, %616 : vector<32x64xf32>
    %cst_246 = arith.constant dense<0.000000e+00> : vector<32xf32>
    %618 = vector.multi_reduction <add>, %617, %cst_246 [1] : vector<32x64xf32> to vector<32xf32>
    %619 = vector.shape_cast %618 : vector<32xf32> to vector<32x1xf32>
    %cst_247 = arith.constant 6.400000e+01 : f32
    %620 = vector.broadcast %cst_247 : f32 to vector<32x1xf32>
    %621 = arith.divf %619, %620 : vector<32x1xf32>
    %622 = vector.broadcast %614 : vector<32x1xf32> to vector<32x64xf32>
    %623 = arith.subf %606, %622 : vector<32x64xf32>
    %cst_248 = arith.constant 9.99999974E-6 : f32
    %624 = vector.broadcast %cst_248 : f32 to vector<32x1xf32>
    %625 = arith.addf %621, %624 : vector<32x1xf32>
    %626 = math.rsqrt %625 : vector<32x1xf32>
    %627 = vector.broadcast %626 : vector<32x1xf32> to vector<32x64xf32>
    %628 = arith.mulf %623, %627 : vector<32x64xf32>
    %629 = vector.broadcast %608 : vector<1x64xf32> to vector<32x64xf32>
    %630 = arith.mulf %628, %629 : vector<32x64xf32>
    %631 = vector.broadcast %610 : vector<1x64xf32> to vector<32x64xf32>
    %632 = arith.addf %630, %631 : vector<32x64xf32>
    %633 = vector.shape_cast %632 : vector<32x64xf32> to vector<2x16x64xf32>
    %634 = vector.extract_strided_slice %633 {offsets = [0, 15, 0], sizes = [2, 1, 64], strides = [1, 1, 1]} : vector<2x16x64xf32> to vector<2x1x64xf32>
    %635 = vector.shape_cast %634 : vector<2x1x64xf32> to vector<2x64xf32>
    %c0_249 = arith.constant 0 : index
    %c0_250 = arith.constant 0 : index
    %636 = vector.load %arg16[%c0_249, %c0_250] : memref<64x256xf32, #tpu.memory_space<vmem>>, vector<64x256xf32>
    %cst_251 = arith.constant dense<0.000000e+00> : vector<2x256xf32>
    %637 = tpu.matmul %635, %636, %cst_251 {dimension_numbers = #tpu.dot_dimension_numbers<[1], [0], [0], [1], [0, 0, 1, 1], [], []>} : vector<2x64xf32>, vector<64x256xf32>, vector<2x256xf32> -> vector<2x256xf32>
    %c0_252 = arith.constant 0 : index
    %c0_253 = arith.constant 0 : index
    %638 = vector.load %arg17[%c0_252, %c0_253] : memref<1x256xf32, #tpu.memory_space<vmem>>, vector<1x256xf32>
    %639 = vector.broadcast %638 : vector<1x256xf32> to vector<2x256xf32>
    %640 = arith.addf %637, %639 : vector<2x256xf32>
    %cst_254 = arith.constant 0.000000e+00 : f32
    %641 = vector.broadcast %cst_254 : f32 to vector<2x256xf32>
    %642 = arith.maximumf %640, %641 : vector<2x256xf32>
    %c0_255 = arith.constant 0 : index
    %c0_256 = arith.constant 0 : index
    %643 = vector.load %arg18[%c0_255, %c0_256] : memref<256x8xf32, #tpu.memory_space<vmem>>, vector<256x8xf32>
    %cst_257 = arith.constant dense<0.000000e+00> : vector<2x8xf32>
    %644 = tpu.matmul %642, %643, %cst_257 {dimension_numbers = #tpu.dot_dimension_numbers<[1], [0], [0], [1], [0, 0, 1, 1], [], []>} : vector<2x256xf32>, vector<256x8xf32>, vector<2x8xf32> -> vector<2x8xf32>
    %c0_258 = arith.constant 0 : index
    %c0_259 = arith.constant 0 : index
    %645 = vector.load %arg19[%c0_258, %c0_259] : memref<1x8xf32, #tpu.memory_space<vmem>>, vector<1x8xf32>
    %646 = vector.broadcast %645 : vector<1x8xf32> to vector<2x8xf32>
    %647 = arith.addf %644, %646 : vector<2x8xf32>
    %c0_260 = arith.constant 0 : index
    %c0_261 = arith.constant 0 : index
    %648 = vector.load %arg20[%c0_260, %c0_261] : memref<2x8xf32, #tpu.memory_space<vmem>>, vector<2x8xf32>
    tpu.vector_store %arg20[%c0_260, %c0_261], %647 {strides = array<i32>} : memref<2x8xf32, #tpu.memory_space<vmem>>, vector<2x8xf32>,
    %cst_262 = arith.constant dense<0xFF800000> : vector<2xf32>
    %649 = vector.multi_reduction <maximumf>, %647, %cst_262 [1] : vector<2x8xf32> to vector<2xf32>
    %650 = vector.shape_cast %649 : vector<2xf32> to vector<2x1xf32>
    %651 = vector.broadcast %650 : vector<2x1xf32> to vector<2x8xf32>
    %652 = arith.subf %647, %651 : vector<2x8xf32>
    %653 = math.exp %652 : vector<2x8xf32>
    %cst_263 = arith.constant dense<0.000000e+00> : vector<2xf32>
    %654 = vector.multi_reduction <add>, %653, %cst_263 [1] : vector<2x8xf32> to vector<2xf32>
    %655 = vector.shape_cast %654 : vector<2xf32> to vector<2x1xf32>
    %656 = vector.broadcast %655 : vector<2x1xf32> to vector<2x8xf32>
    %657 = arith.divf %653, %656 : vector<2x8xf32>
    %c0_264 = arith.constant 0 : index
    %c0_265 = arith.constant 0 : index
    %658 = vector.load %arg21[%c0_264, %c0_265] : memref<2x8xf32, #tpu.memory_space<vmem>>, vector<2x8xf32>
    tpu.vector_store %arg21[%c0_264, %c0_265], %657 {strides = array<i32>} : memref<2x8xf32, #tpu.memory_space<vmem>>, vector<2x8xf32>,
    return
  }
}

</mosaic_0001>

<llo_original>
// kernel: transformer_forward.1
$region0: #{transformer_forward.1}
  #allocation0 [shape = 'u32[]', space=smem, size = 0x4, offset = 0x4, fixed_abs, tag = 'smem constant byte address 0x4 - core index']
  #allocation1 [shape = 'u32[144,128]{1,0:T(1,128)}', space=vmem, size = 0x12000, scoped, tag = 'internal scratch']
  #allocation2 [shape = 'f32[32,64]{1,0:T(8,128)}', space=vmem, size = 0x4000, scoped, tag = 'scratch operand']
  %s0 = inlined_call_operand.vmem [shape: s32[32,1], index: 0, kind: input, shape index: {}]
  %s1 = inlined_call_operand.vmem [shape: f32[2,1,16], index: 1, kind: input, shape index: {}]
  %s2 = inlined_call_operand.vmem [shape: f32[128,64], index: 2, kind: input, shape index: {}]
  %s3 = inlined_call_operand.vmem [shape: f32[16,64], index: 3, kind: input, shape index: {}]
  %s4 = inlined_call_operand.vmem [shape: f32[2,64,192], index: 4, kind: input, shape index: {}]
  %s5 = inlined_call_operand.vmem [shape: f32[2,1,192], index: 5, kind: input, shape index: {}]
  %s6 = inlined_call_operand.vmem [shape: f32[2,64,64], index: 6, kind: input, shape index: {}]
  %s7 = inlined_call_operand.vmem [shape: f32[2,1,64], index: 7, kind: input, shape index: {}]
  %s8 = inlined_call_operand.vmem [shape: f32[2,1,64], index: 8, kind: input, shape index: {}]
  %s9 = inlined_call_operand.vmem [shape: f32[2,1,64], index: 9, kind: input, shape index: {}]
  %s10 = inlined_call_operand.vmem [shape: f32[2,64,128], index: 10, kind: input, shape index: {}]
  %s11 = inlined_call_operand.vmem [shape: f32[2,1,128], index: 11, kind: input, shape index: {}]
  %s12 = inlined_call_operand.vmem [shape: f32[2,128,64], index: 12, kind: input, shape index: {}]
  %s13 = inlined_call_operand.vmem [shape: f32[2,1,64], index: 13, kind: input, shape index: {}]
  %s14 = inlined_call_operand.vmem [shape: f32[2,1,64], index: 14, kind: input, shape index: {}]
  %s15 = inlined_call_operand.vmem [shape: f32[2,1,64], index: 15, kind: input, shape index: {}]
  %s16 = inlined_call_operand.vmem [shape: f32[64,256], index: 16, kind: input, shape index: {}]
  %s17 = inlined_call_operand.vmem [shape: f32[1,256], index: 17, kind: input, shape index: {}]
  %s18 = inlined_call_operand.vmem [shape: f32[256,8], index: 18, kind: input, shape index: {}]
  %s19 = inlined_call_operand.vmem [shape: f32[1,8], index: 19, kind: input, shape index: {}]
  %s20 = inlined_call_operand.hbm [shape: f32[2,8], index: 20, kind: output, shape index: {0}]
  %s21 = inlined_call_operand.hbm [shape: f32[2,8], index: 21, kind: output, shape index: {1}]
  %22 = xla_tuple %s20, %s21
  %s23 = sld [smem:[#allocation0]]
  $region98: #{transformer_forward.1} parent=0
    _
  %s25 = ssub.s32 1, %s23
  %s26 = scalar_select 0, %s25, %s23
  $region1: #{transformer_forward.1} parent=0
    #allocation3 [shape = 'u8[1024]{0}', space=vmem, size = 0x400, scoped, tag = 'output window, operand 0, single buffered']
    #allocation4 [shape = 's32[1]{0}', space=sflag, size = 0x4, scoped, tag = 'scoped memory for transformer_forward.1']
    #allocation5 [shape = 'u8[1024]{0}', space=vmem, size = 0x400, scoped, tag = 'output window, operand 1, single buffered']
    #allocation6 [shape = 's32[1]{0}', space=sflag, size = 0x4, scoped, tag = 'scoped memory for transformer_forward.1']
    %27 = vsyncpa [#allocation4], 0
    %28 = vsyncpa [#allocation6], 0
    // Predicated region
    $region2: #{transformer_forward.1} parent=1 // pred_check
      _
    $region3: #{transformer_forward.1} parent=1 // pred_check_branch
      %30 = sbr.rel (0) target = $region5
    $region4: #{transformer_forward.1} parent=1 // pred_region
      _
    $region5: #{transformer_forward.1} parent=1 // pred_fallthru
      _
    // Predicated region
    $region6: #{transformer_forward.1} parent=1 // pred_check
      _
    $region7: #{transformer_forward.1} parent=1 // pred_check_branch
      %32 = sbr.rel (0) target = $region9
    $region8: #{transformer_forward.1} parent=1 // pred_region
      _
    $region9: #{transformer_forward.1} parent=1 // pred_fallthru
      _
    // Predicated region
    $region10: #{transformer_forward.1} parent=1 // pred_check
      _
    $region11: #{transformer_forward.1} parent=1 // pred_check_branch
      %34 = sbr.rel (0) target = $region13
    $region12: #{transformer_forward.1} parent=1 // pred_region
      _
    $region13: #{transformer_forward.1} parent=1 // pred_fallthru
      _
    // Predicated region
    $region14: #{transformer_forward.1} parent=1 // pred_check
      _
    $region15: #{transformer_forward.1} parent=1 // pred_check_branch
      %36 = sbr.rel (0) target = $region17
    $region16: #{transformer_forward.1} parent=1 // pred_region
      _
    $region17: #{transformer_forward.1} parent=1 // pred_fallthru
      _
    // Predicated region
    $region18: #{transformer_forward.1} parent=1 // pred_check
      _
    $region19: #{transformer_forward.1} parent=1 // pred_check_branch
      %38 = sbr.rel (0) target = $region21
    $region20: #{transformer_forward.1} parent=1 // pred_region
      _
    $region21: #{transformer_forward.1} parent=1 // pred_fallthru
      _
    // Predicated region
    $region22: #{transformer_forward.1} parent=1 // pred_check
      _
    $region23: #{transformer_forward.1} parent=1 // pred_check_branch
      %40 = sbr.rel (0) target = $region25
    $region24: #{transformer_forward.1} parent=1 // pred_region
      _
    $region25: #{transformer_forward.1} parent=1 // pred_fallthru
      _
    // Predicated region
    $region26: #{transformer_forward.1} parent=1 // pred_check
      _
    $region27: #{transformer_forward.1} parent=1 // pred_check_branch
      %42 = sbr.rel (0) target = $region29
    $region28: #{transformer_forward.1} parent=1 // pred_region
      _
    $region29: #{transformer_forward.1} parent=1 // pred_fallthru
      _
    // Predicated region
    $region30: #{transformer_forward.1} parent=1 // pred_check
      _
    $region31: #{transformer_forward.1} parent=1 // pred_check_branch
      %44 = sbr.rel (0) target = $region33
    $region32: #{transformer_forward.1} parent=1 // pred_region
      _
    $region33: #{transformer_forward.1} parent=1 // pred_fallthru
      _
    // Predicated region
    $region34: #{transformer_forward.1} parent=1 // pred_check
      _
    $region35: #{transformer_forward.1} parent=1 // pred_check_branch
      %46 = sbr.rel (0) target = $region37
    $region36: #{transformer_forward.1} parent=1 // pred_region
      _
    $region37: #{transformer_forward.1} parent=1 // pred_fallthru
      _
    // Predicated region
    $region38: #{transformer_forward.1} parent=1 // pred_check
      _
    $region39: #{transformer_forward.1} parent=1 // pred_check_branch
      %48 = sbr.rel (0) target = $region41
    $region40: #{transformer_forward.1} parent=1 // pred_region
      _
    $region41: #{transformer_forward.1} parent=1 // pred_fallthru
      _
    // Predicated region
    $region42: #{transformer_forward.1} parent=1 // pred_check
      _
    $region43: #{transformer_forward.1} parent=1 // pred_check_branch
      %50 = sbr.rel (0) target = $region45
    $region44: #{transformer_forward.1} parent=1 // pred_region
      _
    $region45: #{transformer_forward.1} parent=1 // pred_fallthru
      _
    // Predicated region
    $region46: #{transformer_forward.1} parent=1 // pred_check
      _
    $region47: #{transformer_forward.1} parent=1 // pred_check_branch
      %52 = sbr.rel (0) target = $region49
    $region48: #{transformer_forward.1} parent=1 // pred_region
      _
    $region49: #{transformer_forward.1} parent=1 // pred_fallthru
      _
    // Predicated region
    $region50: #{transformer_forward.1} parent=1 // pred_check
      _
    $region51: #{transformer_forward.1} parent=1 // pred_check_branch
      %54 = sbr.rel (0) target = $region53
    $region52: #{transformer_forward.1} parent=1 // pred_region
      _
    $region53: #{transformer_forward.1} parent=1 // pred_fallthru
      _
    // Predicated region
    $region54: #{transformer_forward.1} parent=1 // pred_check
      _
    $region55: #{transformer_forward.1} parent=1 // pred_check_branch
      %56 = sbr.rel (0) target = $region57
    $region56: #{transformer_forward.1} parent=1 // pred_region
      _
    $region57: #{transformer_forward.1} parent=1 // pred_fallthru
      _
    // Predicated region
    $region58: #{transformer_forward.1} parent=1 // pred_check
      _
    $region59: #{transformer_forward.1} parent=1 // pred_check_branch
      %58 = sbr.rel (0) target = $region61
    $region60: #{transformer_forward.1} parent=1 // pred_region
      _
    $region61: #{transformer_forward.1} parent=1 // pred_fallthru
      _
    // Predicated region
    $region62: #{transformer_forward.1} parent=1 // pred_check
      _
    $region63: #{transformer_forward.1} parent=1 // pred_check_branch
      %60 = sbr.rel (0) target = $region65
    $region64: #{transformer_forward.1} parent=1 // pred_region
      _
    $region65: #{transformer_forward.1} parent=1 // pred_fallthru
      _
    // Predicated region
    $region66: #{transformer_forward.1} parent=1 // pred_check
      _
    $region67: #{transformer_forward.1} parent=1 // pred_check_branch
      %62 = sbr.rel (0) target = $region69
    $region68: #{transformer_forward.1} parent=1 // pred_region
      _
    $region69: #{transformer_forward.1} parent=1 // pred_fallthru
      _
    // Predicated region
    $region70: #{transformer_forward.1} parent=1 // pred_check
      _
    $region71: #{transformer_forward.1} parent=1 // pred_check_branch
      %64 = sbr.rel (0) target = $region73
    $region72: #{transformer_forward.1} parent=1 // pred_region
      _
    $region73: #{transformer_forward.1} parent=1 // pred_fallthru
      _
    // Predicated region
    $region74: #{transformer_forward.1} parent=1 // pred_check
      _
    $region75: #{transformer_forward.1} parent=1 // pred_check_branch
      %66 = sbr.rel (0) target = $region77
    $region76: #{transformer_forward.1} parent=1 // pred_region
      _
    $region77: #{transformer_forward.1} parent=1 // pred_fallthru
      _
    // Predicated region
    $region78: #{transformer_forward.1} parent=1 // pred_check
      _
    $region79: #{transformer_forward.1} parent=1 // pred_check_branch
      %68 = sbr.rel (0) target = $region81
    $region80: #{transformer_forward.1} parent=1 // pred_region
      _
    $region81: #{transformer_forward.1} parent=1 // pred_fallthru
      _
    %v69 = vld [vmem:[%s0] sm:$0xff]
    %v70 = vld [vmem:[%s0 + $0x8] sm:$0xff]
    %v71 = vld [vmem:[%s0 + $0x10] sm:$0xff]
    %v72 = vld [vmem:[%s0 + $0x18] sm:$0xff]
    %v73 = vlaneseq
    %v74 = vand.u32 %v73, 127
    %75 = vset.pattern.permute.xlu0 0
    %76 = vperm.xlu0 %75, %v69
    %v77 = vpop.permute.xlu0 %76
    %78 = vset.pattern.permute.xlu0 0
    %79 = vperm.xlu0 %78, %v70
    %v80 = vpop.permute.xlu0 %79
    %81 = vset.pattern.permute.xlu0 0
    %82 = vperm.xlu0 %81, %v71
    %v83 = vpop.permute.xlu0 %82
    %84 = vset.pattern.permute.xlu0 0
    %85 = vperm.xlu0 %84, %v72
    %v86 = vpop.permute.xlu0 %85
    %vm87 = vcmp.eq.s32.totalorder %v74, %v77
    %vm88 = vcmp.eq.s32.totalorder %v74, %v80
    %vm89 = vcmp.eq.s32.totalorder %v74, %v83
    %vm90 = vcmp.eq.s32.totalorder %v74, %v86
    %v91 = vsel %vm87, 1, 0
    %v92 = vsel %vm88, 1, 0
    %v93 = vsel %vm89, 1, 0
    %v94 = vsel %vm90, 1, 0
    %v95 = vcvt.s32.f32 %v91
    %v96 = vcvt.s32.f32 %v92
    %v97 = vcvt.s32.f32 %v93
    %v98 = vcvt.s32.f32 %v94
    %v99 = vld [vmem:[%s2] sm:$0xff]
    %v100 = vld [vmem:[%s2 + $0x8] sm:$0xff]
    %v101 = vld [vmem:[%s2 + $0x10] sm:$0xff]
    %v102 = vld [vmem:[%s2 + $0x18] sm:$0xff]
    %v103 = vld [vmem:[%s2 + $0x20] sm:$0xff]
    %v104 = vld [vmem:[%s2 + $0x28] sm:$0xff]
    %v105 = vld [vmem:[%s2 + $0x30] sm:$0xff]
    %v106 = vld [vmem:[%s2 + $0x38] sm:$0xff]
    %v107 = vld [vmem:[%s2 + $0x40] sm:$0xff]
    %v108 = vld [vmem:[%s2 + $0x48] sm:$0xff]
    %v109 = vld [vmem:[%s2 + $0x50] sm:$0xff]
    %v110 = vld [vmem:[%s2 + $0x58] sm:$0xff]
    %v111 = vld [vmem:[%s2 + $0x60] sm:$0xff]
    %v112 = vld [vmem:[%s2 + $0x68] sm:$0xff]
    %v113 = vld [vmem:[%s2 + $0x70] sm:$0xff]
    %v114 = vld [vmem:[%s2 + $0x78] sm:$0xff]
    %115 = vmatprep.subr.mxu0 0.0
    %116 = vmatpush1.msra.mxu0 %v114
    %117 = vmatprep.subr.mxu0 0.0
    %118 = vmatpush1.msra.mxu0 %v113
    %119 = vmatprep.subr.mxu0 0.0
    %120 = vmatpush1.msra.mxu0 %v112
    %121 = vmatprep.subr.mxu0 0.0
    %122 = vmatpush1.msra.mxu0 %v111
    %123 = vmatprep.subr.mxu0 0.0
    %124 = vmatpush1.msra.mxu0 %v110
    %125 = vmatprep.subr.mxu0 0.0
    %126 = vmatpush1.msra.mxu0 %v109
    %127 = vmatprep.subr.mxu0 0.0
    %128 = vmatpush1.msra.mxu0 %v108
    %129 = vmatprep.subr.mxu0 0.0
    %130 = vmatpush1.msra.mxu0 %v107
    %131 = vmatprep.subr.mxu0 0.0
    %132 = vmatpush1.msra.mxu0 %v106
    %133 = vmatprep.subr.mxu0 0.0
    %134 = vmatpush1.msra.mxu0 %v105
    %135 = vmatprep.subr.mxu0 0.0
    %136 = vmatpush1.msra.mxu0 %v104
    %137 = vmatprep.subr.mxu0 0.0
    %138 = vmatpush1.msra.mxu0 %v103
    %139 = vmatprep.subr.mxu0 0.0
    %140 = vmatpush1.msra.mxu0 %v102
    %141 = vmatprep.subr.mxu0 0.0
    %142 = vmatpush1.msra.mxu0 %v101
    %143 = vmatprep.subr.mxu0 0.0
    %144 = vmatpush1.msra.mxu0 %v100
    %145 = vmatprep.subr.mxu0 0.0
    %146 = vmatpush1.msra.mxu0 %v99
    %147 = vmatprep.subr.mxu0 0.0
    %148 = vmatpush2.msra.mxu0 0.0
    %149 = vmatprep.subr.mxu0 0.0
    %150 = vmatpush2.msra.mxu0 0.0
    %151 = vmatprep.subr.mxu0 0.0
    %152 = vmatpush2.msra.mxu0 0.0
    %153 = vmatprep.subr.mxu0 0.0
    %154 = vmatpush2.msra.mxu0 0.0
    %155 = vmatprep.subr.mxu0 0.0
    %156 = vmatpush2.msra.mxu0 0.0
    %157 = vmatprep.subr.mxu0 0.0
    %158 = vmatpush2.msra.mxu0 0.0
    %159 = vmatprep.subr.mxu0 0.0
    %160 = vmatpush2.msra.mxu0 0.0
    %161 = vmatprep.subr.mxu0 0.0
    %162 = vmatpush2.msra.mxu0 0.0
    %163 = vmatprep.subr.mxu0 0.0
    %164 = vmatpush2.msra.mxu0 0.0
    %165 = vmatprep.subr.mxu0 0.0
    %166 = vmatpush2.msra.mxu0 0.0
    %167 = vmatprep.subr.mxu0 0.0
    %168 = vmatpush2.msra.mxu0 0.0
    %169 = vmatprep.subr.mxu0 0.0
    %170 = vmatpush2.msra.mxu0 0.0
    %171 = vmatprep.subr.mxu0 0.0
    %172 = vmatpush2.msra.mxu0 0.0
    %173 = vmatprep.subr.mxu0 0.0
    %174 = vmatpush2.msra.mxu0 0.0
    %175 = vmatprep.subr.mxu0 0.0
    %176 = vmatpush2.msra.mxu0 0.0
    %177 = vmatprep.subr.mxu0 0.0
    %178 = vmatpush2.msra.mxu0 0.0
    %179 = vmatprep.mubr.f32.mxu0 0.0
    %180 = vmatmul.mubr.f32.gmra.mxu0 %v95
    %v181 = vpop.f32.mrf.mxu0
    %v182 = vadd.f32 0.0, %v181
    %v183 = vpop.f32.mrf.mxu0
    %184 = vmatprep.mubr.f32.mxu0 0.0
    %185 = vmatmul.mubr.f32.gmra.mxu0 %v96
    %v186 = vpop.f32.mrf.mxu0
    %v187 = vadd.f32 0.0, %v186
    %v188 = vpop.f32.mrf.mxu0
    %189 = vmatprep.mubr.f32.mxu0 0.0
    %190 = vmatmul.mubr.f32.gmra.mxu0 %v97
    %v191 = vpop.f32.mrf.mxu0
    %v192 = vadd.f32 0.0, %v191
    %v193 = vpop.f32.mrf.mxu0
    %194 = vmatprep.mubr.f32.mxu0 0.0
    %195 = vmatmul.mubr.f32.gmra.mxu0 %v98
    %v196 = vpop.f32.mrf.mxu0
    %v197 = vadd.f32 0.0, %v196
    %v198 = vpop.f32.mrf.mxu0
    %199 = vdwg.mxu0
    %v200 = vld [vmem:[%s3] sm:$0xff]
    %v201 = vld [vmem:[%s3 + $0x8] sm:$0xff]
    %v202 = vadd.f32 %v182, %v200
    %v203 = vadd.f32 %v187, %v201
    %v204 = vadd.f32 %v192, %v200
    %v205 = vadd.f32 %v197, %v201
    %v206 = vld [vmem:[%s1] sm:$0x1]
    %v207 = vld [vmem:[%s1 + $0x1] sm:$0x1]
    %v208 = vmul.f32 %v206, -1e+09
    %v209 = vmul.f32 %v207, -1e+09
    %v210 = vld [vmem:[%s4] sm:$0xff]
    %v211 = vld [vmem:[%s4 + $0x8] sm:$0xff]
    %v212 = vld [vmem:[%s4 + $0x10] sm:$0xff]
    %v213 = vld [vmem:[%s4 + $0x18] sm:$0xff]
    %v214 = vld [vmem:[%s4 + $0x20] sm:$0xff]
    %v215 = vld [vmem:[%s4 + $0x28] sm:$0xff]
    %v216 = vld [vmem:[%s4 + $0x30] sm:$0xff]
    %v217 = vld [vmem:[%s4 + $0x38] sm:$0xff]
    %v218 = vld [vmem:[%s4 + $0x40] sm:$0xff]
    %v219 = vld [vmem:[%s4 + $0x48] sm:$0xff]
    %v220 = vld [vmem:[%s4 + $0x50] sm:$0xff]
    %v221 = vld [vmem:[%s4 + $0x58] sm:$0xff]
    %v222 = vld [vmem:[%s4 + $0x60] sm:$0xff]
    %v223 = vld [vmem:[%s4 + $0x68] sm:$0xff]
    %v224 = vld [vmem:[%s4 + $0x70] sm:$0xff]
    %v225 = vld [vmem:[%s4 + $0x78] sm:$0xff]
    %v226 = vld [vmem:[%s5] sm:$0x3]
    %v228 = vlaneseq
    %v229 = vshrl.u32 %v228, 7
    %v230 = vsub.s32 0, %v229
    %v231 = vrot.slane %v226, %v230
    %v232 = vlaneseq
    %v233 = vshrl.u32 %v232, 7
    %v234 = vsub.s32 1, %v233
    %v235 = vrot.slane %v226, %v234
    %vm238 = vcmask 523264
    %v240 = vsel %vm238, %v202, 0
    %v243 = vsel %vm238, %v203, 0
    %v246 = vsel %vm238, %v204, 0
    %v249 = vsel %vm238, %v205, 0
    %251 = vmatprep.subr.mxu0 0.0
    %252 = vmatpush1.msra.mxu0 0.0
    %253 = vmatprep.subr.mxu0 0.0
    %254 = vmatpush1.msra.mxu0 0.0
    %255 = vmatprep.subr.mxu0 0.0
    %256 = vmatpush1.msra.mxu0 0.0
    %257 = vmatprep.subr.mxu0 0.0
    %258 = vmatpush1.msra.mxu0 0.0
    %259 = vmatprep.subr.mxu0 0.0
    %260 = vmatpush1.msra.mxu0 0.0
    %261 = vmatprep.subr.mxu0 0.0
    %262 = vmatpush1.msra.mxu0 0.0
    %263 = vmatprep.subr.mxu0 0.0
    %264 = vmatpush1.msra.mxu0 0.0
    %265 = vmatprep.subr.mxu0 0.0
    %266 = vmatpush1.msra.mxu0 0.0
    %267 = vmatprep.subr.mxu0 %v225
    %268 = vmatpush1.msra.mxu0 %v224
    %269 = vmatprep.subr.mxu0 %v223
    %270 = vmatpush1.msra.mxu0 %v222
    %271 = vmatprep.subr.mxu0 %v221
    %272 = vmatpush1.msra.mxu0 %v220
    %273 = vmatprep.subr.mxu0 %v219
    %274 = vmatpush1.msra.mxu0 %v218
    %275 = vmatprep.subr.mxu0 %v217
    %276 = vmatpush1.msra.mxu0 %v216
    %277 = vmatprep.subr.mxu0 %v215
    %278 = vmatpush1.msra.mxu0 %v214
    %279 = vmatprep.subr.mxu0 %v213
    %280 = vmatpush1.msra.mxu0 %v212
    %281 = vmatprep.subr.mxu0 %v211
    %282 = vmatpush1.msra.mxu0 %v210
    %283 = vmatprep.subr.mxu0 0.0
    %284 = vmatpush2.msra.mxu0 0.0
    %285 = vmatprep.subr.mxu0 0.0
    %286 = vmatpush2.msra.mxu0 0.0
    %287 = vmatprep.subr.mxu0 0.0
    %288 = vmatpush2.msra.mxu0 0.0
    %289 = vmatprep.subr.mxu0 0.0
    %290 = vmatpush2.msra.mxu0 0.0
    %291 = vmatprep.subr.mxu0 0.0
    %292 = vmatpush2.msra.mxu0 0.0
    %293 = vmatprep.subr.mxu0 0.0
    %294 = vmatpush2.msra.mxu0 0.0
    %295 = vmatprep.subr.mxu0 0.0
    %296 = vmatpush2.msra.mxu0 0.0
    %297 = vmatprep.subr.mxu0 0.0
    %298 = vmatpush2.msra.mxu0 0.0
    %299 = vmatprep.subr.mxu0 0.0
    %300 = vmatpush2.msra.mxu0 0.0
    %301 = vmatprep.subr.mxu0 0.0
    %302 = vmatpush2.msra.mxu0 0.0
    %303 = vmatprep.subr.mxu0 0.0
    %304 = vmatpush2.msra.mxu0 0.0
    %305 = vmatprep.subr.mxu0 0.0
    %306 = vmatpush2.msra.mxu0 0.0
    %307 = vmatprep.subr.mxu0 0.0
    %308 = vmatpush2.msra.mxu0 0.0
    %309 = vmatprep.subr.mxu0 0.0
    %310 = vmatpush2.msra.mxu0 0.0
    %311 = vmatprep.subr.mxu0 0.0
    %312 = vmatpush2.msra.mxu0 0.0
    %313 = vmatprep.subr.mxu0 0.0
    %314 = vmatpush2.msra.mxu0 0.0
    %315 = vmatprep.mubr.f32.mxu0 0.0
    %316 = vmatmul.mubr.f32.gmra.mxu0 %v240
    %v317 = vpop.f32.mrf.mxu0
    %v318 = vadd.f32 %v231, %v317
    %v319 = vpop.f32.mrf.mxu0
    %v320 = vadd.f32 %v235, %v319
    %321 = vmatprep.mubr.f32.mxu0 0.0
    %322 = vmatmul.mubr.f32.gmra.mxu0 %v243
    %v323 = vpop.f32.mrf.mxu0
    %v324 = vadd.f32 %v231, %v323
    %v325 = vpop.f32.mrf.mxu0
    %v326 = vadd.f32 %v235, %v325
    %327 = vmatprep.mubr.f32.mxu0 0.0
    %328 = vmatmul.mubr.f32.gmra.mxu0 %v246
    %v329 = vpop.f32.mrf.mxu0
    %v330 = vadd.f32 %v231, %v329
    %v331 = vpop.f32.mrf.mxu0
    %v332 = vadd.f32 %v235, %v331
    %333 = vmatprep.mubr.f32.mxu0 0.0
    %334 = vmatmul.mubr.f32.gmra.mxu0 %v249
    %v335 = vpop.f32.mrf.mxu0
    %v336 = vadd.f32 %v231, %v335
    %v337 = vpop.f32.mrf.mxu0
    %v338 = vadd.f32 %v235, %v337
    %339 = vdwg.mxu0
    %342 = vrot.lane.b32.xlu0 %v318, 64
    %v343 = vpop.permute.xlu0 %342
    %344 = vrot.lane.b32.xlu0 %v324, 64
    %v345 = vpop.permute.xlu0 %344
    %vm346 = vcmask 64512
    %v347 = vsel %vm346, %v318, 0
    %v349 = vsel %vm346, %v324, 0
    %v351 = vsel %vm346, %v343, 0
    %v353 = vsel %vm346, %v345, 0
    %355 = vmatprep.subr.mxu0 0.0
    %356 = vmatpush1.xpose.msra.mxu0 0.0
    %357 = vmatprep.subr.mxu0 0.0
    %358 = vmatpush1.xpose.msra.mxu0 0.0
    %359 = vmatprep.subr.mxu0 0.0
    %360 = vmatpush1.xpose.msra.mxu0 0.0
    %361 = vmatprep.subr.mxu0 0.0
    %362 = vmatpush1.xpose.msra.mxu0 0.0
    %363 = vmatprep.subr.mxu0 0.0
    %364 = vmatpush1.xpose.msra.mxu0 0.0
    %365 = vmatprep.subr.mxu0 0.0
    %366 = vmatpush1.xpose.msra.mxu0 0.0
    %367 = vmatprep.subr.mxu0 0.0
    %368 = vmatpush1.xpose.msra.mxu0 0.0
    %369 = vmatprep.subr.mxu0 0.0
    %370 = vmatpush1.xpose.msra.mxu0 0.0
    %371 = vmatprep.subr.mxu0 0.0
    %372 = vmatpush1.xpose.msra.mxu0 0.0
    %373 = vmatprep.subr.mxu0 0.0
    %374 = vmatpush1.xpose.msra.mxu0 0.0
    %375 = vmatprep.subr.mxu0 0.0
    %376 = vmatpush1.xpose.msra.mxu0 0.0
    %377 = vmatprep.subr.mxu0 0.0
    %378 = vmatpush1.xpose.msra.mxu0 0.0
    %379 = vmatprep.subr.mxu0 0.0
    %380 = vmatpush1.xpose.msra.mxu0 0.0
    %381 = vmatprep.subr.mxu0 0.0
    %382 = vmatpush1.xpose.msra.mxu0 0.0
    %383 = vmatprep.subr.mxu0 0.0
    %384 = vmatpush1.xpose.msra.mxu0 %v353
    %385 = vmatprep.subr.mxu0 0.0
    %386 = vmatpush1.xpose.msra.mxu0 %v351
    %387 = vmatprep.subr.mxu0 0.0
    %388 = vmatpush2.xpose.msra.mxu0 0.0
    %389 = vmatprep.subr.mxu0 0.0
    %390 = vmatpush2.xpose.msra.mxu0 0.0
    %391 = vmatprep.subr.mxu0 0.0
    %392 = vmatpush2.xpose.msra.mxu0 0.0
    %393 = vmatprep.subr.mxu0 0.0
    %394 = vmatpush2.xpose.msra.mxu0 0.0
    %395 = vmatprep.subr.mxu0 0.0
    %396 = vmatpush2.xpose.msra.mxu0 0.0
    %397 = vmatprep.subr.mxu0 0.0
    %398 = vmatpush2.xpose.msra.mxu0 0.0
    %399 = vmatprep.subr.mxu0 0.0
    %400 = vmatpush2.xpose.msra.mxu0 0.0
    %401 = vmatprep.subr.mxu0 0.0
    %402 = vmatpush2.xpose.msra.mxu0 0.0
    %403 = vmatprep.subr.mxu0 0.0
    %404 = vmatpush2.xpose.msra.mxu0 0.0
    %405 = vmatprep.subr.mxu0 0.0
    %406 = vmatpush2.xpose.msra.mxu0 0.0
    %407 = vmatprep.subr.mxu0 0.0
    %408 = vmatpush2.xpose.msra.mxu0 0.0
    %409 = vmatprep.subr.mxu0 0.0
    %410 = vmatpush2.xpose.msra.mxu0 0.0
    %411 = vmatprep.subr.mxu0 0.0
    %412 = vmatpush2.xpose.msra.mxu0 0.0
    %413 = vmatprep.subr.mxu0 0.0
    %414 = vmatpush2.xpose.msra.mxu0 0.0
    %415 = vmatprep.subr.mxu0 0.0
    %416 = vmatpush2.xpose.msra.mxu0 0.0
    %417 = vmatprep.subr.mxu0 0.0
    %418 = vmatpush2.xpose.msra.mxu0 0.0
    %419 = vmatprep.mubr.f32.mxu0 0.0
    %420 = vmatmul.mubr.f32.gmra.mxu0 %v347
    %v421 = vpop.f32.mrf.mxu0
    %v422 = vadd.f32 0.0, %v421
    %v423 = vpop.f32.mrf.mxu0
    %424 = vmatprep.mubr.f32.mxu0 0.0
    %425 = vmatmul.mubr.f32.gmra.mxu0 %v349
    %v426 = vpop.f32.mrf.mxu0
    %v427 = vadd.f32 0.0, %v426
    %v428 = vpop.f32.mrf.mxu0
    %429 = vdwg.mxu0
    %432 = vrot.lane.b32.xlu0 %v330, 64
    %v433 = vpop.permute.xlu0 %432
    %434 = vrot.lane.b32.xlu0 %v336, 64
    %v435 = vpop.permute.xlu0 %434
    %v436 = vsel %vm346, %v330, 0
    %v438 = vsel %vm346, %v336, 0
    %v440 = vsel %vm346, %v433, 0
    %v442 = vsel %vm346, %v435, 0
    %444 = vmatprep.subr.mxu0 0.0
    %445 = vmatpush1.xpose.msra.mxu0 0.0
    %446 = vmatprep.subr.mxu0 0.0
    %447 = vmatpush1.xpose.msra.mxu0 0.0
    %448 = vmatprep.subr.mxu0 0.0
    %449 = vmatpush1.xpose.msra.mxu0 0.0
    %450 = vmatprep.subr.mxu0 0.0
    %451 = vmatpush1.xpose.msra.mxu0 0.0
    %452 = vmatprep.subr.mxu0 0.0
    %453 = vmatpush1.xpose.msra.mxu0 0.0
    %454 = vmatprep.subr.mxu0 0.0
    %455 = vmatpush1.xpose.msra.mxu0 0.0
    %456 = vmatprep.subr.mxu0 0.0
    %457 = vmatpush1.xpose.msra.mxu0 0.0
    %458 = vmatprep.subr.mxu0 0.0
    %459 = vmatpush1.xpose.msra.mxu0 0.0
    %460 = vmatprep.subr.mxu0 0.0
    %461 = vmatpush1.xpose.msra.mxu0 0.0
    %462 = vmatprep.subr.mxu0 0.0
    %463 = vmatpush1.xpose.msra.mxu0 0.0
    %464 = vmatprep.subr.mxu0 0.0
    %465 = vmatpush1.xpose.msra.mxu0 0.0
    %466 = vmatprep.subr.mxu0 0.0
    %467 = vmatpush1.xpose.msra.mxu0 0.0
    %468 = vmatprep.subr.mxu0 0.0
    %469 = vmatpush1.xpose.msra.mxu0 0.0
    %470 = vmatprep.subr.mxu0 0.0
    %471 = vmatpush1.xpose.msra.mxu0 0.0
    %472 = vmatprep.subr.mxu0 0.0
    %473 = vmatpush1.xpose.msra.mxu0 %v442
    %474 = vmatprep.subr.mxu0 0.0
    %475 = vmatpush1.xpose.msra.mxu0 %v440
    %476 = vmatprep.subr.mxu0 0.0
    %477 = vmatpush2.xpose.msra.mxu0 0.0
    %478 = vmatprep.subr.mxu0 0.0
    %479 = vmatpush2.xpose.msra.mxu0 0.0
    %480 = vmatprep.subr.mxu0 0.0
    %481 = vmatpush2.xpose.msra.mxu0 0.0
    %482 = vmatprep.subr.mxu0 0.0
    %483 = vmatpush2.xpose.msra.mxu0 0.0
    %484 = vmatprep.subr.mxu0 0.0
    %485 = vmatpush2.xpose.msra.mxu0 0.0
    %486 = vmatprep.subr.mxu0 0.0
    %487 = vmatpush2.xpose.msra.mxu0 0.0
    %488 = vmatprep.subr.mxu0 0.0
    %489 = vmatpush2.xpose.msra.mxu0 0.0
    %490 = vmatprep.subr.mxu0 0.0
    %491 = vmatpush2.xpose.msra.mxu0 0.0
    %492 = vmatprep.subr.mxu0 0.0
    %493 = vmatpush2.xpose.msra.mxu0 0.0
    %494 = vmatprep.subr.mxu0 0.0
    %495 = vmatpush2.xpose.msra.mxu0 0.0
    %496 = vmatprep.subr.mxu0 0.0
    %497 = vmatpush2.xpose.msra.mxu0 0.0
    %498 = vmatprep.subr.mxu0 0.0
    %499 = vmatpush2.xpose.msra.mxu0 0.0
    %500 = vmatprep.subr.mxu0 0.0
    %501 = vmatpush2.xpose.msra.mxu0 0.0
    %502 = vmatprep.subr.mxu0 0.0
    %503 = vmatpush2.xpose.msra.mxu0 0.0
    %504 = vmatprep.subr.mxu0 0.0
    %505 = vmatpush2.xpose.msra.mxu0 0.0
    %506 = vmatprep.subr.mxu0 0.0
    %507 = vmatpush2.xpose.msra.mxu0 0.0
    %508 = vmatprep.mubr.f32.mxu0 0.0
    %509 = vmatmul.mubr.f32.gmra.mxu0 %v436
    %v510 = vpop.f32.mrf.mxu0
    %v511 = vadd.f32 0.0, %v510
    %v512 = vpop.f32.mrf.mxu0
    %513 = vmatprep.mubr.f32.mxu0 0.0
    %514 = vmatmul.mubr.f32.gmra.mxu0 %v438
    %v515 = vpop.f32.mrf.mxu0
    %v516 = vadd.f32 0.0, %v515
    %v517 = vpop.f32.mrf.mxu0
    %518 = vdwg.mxu0
    %v519 = vmul.f32 %v422, 0.35355338
    %v520 = vmul.f32 %v427, 0.35355338
    %v521 = vmul.f32 %v511, 0.35355338
    %v522 = vmul.f32 %v516, 0.35355338
    %v525 = vlaneseq
    %v526 = vshrl.u32 %v525, 7
    %v527 = vsub.s32 0, %v526
    %v528 = vrot.slane %v208, %v527
    %v529 = vlaneseq
    %v530 = vshrl.u32 %v529, 7
    %v531 = vsub.s32 0, %v530
    %v532 = vrot.slane %v209, %v531
    %v535 = vadd.f32 %v519, %v528
    %v536 = vadd.f32 %v520, %v528
    %v537 = vadd.f32 %v521, %v532
    %v538 = vadd.f32 %v522, %v532
    %vm539 = vcmask 130048
    %v540 = vsel %vm539, %v535, -inf
    %541 = vmax.xlane.f32.xlu0 %v540
    %v542 = vpop.xlane.xlu0 %541
    %v543 = vsel %vm539, %v536, -inf
    %544 = vmax.xlane.f32.xlu0 %v543
    %v545 = vpop.xlane.xlu0 %544
    %v546 = vsel %vm539, %v537, -inf
    %547 = vmax.xlane.f32.xlu0 %v546
    %v548 = vpop.xlane.xlu0 %547
    %v549 = vsel %vm539, %v538, -inf
    %550 = vmax.xlane.f32.xlu0 %v549
    %v551 = vpop.xlane.xlu0 %550
    %v552 = vsub.f32 %v535, %v542
    %v553 = vsub.f32 %v536, %v545
    %v554 = vsub.f32 %v537, %v548
    %v555 = vsub.f32 %v538, %v551
    %v556 = vmul.f32 %v552, 1.442695
    %v557 = vpow.pop %v556
    %v558 = vmul.f32 %v553, 1.442695
    %v559 = vpow.pop %v558
    %v560 = vmul.f32 %v554, 1.442695
    %v561 = vpow.pop %v560
    %v562 = vmul.f32 %v555, 1.442695
    %v563 = vpow.pop %v562
    %v564 = vsel %vm539, %v557, 0.0
    %565 = vadd.xlane.f32.xlu0 %v564
    %v566 = vpop.xlane.xlu0 %565
    %v567 = vsel %vm539, %v559, 0.0
    %568 = vadd.xlane.f32.xlu0 %v567
    %v569 = vpop.xlane.xlu0 %568
    %v570 = vsel %vm539, %v561, 0.0
    %571 = vadd.xlane.f32.xlu0 %v570
    %v572 = vpop.xlane.xlu0 %571
    %v573 = vsel %vm539, %v563, 0.0
    %574 = vadd.xlane.f32.xlu0 %v573
    %v575 = vpop.xlane.xlu0 %574
    %v576 = vrcp.pop %v566
    %v577 = vmul.f32 %v557, %v576
    %v578 = vrcp.pop %v569
    %v579 = vmul.f32 %v559, %v578
    %v580 = vrcp.pop %v572
    %v581 = vmul.f32 %v561, %v580
    %v582 = vrcp.pop %v575
    %v583 = vmul.f32 %v563, %v582
    %v585 = vsel %vm539, %v577, 0
    %v588 = vsel %vm539, %v579, 0
    %590 = vmatprep.subr.mxu0 0.0
    %591 = vmatpush1.msra.mxu0 0.0
    %592 = vmatprep.subr.mxu0 0.0
    %593 = vmatpush1.msra.mxu0 0.0
    %594 = vmatprep.subr.mxu0 0.0
    %595 = vmatpush1.msra.mxu0 0.0
    %596 = vmatprep.subr.mxu0 0.0
    %597 = vmatpush1.msra.mxu0 0.0
    %598 = vmatprep.subr.mxu0 0.0
    %599 = vmatpush1.msra.mxu0 0.0
    %600 = vmatprep.subr.mxu0 0.0
    %601 = vmatpush1.msra.mxu0 0.0
    %602 = vmatprep.subr.mxu0 0.0
    %603 = vmatpush1.msra.mxu0 0.0
    %604 = vmatprep.subr.mxu0 0.0
    %605 = vmatpush1.msra.mxu0 0.0
    %606 = vmatprep.subr.mxu0 0.0
    %607 = vmatpush1.msra.mxu0 0.0
    %608 = vmatprep.subr.mxu0 0.0
    %609 = vmatpush1.msra.mxu0 0.0
    %610 = vmatprep.subr.mxu0 0.0
    %611 = vmatpush1.msra.mxu0 0.0
    %612 = vmatprep.subr.mxu0 0.0
    %613 = vmatpush1.msra.mxu0 0.0
    %614 = vmatprep.subr.mxu0 0.0
    %615 = vmatpush1.msra.mxu0 0.0
    %616 = vmatprep.subr.mxu0 0.0
    %617 = vmatpush1.msra.mxu0 0.0
    %618 = vmatprep.subr.mxu0 0.0
    %619 = vmatpush1.msra.mxu0 %v326
    %620 = vmatprep.subr.mxu0 0.0
    %621 = vmatpush1.msra.mxu0 %v320
    %622 = vmatprep.subr.mxu0 0.0
    %623 = vmatpush2.msra.mxu0 0.0
    %624 = vmatprep.subr.mxu0 0.0
    %625 = vmatpush2.msra.mxu0 0.0
    %626 = vmatprep.subr.mxu0 0.0
    %627 = vmatpush2.msra.mxu0 0.0
    %628 = vmatprep.subr.mxu0 0.0
    %629 = vmatpush2.msra.mxu0 0.0
    %630 = vmatprep.subr.mxu0 0.0
    %631 = vmatpush2.msra.mxu0 0.0
    %632 = vmatprep.subr.mxu0 0.0
    %633 = vmatpush2.msra.mxu0 0.0
    %634 = vmatprep.subr.mxu0 0.0
    %635 = vmatpush2.msra.mxu0 0.0
    %636 = vmatprep.subr.mxu0 0.0
    %637 = vmatpush2.msra.mxu0 0.0
    %638 = vmatprep.subr.mxu0 0.0
    %639 = vmatpush2.msra.mxu0 0.0
    %640 = vmatprep.subr.mxu0 0.0
    %641 = vmatpush2.msra.mxu0 0.0
    %642 = vmatprep.subr.mxu0 0.0
    %643 = vmatpush2.msra.mxu0 0.0
    %644 = vmatprep.subr.mxu0 0.0
    %645 = vmatpush2.msra.mxu0 0.0
    %646 = vmatprep.subr.mxu0 0.0
    %647 = vmatpush2.msra.mxu0 0.0
    %648 = vmatprep.subr.mxu0 0.0
    %649 = vmatpush2.msra.mxu0 0.0
    %650 = vmatprep.subr.mxu0 0.0
    %651 = vmatpush2.msra.mxu0 0.0
    %652 = vmatprep.subr.mxu0 0.0
    %653 = vmatpush2.msra.mxu0 0.0
    %654 = vmatprep.mubr.f32.mxu0 0.0
    %655 = vmatmul.mubr.f32.gmra.mxu0 %v585
    %v656 = vpop.f32.mrf.mxu0
    %v657 = vadd.f32 0.0, %v656
    %v658 = vpop.f32.mrf.mxu0
    %659 = vmatprep.mubr.f32.mxu0 0.0
    %660 = vmatmul.mubr.f32.gmra.mxu0 %v588
    %v661 = vpop.f32.mrf.mxu0
    %v662 = vadd.f32 0.0, %v661
    %v663 = vpop.f32.mrf.mxu0
    %664 = vdwg.mxu0
    %v666 = vsel %vm539, %v581, 0
    %v669 = vsel %vm539, %v583, 0
    %671 = vmatprep.subr.mxu0 0.0
    %672 = vmatpush1.msra.mxu0 0.0
    %673 = vmatprep.subr.mxu0 0.0
    %674 = vmatpush1.msra.mxu0 0.0
    %675 = vmatprep.subr.mxu0 0.0
    %676 = vmatpush1.msra.mxu0 0.0
    %677 = vmatprep.subr.mxu0 0.0
    %678 = vmatpush1.msra.mxu0 0.0
    %679 = vmatprep.subr.mxu0 0.0
    %680 = vmatpush1.msra.mxu0 0.0
    %681 = vmatprep.subr.mxu0 0.0
    %682 = vmatpush1.msra.mxu0 0.0
    %683 = vmatprep.subr.mxu0 0.0
    %684 = vmatpush1.msra.mxu0 0.0
    %685 = vmatprep.subr.mxu0 0.0
    %686 = vmatpush1.msra.mxu0 0.0
    %687 = vmatprep.subr.mxu0 0.0
    %688 = vmatpush1.msra.mxu0 0.0
    %689 = vmatprep.subr.mxu0 0.0
    %690 = vmatpush1.msra.mxu0 0.0
    %691 = vmatprep.subr.mxu0 0.0
    %692 = vmatpush1.msra.mxu0 0.0
    %693 = vmatprep.subr.mxu0 0.0
    %694 = vmatpush1.msra.mxu0 0.0
    %695 = vmatprep.subr.mxu0 0.0
    %696 = vmatpush1.msra.mxu0 0.0
    %697 = vmatprep.subr.mxu0 0.0
    %698 = vmatpush1.msra.mxu0 0.0
    %699 = vmatprep.subr.mxu0 0.0
    %700 = vmatpush1.msra.mxu0 %v338
    %701 = vmatprep.subr.mxu0 0.0
    %702 = vmatpush1.msra.mxu0 %v332
    %703 = vmatprep.subr.mxu0 0.0
    %704 = vmatpush2.msra.mxu0 0.0
    %705 = vmatprep.subr.mxu0 0.0
    %706 = vmatpush2.msra.mxu0 0.0
    %707 = vmatprep.subr.mxu0 0.0
    %708 = vmatpush2.msra.mxu0 0.0
    %709 = vmatprep.subr.mxu0 0.0
    %710 = vmatpush2.msra.mxu0 0.0
    %711 = vmatprep.subr.mxu0 0.0
    %712 = vmatpush2.msra.mxu0 0.0
    %713 = vmatprep.subr.mxu0 0.0
    %714 = vmatpush2.msra.mxu0 0.0
    %715 = vmatprep.subr.mxu0 0.0
    %716 = vmatpush2.msra.mxu0 0.0
    %717 = vmatprep.subr.mxu0 0.0
    %718 = vmatpush2.msra.mxu0 0.0
    %719 = vmatprep.subr.mxu0 0.0
    %720 = vmatpush2.msra.mxu0 0.0
    %721 = vmatprep.subr.mxu0 0.0
    %722 = vmatpush2.msra.mxu0 0.0
    %723 = vmatprep.subr.mxu0 0.0
    %724 = vmatpush2.msra.mxu0 0.0
    %725 = vmatprep.subr.mxu0 0.0
    %726 = vmatpush2.msra.mxu0 0.0
    %727 = vmatprep.subr.mxu0 0.0
    %728 = vmatpush2.msra.mxu0 0.0
    %729 = vmatprep.subr.mxu0 0.0
    %730 = vmatpush2.msra.mxu0 0.0
    %731 = vmatprep.subr.mxu0 0.0
    %732 = vmatpush2.msra.mxu0 0.0
    %733 = vmatprep.subr.mxu0 0.0
    %734 = vmatpush2.msra.mxu0 0.0
    %735 = vmatprep.mubr.f32.mxu0 0.0
    %736 = vmatmul.mubr.f32.gmra.mxu0 %v666
    %v737 = vpop.f32.mrf.mxu0
    %v738 = vadd.f32 0.0, %v737
    %v739 = vpop.f32.mrf.mxu0
    %740 = vmatprep.mubr.f32.mxu0 0.0
    %741 = vmatmul.mubr.f32.gmra.mxu0 %v669
    %v742 = vpop.f32.mrf.mxu0
    %v743 = vadd.f32 0.0, %v742
    %v744 = vpop.f32.mrf.mxu0
    %745 = vdwg.mxu0
    %746 = vst.msk [vmem:[#allocation2] sm:$0xff] %vm346, %v657
    %747 = vst.msk [vmem:[#allocation2 + $0x8] sm:$0xff] %vm346, %v662
    %748 = vst.msk [vmem:[#allocation2 + $0x10] sm:$0xff] %vm346, %v738
    %749 = vst.msk [vmem:[#allocation2 + $0x18] sm:$0xff] %vm346, %v743
    %750 = vrot.lane.b32.xlu0 %v318, 120
    %v751 = vpop.permute.xlu0 %750
    %752 = vrot.lane.b32.xlu0 %v324, 120
    %v753 = vpop.permute.xlu0 %752
    %754 = vrot.lane.b32.xlu0 %v318, 56
    %v755 = vpop.permute.xlu0 %754
    %756 = vrot.lane.b32.xlu0 %v324, 56
    %v757 = vpop.permute.xlu0 %756
    %v758 = vsel %vm346, %v751, 0
    %v760 = vsel %vm346, %v753, 0
    %v762 = vsel %vm346, %v755, 0
    %v764 = vsel %vm346, %v757, 0
    %766 = vmatprep.subr.mxu0 0.0
    %767 = vmatpush1.xpose.msra.mxu0 0.0
    %768 = vmatprep.subr.mxu0 0.0
    %769 = vmatpush1.xpose.msra.mxu0 0.0
    %770 = vmatprep.subr.mxu0 0.0
    %771 = vmatpush1.xpose.msra.mxu0 0.0
    %772 = vmatprep.subr.mxu0 0.0
    %773 = vmatpush1.xpose.msra.mxu0 0.0
    %774 = vmatprep.subr.mxu0 0.0
    %775 = vmatpush1.xpose.msra.mxu0 0.0
    %776 = vmatprep.subr.mxu0 0.0
    %777 = vmatpush1.xpose.msra.mxu0 0.0
    %778 = vmatprep.subr.mxu0 0.0
    %779 = vmatpush1.xpose.msra.mxu0 0.0
    %780 = vmatprep.subr.mxu0 0.0
    %781 = vmatpush1.xpose.msra.mxu0 0.0
    %782 = vmatprep.subr.mxu0 0.0
    %783 = vmatpush1.xpose.msra.mxu0 0.0
    %784 = vmatprep.subr.mxu0 0.0
    %785 = vmatpush1.xpose.msra.mxu0 0.0
    %786 = vmatprep.subr.mxu0 0.0
    %787 = vmatpush1.xpose.msra.mxu0 0.0
    %788 = vmatprep.subr.mxu0 0.0
    %789 = vmatpush1.xpose.msra.mxu0 0.0
    %790 = vmatprep.subr.mxu0 0.0
    %791 = vmatpush1.xpose.msra.mxu0 0.0
    %792 = vmatprep.subr.mxu0 0.0
    %793 = vmatpush1.xpose.msra.mxu0 0.0
    %794 = vmatprep.subr.mxu0 0.0
    %795 = vmatpush1.xpose.msra.mxu0 %v764
    %796 = vmatprep.subr.mxu0 0.0
    %797 = vmatpush1.xpose.msra.mxu0 %v762
    %798 = vmatprep.subr.mxu0 0.0
    %799 = vmatpush2.xpose.msra.mxu0 0.0
    %800 = vmatprep.subr.mxu0 0.0
    %801 = vmatpush2.xpose.msra.mxu0 0.0
    %802 = vmatprep.subr.mxu0 0.0
    %803 = vmatpush2.xpose.msra.mxu0 0.0
    %804 = vmatprep.subr.mxu0 0.0
    %805 = vmatpush2.xpose.msra.mxu0 0.0
    %806 = vmatprep.subr.mxu0 0.0
    %807 = vmatpush2.xpose.msra.mxu0 0.0
    %808 = vmatprep.subr.mxu0 0.0
    %809 = vmatpush2.xpose.msra.mxu0 0.0
    %810 = vmatprep.subr.mxu0 0.0
    %811 = vmatpush2.xpose.msra.mxu0 0.0
    %812 = vmatprep.subr.mxu0 0.0
    %813 = vmatpush2.xpose.msra.mxu0 0.0
    %814 = vmatprep.subr.mxu0 0.0
    %815 = vmatpush2.xpose.msra.mxu0 0.0
    %816 = vmatprep.subr.mxu0 0.0
    %817 = vmatpush2.xpose.msra.mxu0 0.0
    %818 = vmatprep.subr.mxu0 0.0
    %819 = vmatpush2.xpose.msra.mxu0 0.0
    %820 = vmatprep.subr.mxu0 0.0
    %821 = vmatpush2.xpose.msra.mxu0 0.0
    %822 = vmatprep.subr.mxu0 0.0
    %823 = vmatpush2.xpose.msra.mxu0 0.0
    %824 = vmatprep.subr.mxu0 0.0
    %825 = vmatpush2.xpose.msra.mxu0 0.0
    %826 = vmatprep.subr.mxu0 0.0
    %827 = vmatpush2.xpose.msra.mxu0 0.0
    %828 = vmatprep.subr.mxu0 0.0
    %829 = vmatpush2.xpose.msra.mxu0 0.0
    %830 = vmatprep.mubr.f32.mxu0 0.0
    %831 = vmatmul.mubr.f32.gmra.mxu0 %v758
    %v832 = vpop.f32.mrf.mxu0
    %v833 = vadd.f32 0.0, %v832
    %v834 = vpop.f32.mrf.mxu0
    %835 = vmatprep.mubr.f32.mxu0 0.0
    %836 = vmatmul.mubr.f32.gmra.mxu0 %v760
    %v837 = vpop.f32.mrf.mxu0
    %v838 = vadd.f32 0.0, %v837
    %v839 = vpop.f32.mrf.mxu0
    %840 = vdwg.mxu0
    %841 = vrot.lane.b32.xlu0 %v330, 120
    %v842 = vpop.permute.xlu0 %841
    %843 = vrot.lane.b32.xlu0 %v336, 120
    %v844 = vpop.permute.xlu0 %843
    %845 = vrot.lane.b32.xlu0 %v330, 56
    %v846 = vpop.permute.xlu0 %845
    %847 = vrot.lane.b32.xlu0 %v336, 56
    %v848 = vpop.permute.xlu0 %847
    %v849 = vsel %vm346, %v842, 0
    %v851 = vsel %vm346, %v844, 0
    %v853 = vsel %vm346, %v846, 0
    %v855 = vsel %vm346, %v848, 0
    %857 = vmatprep.subr.mxu0 0.0
    %858 = vmatpush1.xpose.msra.mxu0 0.0
    %859 = vmatprep.subr.mxu0 0.0
    %860 = vmatpush1.xpose.msra.mxu0 0.0
    %861 = vmatprep.subr.mxu0 0.0
    %862 = vmatpush1.xpose.msra.mxu0 0.0
    %863 = vmatprep.subr.mxu0 0.0
    %864 = vmatpush1.xpose.msra.mxu0 0.0
    %865 = vmatprep.subr.mxu0 0.0
    %866 = vmatpush1.xpose.msra.mxu0 0.0
    %867 = vmatprep.subr.mxu0 0.0
    %868 = vmatpush1.xpose.msra.mxu0 0.0
    %869 = vmatprep.subr.mxu0 0.0
    %870 = vmatpush1.xpose.msra.mxu0 0.0
    %871 = vmatprep.subr.mxu0 0.0
    %872 = vmatpush1.xpose.msra.mxu0 0.0
    %873 = vmatprep.subr.mxu0 0.0
    %874 = vmatpush1.xpose.msra.mxu0 0.0
    %875 = vmatprep.subr.mxu0 0.0
    %876 = vmatpush1.xpose.msra.mxu0 0.0
    %877 = vmatprep.subr.mxu0 0.0
    %878 = vmatpush1.xpose.msra.mxu0 0.0
    %879 = vmatprep.subr.mxu0 0.0
    %880 = vmatpush1.xpose.msra.mxu0 0.0
    %881 = vmatprep.subr.mxu0 0.0
    %882 = vmatpush1.xpose.msra.mxu0 0.0
    %883 = vmatprep.subr.mxu0 0.0
    %884 = vmatpush1.xpose.msra.mxu0 0.0
    %885 = vmatprep.subr.mxu0 0.0
    %886 = vmatpush1.xpose.msra.mxu0 %v855
    %887 = vmatprep.subr.mxu0 0.0
    %888 = vmatpush1.xpose.msra.mxu0 %v853
    %889 = vmatprep.subr.mxu0 0.0
    %890 = vmatpush2.xpose.msra.mxu0 0.0
    %891 = vmatprep.subr.mxu0 0.0
    %892 = vmatpush2.xpose.msra.mxu0 0.0
    %893 = vmatprep.subr.mxu0 0.0
    %894 = vmatpush2.xpose.msra.mxu0 0.0
    %895 = vmatprep.subr.mxu0 0.0
    %896 = vmatpush2.xpose.msra.mxu0 0.0
    %897 = vmatprep.subr.mxu0 0.0
    %898 = vmatpush2.xpose.msra.mxu0 0.0
    %899 = vmatprep.subr.mxu0 0.0
    %900 = vmatpush2.xpose.msra.mxu0 0.0
    %901 = vmatprep.subr.mxu0 0.0
    %902 = vmatpush2.xpose.msra.mxu0 0.0
    %903 = vmatprep.subr.mxu0 0.0
    %904 = vmatpush2.xpose.msra.mxu0 0.0
    %905 = vmatprep.subr.mxu0 0.0
    %906 = vmatpush2.xpose.msra.mxu0 0.0
    %907 = vmatprep.subr.mxu0 0.0
    %908 = vmatpush2.xpose.msra.mxu0 0.0
    %909 = vmatprep.subr.mxu0 0.0
    %910 = vmatpush2.xpose.msra.mxu0 0.0
    %911 = vmatprep.subr.mxu0 0.0
    %912 = vmatpush2.xpose.msra.mxu0 0.0
    %913 = vmatprep.subr.mxu0 0.0
    %914 = vmatpush2.xpose.msra.mxu0 0.0
    %915 = vmatprep.subr.mxu0 0.0
    %916 = vmatpush2.xpose.msra.mxu0 0.0
    %917 = vmatprep.subr.mxu0 0.0
    %918 = vmatpush2.xpose.msra.mxu0 0.0
    %919 = vmatprep.subr.mxu0 0.0
    %920 = vmatpush2.xpose.msra.mxu0 0.0
    %921 = vmatprep.mubr.f32.mxu0 0.0
    %922 = vmatmul.mubr.f32.gmra.mxu0 %v849
    %v923 = vpop.f32.mrf.mxu0
    %v924 = vadd.f32 0.0, %v923
    %v925 = vpop.f32.mrf.mxu0
    %926 = vmatprep.mubr.f32.mxu0 0.0
    %927 = vmatmul.mubr.f32.gmra.mxu0 %v851
    %v928 = vpop.f32.mrf.mxu0
    %v929 = vadd.f32 0.0, %v928
    %v930 = vpop.f32.mrf.mxu0
    %931 = vdwg.mxu0
    %v932 = vmul.f32 %v833, 0.35355338
    %v933 = vmul.f32 %v838, 0.35355338
    %v934 = vmul.f32 %v924, 0.35355338
    %v935 = vmul.f32 %v929, 0.35355338
    %v936 = vadd.f32 %v932, %v528
    %v937 = vadd.f32 %v933, %v528
    %v938 = vadd.f32 %v934, %v532
    %v939 = vadd.f32 %v935, %v532
    %v940 = vsel %vm539, %v936, -inf
    %941 = vmax.xlane.f32.xlu0 %v940
    %v942 = vpop.xlane.xlu0 %941
    %v943 = vsel %vm539, %v937, -inf
    %944 = vmax.xlane.f32.xlu0 %v943
    %v945 = vpop.xlane.xlu0 %944
    %v946 = vsel %vm539, %v938, -inf
    %947 = vmax.xlane.f32.xlu0 %v946
    %v948 = vpop.xlane.xlu0 %947
    %v949 = vsel %vm539, %v939, -inf
    %950 = vmax.xlane.f32.xlu0 %v949
    %v951 = vpop.xlane.xlu0 %950
    %v952 = vsub.f32 %v936, %v942
    %v953 = vsub.f32 %v937, %v945
    %v954 = vsub.f32 %v938, %v948
    %v955 = vsub.f32 %v939, %v951
    %v956 = vmul.f32 %v952, 1.442695
    %v957 = vpow.pop %v956
    %v958 = vmul.f32 %v953, 1.442695
    %v959 = vpow.pop %v958
    %v960 = vmul.f32 %v954, 1.442695
    %v961 = vpow.pop %v960
    %v962 = vmul.f32 %v955, 1.442695
    %v963 = vpow.pop %v962
    %v964 = vsel %vm539, %v957, 0.0
    %965 = vadd.xlane.f32.xlu0 %v964
    %v966 = vpop.xlane.xlu0 %965
    %v967 = vsel %vm539, %v959, 0.0
    %968 = vadd.xlane.f32.xlu0 %v967
    %v969 = vpop.xlane.xlu0 %968
    %v970 = vsel %vm539, %v961, 0.0
    %971 = vadd.xlane.f32.xlu0 %v970
    %v972 = vpop.xlane.xlu0 %971
    %v973 = vsel %vm539, %v963, 0.0
    %974 = vadd.xlane.f32.xlu0 %v973
    %v975 = vpop.xlane.xlu0 %974
    %v976 = vrcp.pop %v966
    %v977 = vmul.f32 %v957, %v976
    %v978 = vrcp.pop %v969
    %v979 = vmul.f32 %v959, %v978
    %v980 = vrcp.pop %v972
    %v981 = vmul.f32 %v961, %v980
    %v982 = vrcp.pop %v975
    %v983 = vmul.f32 %v963, %v982
    %986 = vrot.lane.b32.xlu0 %v320, 120
    %v987 = vpop.permute.xlu0 %986
    %988 = vrot.lane.b32.xlu0 %v326, 120
    %v989 = vpop.permute.xlu0 %988
    %v993 = vsel %vm539, %v977, 0
    %v996 = vsel %vm539, %v979, 0
    %998 = vmatprep.subr.mxu0 0.0
    %999 = vmatpush1.msra.mxu0 0.0
    %1000 = vmatprep.subr.mxu0 0.0
    %1001 = vmatpush1.msra.mxu0 0.0
    %1002 = vmatprep.subr.mxu0 0.0
    %1003 = vmatpush1.msra.mxu0 0.0
    %1004 = vmatprep.subr.mxu0 0.0
    %1005 = vmatpush1.msra.mxu0 0.0
    %1006 = vmatprep.subr.mxu0 0.0
    %1007 = vmatpush1.msra.mxu0 0.0
    %1008 = vmatprep.subr.mxu0 0.0
    %1009 = vmatpush1.msra.mxu0 0.0
    %1010 = vmatprep.subr.mxu0 0.0
    %1011 = vmatpush1.msra.mxu0 0.0
    %1012 = vmatprep.subr.mxu0 0.0
    %1013 = vmatpush1.msra.mxu0 0.0
    %1014 = vmatprep.subr.mxu0 0.0
    %1015 = vmatpush1.msra.mxu0 0.0
    %1016 = vmatprep.subr.mxu0 0.0
    %1017 = vmatpush1.msra.mxu0 0.0
    %1018 = vmatprep.subr.mxu0 0.0
    %1019 = vmatpush1.msra.mxu0 0.0
    %1020 = vmatprep.subr.mxu0 0.0
    %1021 = vmatpush1.msra.mxu0 0.0
    %1022 = vmatprep.subr.mxu0 0.0
    %1023 = vmatpush1.msra.mxu0 0.0
    %1024 = vmatprep.subr.mxu0 0.0
    %1025 = vmatpush1.msra.mxu0 0.0
    %1026 = vmatprep.subr.mxu0 0.0
    %1027 = vmatpush1.msra.mxu0 %v989
    %1028 = vmatprep.subr.mxu0 0.0
    %1029 = vmatpush1.msra.mxu0 %v987
    %1030 = vmatprep.subr.mxu0 0.0
    %1031 = vmatpush2.msra.mxu0 0.0
    %1032 = vmatprep.subr.mxu0 0.0
    %1033 = vmatpush2.msra.mxu0 0.0
    %1034 = vmatprep.subr.mxu0 0.0
    %1035 = vmatpush2.msra.mxu0 0.0
    %1036 = vmatprep.subr.mxu0 0.0
    %1037 = vmatpush2.msra.mxu0 0.0
    %1038 = vmatprep.subr.mxu0 0.0
    %1039 = vmatpush2.msra.mxu0 0.0
    %1040 = vmatprep.subr.mxu0 0.0
    %1041 = vmatpush2.msra.mxu0 0.0
    %1042 = vmatprep.subr.mxu0 0.0
    %1043 = vmatpush2.msra.mxu0 0.0
    %1044 = vmatprep.subr.mxu0 0.0
    %1045 = vmatpush2.msra.mxu0 0.0
    %1046 = vmatprep.subr.mxu0 0.0
    %1047 = vmatpush2.msra.mxu0 0.0
    %1048 = vmatprep.subr.mxu0 0.0
    %1049 = vmatpush2.msra.mxu0 0.0
    %1050 = vmatprep.subr.mxu0 0.0
    %1051 = vmatpush2.msra.mxu0 0.0
    %1052 = vmatprep.subr.mxu0 0.0
    %1053 = vmatpush2.msra.mxu0 0.0
    %1054 = vmatprep.subr.mxu0 0.0
    %1055 = vmatpush2.msra.mxu0 0.0
    %1056 = vmatprep.subr.mxu0 0.0
    %1057 = vmatpush2.msra.mxu0 0.0
    %1058 = vmatprep.subr.mxu0 0.0
    %1059 = vmatpush2.msra.mxu0 0.0
    %1060 = vmatprep.subr.mxu0 0.0
    %1061 = vmatpush2.msra.mxu0 0.0
    %1062 = vmatprep.mubr.f32.mxu0 0.0
    %1063 = vmatmul.mubr.f32.gmra.mxu0 %v993
    %v1064 = vpop.f32.mrf.mxu0
    %v1065 = vadd.f32 0.0, %v1064
    %v1066 = vpop.f32.mrf.mxu0
    %1067 = vmatprep.mubr.f32.mxu0 0.0
    %1068 = vmatmul.mubr.f32.gmra.mxu0 %v996
    %v1069 = vpop.f32.mrf.mxu0
    %v1070 = vadd.f32 0.0, %v1069
    %v1071 = vpop.f32.mrf.mxu0
    %1072 = vdwg.mxu0
    %1075 = vrot.lane.b32.xlu0 %v332, 120
    %v1076 = vpop.permute.xlu0 %1075
    %1077 = vrot.lane.b32.xlu0 %v338, 120
    %v1078 = vpop.permute.xlu0 %1077
    %v1082 = vsel %vm539, %v981, 0
    %v1085 = vsel %vm539, %v983, 0
    %1087 = vmatprep.subr.mxu0 0.0
    %1088 = vmatpush1.msra.mxu0 0.0
    %1089 = vmatprep.subr.mxu0 0.0
    %1090 = vmatpush1.msra.mxu0 0.0
    %1091 = vmatprep.subr.mxu0 0.0
    %1092 = vmatpush1.msra.mxu0 0.0
    %1093 = vmatprep.subr.mxu0 0.0
    %1094 = vmatpush1.msra.mxu0 0.0
    %1095 = vmatprep.subr.mxu0 0.0
    %1096 = vmatpush1.msra.mxu0 0.0
    %1097 = vmatprep.subr.mxu0 0.0
    %1098 = vmatpush1.msra.mxu0 0.0
    %1099 = vmatprep.subr.mxu0 0.0
    %1100 = vmatpush1.msra.mxu0 0.0
    %1101 = vmatprep.subr.mxu0 0.0
    %1102 = vmatpush1.msra.mxu0 0.0
    %1103 = vmatprep.subr.mxu0 0.0
    %1104 = vmatpush1.msra.mxu0 0.0
    %1105 = vmatprep.subr.mxu0 0.0
    %1106 = vmatpush1.msra.mxu0 0.0
    %1107 = vmatprep.subr.mxu0 0.0
    %1108 = vmatpush1.msra.mxu0 0.0
    %1109 = vmatprep.subr.mxu0 0.0
    %1110 = vmatpush1.msra.mxu0 0.0
    %1111 = vmatprep.subr.mxu0 0.0
    %1112 = vmatpush1.msra.mxu0 0.0
    %1113 = vmatprep.subr.mxu0 0.0
    %1114 = vmatpush1.msra.mxu0 0.0
    %1115 = vmatprep.subr.mxu0 0.0
    %1116 = vmatpush1.msra.mxu0 %v1078
    %1117 = vmatprep.subr.mxu0 0.0
    %1118 = vmatpush1.msra.mxu0 %v1076
    %1119 = vmatprep.subr.mxu0 0.0
    %1120 = vmatpush2.msra.mxu0 0.0
    %1121 = vmatprep.subr.mxu0 0.0
    %1122 = vmatpush2.msra.mxu0 0.0
    %1123 = vmatprep.subr.mxu0 0.0
    %1124 = vmatpush2.msra.mxu0 0.0
    %1125 = vmatprep.subr.mxu0 0.0
    %1126 = vmatpush2.msra.mxu0 0.0
    %1127 = vmatprep.subr.mxu0 0.0
    %1128 = vmatpush2.msra.mxu0 0.0
    %1129 = vmatprep.subr.mxu0 0.0
    %1130 = vmatpush2.msra.mxu0 0.0
    %1131 = vmatprep.subr.mxu0 0.0
    %1132 = vmatpush2.msra.mxu0 0.0
    %1133 = vmatprep.subr.mxu0 0.0
    %1134 = vmatpush2.msra.mxu0 0.0
    %1135 = vmatprep.subr.mxu0 0.0
    %1136 = vmatpush2.msra.mxu0 0.0
    %1137 = vmatprep.subr.mxu0 0.0
    %1138 = vmatpush2.msra.mxu0 0.0
    %1139 = vmatprep.subr.mxu0 0.0
    %1140 = vmatpush2.msra.mxu0 0.0
    %1141 = vmatprep.subr.mxu0 0.0
    %1142 = vmatpush2.msra.mxu0 0.0
    %1143 = vmatprep.subr.mxu0 0.0
    %1144 = vmatpush2.msra.mxu0 0.0
    %1145 = vmatprep.subr.mxu0 0.0
    %1146 = vmatpush2.msra.mxu0 0.0
    %1147 = vmatprep.subr.mxu0 0.0
    %1148 = vmatpush2.msra.mxu0 0.0
    %1149 = vmatprep.subr.mxu0 0.0
    %1150 = vmatpush2.msra.mxu0 0.0
    %1151 = vmatprep.mubr.f32.mxu0 0.0
    %1152 = vmatmul.mubr.f32.gmra.mxu0 %v1082
    %v1153 = vpop.f32.mrf.mxu0
    %v1154 = vadd.f32 0.0, %v1153
    %v1155 = vpop.f32.mrf.mxu0
    %1156 = vmatprep.mubr.f32.mxu0 0.0
    %1157 = vmatmul.mubr.f32.gmra.mxu0 %v1085
    %v1158 = vpop.f32.mrf.mxu0
    %v1159 = vadd.f32 0.0, %v1158
    %v1160 = vpop.f32.mrf.mxu0
    %1161 = vdwg.mxu0
    %1166 = vrot.lane.b32.xlu0 %v1065, 8
    %v1167 = vpop.permute.xlu0 %1166
    %1168 = vrot.lane.b32.xlu0 %v1070, 8
    %v1169 = vpop.permute.xlu0 %1168
    %1170 = vrot.lane.b32.xlu0 %v1154, 8
    %v1171 = vpop.permute.xlu0 %1170
    %1172 = vrot.lane.b32.xlu0 %v1159, 8
    %v1173 = vpop.permute.xlu0 %1172
    %vm1178 = vcmask 130112
    %1179 = vst.msk [vmem:[#allocation2] sm:$0xff] %vm1178, %v1167
    %1180 = vst.msk [vmem:[#allocation2 + $0x8] sm:$0xff] %vm1178, %v1169
    %1181 = vst.msk [vmem:[#allocation2 + $0x10] sm:$0xff] %vm1178, %v1171
    %1182 = vst.msk [vmem:[#allocation2 + $0x18] sm:$0xff] %vm1178, %v1173
    %1183 = vrot.lane.b32.xlu0 %v318, 112
    %v1184 = vpop.permute.xlu0 %1183
    %1185 = vrot.lane.b32.xlu0 %v324, 112
    %v1186 = vpop.permute.xlu0 %1185
    %1187 = vrot.lane.b32.xlu0 %v318, 48
    %v1188 = vpop.permute.xlu0 %1187
    %1189 = vrot.lane.b32.xlu0 %v324, 48
    %v1190 = vpop.permute.xlu0 %1189
    %v1191 = vsel %vm346, %v1184, 0
    %v1193 = vsel %vm346, %v1186, 0
    %v1195 = vsel %vm346, %v1188, 0
    %v1197 = vsel %vm346, %v1190, 0
    %1199 = vmatprep.subr.mxu0 0.0
    %1200 = vmatpush1.xpose.msra.mxu0 0.0
    %1201 = vmatprep.subr.mxu0 0.0
    %1202 = vmatpush1.xpose.msra.mxu0 0.0
    %1203 = vmatprep.subr.mxu0 0.0
    %1204 = vmatpush1.xpose.msra.mxu0 0.0
    %1205 = vmatprep.subr.mxu0 0.0
    %1206 = vmatpush1.xpose.msra.mxu0 0.0
    %1207 = vmatprep.subr.mxu0 0.0
    %1208 = vmatpush1.xpose.msra.mxu0 0.0
    %1209 = vmatprep.subr.mxu0 0.0
    %1210 = vmatpush1.xpose.msra.mxu0 0.0
    %1211 = vmatprep.subr.mxu0 0.0
    %1212 = vmatpush1.xpose.msra.mxu0 0.0
    %1213 = vmatprep.subr.mxu0 0.0
    %1214 = vmatpush1.xpose.msra.mxu0 0.0
    %1215 = vmatprep.subr.mxu0 0.0
    %1216 = vmatpush1.xpose.msra.mxu0 0.0
    %1217 = vmatprep.subr.mxu0 0.0
    %1218 = vmatpush1.xpose.msra.mxu0 0.0
    %1219 = vmatprep.subr.mxu0 0.0
    %1220 = vmatpush1.xpose.msra.mxu0 0.0
    %1221 = vmatprep.subr.mxu0 0.0
    %1222 = vmatpush1.xpose.msra.mxu0 0.0
    %1223 = vmatprep.subr.mxu0 0.0
    %1224 = vmatpush1.xpose.msra.mxu0 0.0
    %1225 = vmatprep.subr.mxu0 0.0
    %1226 = vmatpush1.xpose.msra.mxu0 0.0
    %1227 = vmatprep.subr.mxu0 0.0
    %1228 = vmatpush1.xpose.msra.mxu0 %v1197
    %1229 = vmatprep.subr.mxu0 0.0
    %1230 = vmatpush1.xpose.msra.mxu0 %v1195
    %1231 = vmatprep.subr.mxu0 0.0
    %1232 = vmatpush2.xpose.msra.mxu0 0.0
    %1233 = vmatprep.subr.mxu0 0.0
    %1234 = vmatpush2.xpose.msra.mxu0 0.0
    %1235 = vmatprep.subr.mxu0 0.0
    %1236 = vmatpush2.xpose.msra.mxu0 0.0
    %1237 = vmatprep.subr.mxu0 0.0
    %1238 = vmatpush2.xpose.msra.mxu0 0.0
    %1239 = vmatprep.subr.mxu0 0.0
    %1240 = vmatpush2.xpose.msra.mxu0 0.0
    %1241 = vmatprep.subr.mxu0 0.0
    %1242 = vmatpush2.xpose.msra.mxu0 0.0
    %1243 = vmatprep.subr.mxu0 0.0
    %1244 = vmatpush2.xpose.msra.mxu0 0.0
    %1245 = vmatprep.subr.mxu0 0.0
    %1246 = vmatpush2.xpose.msra.mxu0 0.0
    %1247 = vmatprep.subr.mxu0 0.0
    %1248 = vmatpush2.xpose.msra.mxu0 0.0
    %1249 = vmatprep.subr.mxu0 0.0
    %1250 = vmatpush2.xpose.msra.mxu0 0.0
    %1251 = vmatprep.subr.mxu0 0.0
    %1252 = vmatpush2.xpose.msra.mxu0 0.0
    %1253 = vmatprep.subr.mxu0 0.0
    %1254 = vmatpush2.xpose.msra.mxu0 0.0
    %1255 = vmatprep.subr.mxu0 0.0
    %1256 = vmatpush2.xpose.msra.mxu0 0.0
    %1257 = vmatprep.subr.mxu0 0.0
    %1258 = vmatpush2.xpose.msra.mxu0 0.0
    %1259 = vmatprep.subr.mxu0 0.0
    %1260 = vmatpush2.xpose.msra.mxu0 0.0
    %1261 = vmatprep.subr.mxu0 0.0
    %1262 = vmatpush2.xpose.msra.mxu0 0.0
    %1263 = vmatprep.mubr.f32.mxu0 0.0
    %1264 = vmatmul.mubr.f32.gmra.mxu0 %v1191
    %v1265 = vpop.f32.mrf.mxu0
    %v1266 = vadd.f32 0.0, %v1265
    %v1267 = vpop.f32.mrf.mxu0
    %1268 = vmatprep.mubr.f32.mxu0 0.0
    %1269 = vmatmul.mubr.f32.gmra.mxu0 %v1193
    %v1270 = vpop.f32.mrf.mxu0
    %v1271 = vadd.f32 0.0, %v1270
    %v1272 = vpop.f32.mrf.mxu0
    %1273 = vdwg.mxu0
    %1274 = vrot.lane.b32.xlu0 %v330, 112
    %v1275 = vpop.permute.xlu0 %1274
    %1276 = vrot.lane.b32.xlu0 %v336, 112
    %v1277 = vpop.permute.xlu0 %1276
    %1278 = vrot.lane.b32.xlu0 %v330, 48
    %v1279 = vpop.permute.xlu0 %1278
    %1280 = vrot.lane.b32.xlu0 %v336, 48
    %v1281 = vpop.permute.xlu0 %1280
    %v1282 = vsel %vm346, %v1275, 0
    %v1284 = vsel %vm346, %v1277, 0
    %v1286 = vsel %vm346, %v1279, 0
    %v1288 = vsel %vm346, %v1281, 0
    %1290 = vmatprep.subr.mxu0 0.0
    %1291 = vmatpush1.xpose.msra.mxu0 0.0
    %1292 = vmatprep.subr.mxu0 0.0
    %1293 = vmatpush1.xpose.msra.mxu0 0.0
    %1294 = vmatprep.subr.mxu0 0.0
    %1295 = vmatpush1.xpose.msra.mxu0 0.0
    %1296 = vmatprep.subr.mxu0 0.0
    %1297 = vmatpush1.xpose.msra.mxu0 0.0
    %1298 = vmatprep.subr.mxu0 0.0
    %1299 = vmatpush1.xpose.msra.mxu0 0.0
    %1300 = vmatprep.subr.mxu0 0.0
    %1301 = vmatpush1.xpose.msra.mxu0 0.0
    %1302 = vmatprep.subr.mxu0 0.0
    %1303 = vmatpush1.xpose.msra.mxu0 0.0
    %1304 = vmatprep.subr.mxu0 0.0
    %1305 = vmatpush1.xpose.msra.mxu0 0.0
    %1306 = vmatprep.subr.mxu0 0.0
    %1307 = vmatpush1.xpose.msra.mxu0 0.0
    %1308 = vmatprep.subr.mxu0 0.0
    %1309 = vmatpush1.xpose.msra.mxu0 0.0
    %1310 = vmatprep.subr.mxu0 0.0
    %1311 = vmatpush1.xpose.msra.mxu0 0.0
    %1312 = vmatprep.subr.mxu0 0.0
    %1313 = vmatpush1.xpose.msra.mxu0 0.0
    %1314 = vmatprep.subr.mxu0 0.0
    %1315 = vmatpush1.xpose.msra.mxu0 0.0
    %1316 = vmatprep.subr.mxu0 0.0
    %1317 = vmatpush1.xpose.msra.mxu0 0.0
    %1318 = vmatprep.subr.mxu0 0.0
    %1319 = vmatpush1.xpose.msra.mxu0 %v1288
    %1320 = vmatprep.subr.mxu0 0.0
    %1321 = vmatpush1.xpose.msra.mxu0 %v1286
    %1322 = vmatprep.subr.mxu0 0.0
    %1323 = vmatpush2.xpose.msra.mxu0 0.0
    %1324 = vmatprep.subr.mxu0 0.0
    %1325 = vmatpush2.xpose.msra.mxu0 0.0
    %1326 = vmatprep.subr.mxu0 0.0
    %1327 = vmatpush2.xpose.msra.mxu0 0.0
    %1328 = vmatprep.subr.mxu0 0.0
    %1329 = vmatpush2.xpose.msra.mxu0 0.0
    %1330 = vmatprep.subr.mxu0 0.0
    %1331 = vmatpush2.xpose.msra.mxu0 0.0
    %1332 = vmatprep.subr.mxu0 0.0
    %1333 = vmatpush2.xpose.msra.mxu0 0.0
    %1334 = vmatprep.subr.mxu0 0.0
    %1335 = vmatpush2.xpose.msra.mxu0 0.0
    %1336 = vmatprep.subr.mxu0 0.0
    %1337 = vmatpush2.xpose.msra.mxu0 0.0
    %1338 = vmatprep.subr.mxu0 0.0
    %1339 = vmatpush2.xpose.msra.mxu0 0.0
    %1340 = vmatprep.subr.mxu0 0.0
    %1341 = vmatpush2.xpose.msra.mxu0 0.0
    %1342 = vmatprep.subr.mxu0 0.0
    %1343 = vmatpush2.xpose.msra.mxu0 0.0
    %1344 = vmatprep.subr.mxu0 0.0
    %1345 = vmatpush2.xpose.msra.mxu0 0.0
    %1346 = vmatprep.subr.mxu0 0.0
    %1347 = vmatpush2.xpose.msra.mxu0 0.0
    %1348 = vmatprep.subr.mxu0 0.0
    %1349 = vmatpush2.xpose.msra.mxu0 0.0
    %1350 = vmatprep.subr.mxu0 0.0
    %1351 = vmatpush2.xpose.msra.mxu0 0.0
    %1352 = vmatprep.subr.mxu0 0.0
    %1353 = vmatpush2.xpose.msra.mxu0 0.0
    %1354 = vmatprep.mubr.f32.mxu0 0.0
    %1355 = vmatmul.mubr.f32.gmra.mxu0 %v1282
    %v1356 = vpop.f32.mrf.mxu0
    %v1357 = vadd.f32 0.0, %v1356
    %v1358 = vpop.f32.mrf.mxu0
    %1359 = vmatprep.mubr.f32.mxu0 0.0
    %1360 = vmatmul.mubr.f32.gmra.mxu0 %v1284
    %v1361 = vpop.f32.mrf.mxu0
    %v1362 = vadd.f32 0.0, %v1361
    %v1363 = vpop.f32.mrf.mxu0
    %1364 = vdwg.mxu0
    %v1365 = vmul.f32 %v1266, 0.35355338
    %v1366 = vmul.f32 %v1271, 0.35355338
    %v1367 = vmul.f32 %v1357, 0.35355338
    %v1368 = vmul.f32 %v1362, 0.35355338
    %v1369 = vadd.f32 %v1365, %v528
    %v1370 = vadd.f32 %v1366, %v528
    %v1371 = vadd.f32 %v1367, %v532
    %v1372 = vadd.f32 %v1368, %v532
    %v1373 = vsel %vm539, %v1369, -inf
    %1374 = vmax.xlane.f32.xlu0 %v1373
    %v1375 = vpop.xlane.xlu0 %1374
    %v1376 = vsel %vm539, %v1370, -inf
    %1377 = vmax.xlane.f32.xlu0 %v1376
    %v1378 = vpop.xlane.xlu0 %1377
    %v1379 = vsel %vm539, %v1371, -inf
    %1380 = vmax.xlane.f32.xlu0 %v1379
    %v1381 = vpop.xlane.xlu0 %1380
    %v1382 = vsel %vm539, %v1372, -inf
    %1383 = vmax.xlane.f32.xlu0 %v1382
    %v1384 = vpop.xlane.xlu0 %1383
    %v1385 = vsub.f32 %v1369, %v1375
    %v1386 = vsub.f32 %v1370, %v1378
    %v1387 = vsub.f32 %v1371, %v1381
    %v1388 = vsub.f32 %v1372, %v1384
    %v1389 = vmul.f32 %v1385, 1.442695
    %v1390 = vpow.pop %v1389
    %v1391 = vmul.f32 %v1386, 1.442695
    %v1392 = vpow.pop %v1391
    %v1393 = vmul.f32 %v1387, 1.442695
    %v1394 = vpow.pop %v1393
    %v1395 = vmul.f32 %v1388, 1.442695
    %v1396 = vpow.pop %v1395
    %v1397 = vsel %vm539, %v1390, 0.0
    %1398 = vadd.xlane.f32.xlu0 %v1397
    %v1399 = vpop.xlane.xlu0 %1398
    %v1400 = vsel %vm539, %v1392, 0.0
    %1401 = vadd.xlane.f32.xlu0 %v1400
    %v1402 = vpop.xlane.xlu0 %1401
    %v1403 = vsel %vm539, %v1394, 0.0
    %1404 = vadd.xlane.f32.xlu0 %v1403
    %v1405 = vpop.xlane.xlu0 %1404
    %v1406 = vsel %vm539, %v1396, 0.0
    %1407 = vadd.xlane.f32.xlu0 %v1406
    %v1408 = vpop.xlane.xlu0 %1407
    %v1409 = vrcp.pop %v1399
    %v1410 = vmul.f32 %v1390, %v1409
    %v1411 = vrcp.pop %v1402
    %v1412 = vmul.f32 %v1392, %v1411
    %v1413 = vrcp.pop %v1405
    %v1414 = vmul.f32 %v1394, %v1413
    %v1415 = vrcp.pop %v1408
    %v1416 = vmul.f32 %v1396, %v1415
    %1417 = vrot.lane.b32.xlu0 %v320, 112
    %v1418 = vpop.permute.xlu0 %1417
    %1419 = vrot.lane.b32.xlu0 %v326, 112
    %v1420 = vpop.permute.xlu0 %1419
    %v1424 = vsel %vm539, %v1410, 0
    %v1427 = vsel %vm539, %v1412, 0
    %1429 = vmatprep.subr.mxu0 0.0
    %1430 = vmatpush1.msra.mxu0 0.0
    %1431 = vmatprep.subr.mxu0 0.0
    %1432 = vmatpush1.msra.mxu0 0.0
    %1433 = vmatprep.subr.mxu0 0.0
    %1434 = vmatpush1.msra.mxu0 0.0
    %1435 = vmatprep.subr.mxu0 0.0
    %1436 = vmatpush1.msra.mxu0 0.0
    %1437 = vmatprep.subr.mxu0 0.0
    %1438 = vmatpush1.msra.mxu0 0.0
    %1439 = vmatprep.subr.mxu0 0.0
    %1440 = vmatpush1.msra.mxu0 0.0
    %1441 = vmatprep.subr.mxu0 0.0
    %1442 = vmatpush1.msra.mxu0 0.0
    %1443 = vmatprep.subr.mxu0 0.0
    %1444 = vmatpush1.msra.mxu0 0.0
    %1445 = vmatprep.subr.mxu0 0.0
    %1446 = vmatpush1.msra.mxu0 0.0
    %1447 = vmatprep.subr.mxu0 0.0
    %1448 = vmatpush1.msra.mxu0 0.0
    %1449 = vmatprep.subr.mxu0 0.0
    %1450 = vmatpush1.msra.mxu0 0.0
    %1451 = vmatprep.subr.mxu0 0.0
    %1452 = vmatpush1.msra.mxu0 0.0
    %1453 = vmatprep.subr.mxu0 0.0
    %1454 = vmatpush1.msra.mxu0 0.0
    %1455 = vmatprep.subr.mxu0 0.0
    %1456 = vmatpush1.msra.mxu0 0.0
    %1457 = vmatprep.subr.mxu0 0.0
    %1458 = vmatpush1.msra.mxu0 %v1420
    %1459 = vmatprep.subr.mxu0 0.0
    %1460 = vmatpush1.msra.mxu0 %v1418
    %1461 = vmatprep.subr.mxu0 0.0
    %1462 = vmatpush2.msra.mxu0 0.0
    %1463 = vmatprep.subr.mxu0 0.0
    %1464 = vmatpush2.msra.mxu0 0.0
    %1465 = vmatprep.subr.mxu0 0.0
    %1466 = vmatpush2.msra.mxu0 0.0
    %1467 = vmatprep.subr.mxu0 0.0
    %1468 = vmatpush2.msra.mxu0 0.0
    %1469 = vmatprep.subr.mxu0 0.0
    %1470 = vmatpush2.msra.mxu0 0.0
    %1471 = vmatprep.subr.mxu0 0.0
    %1472 = vmatpush2.msra.mxu0 0.0
    %1473 = vmatprep.subr.mxu0 0.0
    %1474 = vmatpush2.msra.mxu0 0.0
    %1475 = vmatprep.subr.mxu0 0.0
    %1476 = vmatpush2.msra.mxu0 0.0
    %1477 = vmatprep.subr.mxu0 0.0
    %1478 = vmatpush2.msra.mxu0 0.0
    %1479 = vmatprep.subr.mxu0 0.0
    %1480 = vmatpush2.msra.mxu0 0.0
    %1481 = vmatprep.subr.mxu0 0.0
    %1482 = vmatpush2.msra.mxu0 0.0
    %1483 = vmatprep.subr.mxu0 0.0
    %1484 = vmatpush2.msra.mxu0 0.0
    %1485 = vmatprep.subr.mxu0 0.0
    %1486 = vmatpush2.msra.mxu0 0.0
    %1487 = vmatprep.subr.mxu0 0.0
    %1488 = vmatpush2.msra.mxu0 0.0
    %1489 = vmatprep.subr.mxu0 0.0
    %1490 = vmatpush2.msra.mxu0 0.0
    %1491 = vmatprep.subr.mxu0 0.0
    %1492 = vmatpush2.msra.mxu0 0.0
    %1493 = vmatprep.mubr.f32.mxu0 0.0
    %1494 = vmatmul.mubr.f32.gmra.mxu0 %v1424
    %v1495 = vpop.f32.mrf.mxu0
    %v1496 = vadd.f32 0.0, %v1495
    %v1497 = vpop.f32.mrf.mxu0
    %1498 = vmatprep.mubr.f32.mxu0 0.0
    %1499 = vmatmul.mubr.f32.gmra.mxu0 %v1427
    %v1500 = vpop.f32.mrf.mxu0
    %v1501 = vadd.f32 0.0, %v1500
    %v1502 = vpop.f32.mrf.mxu0
    %1503 = vdwg.mxu0
    %1504 = vrot.lane.b32.xlu0 %v332, 112
    %v1505 = vpop.permute.xlu0 %1504
    %1506 = vrot.lane.b32.xlu0 %v338, 112
    %v1507 = vpop.permute.xlu0 %1506
    %v1511 = vsel %vm539, %v1414, 0
    %v1514 = vsel %vm539, %v1416, 0
    %1516 = vmatprep.subr.mxu0 0.0
    %1517 = vmatpush1.msra.mxu0 0.0
    %1518 = vmatprep.subr.mxu0 0.0
    %1519 = vmatpush1.msra.mxu0 0.0
    %1520 = vmatprep.subr.mxu0 0.0
    %1521 = vmatpush1.msra.mxu0 0.0
    %1522 = vmatprep.subr.mxu0 0.0
    %1523 = vmatpush1.msra.mxu0 0.0
    %1524 = vmatprep.subr.mxu0 0.0
    %1525 = vmatpush1.msra.mxu0 0.0
    %1526 = vmatprep.subr.mxu0 0.0
    %1527 = vmatpush1.msra.mxu0 0.0
    %1528 = vmatprep.subr.mxu0 0.0
    %1529 = vmatpush1.msra.mxu0 0.0
    %1530 = vmatprep.subr.mxu0 0.0
    %1531 = vmatpush1.msra.mxu0 0.0
    %1532 = vmatprep.subr.mxu0 0.0
    %1533 = vmatpush1.msra.mxu0 0.0
    %1534 = vmatprep.subr.mxu0 0.0
    %1535 = vmatpush1.msra.mxu0 0.0
    %1536 = vmatprep.subr.mxu0 0.0
    %1537 = vmatpush1.msra.mxu0 0.0
    %1538 = vmatprep.subr.mxu0 0.0
    %1539 = vmatpush1.msra.mxu0 0.0
    %1540 = vmatprep.subr.mxu0 0.0
    %1541 = vmatpush1.msra.mxu0 0.0
    %1542 = vmatprep.subr.mxu0 0.0
    %1543 = vmatpush1.msra.mxu0 0.0
    %1544 = vmatprep.subr.mxu0 0.0
    %1545 = vmatpush1.msra.mxu0 %v1507
    %1546 = vmatprep.subr.mxu0 0.0
    %1547 = vmatpush1.msra.mxu0 %v1505
    %1548 = vmatprep.subr.mxu0 0.0
    %1549 = vmatpush2.msra.mxu0 0.0
    %1550 = vmatprep.subr.mxu0 0.0
    %1551 = vmatpush2.msra.mxu0 0.0
    %1552 = vmatprep.subr.mxu0 0.0
    %1553 = vmatpush2.msra.mxu0 0.0
    %1554 = vmatprep.subr.mxu0 0.0
    %1555 = vmatpush2.msra.mxu0 0.0
    %1556 = vmatprep.subr.mxu0 0.0
    %1557 = vmatpush2.msra.mxu0 0.0
    %1558 = vmatprep.subr.mxu0 0.0
    %1559 = vmatpush2.msra.mxu0 0.0
    %1560 = vmatprep.subr.mxu0 0.0
    %1561 = vmatpush2.msra.mxu0 0.0
    %1562 = vmatprep.subr.mxu0 0.0
    %1563 = vmatpush2.msra.mxu0 0.0
    %1564 = vmatprep.subr.mxu0 0.0
    %1565 = vmatpush2.msra.mxu0 0.0
    %1566 = vmatprep.subr.mxu0 0.0
    %1567 = vmatpush2.msra.mxu0 0.0
    %1568 = vmatprep.subr.mxu0 0.0
    %1569 = vmatpush2.msra.mxu0 0.0
    %1570 = vmatprep.subr.mxu0 0.0
    %1571 = vmatpush2.msra.mxu0 0.0
    %1572 = vmatprep.subr.mxu0 0.0
    %1573 = vmatpush2.msra.mxu0 0.0
    %1574 = vmatprep.subr.mxu0 0.0
    %1575 = vmatpush2.msra.mxu0 0.0
    %1576 = vmatprep.subr.mxu0 0.0
    %1577 = vmatpush2.msra.mxu0 0.0
    %1578 = vmatprep.subr.mxu0 0.0
    %1579 = vmatpush2.msra.mxu0 0.0
    %1580 = vmatprep.mubr.f32.mxu0 0.0
    %1581 = vmatmul.mubr.f32.gmra.mxu0 %v1511
    %v1582 = vpop.f32.mrf.mxu0
    %v1583 = vadd.f32 0.0, %v1582
    %v1584 = vpop.f32.mrf.mxu0
    %1585 = vmatprep.mubr.f32.mxu0 0.0
    %1586 = vmatmul.mubr.f32.gmra.mxu0 %v1514
    %v1587 = vpop.f32.mrf.mxu0
    %v1588 = vadd.f32 0.0, %v1587
    %v1589 = vpop.f32.mrf.mxu0
    %1590 = vdwg.mxu0
    %1595 = vrot.lane.b32.xlu0 %v1496, 16
    %v1596 = vpop.permute.xlu0 %1595
    %1597 = vrot.lane.b32.xlu0 %v1501, 16
    %v1598 = vpop.permute.xlu0 %1597
    %1599 = vrot.lane.b32.xlu0 %v1583, 16
    %v1600 = vpop.permute.xlu0 %1599
    %1601 = vrot.lane.b32.xlu0 %v1588, 16
    %v1602 = vpop.permute.xlu0 %1601
    %vm1607 = vcmask 195712
    %1608 = vst.msk [vmem:[#allocation2] sm:$0xff] %vm1607, %v1596
    %1609 = vst.msk [vmem:[#allocation2 + $0x8] sm:$0xff] %vm1607, %v1598
    %1610 = vst.msk [vmem:[#allocation2 + $0x10] sm:$0xff] %vm1607, %v1600
    %1611 = vst.msk [vmem:[#allocation2 + $0x18] sm:$0xff] %vm1607, %v1602
    %1612 = vrot.lane.b32.xlu0 %v318, 104
    %v1613 = vpop.permute.xlu0 %1612
    %1614 = vrot.lane.b32.xlu0 %v324, 104
    %v1615 = vpop.permute.xlu0 %1614
    %1616 = vrot.lane.b32.xlu0 %v318, 40
    %v1617 = vpop.permute.xlu0 %1616
    %1618 = vrot.lane.b32.xlu0 %v324, 40
    %v1619 = vpop.permute.xlu0 %1618
    %v1620 = vsel %vm346, %v1613, 0
    %v1622 = vsel %vm346, %v1615, 0
    %v1624 = vsel %vm346, %v1617, 0
    %v1626 = vsel %vm346, %v1619, 0
    %1628 = vmatprep.subr.mxu0 0.0
    %1629 = vmatpush1.xpose.msra.mxu0 0.0
    %1630 = vmatprep.subr.mxu0 0.0
    %1631 = vmatpush1.xpose.msra.mxu0 0.0
    %1632 = vmatprep.subr.mxu0 0.0
    %1633 = vmatpush1.xpose.msra.mxu0 0.0
    %1634 = vmatprep.subr.mxu0 0.0
    %1635 = vmatpush1.xpose.msra.mxu0 0.0
    %1636 = vmatprep.subr.mxu0 0.0
    %1637 = vmatpush1.xpose.msra.mxu0 0.0
    %1638 = vmatprep.subr.mxu0 0.0
    %1639 = vmatpush1.xpose.msra.mxu0 0.0
    %1640 = vmatprep.subr.mxu0 0.0
    %1641 = vmatpush1.xpose.msra.mxu0 0.0
    %1642 = vmatprep.subr.mxu0 0.0
    %1643 = vmatpush1.xpose.msra.mxu0 0.0
    %1644 = vmatprep.subr.mxu0 0.0
    %1645 = vmatpush1.xpose.msra.mxu0 0.0
    %1646 = vmatprep.subr.mxu0 0.0
    %1647 = vmatpush1.xpose.msra.mxu0 0.0
    %1648 = vmatprep.subr.mxu0 0.0
    %1649 = vmatpush1.xpose.msra.mxu0 0.0
    %1650 = vmatprep.subr.mxu0 0.0
    %1651 = vmatpush1.xpose.msra.mxu0 0.0
    %1652 = vmatprep.subr.mxu0 0.0
    %1653 = vmatpush1.xpose.msra.mxu0 0.0
    %1654 = vmatprep.subr.mxu0 0.0
    %1655 = vmatpush1.xpose.msra.mxu0 0.0
    %1656 = vmatprep.subr.mxu0 0.0
    %1657 = vmatpush1.xpose.msra.mxu0 %v1626
    %1658 = vmatprep.subr.mxu0 0.0
    %1659 = vmatpush1.xpose.msra.mxu0 %v1624
    %1660 = vmatprep.subr.mxu0 0.0
    %1661 = vmatpush2.xpose.msra.mxu0 0.0
    %1662 = vmatprep.subr.mxu0 0.0
    %1663 = vmatpush2.xpose.msra.mxu0 0.0
    %1664 = vmatprep.subr.mxu0 0.0
    %1665 = vmatpush2.xpose.msra.mxu0 0.0
    %1666 = vmatprep.subr.mxu0 0.0
    %1667 = vmatpush2.xpose.msra.mxu0 0.0
    %1668 = vmatprep.subr.mxu0 0.0
    %1669 = vmatpush2.xpose.msra.mxu0 0.0
    %1670 = vmatprep.subr.mxu0 0.0
    %1671 = vmatpush2.xpose.msra.mxu0 0.0
    %1672 = vmatprep.subr.mxu0 0.0
    %1673 = vmatpush2.xpose.msra.mxu0 0.0
    %1674 = vmatprep.subr.mxu0 0.0
    %1675 = vmatpush2.xpose.msra.mxu0 0.0
    %1676 = vmatprep.subr.mxu0 0.0
    %1677 = vmatpush2.xpose.msra.mxu0 0.0
    %1678 = vmatprep.subr.mxu0 0.0
    %1679 = vmatpush2.xpose.msra.mxu0 0.0
    %1680 = vmatprep.subr.mxu0 0.0
    %1681 = vmatpush2.xpose.msra.mxu0 0.0
    %1682 = vmatprep.subr.mxu0 0.0
    %1683 = vmatpush2.xpose.msra.mxu0 0.0
    %1684 = vmatprep.subr.mxu0 0.0
    %1685 = vmatpush2.xpose.msra.mxu0 0.0
    %1686 = vmatprep.subr.mxu0 0.0
    %1687 = vmatpush2.xpose.msra.mxu0 0.0
    %1688 = vmatprep.subr.mxu0 0.0
    %1689 = vmatpush2.xpose.msra.mxu0 0.0
    %1690 = vmatprep.subr.mxu0 0.0
    %1691 = vmatpush2.xpose.msra.mxu0 0.0
    %1692 = vmatprep.mubr.f32.mxu0 0.0
    %1693 = vmatmul.mubr.f32.gmra.mxu0 %v1620
    %v1694 = vpop.f32.mrf.mxu0
    %v1695 = vadd.f32 0.0, %v1694
    %v1696 = vpop.f32.mrf.mxu0
    %1697 = vmatprep.mubr.f32.mxu0 0.0
    %1698 = vmatmul.mubr.f32.gmra.mxu0 %v1622
    %v1699 = vpop.f32.mrf.mxu0
    %v1700 = vadd.f32 0.0, %v1699
    %v1701 = vpop.f32.mrf.mxu0
    %1702 = vdwg.mxu0
    %1703 = vrot.lane.b32.xlu0 %v330, 104
    %v1704 = vpop.permute.xlu0 %1703
    %1705 = vrot.lane.b32.xlu0 %v336, 104
    %v1706 = vpop.permute.xlu0 %1705
    %1707 = vrot.lane.b32.xlu0 %v330, 40
    %v1708 = vpop.permute.xlu0 %1707
    %1709 = vrot.lane.b32.xlu0 %v336, 40
    %v1710 = vpop.permute.xlu0 %1709
    %v1711 = vsel %vm346, %v1704, 0
    %v1713 = vsel %vm346, %v1706, 0
    %v1715 = vsel %vm346, %v1708, 0
    %v1717 = vsel %vm346, %v1710, 0
    %1719 = vmatprep.subr.mxu0 0.0
    %1720 = vmatpush1.xpose.msra.mxu0 0.0
    %1721 = vmatprep.subr.mxu0 0.0
    %1722 = vmatpush1.xpose.msra.mxu0 0.0
    %1723 = vmatprep.subr.mxu0 0.0
    %1724 = vmatpush1.xpose.msra.mxu0 0.0
    %1725 = vmatprep.subr.mxu0 0.0
    %1726 = vmatpush1.xpose.msra.mxu0 0.0
    %1727 = vmatprep.subr.mxu0 0.0
    %1728 = vmatpush1.xpose.msra.mxu0 0.0
    %1729 = vmatprep.subr.mxu0 0.0
    %1730 = vmatpush1.xpose.msra.mxu0 0.0
    %1731 = vmatprep.subr.mxu0 0.0
    %1732 = vmatpush1.xpose.msra.mxu0 0.0
    %1733 = vmatprep.subr.mxu0 0.0
    %1734 = vmatpush1.xpose.msra.mxu0 0.0
    %1735 = vmatprep.subr.mxu0 0.0
    %1736 = vmatpush1.xpose.msra.mxu0 0.0
    %1737 = vmatprep.subr.mxu0 0.0
    %1738 = vmatpush1.xpose.msra.mxu0 0.0
    %1739 = vmatprep.subr.mxu0 0.0
    %1740 = vmatpush1.xpose.msra.mxu0 0.0
    %1741 = vmatprep.subr.mxu0 0.0
    %1742 = vmatpush1.xpose.msra.mxu0 0.0
    %1743 = vmatprep.subr.mxu0 0.0
    %1744 = vmatpush1.xpose.msra.mxu0 0.0
    %1745 = vmatprep.subr.mxu0 0.0
    %1746 = vmatpush1.xpose.msra.mxu0 0.0
    %1747 = vmatprep.subr.mxu0 0.0
    %1748 = vmatpush1.xpose.msra.mxu0 %v1717
    %1749 = vmatprep.subr.mxu0 0.0
    %1750 = vmatpush1.xpose.msra.mxu0 %v1715
    %1751 = vmatprep.subr.mxu0 0.0
    %1752 = vmatpush2.xpose.msra.mxu0 0.0
    %1753 = vmatprep.subr.mxu0 0.0
    %1754 = vmatpush2.xpose.msra.mxu0 0.0
    %1755 = vmatprep.subr.mxu0 0.0
    %1756 = vmatpush2.xpose.msra.mxu0 0.0
    %1757 = vmatprep.subr.mxu0 0.0
    %1758 = vmatpush2.xpose.msra.mxu0 0.0
    %1759 = vmatprep.subr.mxu0 0.0
    %1760 = vmatpush2.xpose.msra.mxu0 0.0
    %1761 = vmatprep.subr.mxu0 0.0
    %1762 = vmatpush2.xpose.msra.mxu0 0.0
    %1763 = vmatprep.subr.mxu0 0.0
    %1764 = vmatpush2.xpose.msra.mxu0 0.0
    %1765 = vmatprep.subr.mxu0 0.0
    %1766 = vmatpush2.xpose.msra.mxu0 0.0
    %1767 = vmatprep.subr.mxu0 0.0
    %1768 = vmatpush2.xpose.msra.mxu0 0.0
    %1769 = vmatprep.subr.mxu0 0.0
    %1770 = vmatpush2.xpose.msra.mxu0 0.0
    %1771 = vmatprep.subr.mxu0 0.0
    %1772 = vmatpush2.xpose.msra.mxu0 0.0
    %1773 = vmatprep.subr.mxu0 0.0
    %1774 = vmatpush2.xpose.msra.mxu0 0.0
    %1775 = vmatprep.subr.mxu0 0.0
    %1776 = vmatpush2.xpose.msra.mxu0 0.0
    %1777 = vmatprep.subr.mxu0 0.0
    %1778 = vmatpush2.xpose.msra.mxu0 0.0
    %1779 = vmatprep.subr.mxu0 0.0
    %1780 = vmatpush2.xpose.msra.mxu0 0.0
    %1781 = vmatprep.subr.mxu0 0.0
    %1782 = vmatpush2.xpose.msra.mxu0 0.0
    %1783 = vmatprep.mubr.f32.mxu0 0.0
    %1784 = vmatmul.mubr.f32.gmra.mxu0 %v1711
    %v1785 = vpop.f32.mrf.mxu0
    %v1786 = vadd.f32 0.0, %v1785
    %v1787 = vpop.f32.mrf.mxu0
    %1788 = vmatprep.mubr.f32.mxu0 0.0
    %1789 = vmatmul.mubr.f32.gmra.mxu0 %v1713
    %v1790 = vpop.f32.mrf.mxu0
    %v1791 = vadd.f32 0.0, %v1790
    %v1792 = vpop.f32.mrf.mxu0
    %1793 = vdwg.mxu0
    %v1794 = vmul.f32 %v1695, 0.35355338
    %v1795 = vmul.f32 %v1700, 0.35355338
    %v1796 = vmul.f32 %v1786, 0.35355338
    %v1797 = vmul.f32 %v1791, 0.35355338
    %v1798 = vadd.f32 %v1794, %v528
    %v1799 = vadd.f32 %v1795, %v528
    %v1800 = vadd.f32 %v1796, %v532
    %v1801 = vadd.f32 %v1797, %v532
    %v1802 = vsel %vm539, %v1798, -inf
    %1803 = vmax.xlane.f32.xlu0 %v1802
    %v1804 = vpop.xlane.xlu0 %1803
    %v1805 = vsel %vm539, %v1799, -inf
    %1806 = vmax.xlane.f32.xlu0 %v1805
    %v1807 = vpop.xlane.xlu0 %1806
    %v1808 = vsel %vm539, %v1800, -inf
    %1809 = vmax.xlane.f32.xlu0 %v1808
    %v1810 = vpop.xlane.xlu0 %1809
    %v1811 = vsel %vm539, %v1801, -inf
    %1812 = vmax.xlane.f32.xlu0 %v1811
    %v1813 = vpop.xlane.xlu0 %1812
    %v1814 = vsub.f32 %v1798, %v1804
    %v1815 = vsub.f32 %v1799, %v1807
    %v1816 = vsub.f32 %v1800, %v1810
    %v1817 = vsub.f32 %v1801, %v1813
    %v1818 = vmul.f32 %v1814, 1.442695
    %v1819 = vpow.pop %v1818
    %v1820 = vmul.f32 %v1815, 1.442695
    %v1821 = vpow.pop %v1820
    %v1822 = vmul.f32 %v1816, 1.442695
    %v1823 = vpow.pop %v1822
    %v1824 = vmul.f32 %v1817, 1.442695
    %v1825 = vpow.pop %v1824
    %v1826 = vsel %vm539, %v1819, 0.0
    %1827 = vadd.xlane.f32.xlu0 %v1826
    %v1828 = vpop.xlane.xlu0 %1827
    %v1829 = vsel %vm539, %v1821, 0.0
    %1830 = vadd.xlane.f32.xlu0 %v1829
    %v1831 = vpop.xlane.xlu0 %1830
    %v1832 = vsel %vm539, %v1823, 0.0
    %1833 = vadd.xlane.f32.xlu0 %v1832
    %v1834 = vpop.xlane.xlu0 %1833
    %v1835 = vsel %vm539, %v1825, 0.0
    %1836 = vadd.xlane.f32.xlu0 %v1835
    %v1837 = vpop.xlane.xlu0 %1836
    %v1838 = vrcp.pop %v1828
    %v1839 = vmul.f32 %v1819, %v1838
    %v1840 = vrcp.pop %v1831
    %v1841 = vmul.f32 %v1821, %v1840
    %v1842 = vrcp.pop %v1834
    %v1843 = vmul.f32 %v1823, %v1842
    %v1844 = vrcp.pop %v1837
    %v1845 = vmul.f32 %v1825, %v1844
    %1846 = vrot.lane.b32.xlu0 %v320, 104
    %v1847 = vpop.permute.xlu0 %1846
    %1848 = vrot.lane.b32.xlu0 %v326, 104
    %v1849 = vpop.permute.xlu0 %1848
    %v1853 = vsel %vm539, %v1839, 0
    %v1856 = vsel %vm539, %v1841, 0
    %1858 = vmatprep.subr.mxu0 0.0
    %1859 = vmatpush1.msra.mxu0 0.0
    %1860 = vmatprep.subr.mxu0 0.0
    %1861 = vmatpush1.msra.mxu0 0.0
    %1862 = vmatprep.subr.mxu0 0.0
    %1863 = vmatpush1.msra.mxu0 0.0
    %1864 = vmatprep.subr.mxu0 0.0
    %1865 = vmatpush1.msra.mxu0 0.0
    %1866 = vmatprep.subr.mxu0 0.0
    %1867 = vmatpush1.msra.mxu0 0.0
    %1868 = vmatprep.subr.mxu0 0.0
    %1869 = vmatpush1.msra.mxu0 0.0
    %1870 = vmatprep.subr.mxu0 0.0
    %1871 = vmatpush1.msra.mxu0 0.0
    %1872 = vmatprep.subr.mxu0 0.0
    %1873 = vmatpush1.msra.mxu0 0.0
    %1874 = vmatprep.subr.mxu0 0.0
    %1875 = vmatpush1.msra.mxu0 0.0
    %1876 = vmatprep.subr.mxu0 0.0
    %1877 = vmatpush1.msra.mxu0 0.0
    %1878 = vmatprep.subr.mxu0 0.0
    %1879 = vmatpush1.msra.mxu0 0.0
    %1880 = vmatprep.subr.mxu0 0.0
    %1881 = vmatpush1.msra.mxu0 0.0
    %1882 = vmatprep.subr.mxu0 0.0
    %1883 = vmatpush1.msra.mxu0 0.0
    %1884 = vmatprep.subr.mxu0 0.0
    %1885 = vmatpush1.msra.mxu0 0.0
    %1886 = vmatprep.subr.mxu0 0.0
    %1887 = vmatpush1.msra.mxu0 %v1849
    %1888 = vmatprep.subr.mxu0 0.0
    %1889 = vmatpush1.msra.mxu0 %v1847
    %1890 = vmatprep.subr.mxu0 0.0
    %1891 = vmatpush2.msra.mxu0 0.0
    %1892 = vmatprep.subr.mxu0 0.0
    %1893 = vmatpush2.msra.mxu0 0.0
    %1894 = vmatprep.subr.mxu0 0.0
    %1895 = vmatpush2.msra.mxu0 0.0
    %1896 = vmatprep.subr.mxu0 0.0
    %1897 = vmatpush2.msra.mxu0 0.0
    %1898 = vmatprep.subr.mxu0 0.0
    %1899 = vmatpush2.msra.mxu0 0.0
    %1900 = vmatprep.subr.mxu0 0.0
    %1901 = vmatpush2.msra.mxu0 0.0
    %1902 = vmatprep.subr.mxu0 0.0
    %1903 = vmatpush2.msra.mxu0 0.0
    %1904 = vmatprep.subr.mxu0 0.0
    %1905 = vmatpush2.msra.mxu0 0.0
    %1906 = vmatprep.subr.mxu0 0.0
    %1907 = vmatpush2.msra.mxu0 0.0
    %1908 = vmatprep.subr.mxu0 0.0
    %1909 = vmatpush2.msra.mxu0 0.0
    %1910 = vmatprep.subr.mxu0 0.0
    %1911 = vmatpush2.msra.mxu0 0.0
    %1912 = vmatprep.subr.mxu0 0.0
    %1913 = vmatpush2.msra.mxu0 0.0
    %1914 = vmatprep.subr.mxu0 0.0
    %1915 = vmatpush2.msra.mxu0 0.0
    %1916 = vmatprep.subr.mxu0 0.0
    %1917 = vmatpush2.msra.mxu0 0.0
    %1918 = vmatprep.subr.mxu0 0.0
    %1919 = vmatpush2.msra.mxu0 0.0
    %1920 = vmatprep.subr.mxu0 0.0
    %1921 = vmatpush2.msra.mxu0 0.0
    %1922 = vmatprep.mubr.f32.mxu0 0.0
    %1923 = vmatmul.mubr.f32.gmra.mxu0 %v1853
    %v1924 = vpop.f32.mrf.mxu0
    %v1925 = vadd.f32 0.0, %v1924
    %v1926 = vpop.f32.mrf.mxu0
    %1927 = vmatprep.mubr.f32.mxu0 0.0
    %1928 = vmatmul.mubr.f32.gmra.mxu0 %v1856
    %v1929 = vpop.f32.mrf.mxu0
    %v1930 = vadd.f32 0.0, %v1929
    %v1931 = vpop.f32.mrf.mxu0
    %1932 = vdwg.mxu0
    %1933 = vrot.lane.b32.xlu0 %v332, 104
    %v1934 = vpop.permute.xlu0 %1933
    %1935 = vrot.lane.b32.xlu0 %v338, 104
    %v1936 = vpop.permute.xlu0 %1935
    %v1940 = vsel %vm539, %v1843, 0
    %v1943 = vsel %vm539, %v1845, 0
    %1945 = vmatprep.subr.mxu0 0.0
    %1946 = vmatpush1.msra.mxu0 0.0
    %1947 = vmatprep.subr.mxu0 0.0
    %1948 = vmatpush1.msra.mxu0 0.0
    %1949 = vmatprep.subr.mxu0 0.0
    %1950 = vmatpush1.msra.mxu0 0.0
    %1951 = vmatprep.subr.mxu0 0.0
    %1952 = vmatpush1.msra.mxu0 0.0
    %1953 = vmatprep.subr.mxu0 0.0
    %1954 = vmatpush1.msra.mxu0 0.0
    %1955 = vmatprep.subr.mxu0 0.0
    %1956 = vmatpush1.msra.mxu0 0.0
    %1957 = vmatprep.subr.mxu0 0.0
    %1958 = vmatpush1.msra.mxu0 0.0
    %1959 = vmatprep.subr.mxu0 0.0
    %1960 = vmatpush1.msra.mxu0 0.0
    %1961 = vmatprep.subr.mxu0 0.0
    %1962 = vmatpush1.msra.mxu0 0.0
    %1963 = vmatprep.subr.mxu0 0.0
    %1964 = vmatpush1.msra.mxu0 0.0
    %1965 = vmatprep.subr.mxu0 0.0
    %1966 = vmatpush1.msra.mxu0 0.0
    %1967 = vmatprep.subr.mxu0 0.0
    %1968 = vmatpush1.msra.mxu0 0.0
    %1969 = vmatprep.subr.mxu0 0.0
    %1970 = vmatpush1.msra.mxu0 0.0
    %1971 = vmatprep.subr.mxu0 0.0
    %1972 = vmatpush1.msra.mxu0 0.0
    %1973 = vmatprep.subr.mxu0 0.0
    %1974 = vmatpush1.msra.mxu0 %v1936
    %1975 = vmatprep.subr.mxu0 0.0
    %1976 = vmatpush1.msra.mxu0 %v1934
    %1977 = vmatprep.subr.mxu0 0.0
    %1978 = vmatpush2.msra.mxu0 0.0
    %1979 = vmatprep.subr.mxu0 0.0
    %1980 = vmatpush2.msra.mxu0 0.0
    %1981 = vmatprep.subr.mxu0 0.0
    %1982 = vmatpush2.msra.mxu0 0.0
    %1983 = vmatprep.subr.mxu0 0.0
    %1984 = vmatpush2.msra.mxu0 0.0
    %1985 = vmatprep.subr.mxu0 0.0
    %1986 = vmatpush2.msra.mxu0 0.0
    %1987 = vmatprep.subr.mxu0 0.0
    %1988 = vmatpush2.msra.mxu0 0.0
    %1989 = vmatprep.subr.mxu0 0.0
    %1990 = vmatpush2.msra.mxu0 0.0
    %1991 = vmatprep.subr.mxu0 0.0
    %1992 = vmatpush2.msra.mxu0 0.0
    %1993 = vmatprep.subr.mxu0 0.0
    %1994 = vmatpush2.msra.mxu0 0.0
    %1995 = vmatprep.subr.mxu0 0.0
    %1996 = vmatpush2.msra.mxu0 0.0
    %1997 = vmatprep.subr.mxu0 0.0
    %1998 = vmatpush2.msra.mxu0 0.0
    %1999 = vmatprep.subr.mxu0 0.0
    %2000 = vmatpush2.msra.mxu0 0.0
    %2001 = vmatprep.subr.mxu0 0.0
    %2002 = vmatpush2.msra.mxu0 0.0
    %2003 = vmatprep.subr.mxu0 0.0
    %2004 = vmatpush2.msra.mxu0 0.0
    %2005 = vmatprep.subr.mxu0 0.0
    %2006 = vmatpush2.msra.mxu0 0.0
    %2007 = vmatprep.subr.mxu0 0.0
    %2008 = vmatpush2.msra.mxu0 0.0
    %2009 = vmatprep.mubr.f32.mxu0 0.0
    %2010 = vmatmul.mubr.f32.gmra.mxu0 %v1940
    %v2011 = vpop.f32.mrf.mxu0
    %v2012 = vadd.f32 0.0, %v2011
    %v2013 = vpop.f32.mrf.mxu0
    %2014 = vmatprep.mubr.f32.mxu0 0.0
    %2015 = vmatmul.mubr.f32.gmra.mxu0 %v1943
    %v2016 = vpop.f32.mrf.mxu0
    %v2017 = vadd.f32 0.0, %v2016
    %v2018 = vpop.f32.mrf.mxu0
    %2019 = vdwg.mxu0
    %2024 = vrot.lane.b32.xlu0 %v1925, 24
    %v2025 = vpop.permute.xlu0 %2024
    %2026 = vrot.lane.b32.xlu0 %v1930, 24
    %v2027 = vpop.permute.xlu0 %2026
    %2028 = vrot.lane.b32.xlu0 %v2012, 24
    %v2029 = vpop.permute.xlu0 %2028
    %2030 = vrot.lane.b32.xlu0 %v2017, 24
    %v2031 = vpop.permute.xlu0 %2030
    %vm2036 = vcmask 261312
    %2037 = vst.msk [vmem:[#allocation2] sm:$0xff] %vm2036, %v2025
    %2038 = vst.msk [vmem:[#allocation2 + $0x8] sm:$0xff] %vm2036, %v2027
    %2039 = vst.msk [vmem:[#allocation2 + $0x10] sm:$0xff] %vm2036, %v2029
    %2040 = vst.msk [vmem:[#allocation2 + $0x18] sm:$0xff] %vm2036, %v2031
    %2041 = vrot.lane.b32.xlu0 %v318, 96
    %v2042 = vpop.permute.xlu0 %2041
    %2043 = vrot.lane.b32.xlu0 %v324, 96
    %v2044 = vpop.permute.xlu0 %2043
    %2045 = vrot.lane.b32.xlu0 %v318, 32
    %v2046 = vpop.permute.xlu0 %2045
    %2047 = vrot.lane.b32.xlu0 %v324, 32
    %v2048 = vpop.permute.xlu0 %2047
    %v2049 = vsel %vm346, %v2042, 0
    %v2051 = vsel %vm346, %v2044, 0
    %v2053 = vsel %vm346, %v2046, 0
    %v2055 = vsel %vm346, %v2048, 0
    %2057 = vmatprep.subr.mxu0 0.0
    %2058 = vmatpush1.xpose.msra.mxu0 0.0
    %2059 = vmatprep.subr.mxu0 0.0
    %2060 = vmatpush1.xpose.msra.mxu0 0.0
    %2061 = vmatprep.subr.mxu0 0.0
    %2062 = vmatpush1.xpose.msra.mxu0 0.0
    %2063 = vmatprep.subr.mxu0 0.0
    %2064 = vmatpush1.xpose.msra.mxu0 0.0
    %2065 = vmatprep.subr.mxu0 0.0
    %2066 = vmatpush1.xpose.msra.mxu0 0.0
    %2067 = vmatprep.subr.mxu0 0.0
    %2068 = vmatpush1.xpose.msra.mxu0 0.0
    %2069 = vmatprep.subr.mxu0 0.0
    %2070 = vmatpush1.xpose.msra.mxu0 0.0
    %2071 = vmatprep.subr.mxu0 0.0
    %2072 = vmatpush1.xpose.msra.mxu0 0.0
    %2073 = vmatprep.subr.mxu0 0.0
    %2074 = vmatpush1.xpose.msra.mxu0 0.0
    %2075 = vmatprep.subr.mxu0 0.0
    %2076 = vmatpush1.xpose.msra.mxu0 0.0
    %2077 = vmatprep.subr.mxu0 0.0
    %2078 = vmatpush1.xpose.msra.mxu0 0.0
    %2079 = vmatprep.subr.mxu0 0.0
    %2080 = vmatpush1.xpose.msra.mxu0 0.0
    %2081 = vmatprep.subr.mxu0 0.0
    %2082 = vmatpush1.xpose.msra.mxu0 0.0
    %2083 = vmatprep.subr.mxu0 0.0
    %2084 = vmatpush1.xpose.msra.mxu0 0.0
    %2085 = vmatprep.subr.mxu0 0.0
    %2086 = vmatpush1.xpose.msra.mxu0 %v2055
    %2087 = vmatprep.subr.mxu0 0.0
    %2088 = vmatpush1.xpose.msra.mxu0 %v2053
    %2089 = vmatprep.subr.mxu0 0.0
    %2090 = vmatpush2.xpose.msra.mxu0 0.0
    %2091 = vmatprep.subr.mxu0 0.0
    %2092 = vmatpush2.xpose.msra.mxu0 0.0
    %2093 = vmatprep.subr.mxu0 0.0
    %2094 = vmatpush2.xpose.msra.mxu0 0.0
    %2095 = vmatprep.subr.mxu0 0.0
    %2096 = vmatpush2.xpose.msra.mxu0 0.0
    %2097 = vmatprep.subr.mxu0 0.0
    %2098 = vmatpush2.xpose.msra.mxu0 0.0
    %2099 = vmatprep.subr.mxu0 0.0
    %2100 = vmatpush2.xpose.msra.mxu0 0.0
    %2101 = vmatprep.subr.mxu0 0.0
    %2102 = vmatpush2.xpose.msra.mxu0 0.0
    %2103 = vmatprep.subr.mxu0 0.0
    %2104 = vmatpush2.xpose.msra.mxu0 0.0
    %2105 = vmatprep.subr.mxu0 0.0
    %2106 = vmatpush2.xpose.msra.mxu0 0.0
    %2107 = vmatprep.subr.mxu0 0.0
    %2108 = vmatpush2.xpose.msra.mxu0 0.0
    %2109 = vmatprep.subr.mxu0 0.0
    %2110 = vmatpush2.xpose.msra.mxu0 0.0
    %2111 = vmatprep.subr.mxu0 0.0
    %2112 = vmatpush2.xpose.msra.mxu0 0.0
    %2113 = vmatprep.subr.mxu0 0.0
    %2114 = vmatpush2.xpose.msra.mxu0 0.0
    %2115 = vmatprep.subr.mxu0 0.0
    %2116 = vmatpush2.xpose.msra.mxu0 0.0
    %2117 = vmatprep.subr.mxu0 0.0
    %2118 = vmatpush2.xpose.msra.mxu0 0.0
    %2119 = vmatprep.subr.mxu0 0.0
    %2120 = vmatpush2.xpose.msra.mxu0 0.0
    %2121 = vmatprep.mubr.f32.mxu0 0.0
    %2122 = vmatmul.mubr.f32.gmra.mxu0 %v2049
    %v2123 = vpop.f32.mrf.mxu0
    %v2124 = vadd.f32 0.0, %v2123
    %v2125 = vpop.f32.mrf.mxu0
    %2126 = vmatprep.mubr.f32.mxu0 0.0
    %2127 = vmatmul.mubr.f32.gmra.mxu0 %v2051
    %v2128 = vpop.f32.mrf.mxu0
    %v2129 = vadd.f32 0.0, %v2128
    %v2130 = vpop.f32.mrf.mxu0
    %2131 = vdwg.mxu0
    %2132 = vrot.lane.b32.xlu0 %v330, 96
    %v2133 = vpop.permute.xlu0 %2132
    %2134 = vrot.lane.b32.xlu0 %v336, 96
    %v2135 = vpop.permute.xlu0 %2134
    %2136 = vrot.lane.b32.xlu0 %v330, 32
    %v2137 = vpop.permute.xlu0 %2136
    %2138 = vrot.lane.b32.xlu0 %v336, 32
    %v2139 = vpop.permute.xlu0 %2138
    %v2140 = vsel %vm346, %v2133, 0
    %v2142 = vsel %vm346, %v2135, 0
    %v2144 = vsel %vm346, %v2137, 0
    %v2146 = vsel %vm346, %v2139, 0
    %2148 = vmatprep.subr.mxu0 0.0
    %2149 = vmatpush1.xpose.msra.mxu0 0.0
    %2150 = vmatprep.subr.mxu0 0.0
    %2151 = vmatpush1.xpose.msra.mxu0 0.0
    %2152 = vmatprep.subr.mxu0 0.0
    %2153 = vmatpush1.xpose.msra.mxu0 0.0
    %2154 = vmatprep.subr.mxu0 0.0
    %2155 = vmatpush1.xpose.msra.mxu0 0.0
    %2156 = vmatprep.subr.mxu0 0.0
    %2157 = vmatpush1.xpose.msra.mxu0 0.0
    %2158 = vmatprep.subr.mxu0 0.0
    %2159 = vmatpush1.xpose.msra.mxu0 0.0
    %2160 = vmatprep.subr.mxu0 0.0
    %2161 = vmatpush1.xpose.msra.mxu0 0.0
    %2162 = vmatprep.subr.mxu0 0.0
    %2163 = vmatpush1.xpose.msra.mxu0 0.0
    %2164 = vmatprep.subr.mxu0 0.0
    %2165 = vmatpush1.xpose.msra.mxu0 0.0
    %2166 = vmatprep.subr.mxu0 0.0
    %2167 = vmatpush1.xpose.msra.mxu0 0.0
    %2168 = vmatprep.subr.mxu0 0.0
    %2169 = vmatpush1.xpose.msra.mxu0 0.0
    %2170 = vmatprep.subr.mxu0 0.0
    %2171 = vmatpush1.xpose.msra.mxu0 0.0
    %2172 = vmatprep.subr.mxu0 0.0
    %2173 = vmatpush1.xpose.msra.mxu0 0.0
    %2174 = vmatprep.subr.mxu0 0.0
    %2175 = vmatpush1.xpose.msra.mxu0 0.0
    %2176 = vmatprep.subr.mxu0 0.0
    %2177 = vmatpush1.xpose.msra.mxu0 %v2146
    %2178 = vmatprep.subr.mxu0 0.0
    %2179 = vmatpush1.xpose.msra.mxu0 %v2144
    %2180 = vmatprep.subr.mxu0 0.0
    %2181 = vmatpush2.xpose.msra.mxu0 0.0
    %2182 = vmatprep.subr.mxu0 0.0
    %2183 = vmatpush2.xpose.msra.mxu0 0.0
    %2184 = vmatprep.subr.mxu0 0.0
    %2185 = vmatpush2.xpose.msra.mxu0 0.0
    %2186 = vmatprep.subr.mxu0 0.0
    %2187 = vmatpush2.xpose.msra.mxu0 0.0
    %2188 = vmatprep.subr.mxu0 0.0
    %2189 = vmatpush2.xpose.msra.mxu0 0.0
    %2190 = vmatprep.subr.mxu0 0.0
    %2191 = vmatpush2.xpose.msra.mxu0 0.0
    %2192 = vmatprep.subr.mxu0 0.0
    %2193 = vmatpush2.xpose.msra.mxu0 0.0
    %2194 = vmatprep.subr.mxu0 0.0
    %2195 = vmatpush2.xpose.msra.mxu0 0.0
    %2196 = vmatprep.subr.mxu0 0.0
    %2197 = vmatpush2.xpose.msra.mxu0 0.0
    %2198 = vmatprep.subr.mxu0 0.0
    %2199 = vmatpush2.xpose.msra.mxu0 0.0
    %2200 = vmatprep.subr.mxu0 0.0
    %2201 = vmatpush2.xpose.msra.mxu0 0.0
    %2202 = vmatprep.subr.mxu0 0.0
    %2203 = vmatpush2.xpose.msra.mxu0 0.0
    %2204 = vmatprep.subr.mxu0 0.0
    %2205 = vmatpush2.xpose.msra.mxu0 0.0
    %2206 = vmatprep.subr.mxu0 0.0
    %2207 = vmatpush2.xpose.msra.mxu0 0.0
    %2208 = vmatprep.subr.mxu0 0.0
    %2209 = vmatpush2.xpose.msra.mxu0 0.0
    %2210 = vmatprep.subr.mxu0 0.0
    %2211 = vmatpush2.xpose.msra.mxu0 0.0
    %2212 = vmatprep.mubr.f32.mxu0 0.0
    %2213 = vmatmul.mubr.f32.gmra.mxu0 %v2140
    %v2214 = vpop.f32.mrf.mxu0
    %v2215 = vadd.f32 0.0, %v2214
    %v2216 = vpop.f32.mrf.mxu0
    %2217 = vmatprep.mubr.f32.mxu0 0.0
    %2218 = vmatmul.mubr.f32.gmra.mxu0 %v2142
    %v2219 = vpop.f32.mrf.mxu0
    %v2220 = vadd.f32 0.0, %v2219
    %v2221 = vpop.f32.mrf.mxu0
    %2222 = vdwg.mxu0
    %v2223 = vmul.f32 %v2124, 0.35355338
    %v2224 = vmul.f32 %v2129, 0.35355338
    %v2225 = vmul.f32 %v2215, 0.35355338
    %v2226 = vmul.f32 %v2220, 0.35355338
    %v2227 = vadd.f32 %v2223, %v528
    %v2228 = vadd.f32 %v2224, %v528
    %v2229 = vadd.f32 %v2225, %v532
    %v2230 = vadd.f32 %v2226, %v532
    %v2231 = vsel %vm539, %v2227, -inf
    %2232 = vmax.xlane.f32.xlu0 %v2231
    %v2233 = vpop.xlane.xlu0 %2232
    %v2234 = vsel %vm539, %v2228, -inf
    %2235 = vmax.xlane.f32.xlu0 %v2234
    %v2236 = vpop.xlane.xlu0 %2235
    %v2237 = vsel %vm539, %v2229, -inf
    %2238 = vmax.xlane.f32.xlu0 %v2237
    %v2239 = vpop.xlane.xlu0 %2238
    %v2240 = vsel %vm539, %v2230, -inf
    %2241 = vmax.xlane.f32.xlu0 %v2240
    %v2242 = vpop.xlane.xlu0 %2241
    %v2243 = vsub.f32 %v2227, %v2233
    %v2244 = vsub.f32 %v2228, %v2236
    %v2245 = vsub.f32 %v2229, %v2239
    %v2246 = vsub.f32 %v2230, %v2242
    %v2247 = vmul.f32 %v2243, 1.442695
    %v2248 = vpow.pop %v2247
    %v2249 = vmul.f32 %v2244, 1.442695
    %v2250 = vpow.pop %v2249
    %v2251 = vmul.f32 %v2245, 1.442695
    %v2252 = vpow.pop %v2251
    %v2253 = vmul.f32 %v2246, 1.442695
    %v2254 = vpow.pop %v2253
    %v2255 = vsel %vm539, %v2248, 0.0
    %2256 = vadd.xlane.f32.xlu0 %v2255
    %v2257 = vpop.xlane.xlu0 %2256
    %v2258 = vsel %vm539, %v2250, 0.0
    %2259 = vadd.xlane.f32.xlu0 %v2258
    %v2260 = vpop.xlane.xlu0 %2259
    %v2261 = vsel %vm539, %v2252, 0.0
    %2262 = vadd.xlane.f32.xlu0 %v2261
    %v2263 = vpop.xlane.xlu0 %2262
    %v2264 = vsel %vm539, %v2254, 0.0
    %2265 = vadd.xlane.f32.xlu0 %v2264
    %v2266 = vpop.xlane.xlu0 %2265
    %v2267 = vrcp.pop %v2257
    %v2268 = vmul.f32 %v2248, %v2267
    %v2269 = vrcp.pop %v2260
    %v2270 = vmul.f32 %v2250, %v2269
    %v2271 = vrcp.pop %v2263
    %v2272 = vmul.f32 %v2252, %v2271
    %v2273 = vrcp.pop %v2266
    %v2274 = vmul.f32 %v2254, %v2273
    %2275 = vrot.lane.b32.xlu0 %v320, 96
    %v2276 = vpop.permute.xlu0 %2275
    %2277 = vrot.lane.b32.xlu0 %v326, 96
    %v2278 = vpop.permute.xlu0 %2277
    %v2282 = vsel %vm539, %v2268, 0
    %v2285 = vsel %vm539, %v2270, 0
    %2287 = vmatprep.subr.mxu0 0.0
    %2288 = vmatpush1.msra.mxu0 0.0
    %2289 = vmatprep.subr.mxu0 0.0
    %2290 = vmatpush1.msra.mxu0 0.0
    %2291 = vmatprep.subr.mxu0 0.0
    %2292 = vmatpush1.msra.mxu0 0.0
    %2293 = vmatprep.subr.mxu0 0.0
    %2294 = vmatpush1.msra.mxu0 0.0
    %2295 = vmatprep.subr.mxu0 0.0
    %2296 = vmatpush1.msra.mxu0 0.0
    %2297 = vmatprep.subr.mxu0 0.0
    %2298 = vmatpush1.msra.mxu0 0.0
    %2299 = vmatprep.subr.mxu0 0.0
    %2300 = vmatpush1.msra.mxu0 0.0
    %2301 = vmatprep.subr.mxu0 0.0
    %2302 = vmatpush1.msra.mxu0 0.0
    %2303 = vmatprep.subr.mxu0 0.0
    %2304 = vmatpush1.msra.mxu0 0.0
    %2305 = vmatprep.subr.mxu0 0.0
    %2306 = vmatpush1.msra.mxu0 0.0
    %2307 = vmatprep.subr.mxu0 0.0
    %2308 = vmatpush1.msra.mxu0 0.0
    %2309 = vmatprep.subr.mxu0 0.0
    %2310 = vmatpush1.msra.mxu0 0.0
    %2311 = vmatprep.subr.mxu0 0.0
    %2312 = vmatpush1.msra.mxu0 0.0
    %2313 = vmatprep.subr.mxu0 0.0
    %2314 = vmatpush1.msra.mxu0 0.0
    %2315 = vmatprep.subr.mxu0 0.0
    %2316 = vmatpush1.msra.mxu0 %v2278
    %2317 = vmatprep.subr.mxu0 0.0
    %2318 = vmatpush1.msra.mxu0 %v2276
    %2319 = vmatprep.subr.mxu0 0.0
    %2320 = vmatpush2.msra.mxu0 0.0
    %2321 = vmatprep.subr.mxu0 0.0
    %2322 = vmatpush2.msra.mxu0 0.0
    %2323 = vmatprep.subr.mxu0 0.0
    %2324 = vmatpush2.msra.mxu0 0.0
    %2325 = vmatprep.subr.mxu0 0.0
    %2326 = vmatpush2.msra.mxu0 0.0
    %2327 = vmatprep.subr.mxu0 0.0
    %2328 = vmatpush2.msra.mxu0 0.0
    %2329 = vmatprep.subr.mxu0 0.0
    %2330 = vmatpush2.msra.mxu0 0.0
    %2331 = vmatprep.subr.mxu0 0.0
    %2332 = vmatpush2.msra.mxu0 0.0
    %2333 = vmatprep.subr.mxu0 0.0
    %2334 = vmatpush2.msra.mxu0 0.0
    %2335 = vmatprep.subr.mxu0 0.0
    %2336 = vmatpush2.msra.mxu0 0.0
    %2337 = vmatprep.subr.mxu0 0.0
    %2338 = vmatpush2.msra.mxu0 0.0
    %2339 = vmatprep.subr.mxu0 0.0
    %2340 = vmatpush2.msra.mxu0 0.0
    %2341 = vmatprep.subr.mxu0 0.0
    %2342 = vmatpush2.msra.mxu0 0.0
    %2343 = vmatprep.subr.mxu0 0.0
    %2344 = vmatpush2.msra.mxu0 0.0
    %2345 = vmatprep.subr.mxu0 0.0
    %2346 = vmatpush2.msra.mxu0 0.0
    %2347 = vmatprep.subr.mxu0 0.0
    %2348 = vmatpush2.msra.mxu0 0.0
    %2349 = vmatprep.subr.mxu0 0.0
    %2350 = vmatpush2.msra.mxu0 0.0
    %2351 = vmatprep.mubr.f32.mxu0 0.0
    %2352 = vmatmul.mubr.f32.gmra.mxu0 %v2282
    %v2353 = vpop.f32.mrf.mxu0
    %v2354 = vadd.f32 0.0, %v2353
    %v2355 = vpop.f32.mrf.mxu0
    %2356 = vmatprep.mubr.f32.mxu0 0.0
    %2357 = vmatmul.mubr.f32.gmra.mxu0 %v2285
    %v2358 = vpop.f32.mrf.mxu0
    %v2359 = vadd.f32 0.0, %v2358
    %v2360 = vpop.f32.mrf.mxu0
    %2361 = vdwg.mxu0
    %2362 = vrot.lane.b32.xlu0 %v332, 96
    %v2363 = vpop.permute.xlu0 %2362
    %2364 = vrot.lane.b32.xlu0 %v338, 96
    %v2365 = vpop.permute.xlu0 %2364
    %v2369 = vsel %vm539, %v2272, 0
    %v2372 = vsel %vm539, %v2274, 0
    %2374 = vmatprep.subr.mxu0 0.0
    %2375 = vmatpush1.msra.mxu0 0.0
    %2376 = vmatprep.subr.mxu0 0.0
    %2377 = vmatpush1.msra.mxu0 0.0
    %2378 = vmatprep.subr.mxu0 0.0
    %2379 = vmatpush1.msra.mxu0 0.0
    %2380 = vmatprep.subr.mxu0 0.0
    %2381 = vmatpush1.msra.mxu0 0.0
    %2382 = vmatprep.subr.mxu0 0.0
    %2383 = vmatpush1.msra.mxu0 0.0
    %2384 = vmatprep.subr.mxu0 0.0
    %2385 = vmatpush1.msra.mxu0 0.0
    %2386 = vmatprep.subr.mxu0 0.0
    %2387 = vmatpush1.msra.mxu0 0.0
    %2388 = vmatprep.subr.mxu0 0.0
    %2389 = vmatpush1.msra.mxu0 0.0
    %2390 = vmatprep.subr.mxu0 0.0
    %2391 = vmatpush1.msra.mxu0 0.0
    %2392 = vmatprep.subr.mxu0 0.0
    %2393 = vmatpush1.msra.mxu0 0.0
    %2394 = vmatprep.subr.mxu0 0.0
    %2395 = vmatpush1.msra.mxu0 0.0
    %2396 = vmatprep.subr.mxu0 0.0
    %2397 = vmatpush1.msra.mxu0 0.0
    %2398 = vmatprep.subr.mxu0 0.0
    %2399 = vmatpush1.msra.mxu0 0.0
    %2400 = vmatprep.subr.mxu0 0.0
    %2401 = vmatpush1.msra.mxu0 0.0
    %2402 = vmatprep.subr.mxu0 0.0
    %2403 = vmatpush1.msra.mxu0 %v2365
    %2404 = vmatprep.subr.mxu0 0.0
    %2405 = vmatpush1.msra.mxu0 %v2363
    %2406 = vmatprep.subr.mxu0 0.0
    %2407 = vmatpush2.msra.mxu0 0.0
    %2408 = vmatprep.subr.mxu0 0.0
    %2409 = vmatpush2.msra.mxu0 0.0
    %2410 = vmatprep.subr.mxu0 0.0
    %2411 = vmatpush2.msra.mxu0 0.0
    %2412 = vmatprep.subr.mxu0 0.0
    %2413 = vmatpush2.msra.mxu0 0.0
    %2414 = vmatprep.subr.mxu0 0.0
    %2415 = vmatpush2.msra.mxu0 0.0
    %2416 = vmatprep.subr.mxu0 0.0
    %2417 = vmatpush2.msra.mxu0 0.0
    %2418 = vmatprep.subr.mxu0 0.0
    %2419 = vmatpush2.msra.mxu0 0.0
    %2420 = vmatprep.subr.mxu0 0.0
    %2421 = vmatpush2.msra.mxu0 0.0
    %2422 = vmatprep.subr.mxu0 0.0
    %2423 = vmatpush2.msra.mxu0 0.0
    %2424 = vmatprep.subr.mxu0 0.0
    %2425 = vmatpush2.msra.mxu0 0.0
    %2426 = vmatprep.subr.mxu0 0.0
    %2427 = vmatpush2.msra.mxu0 0.0
    %2428 = vmatprep.subr.mxu0 0.0
    %2429 = vmatpush2.msra.mxu0 0.0
    %2430 = vmatprep.subr.mxu0 0.0
    %2431 = vmatpush2.msra.mxu0 0.0
    %2432 = vmatprep.subr.mxu0 0.0
    %2433 = vmatpush2.msra.mxu0 0.0
    %2434 = vmatprep.subr.mxu0 0.0
    %2435 = vmatpush2.msra.mxu0 0.0
    %2436 = vmatprep.subr.mxu0 0.0
    %2437 = vmatpush2.msra.mxu0 0.0
    %2438 = vmatprep.mubr.f32.mxu0 0.0
    %2439 = vmatmul.mubr.f32.gmra.mxu0 %v2369
    %v2440 = vpop.f32.mrf.mxu0
    %v2441 = vadd.f32 0.0, %v2440
    %v2442 = vpop.f32.mrf.mxu0
    %2443 = vmatprep.mubr.f32.mxu0 0.0
    %2444 = vmatmul.mubr.f32.gmra.mxu0 %v2372
    %v2445 = vpop.f32.mrf.mxu0
    %v2446 = vadd.f32 0.0, %v2445
    %v2447 = vpop.f32.mrf.mxu0
    %2448 = vdwg.mxu0
    %2453 = vrot.lane.b32.xlu0 %v2354, 32
    %v2454 = vpop.permute.xlu0 %2453
    %2455 = vrot.lane.b32.xlu0 %v2359, 32
    %v2456 = vpop.permute.xlu0 %2455
    %2457 = vrot.lane.b32.xlu0 %v2441, 32
    %v2458 = vpop.permute.xlu0 %2457
    %2459 = vrot.lane.b32.xlu0 %v2446, 32
    %v2460 = vpop.permute.xlu0 %2459
    %vm2465 = vcmask 326912
    %2466 = vst.msk [vmem:[#allocation2] sm:$0xff] %vm2465, %v2454
    %2467 = vst.msk [vmem:[#allocation2 + $0x8] sm:$0xff] %vm2465, %v2456
    %2468 = vst.msk [vmem:[#allocation2 + $0x10] sm:$0xff] %vm2465, %v2458
    %2469 = vst.msk [vmem:[#allocation2 + $0x18] sm:$0xff] %vm2465, %v2460
    %2470 = vrot.lane.b32.xlu0 %v318, 88
    %v2471 = vpop.permute.xlu0 %2470
    %2472 = vrot.lane.b32.xlu0 %v324, 88
    %v2473 = vpop.permute.xlu0 %2472
    %2474 = vrot.lane.b32.xlu0 %v318, 24
    %v2475 = vpop.permute.xlu0 %2474
    %2476 = vrot.lane.b32.xlu0 %v324, 24
    %v2477 = vpop.permute.xlu0 %2476
    %v2478 = vsel %vm346, %v2471, 0
    %v2480 = vsel %vm346, %v2473, 0
    %v2482 = vsel %vm346, %v2475, 0
    %v2484 = vsel %vm346, %v2477, 0
    %2486 = vmatprep.subr.mxu0 0.0
    %2487 = vmatpush1.xpose.msra.mxu0 0.0
    %2488 = vmatprep.subr.mxu0 0.0
    %2489 = vmatpush1.xpose.msra.mxu0 0.0
    %2490 = vmatprep.subr.mxu0 0.0
    %2491 = vmatpush1.xpose.msra.mxu0 0.0
    %2492 = vmatprep.subr.mxu0 0.0
    %2493 = vmatpush1.xpose.msra.mxu0 0.0
    %2494 = vmatprep.subr.mxu0 0.0
    %2495 = vmatpush1.xpose.msra.mxu0 0.0
    %2496 = vmatprep.subr.mxu0 0.0
    %2497 = vmatpush1.xpose.msra.mxu0 0.0
    %2498 = vmatprep.subr.mxu0 0.0
    %2499 = vmatpush1.xpose.msra.mxu0 0.0
    %2500 = vmatprep.subr.mxu0 0.0
    %2501 = vmatpush1.xpose.msra.mxu0 0.0
    %2502 = vmatprep.subr.mxu0 0.0
    %2503 = vmatpush1.xpose.msra.mxu0 0.0
    %2504 = vmatprep.subr.mxu0 0.0
    %2505 = vmatpush1.xpose.msra.mxu0 0.0
    %2506 = vmatprep.subr.mxu0 0.0
    %2507 = vmatpush1.xpose.msra.mxu0 0.0
    %2508 = vmatprep.subr.mxu0 0.0
    %2509 = vmatpush1.xpose.msra.mxu0 0.0
    %2510 = vmatprep.subr.mxu0 0.0
    %2511 = vmatpush1.xpose.msra.mxu0 0.0
    %2512 = vmatprep.subr.mxu0 0.0
    %2513 = vmatpush1.xpose.msra.mxu0 0.0
    %2514 = vmatprep.subr.mxu0 0.0
    %2515 = vmatpush1.xpose.msra.mxu0 %v2484
    %2516 = vmatprep.subr.mxu0 0.0
    %2517 = vmatpush1.xpose.msra.mxu0 %v2482
    %2518 = vmatprep.subr.mxu0 0.0
    %2519 = vmatpush2.xpose.msra.mxu0 0.0
    %2520 = vmatprep.subr.mxu0 0.0
    %2521 = vmatpush2.xpose.msra.mxu0 0.0
    %2522 = vmatprep.subr.mxu0 0.0
    %2523 = vmatpush2.xpose.msra.mxu0 0.0
    %2524 = vmatprep.subr.mxu0 0.0
    %2525 = vmatpush2.xpose.msra.mxu0 0.0
    %2526 = vmatprep.subr.mxu0 0.0
    %2527 = vmatpush2.xpose.msra.mxu0 0.0
    %2528 = vmatprep.subr.mxu0 0.0
    %2529 = vmatpush2.xpose.msra.mxu0 0.0
    %2530 = vmatprep.subr.mxu0 0.0
    %2531 = vmatpush2.xpose.msra.mxu0 0.0
    %2532 = vmatprep.subr.mxu0 0.0
    %2533 = vmatpush2.xpose.msra.mxu0 0.0
    %2534 = vmatprep.subr.mxu0 0.0
    %2535 = vmatpush2.xpose.msra.mxu0 0.0
    %2536 = vmatprep.subr.mxu0 0.0
    %2537 = vmatpush2.xpose.msra.mxu0 0.0
    %2538 = vmatprep.subr.mxu0 0.0
    %2539 = vmatpush2.xpose.msra.mxu0 0.0
    %2540 = vmatprep.subr.mxu0 0.0
    %2541 = vmatpush2.xpose.msra.mxu0 0.0
    %2542 = vmatprep.subr.mxu0 0.0
    %2543 = vmatpush2.xpose.msra.mxu0 0.0
    %2544 = vmatprep.subr.mxu0 0.0
    %2545 = vmatpush2.xpose.msra.mxu0 0.0
    %2546 = vmatprep.subr.mxu0 0.0
    %2547 = vmatpush2.xpose.msra.mxu0 0.0
    %2548 = vmatprep.subr.mxu0 0.0
    %2549 = vmatpush2.xpose.msra.mxu0 0.0
    %2550 = vmatprep.mubr.f32.mxu0 0.0
    %2551 = vmatmul.mubr.f32.gmra.mxu0 %v2478
    %v2552 = vpop.f32.mrf.mxu0
    %v2553 = vadd.f32 0.0, %v2552
    %v2554 = vpop.f32.mrf.mxu0
    %2555 = vmatprep.mubr.f32.mxu0 0.0
    %2556 = vmatmul.mubr.f32.gmra.mxu0 %v2480
    %v2557 = vpop.f32.mrf.mxu0
    %v2558 = vadd.f32 0.0, %v2557
    %v2559 = vpop.f32.mrf.mxu0
    %2560 = vdwg.mxu0
    %2561 = vrot.lane.b32.xlu0 %v330, 88
    %v2562 = vpop.permute.xlu0 %2561
    %2563 = vrot.lane.b32.xlu0 %v336, 88
    %v2564 = vpop.permute.xlu0 %2563
    %2565 = vrot.lane.b32.xlu0 %v330, 24
    %v2566 = vpop.permute.xlu0 %2565
    %2567 = vrot.lane.b32.xlu0 %v336, 24
    %v2568 = vpop.permute.xlu0 %2567
    %v2569 = vsel %vm346, %v2562, 0
    %v2571 = vsel %vm346, %v2564, 0
    %v2573 = vsel %vm346, %v2566, 0
    %v2575 = vsel %vm346, %v2568, 0
    %2577 = vmatprep.subr.mxu0 0.0
    %2578 = vmatpush1.xpose.msra.mxu0 0.0
    %2579 = vmatprep.subr.mxu0 0.0
    %2580 = vmatpush1.xpose.msra.mxu0 0.0
    %2581 = vmatprep.subr.mxu0 0.0
    %2582 = vmatpush1.xpose.msra.mxu0 0.0
    %2583 = vmatprep.subr.mxu0 0.0
    %2584 = vmatpush1.xpose.msra.mxu0 0.0
    %2585 = vmatprep.subr.mxu0 0.0
    %2586 = vmatpush1.xpose.msra.mxu0 0.0
    %2587 = vmatprep.subr.mxu0 0.0
    %2588 = vmatpush1.xpose.msra.mxu0 0.0
    %2589 = vmatprep.subr.mxu0 0.0
    %2590 = vmatpush1.xpose.msra.mxu0 0.0
    %2591 = vmatprep.subr.mxu0 0.0
    %2592 = vmatpush1.xpose.msra.mxu0 0.0
    %2593 = vmatprep.subr.mxu0 0.0
    %2594 = vmatpush1.xpose.msra.mxu0 0.0
    %2595 = vmatprep.subr.mxu0 0.0
    %2596 = vmatpush1.xpose.msra.mxu0 0.0
    %2597 = vmatprep.subr.mxu0 0.0
    %2598 = vmatpush1.xpose.msra.mxu0 0.0
    %2599 = vmatprep.subr.mxu0 0.0
    %2600 = vmatpush1.xpose.msra.mxu0 0.0
    %2601 = vmatprep.subr.mxu0 0.0
    %2602 = vmatpush1.xpose.msra.mxu0 0.0
    %2603 = vmatprep.subr.mxu0 0.0
    %2604 = vmatpush1.xpose.msra.mxu0 0.0
    %2605 = vmatprep.subr.mxu0 0.0
    %2606 = vmatpush1.xpose.msra.mxu0 %v2575
    %2607 = vmatprep.subr.mxu0 0.0
    %2608 = vmatpush1.xpose.msra.mxu0 %v2573
    %2609 = vmatprep.subr.mxu0 0.0
    %2610 = vmatpush2.xpose.msra.mxu0 0.0
    %2611 = vmatprep.subr.mxu0 0.0
    %2612 = vmatpush2.xpose.msra.mxu0 0.0
    %2613 = vmatprep.subr.mxu0 0.0
    %2614 = vmatpush2.xpose.msra.mxu0 0.0
    %2615 = vmatprep.subr.mxu0 0.0
    %2616 = vmatpush2.xpose.msra.mxu0 0.0
    %2617 = vmatprep.subr.mxu0 0.0
    %2618 = vmatpush2.xpose.msra.mxu0 0.0
    %2619 = vmatprep.subr.mxu0 0.0
    %2620 = vmatpush2.xpose.msra.mxu0 0.0
    %2621 = vmatprep.subr.mxu0 0.0
    %2622 = vmatpush2.xpose.msra.mxu0 0.0
    %2623 = vmatprep.subr.mxu0 0.0
    %2624 = vmatpush2.xpose.msra.mxu0 0.0
    %2625 = vmatprep.subr.mxu0 0.0
    %2626 = vmatpush2.xpose.msra.mxu0 0.0
    %2627 = vmatprep.subr.mxu0 0.0
    %2628 = vmatpush2.xpose.msra.mxu0 0.0
    %2629 = vmatprep.subr.mxu0 0.0
    %2630 = vmatpush2.xpose.msra.mxu0 0.0
    %2631 = vmatprep.subr.mxu0 0.0
    %2632 = vmatpush2.xpose.msra.mxu0 0.0
    %2633 = vmatprep.subr.mxu0 0.0
    %2634 = vmatpush2.xpose.msra.mxu0 0.0
    %2635 = vmatprep.subr.mxu0 0.0
    %2636 = vmatpush2.xpose.msra.mxu0 0.0
    %2637 = vmatprep.subr.mxu0 0.0
    %2638 = vmatpush2.xpose.msra.mxu0 0.0
    %2639 = vmatprep.subr.mxu0 0.0
    %2640 = vmatpush2.xpose.msra.mxu0 0.0
    %2641 = vmatprep.mubr.f32.mxu0 0.0
    %2642 = vmatmul.mubr.f32.gmra.mxu0 %v2569
    %v2643 = vpop.f32.mrf.mxu0
    %v2644 = vadd.f32 0.0, %v2643
    %v2645 = vpop.f32.mrf.mxu0
    %2646 = vmatprep.mubr.f32.mxu0 0.0
    %2647 = vmatmul.mubr.f32.gmra.mxu0 %v2571
    %v2648 = vpop.f32.mrf.mxu0
    %v2649 = vadd.f32 0.0, %v2648
    %v2650 = vpop.f32.mrf.mxu0
    %2651 = vdwg.mxu0
    %v2652 = vmul.f32 %v2553, 0.35355338
    %v2653 = vmul.f32 %v2558, 0.35355338
    %v2654 = vmul.f32 %v2644, 0.35355338
    %v2655 = vmul.f32 %v2649, 0.35355338
    %v2656 = vadd.f32 %v2652, %v528
    %v2657 = vadd.f32 %v2653, %v528
    %v2658 = vadd.f32 %v2654, %v532
    %v2659 = vadd.f32 %v2655, %v532
    %v2660 = vsel %vm539, %v2656, -inf
    %2661 = vmax.xlane.f32.xlu0 %v2660
    %v2662 = vpop.xlane.xlu0 %2661
    %v2663 = vsel %vm539, %v2657, -inf
    %2664 = vmax.xlane.f32.xlu0 %v2663
    %v2665 = vpop.xlane.xlu0 %2664
    %v2666 = vsel %vm539, %v2658, -inf
    %2667 = vmax.xlane.f32.xlu0 %v2666
    %v2668 = vpop.xlane.xlu0 %2667
    %v2669 = vsel %vm539, %v2659, -inf
    %2670 = vmax.xlane.f32.xlu0 %v2669
    %v2671 = vpop.xlane.xlu0 %2670
    %v2672 = vsub.f32 %v2656, %v2662
    %v2673 = vsub.f32 %v2657, %v2665
    %v2674 = vsub.f32 %v2658, %v2668
    %v2675 = vsub.f32 %v2659, %v2671
    %v2676 = vmul.f32 %v2672, 1.442695
    %v2677 = vpow.pop %v2676
    %v2678 = vmul.f32 %v2673, 1.442695
    %v2679 = vpow.pop %v2678
    %v2680 = vmul.f32 %v2674, 1.442695
    %v2681 = vpow.pop %v2680
    %v2682 = vmul.f32 %v2675, 1.442695
    %v2683 = vpow.pop %v2682
    %v2684 = vsel %vm539, %v2677, 0.0
    %2685 = vadd.xlane.f32.xlu0 %v2684
    %v2686 = vpop.xlane.xlu0 %2685
    %v2687 = vsel %vm539, %v2679, 0.0
    %2688 = vadd.xlane.f32.xlu0 %v2687
    %v2689 = vpop.xlane.xlu0 %2688
    %v2690 = vsel %vm539, %v2681, 0.0
    %2691 = vadd.xlane.f32.xlu0 %v2690
    %v2692 = vpop.xlane.xlu0 %2691
    %v2693 = vsel %vm539, %v2683, 0.0
    %2694 = vadd.xlane.f32.xlu0 %v2693
    %v2695 = vpop.xlane.xlu0 %2694
    %v2696 = vrcp.pop %v2686
    %v2697 = vmul.f32 %v2677, %v2696
    %v2698 = vrcp.pop %v2689
    %v2699 = vmul.f32 %v2679, %v2698
    %v2700 = vrcp.pop %v2692
    %v2701 = vmul.f32 %v2681, %v2700
    %v2702 = vrcp.pop %v2695
    %v2703 = vmul.f32 %v2683, %v2702
    %2704 = vrot.lane.b32.xlu0 %v320, 88
    %v2705 = vpop.permute.xlu0 %2704
    %2706 = vrot.lane.b32.xlu0 %v326, 88
    %v2707 = vpop.permute.xlu0 %2706
    %v2711 = vsel %vm539, %v2697, 0
    %v2714 = vsel %vm539, %v2699, 0
    %2716 = vmatprep.subr.mxu0 0.0
    %2717 = vmatpush1.msra.mxu0 0.0
    %2718 = vmatprep.subr.mxu0 0.0
    %2719 = vmatpush1.msra.mxu0 0.0
    %2720 = vmatprep.subr.mxu0 0.0
    %2721 = vmatpush1.msra.mxu0 0.0
    %2722 = vmatprep.subr.mxu0 0.0
    %2723 = vmatpush1.msra.mxu0 0.0
    %2724 = vmatprep.subr.mxu0 0.0
    %2725 = vmatpush1.msra.mxu0 0.0
    %2726 = vmatprep.subr.mxu0 0.0
    %2727 = vmatpush1.msra.mxu0 0.0
    %2728 = vmatprep.subr.mxu0 0.0
    %2729 = vmatpush1.msra.mxu0 0.0
    %2730 = vmatprep.subr.mxu0 0.0
    %2731 = vmatpush1.msra.mxu0 0.0
    %2732 = vmatprep.subr.mxu0 0.0
    %2733 = vmatpush1.msra.mxu0 0.0
    %2734 = vmatprep.subr.mxu0 0.0
    %2735 = vmatpush1.msra.mxu0 0.0
    %2736 = vmatprep.subr.mxu0 0.0
    %2737 = vmatpush1.msra.mxu0 0.0
    %2738 = vmatprep.subr.mxu0 0.0
    %2739 = vmatpush1.msra.mxu0 0.0
    %2740 = vmatprep.subr.mxu0 0.0
    %2741 = vmatpush1.msra.mxu0 0.0
    %2742 = vmatprep.subr.mxu0 0.0
    %2743 = vmatpush1.msra.mxu0 0.0
    %2744 = vmatprep.subr.mxu0 0.0
    %2745 = vmatpush1.msra.mxu0 %v2707
    %2746 = vmatprep.subr.mxu0 0.0
    %2747 = vmatpush1.msra.mxu0 %v2705
    %2748 = vmatprep.subr.mxu0 0.0
    %2749 = vmatpush2.msra.mxu0 0.0
    %2750 = vmatprep.subr.mxu0 0.0
    %2751 = vmatpush2.msra.mxu0 0.0
    %2752 = vmatprep.subr.mxu0 0.0
    %2753 = vmatpush2.msra.mxu0 0.0
    %2754 = vmatprep.subr.mxu0 0.0
    %2755 = vmatpush2.msra.mxu0 0.0
    %2756 = vmatprep.subr.mxu0 0.0
    %2757 = vmatpush2.msra.mxu0 0.0
    %2758 = vmatprep.subr.mxu0 0.0
    %2759 = vmatpush2.msra.mxu0 0.0
    %2760 = vmatprep.subr.mxu0 0.0
    %2761 = vmatpush2.msra.mxu0 0.0
    %2762 = vmatprep.subr.mxu0 0.0
    %2763 = vmatpush2.msra.mxu0 0.0
    %2764 = vmatprep.subr.mxu0 0.0
    %2765 = vmatpush2.msra.mxu0 0.0
    %2766 = vmatprep.subr.mxu0 0.0
    %2767 = vmatpush2.msra.mxu0 0.0
    %2768 = vmatprep.subr.mxu0 0.0
    %2769 = vmatpush2.msra.mxu0 0.0
    %2770 = vmatprep.subr.mxu0 0.0
    %2771 = vmatpush2.msra.mxu0 0.0
    %2772 = vmatprep.subr.mxu0 0.0
    %2773 = vmatpush2.msra.mxu0 0.0
    %2774 = vmatprep.subr.mxu0 0.0
    %2775 = vmatpush2.msra.mxu0 0.0
    %2776 = vmatprep.subr.mxu0 0.0
    %2777 = vmatpush2.msra.mxu0 0.0
    %2778 = vmatprep.subr.mxu0 0.0
    %2779 = vmatpush2.msra.mxu0 0.0
    %2780 = vmatprep.mubr.f32.mxu0 0.0
    %2781 = vmatmul.mubr.f32.gmra.mxu0 %v2711
    %v2782 = vpop.f32.mrf.mxu0
    %v2783 = vadd.f32 0.0, %v2782
    %v2784 = vpop.f32.mrf.mxu0
    %2785 = vmatprep.mubr.f32.mxu0 0.0
    %2786 = vmatmul.mubr.f32.gmra.mxu0 %v2714
    %v2787 = vpop.f32.mrf.mxu0
    %v2788 = vadd.f32 0.0, %v2787
    %v2789 = vpop.f32.mrf.mxu0
    %2790 = vdwg.mxu0
    %2791 = vrot.lane.b32.xlu0 %v332, 88
    %v2792 = vpop.permute.xlu0 %2791
    %2793 = vrot.lane.b32.xlu0 %v338, 88
    %v2794 = vpop.permute.xlu0 %2793
    %v2798 = vsel %vm539, %v2701, 0
    %v2801 = vsel %vm539, %v2703, 0
    %2803 = vmatprep.subr.mxu0 0.0
    %2804 = vmatpush1.msra.mxu0 0.0
    %2805 = vmatprep.subr.mxu0 0.0
    %2806 = vmatpush1.msra.mxu0 0.0
    %2807 = vmatprep.subr.mxu0 0.0
    %2808 = vmatpush1.msra.mxu0 0.0
    %2809 = vmatprep.subr.mxu0 0.0
    %2810 = vmatpush1.msra.mxu0 0.0
    %2811 = vmatprep.subr.mxu0 0.0
    %2812 = vmatpush1.msra.mxu0 0.0
    %2813 = vmatprep.subr.mxu0 0.0
    %2814 = vmatpush1.msra.mxu0 0.0
    %2815 = vmatprep.subr.mxu0 0.0
    %2816 = vmatpush1.msra.mxu0 0.0
    %2817 = vmatprep.subr.mxu0 0.0
    %2818 = vmatpush1.msra.mxu0 0.0
    %2819 = vmatprep.subr.mxu0 0.0
    %2820 = vmatpush1.msra.mxu0 0.0
    %2821 = vmatprep.subr.mxu0 0.0
    %2822 = vmatpush1.msra.mxu0 0.0
    %2823 = vmatprep.subr.mxu0 0.0
    %2824 = vmatpush1.msra.mxu0 0.0
    %2825 = vmatprep.subr.mxu0 0.0
    %2826 = vmatpush1.msra.mxu0 0.0
    %2827 = vmatprep.subr.mxu0 0.0
    %2828 = vmatpush1.msra.mxu0 0.0
    %2829 = vmatprep.subr.mxu0 0.0
    %2830 = vmatpush1.msra.mxu0 0.0
    %2831 = vmatprep.subr.mxu0 0.0
    %2832 = vmatpush1.msra.mxu0 %v2794
    %2833 = vmatprep.subr.mxu0 0.0
    %2834 = vmatpush1.msra.mxu0 %v2792
    %2835 = vmatprep.subr.mxu0 0.0
    %2836 = vmatpush2.msra.mxu0 0.0
    %2837 = vmatprep.subr.mxu0 0.0
    %2838 = vmatpush2.msra.mxu0 0.0
    %2839 = vmatprep.subr.mxu0 0.0
    %2840 = vmatpush2.msra.mxu0 0.0
    %2841 = vmatprep.subr.mxu0 0.0
    %2842 = vmatpush2.msra.mxu0 0.0
    %2843 = vmatprep.subr.mxu0 0.0
    %2844 = vmatpush2.msra.mxu0 0.0
    %2845 = vmatprep.subr.mxu0 0.0
    %2846 = vmatpush2.msra.mxu0 0.0
    %2847 = vmatprep.subr.mxu0 0.0
    %2848 = vmatpush2.msra.mxu0 0.0
    %2849 = vmatprep.subr.mxu0 0.0
    %2850 = vmatpush2.msra.mxu0 0.0
    %2851 = vmatprep.subr.mxu0 0.0
    %2852 = vmatpush2.msra.mxu0 0.0
    %2853 = vmatprep.subr.mxu0 0.0
    %2854 = vmatpush2.msra.mxu0 0.0
    %2855 = vmatprep.subr.mxu0 0.0
    %2856 = vmatpush2.msra.mxu0 0.0
    %2857 = vmatprep.subr.mxu0 0.0
    %2858 = vmatpush2.msra.mxu0 0.0
    %2859 = vmatprep.subr.mxu0 0.0
    %2860 = vmatpush2.msra.mxu0 0.0
    %2861 = vmatprep.subr.mxu0 0.0
    %2862 = vmatpush2.msra.mxu0 0.0
    %2863 = vmatprep.subr.mxu0 0.0
    %2864 = vmatpush2.msra.mxu0 0.0
    %2865 = vmatprep.subr.mxu0 0.0
    %2866 = vmatpush2.msra.mxu0 0.0
    %2867 = vmatprep.mubr.f32.mxu0 0.0
    %2868 = vmatmul.mubr.f32.gmra.mxu0 %v2798
    %v2869 = vpop.f32.mrf.mxu0
    %v2870 = vadd.f32 0.0, %v2869
    %v2871 = vpop.f32.mrf.mxu0
    %2872 = vmatprep.mubr.f32.mxu0 0.0
    %2873 = vmatmul.mubr.f32.gmra.mxu0 %v2801
    %v2874 = vpop.f32.mrf.mxu0
    %v2875 = vadd.f32 0.0, %v2874
    %v2876 = vpop.f32.mrf.mxu0
    %2877 = vdwg.mxu0
    %2882 = vrot.lane.b32.xlu0 %v2783, 40
    %v2883 = vpop.permute.xlu0 %2882
    %2884 = vrot.lane.b32.xlu0 %v2788, 40
    %v2885 = vpop.permute.xlu0 %2884
    %2886 = vrot.lane.b32.xlu0 %v2870, 40
    %v2887 = vpop.permute.xlu0 %2886
    %2888 = vrot.lane.b32.xlu0 %v2875, 40
    %v2889 = vpop.permute.xlu0 %2888
    %vm2894 = vcmask 392512
    %2895 = vst.msk [vmem:[#allocation2] sm:$0xff] %vm2894, %v2883
    %2896 = vst.msk [vmem:[#allocation2 + $0x8] sm:$0xff] %vm2894, %v2885
    %2897 = vst.msk [vmem:[#allocation2 + $0x10] sm:$0xff] %vm2894, %v2887
    %2898 = vst.msk [vmem:[#allocation2 + $0x18] sm:$0xff] %vm2894, %v2889
    %2899 = vrot.lane.b32.xlu0 %v318, 80
    %v2900 = vpop.permute.xlu0 %2899
    %2901 = vrot.lane.b32.xlu0 %v324, 80
    %v2902 = vpop.permute.xlu0 %2901
    %2903 = vrot.lane.b32.xlu0 %v318, 16
    %v2904 = vpop.permute.xlu0 %2903
    %2905 = vrot.lane.b32.xlu0 %v324, 16
    %v2906 = vpop.permute.xlu0 %2905
    %v2907 = vsel %vm346, %v2900, 0
    %v2909 = vsel %vm346, %v2902, 0
    %v2911 = vsel %vm346, %v2904, 0
    %v2913 = vsel %vm346, %v2906, 0
    %2915 = vmatprep.subr.mxu0 0.0
    %2916 = vmatpush1.xpose.msra.mxu0 0.0
    %2917 = vmatprep.subr.mxu0 0.0
    %2918 = vmatpush1.xpose.msra.mxu0 0.0
    %2919 = vmatprep.subr.mxu0 0.0
    %2920 = vmatpush1.xpose.msra.mxu0 0.0
    %2921 = vmatprep.subr.mxu0 0.0
    %2922 = vmatpush1.xpose.msra.mxu0 0.0
    %2923 = vmatprep.subr.mxu0 0.0
    %2924 = vmatpush1.xpose.msra.mxu0 0.0
    %2925 = vmatprep.subr.mxu0 0.0
    %2926 = vmatpush1.xpose.msra.mxu0 0.0
    %2927 = vmatprep.subr.mxu0 0.0
    %2928 = vmatpush1.xpose.msra.mxu0 0.0
    %2929 = vmatprep.subr.mxu0 0.0
    %2930 = vmatpush1.xpose.msra.mxu0 0.0
    %2931 = vmatprep.subr.mxu0 0.0
    %2932 = vmatpush1.xpose.msra.mxu0 0.0
    %2933 = vmatprep.subr.mxu0 0.0
    %2934 = vmatpush1.xpose.msra.mxu0 0.0
    %2935 = vmatprep.subr.mxu0 0.0
    %2936 = vmatpush1.xpose.msra.mxu0 0.0
    %2937 = vmatprep.subr.mxu0 0.0
    %2938 = vmatpush1.xpose.msra.mxu0 0.0
    %2939 = vmatprep.subr.mxu0 0.0
    %2940 = vmatpush1.xpose.msra.mxu0 0.0
    %2941 = vmatprep.subr.mxu0 0.0
    %2942 = vmatpush1.xpose.msra.mxu0 0.0
    %2943 = vmatprep.subr.mxu0 0.0
    %2944 = vmatpush1.xpose.msra.mxu0 %v2913
    %2945 = vmatprep.subr.mxu0 0.0
    %2946 = vmatpush1.xpose.msra.mxu0 %v2911
    %2947 = vmatprep.subr.mxu0 0.0
    %2948 = vmatpush2.xpose.msra.mxu0 0.0
    %2949 = vmatprep.subr.mxu0 0.0
    %2950 = vmatpush2.xpose.msra.mxu0 0.0
    %2951 = vmatprep.subr.mxu0 0.0
    %2952 = vmatpush2.xpose.msra.mxu0 0.0
    %2953 = vmatprep.subr.mxu0 0.0
    %2954 = vmatpush2.xpose.msra.mxu0 0.0
    %2955 = vmatprep.subr.mxu0 0.0
    %2956 = vmatpush2.xpose.msra.mxu0 0.0
    %2957 = vmatprep.subr.mxu0 0.0
    %2958 = vmatpush2.xpose.msra.mxu0 0.0
    %2959 = vmatprep.subr.mxu0 0.0
    %2960 = vmatpush2.xpose.msra.mxu0 0.0
    %2961 = vmatprep.subr.mxu0 0.0
    %2962 = vmatpush2.xpose.msra.mxu0 0.0
    %2963 = vmatprep.subr.mxu0 0.0
    %2964 = vmatpush2.xpose.msra.mxu0 0.0
    %2965 = vmatprep.subr.mxu0 0.0
    %2966 = vmatpush2.xpose.msra.mxu0 0.0
    %2967 = vmatprep.subr.mxu0 0.0
    %2968 = vmatpush2.xpose.msra.mxu0 0.0
    %2969 = vmatprep.subr.mxu0 0.0
    %2970 = vmatpush2.xpose.msra.mxu0 0.0
    %2971 = vmatprep.subr.mxu0 0.0
    %2972 = vmatpush2.xpose.msra.mxu0 0.0
    %2973 = vmatprep.subr.mxu0 0.0
    %2974 = vmatpush2.xpose.msra.mxu0 0.0
    %2975 = vmatprep.subr.mxu0 0.0
    %2976 = vmatpush2.xpose.msra.mxu0 0.0
    %2977 = vmatprep.subr.mxu0 0.0
    %2978 = vmatpush2.xpose.msra.mxu0 0.0
    %2979 = vmatprep.mubr.f32.mxu0 0.0
    %2980 = vmatmul.mubr.f32.gmra.mxu0 %v2907
    %v2981 = vpop.f32.mrf.mxu0
    %v2982 = vadd.f32 0.0, %v2981
    %v2983 = vpop.f32.mrf.mxu0
    %2984 = vmatprep.mubr.f32.mxu0 0.0
    %2985 = vmatmul.mubr.f32.gmra.mxu0 %v2909
    %v2986 = vpop.f32.mrf.mxu0
    %v2987 = vadd.f32 0.0, %v2986
    %v2988 = vpop.f32.mrf.mxu0
    %2989 = vdwg.mxu0
    %2990 = vrot.lane.b32.xlu0 %v330, 80
    %v2991 = vpop.permute.xlu0 %2990
    %2992 = vrot.lane.b32.xlu0 %v336, 80
    %v2993 = vpop.permute.xlu0 %2992
    %2994 = vrot.lane.b32.xlu0 %v330, 16
    %v2995 = vpop.permute.xlu0 %2994
    %2996 = vrot.lane.b32.xlu0 %v336, 16
    %v2997 = vpop.permute.xlu0 %2996
    %v2998 = vsel %vm346, %v2991, 0
    %v3000 = vsel %vm346, %v2993, 0
    %v3002 = vsel %vm346, %v2995, 0
    %v3004 = vsel %vm346, %v2997, 0
    %3006 = vmatprep.subr.mxu0 0.0
    %3007 = vmatpush1.xpose.msra.mxu0 0.0
    %3008 = vmatprep.subr.mxu0 0.0
    %3009 = vmatpush1.xpose.msra.mxu0 0.0
    %3010 = vmatprep.subr.mxu0 0.0
    %3011 = vmatpush1.xpose.msra.mxu0 0.0
    %3012 = vmatprep.subr.mxu0 0.0
    %3013 = vmatpush1.xpose.msra.mxu0 0.0
    %3014 = vmatprep.subr.mxu0 0.0
    %3015 = vmatpush1.xpose.msra.mxu0 0.0
    %3016 = vmatprep.subr.mxu0 0.0
    %3017 = vmatpush1.xpose.msra.mxu0 0.0
    %3018 = vmatprep.subr.mxu0 0.0
    %3019 = vmatpush1.xpose.msra.mxu0 0.0
    %3020 = vmatprep.subr.mxu0 0.0
    %3021 = vmatpush1.xpose.msra.mxu0 0.0
    %3022 = vmatprep.subr.mxu0 0.0
    %3023 = vmatpush1.xpose.msra.mxu0 0.0
    %3024 = vmatprep.subr.mxu0 0.0
    %3025 = vmatpush1.xpose.msra.mxu0 0.0
    %3026 = vmatprep.subr.mxu0 0.0
    %3027 = vmatpush1.xpose.msra.mxu0 0.0
    %3028 = vmatprep.subr.mxu0 0.0
    %3029 = vmatpush1.xpose.msra.mxu0 0.0
    %3030 = vmatprep.subr.mxu0 0.0
    %3031 = vmatpush1.xpose.msra.mxu0 0.0
    %3032 = vmatprep.subr.mxu0 0.0
    %3033 = vmatpush1.xpose.msra.mxu0 0.0
    %3034 = vmatprep.subr.mxu0 0.0
    %3035 = vmatpush1.xpose.msra.mxu0 %v3004
    %3036 = vmatprep.subr.mxu0 0.0
    %3037 = vmatpush1.xpose.msra.mxu0 %v3002
    %3038 = vmatprep.subr.mxu0 0.0
    %3039 = vmatpush2.xpose.msra.mxu0 0.0
    %3040 = vmatprep.subr.mxu0 0.0
    %3041 = vmatpush2.xpose.msra.mxu0 0.0
    %3042 = vmatprep.subr.mxu0 0.0
    %3043 = vmatpush2.xpose.msra.mxu0 0.0
    %3044 = vmatprep.subr.mxu0 0.0
    %3045 = vmatpush2.xpose.msra.mxu0 0.0
    %3046 = vmatprep.subr.mxu0 0.0
    %3047 = vmatpush2.xpose.msra.mxu0 0.0
    %3048 = vmatprep.subr.mxu0 0.0
    %3049 = vmatpush2.xpose.msra.mxu0 0.0
    %3050 = vmatprep.subr.mxu0 0.0
    %3051 = vmatpush2.xpose.msra.mxu0 0.0
    %3052 = vmatprep.subr.mxu0 0.0
    %3053 = vmatpush2.xpose.msra.mxu0 0.0
    %3054 = vmatprep.subr.mxu0 0.0
    %3055 = vmatpush2.xpose.msra.mxu0 0.0
    %3056 = vmatprep.subr.mxu0 0.0
    %3057 = vmatpush2.xpose.msra.mxu0 0.0
    %3058 = vmatprep.subr.mxu0 0.0
    %3059 = vmatpush2.xpose.msra.mxu0 0.0
    %3060 = vmatprep.subr.mxu0 0.0
    %3061 = vmatpush2.xpose.msra.mxu0 0.0
    %3062 = vmatprep.subr.mxu0 0.0
    %3063 = vmatpush2.xpose.msra.mxu0 0.0
    %3064 = vmatprep.subr.mxu0 0.0
    %3065 = vmatpush2.xpose.msra.mxu0 0.0
    %3066 = vmatprep.subr.mxu0 0.0
    %3067 = vmatpush2.xpose.msra.mxu0 0.0
    %3068 = vmatprep.subr.mxu0 0.0
    %3069 = vmatpush2.xpose.msra.mxu0 0.0
    %3070 = vmatprep.mubr.f32.mxu0 0.0
    %3071 = vmatmul.mubr.f32.gmra.mxu0 %v2998
    %v3072 = vpop.f32.mrf.mxu0
    %v3073 = vadd.f32 0.0, %v3072
    %v3074 = vpop.f32.mrf.mxu0
    %3075 = vmatprep.mubr.f32.mxu0 0.0
    %3076 = vmatmul.mubr.f32.gmra.mxu0 %v3000
    %v3077 = vpop.f32.mrf.mxu0
    %v3078 = vadd.f32 0.0, %v3077
    %v3079 = vpop.f32.mrf.mxu0
    %3080 = vdwg.mxu0
    %v3081 = vmul.f32 %v2982, 0.35355338
    %v3082 = vmul.f32 %v2987, 0.35355338
    %v3083 = vmul.f32 %v3073, 0.35355338
    %v3084 = vmul.f32 %v3078, 0.35355338
    %v3085 = vadd.f32 %v3081, %v528
    %v3086 = vadd.f32 %v3082, %v528
    %v3087 = vadd.f32 %v3083, %v532
    %v3088 = vadd.f32 %v3084, %v532
    %v3089 = vsel %vm539, %v3085, -inf
    %3090 = vmax.xlane.f32.xlu0 %v3089
    %v3091 = vpop.xlane.xlu0 %3090
    %v3092 = vsel %vm539, %v3086, -inf
    %3093 = vmax.xlane.f32.xlu0 %v3092
    %v3094 = vpop.xlane.xlu0 %3093
    %v3095 = vsel %vm539, %v3087, -inf
    %3096 = vmax.xlane.f32.xlu0 %v3095
    %v3097 = vpop.xlane.xlu0 %3096
    %v3098 = vsel %vm539, %v3088, -inf
    %3099 = vmax.xlane.f32.xlu0 %v3098
    %v3100 = vpop.xlane.xlu0 %3099
    %v3101 = vsub.f32 %v3085, %v3091
    %v3102 = vsub.f32 %v3086, %v3094
    %v3103 = vsub.f32 %v3087, %v3097
    %v3104 = vsub.f32 %v3088, %v3100
    %v3105 = vmul.f32 %v3101, 1.442695
    %v3106 = vpow.pop %v3105
    %v3107 = vmul.f32 %v3102, 1.442695
    %v3108 = vpow.pop %v3107
    %v3109 = vmul.f32 %v3103, 1.442695
    %v3110 = vpow.pop %v3109
    %v3111 = vmul.f32 %v3104, 1.442695
    %v3112 = vpow.pop %v3111
    %v3113 = vsel %vm539, %v3106, 0.0
    %3114 = vadd.xlane.f32.xlu0 %v3113
    %v3115 = vpop.xlane.xlu0 %3114
    %v3116 = vsel %vm539, %v3108, 0.0
    %3117 = vadd.xlane.f32.xlu0 %v3116
    %v3118 = vpop.xlane.xlu0 %3117
    %v3119 = vsel %vm539, %v3110, 0.0
    %3120 = vadd.xlane.f32.xlu0 %v3119
    %v3121 = vpop.xlane.xlu0 %3120
    %v3122 = vsel %vm539, %v3112, 0.0
    %3123 = vadd.xlane.f32.xlu0 %v3122
    %v3124 = vpop.xlane.xlu0 %3123
    %v3125 = vrcp.pop %v3115
    %v3126 = vmul.f32 %v3106, %v3125
    %v3127 = vrcp.pop %v3118
    %v3128 = vmul.f32 %v3108, %v3127
    %v3129 = vrcp.pop %v3121
    %v3130 = vmul.f32 %v3110, %v3129
    %v3131 = vrcp.pop %v3124
    %v3132 = vmul.f32 %v3112, %v3131
    %3133 = vrot.lane.b32.xlu0 %v320, 80
    %v3134 = vpop.permute.xlu0 %3133
    %3135 = vrot.lane.b32.xlu0 %v326, 80
    %v3136 = vpop.permute.xlu0 %3135
    %v3140 = vsel %vm539, %v3126, 0
    %v3143 = vsel %vm539, %v3128, 0
    %3145 = vmatprep.subr.mxu0 0.0
    %3146 = vmatpush1.msra.mxu0 0.0
    %3147 = vmatprep.subr.mxu0 0.0
    %3148 = vmatpush1.msra.mxu0 0.0
    %3149 = vmatprep.subr.mxu0 0.0
    %3150 = vmatpush1.msra.mxu0 0.0
    %3151 = vmatprep.subr.mxu0 0.0
    %3152 = vmatpush1.msra.mxu0 0.0
    %3153 = vmatprep.subr.mxu0 0.0
    %3154 = vmatpush1.msra.mxu0 0.0
    %3155 = vmatprep.subr.mxu0 0.0
    %3156 = vmatpush1.msra.mxu0 0.0
    %3157 = vmatprep.subr.mxu0 0.0
    %3158 = vmatpush1.msra.mxu0 0.0
    %3159 = vmatprep.subr.mxu0 0.0
    %3160 = vmatpush1.msra.mxu0 0.0
    %3161 = vmatprep.subr.mxu0 0.0
    %3162 = vmatpush1.msra.mxu0 0.0
    %3163 = vmatprep.subr.mxu0 0.0
    %3164 = vmatpush1.msra.mxu0 0.0
    %3165 = vmatprep.subr.mxu0 0.0
    %3166 = vmatpush1.msra.mxu0 0.0
    %3167 = vmatprep.subr.mxu0 0.0
    %3168 = vmatpush1.msra.mxu0 0.0
    %3169 = vmatprep.subr.mxu0 0.0
    %3170 = vmatpush1.msra.mxu0 0.0
    %3171 = vmatprep.subr.mxu0 0.0
    %3172 = vmatpush1.msra.mxu0 0.0
    %3173 = vmatprep.subr.mxu0 0.0
    %3174 = vmatpush1.msra.mxu0 %v3136
    %3175 = vmatprep.subr.mxu0 0.0
    %3176 = vmatpush1.msra.mxu0 %v3134
    %3177 = vmatprep.subr.mxu0 0.0
    %3178 = vmatpush2.msra.mxu0 0.0
    %3179 = vmatprep.subr.mxu0 0.0
    %3180 = vmatpush2.msra.mxu0 0.0
    %3181 = vmatprep.subr.mxu0 0.0
    %3182 = vmatpush2.msra.mxu0 0.0
    %3183 = vmatprep.subr.mxu0 0.0
    %3184 = vmatpush2.msra.mxu0 0.0
    %3185 = vmatprep.subr.mxu0 0.0
    %3186 = vmatpush2.msra.mxu0 0.0
    %3187 = vmatprep.subr.mxu0 0.0
    %3188 = vmatpush2.msra.mxu0 0.0
    %3189 = vmatprep.subr.mxu0 0.0
    %3190 = vmatpush2.msra.mxu0 0.0
    %3191 = vmatprep.subr.mxu0 0.0
    %3192 = vmatpush2.msra.mxu0 0.0
    %3193 = vmatprep.subr.mxu0 0.0
    %3194 = vmatpush2.msra.mxu0 0.0
    %3195 = vmatprep.subr.mxu0 0.0
    %3196 = vmatpush2.msra.mxu0 0.0
    %3197 = vmatprep.subr.mxu0 0.0
    %3198 = vmatpush2.msra.mxu0 0.0
    %3199 = vmatprep.subr.mxu0 0.0
    %3200 = vmatpush2.msra.mxu0 0.0
    %3201 = vmatprep.subr.mxu0 0.0
    %3202 = vmatpush2.msra.mxu0 0.0
    %3203 = vmatprep.subr.mxu0 0.0
    %3204 = vmatpush2.msra.mxu0 0.0
    %3205 = vmatprep.subr.mxu0 0.0
    %3206 = vmatpush2.msra.mxu0 0.0
    %3207 = vmatprep.subr.mxu0 0.0
    %3208 = vmatpush2.msra.mxu0 0.0
    %3209 = vmatprep.mubr.f32.mxu0 0.0
    %3210 = vmatmul.mubr.f32.gmra.mxu0 %v3140
    %v3211 = vpop.f32.mrf.mxu0
    %v3212 = vadd.f32 0.0, %v3211
    %v3213 = vpop.f32.mrf.mxu0
    %3214 = vmatprep.mubr.f32.mxu0 0.0
    %3215 = vmatmul.mubr.f32.gmra.mxu0 %v3143
    %v3216 = vpop.f32.mrf.mxu0
    %v3217 = vadd.f32 0.0, %v3216
    %v3218 = vpop.f32.mrf.mxu0
    %3219 = vdwg.mxu0
    %3220 = vrot.lane.b32.xlu0 %v332, 80
    %v3221 = vpop.permute.xlu0 %3220
    %3222 = vrot.lane.b32.xlu0 %v338, 80
    %v3223 = vpop.permute.xlu0 %3222
    %v3227 = vsel %vm539, %v3130, 0
    %v3230 = vsel %vm539, %v3132, 0
    %3232 = vmatprep.subr.mxu0 0.0
    %3233 = vmatpush1.msra.mxu0 0.0
    %3234 = vmatprep.subr.mxu0 0.0
    %3235 = vmatpush1.msra.mxu0 0.0
    %3236 = vmatprep.subr.mxu0 0.0
    %3237 = vmatpush1.msra.mxu0 0.0
    %3238 = vmatprep.subr.mxu0 0.0
    %3239 = vmatpush1.msra.mxu0 0.0
    %3240 = vmatprep.subr.mxu0 0.0
    %3241 = vmatpush1.msra.mxu0 0.0
    %3242 = vmatprep.subr.mxu0 0.0
    %3243 = vmatpush1.msra.mxu0 0.0
    %3244 = vmatprep.subr.mxu0 0.0
    %3245 = vmatpush1.msra.mxu0 0.0
    %3246 = vmatprep.subr.mxu0 0.0
    %3247 = vmatpush1.msra.mxu0 0.0
    %3248 = vmatprep.subr.mxu0 0.0
    %3249 = vmatpush1.msra.mxu0 0.0
    %3250 = vmatprep.subr.mxu0 0.0
    %3251 = vmatpush1.msra.mxu0 0.0
    %3252 = vmatprep.subr.mxu0 0.0
    %3253 = vmatpush1.msra.mxu0 0.0
    %3254 = vmatprep.subr.mxu0 0.0
    %3255 = vmatpush1.msra.mxu0 0.0
    %3256 = vmatprep.subr.mxu0 0.0
    %3257 = vmatpush1.msra.mxu0 0.0
    %3258 = vmatprep.subr.mxu0 0.0
    %3259 = vmatpush1.msra.mxu0 0.0
    %3260 = vmatprep.subr.mxu0 0.0
    %3261 = vmatpush1.msra.mxu0 %v3223
    %3262 = vmatprep.subr.mxu0 0.0
    %3263 = vmatpush1.msra.mxu0 %v3221
    %3264 = vmatprep.subr.mxu0 0.0
    %3265 = vmatpush2.msra.mxu0 0.0
    %3266 = vmatprep.subr.mxu0 0.0
    %3267 = vmatpush2.msra.mxu0 0.0
    %3268 = vmatprep.subr.mxu0 0.0
    %3269 = vmatpush2.msra.mxu0 0.0
    %3270 = vmatprep.subr.mxu0 0.0
    %3271 = vmatpush2.msra.mxu0 0.0
    %3272 = vmatprep.subr.mxu0 0.0
    %3273 = vmatpush2.msra.mxu0 0.0
    %3274 = vmatprep.subr.mxu0 0.0
    %3275 = vmatpush2.msra.mxu0 0.0
    %3276 = vmatprep.subr.mxu0 0.0
    %3277 = vmatpush2.msra.mxu0 0.0
    %3278 = vmatprep.subr.mxu0 0.0
    %3279 = vmatpush2.msra.mxu0 0.0
    %3280 = vmatprep.subr.mxu0 0.0
    %3281 = vmatpush2.msra.mxu0 0.0
    %3282 = vmatprep.subr.mxu0 0.0
    %3283 = vmatpush2.msra.mxu0 0.0
    %3284 = vmatprep.subr.mxu0 0.0
    %3285 = vmatpush2.msra.mxu0 0.0
    %3286 = vmatprep.subr.mxu0 0.0
    %3287 = vmatpush2.msra.mxu0 0.0
    %3288 = vmatprep.subr.mxu0 0.0
    %3289 = vmatpush2.msra.mxu0 0.0
    %3290 = vmatprep.subr.mxu0 0.0
    %3291 = vmatpush2.msra.mxu0 0.0
    %3292 = vmatprep.subr.mxu0 0.0
    %3293 = vmatpush2.msra.mxu0 0.0
    %3294 = vmatprep.subr.mxu0 0.0
    %3295 = vmatpush2.msra.mxu0 0.0
    %3296 = vmatprep.mubr.f32.mxu0 0.0
    %3297 = vmatmul.mubr.f32.gmra.mxu0 %v3227
    %v3298 = vpop.f32.mrf.mxu0
    %v3299 = vadd.f32 0.0, %v3298
    %v3300 = vpop.f32.mrf.mxu0
    %3301 = vmatprep.mubr.f32.mxu0 0.0
    %3302 = vmatmul.mubr.f32.gmra.mxu0 %v3230
    %v3303 = vpop.f32.mrf.mxu0
    %v3304 = vadd.f32 0.0, %v3303
    %v3305 = vpop.f32.mrf.mxu0
    %3306 = vdwg.mxu0
    %3311 = vrot.lane.b32.xlu0 %v3212, 48
    %v3312 = vpop.permute.xlu0 %3311
    %3313 = vrot.lane.b32.xlu0 %v3217, 48
    %v3314 = vpop.permute.xlu0 %3313
    %3315 = vrot.lane.b32.xlu0 %v3299, 48
    %v3316 = vpop.permute.xlu0 %3315
    %3317 = vrot.lane.b32.xlu0 %v3304, 48
    %v3318 = vpop.permute.xlu0 %3317
    %vm3323 = vcmask 458112
    %3324 = vst.msk [vmem:[#allocation2] sm:$0xff] %vm3323, %v3312
    %3325 = vst.msk [vmem:[#allocation2 + $0x8] sm:$0xff] %vm3323, %v3314
    %3326 = vst.msk [vmem:[#allocation2 + $0x10] sm:$0xff] %vm3323, %v3316
    %3327 = vst.msk [vmem:[#allocation2 + $0x18] sm:$0xff] %vm3323, %v3318
    %3328 = vrot.lane.b32.xlu0 %v318, 72
    %v3329 = vpop.permute.xlu0 %3328
    %3330 = vrot.lane.b32.xlu0 %v324, 72
    %v3331 = vpop.permute.xlu0 %3330
    %3332 = vrot.lane.b32.xlu0 %v318, 8
    %v3333 = vpop.permute.xlu0 %3332
    %3334 = vrot.lane.b32.xlu0 %v324, 8
    %v3335 = vpop.permute.xlu0 %3334
    %v3336 = vsel %vm346, %v3329, 0
    %v3338 = vsel %vm346, %v3331, 0
    %v3340 = vsel %vm346, %v3333, 0
    %v3342 = vsel %vm346, %v3335, 0
    %3344 = vmatprep.subr.mxu0 0.0
    %3345 = vmatpush1.xpose.msra.mxu0 0.0
    %3346 = vmatprep.subr.mxu0 0.0
    %3347 = vmatpush1.xpose.msra.mxu0 0.0
    %3348 = vmatprep.subr.mxu0 0.0
    %3349 = vmatpush1.xpose.msra.mxu0 0.0
    %3350 = vmatprep.subr.mxu0 0.0
    %3351 = vmatpush1.xpose.msra.mxu0 0.0
    %3352 = vmatprep.subr.mxu0 0.0
    %3353 = vmatpush1.xpose.msra.mxu0 0.0
    %3354 = vmatprep.subr.mxu0 0.0
    %3355 = vmatpush1.xpose.msra.mxu0 0.0
    %3356 = vmatprep.subr.mxu0 0.0
    %3357 = vmatpush1.xpose.msra.mxu0 0.0
    %3358 = vmatprep.subr.mxu0 0.0
    %3359 = vmatpush1.xpose.msra.mxu0 0.0
    %3360 = vmatprep.subr.mxu0 0.0
    %3361 = vmatpush1.xpose.msra.mxu0 0.0
    %3362 = vmatprep.subr.mxu0 0.0
    %3363 = vmatpush1.xpose.msra.mxu0 0.0
    %3364 = vmatprep.subr.mxu0 0.0
    %3365 = vmatpush1.xpose.msra.mxu0 0.0
    %3366 = vmatprep.subr.mxu0 0.0
    %3367 = vmatpush1.xpose.msra.mxu0 0.0
    %3368 = vmatprep.subr.mxu0 0.0
    %3369 = vmatpush1.xpose.msra.mxu0 0.0
    %3370 = vmatprep.subr.mxu0 0.0
    %3371 = vmatpush1.xpose.msra.mxu0 0.0
    %3372 = vmatprep.subr.mxu0 0.0
    %3373 = vmatpush1.xpose.msra.mxu0 %v3342
    %3374 = vmatprep.subr.mxu0 0.0
    %3375 = vmatpush1.xpose.msra.mxu0 %v3340
    %3376 = vmatprep.subr.mxu0 0.0
    %3377 = vmatpush2.xpose.msra.mxu0 0.0
    %3378 = vmatprep.subr.mxu0 0.0
    %3379 = vmatpush2.xpose.msra.mxu0 0.0
    %3380 = vmatprep.subr.mxu0 0.0
    %3381 = vmatpush2.xpose.msra.mxu0 0.0
    %3382 = vmatprep.subr.mxu0 0.0
    %3383 = vmatpush2.xpose.msra.mxu0 0.0
    %3384 = vmatprep.subr.mxu0 0.0
    %3385 = vmatpush2.xpose.msra.mxu0 0.0
    %3386 = vmatprep.subr.mxu0 0.0
    %3387 = vmatpush2.xpose.msra.mxu0 0.0
    %3388 = vmatprep.subr.mxu0 0.0
    %3389 = vmatpush2.xpose.msra.mxu0 0.0
    %3390 = vmatprep.subr.mxu0 0.0
    %3391 = vmatpush2.xpose.msra.mxu0 0.0
    %3392 = vmatprep.subr.mxu0 0.0
    %3393 = vmatpush2.xpose.msra.mxu0 0.0
    %3394 = vmatprep.subr.mxu0 0.0
    %3395 = vmatpush2.xpose.msra.mxu0 0.0
    %3396 = vmatprep.subr.mxu0 0.0
    %3397 = vmatpush2.xpose.msra.mxu0 0.0
    %3398 = vmatprep.subr.mxu0 0.0
    %3399 = vmatpush2.xpose.msra.mxu0 0.0
    %3400 = vmatprep.subr.mxu0 0.0
    %3401 = vmatpush2.xpose.msra.mxu0 0.0
    %3402 = vmatprep.subr.mxu0 0.0
    %3403 = vmatpush2.xpose.msra.mxu0 0.0
    %3404 = vmatprep.subr.mxu0 0.0
    %3405 = vmatpush2.xpose.msra.mxu0 0.0
    %3406 = vmatprep.subr.mxu0 0.0
    %3407 = vmatpush2.xpose.msra.mxu0 0.0
    %3408 = vmatprep.mubr.f32.mxu0 0.0
    %3409 = vmatmul.mubr.f32.gmra.mxu0 %v3336
    %v3410 = vpop.f32.mrf.mxu0
    %v3411 = vadd.f32 0.0, %v3410
    %v3412 = vpop.f32.mrf.mxu0
    %3413 = vmatprep.mubr.f32.mxu0 0.0
    %3414 = vmatmul.mubr.f32.gmra.mxu0 %v3338
    %v3415 = vpop.f32.mrf.mxu0
    %v3416 = vadd.f32 0.0, %v3415
    %v3417 = vpop.f32.mrf.mxu0
    %3418 = vdwg.mxu0
    %3419 = vrot.lane.b32.xlu0 %v330, 72
    %v3420 = vpop.permute.xlu0 %3419
    %3421 = vrot.lane.b32.xlu0 %v336, 72
    %v3422 = vpop.permute.xlu0 %3421
    %3423 = vrot.lane.b32.xlu0 %v330, 8
    %v3424 = vpop.permute.xlu0 %3423
    %3425 = vrot.lane.b32.xlu0 %v336, 8
    %v3426 = vpop.permute.xlu0 %3425
    %v3427 = vsel %vm346, %v3420, 0
    %v3429 = vsel %vm346, %v3422, 0
    %v3431 = vsel %vm346, %v3424, 0
    %v3433 = vsel %vm346, %v3426, 0
    %3435 = vmatprep.subr.mxu0 0.0
    %3436 = vmatpush1.xpose.msra.mxu0 0.0
    %3437 = vmatprep.subr.mxu0 0.0
    %3438 = vmatpush1.xpose.msra.mxu0 0.0
    %3439 = vmatprep.subr.mxu0 0.0
    %3440 = vmatpush1.xpose.msra.mxu0 0.0
    %3441 = vmatprep.subr.mxu0 0.0
    %3442 = vmatpush1.xpose.msra.mxu0 0.0
    %3443 = vmatprep.subr.mxu0 0.0
    %3444 = vmatpush1.xpose.msra.mxu0 0.0
    %3445 = vmatprep.subr.mxu0 0.0
    %3446 = vmatpush1.xpose.msra.mxu0 0.0
    %3447 = vmatprep.subr.mxu0 0.0
    %3448 = vmatpush1.xpose.msra.mxu0 0.0
    %3449 = vmatprep.subr.mxu0 0.0
    %3450 = vmatpush1.xpose.msra.mxu0 0.0
    %3451 = vmatprep.subr.mxu0 0.0
    %3452 = vmatpush1.xpose.msra.mxu0 0.0
    %3453 = vmatprep.subr.mxu0 0.0
    %3454 = vmatpush1.xpose.msra.mxu0 0.0
    %3455 = vmatprep.subr.mxu0 0.0
    %3456 = vmatpush1.xpose.msra.mxu0 0.0
    %3457 = vmatprep.subr.mxu0 0.0
    %3458 = vmatpush1.xpose.msra.mxu0 0.0
    %3459 = vmatprep.subr.mxu0 0.0
    %3460 = vmatpush1.xpose.msra.mxu0 0.0
    %3461 = vmatprep.subr.mxu0 0.0
    %3462 = vmatpush1.xpose.msra.mxu0 0.0
    %3463 = vmatprep.subr.mxu0 0.0
    %3464 = vmatpush1.xpose.msra.mxu0 %v3433
    %3465 = vmatprep.subr.mxu0 0.0
    %3466 = vmatpush1.xpose.msra.mxu0 %v3431
    %3467 = vmatprep.subr.mxu0 0.0
    %3468 = vmatpush2.xpose.msra.mxu0 0.0
    %3469 = vmatprep.subr.mxu0 0.0
    %3470 = vmatpush2.xpose.msra.mxu0 0.0
    %3471 = vmatprep.subr.mxu0 0.0
    %3472 = vmatpush2.xpose.msra.mxu0 0.0
    %3473 = vmatprep.subr.mxu0 0.0
    %3474 = vmatpush2.xpose.msra.mxu0 0.0
    %3475 = vmatprep.subr.mxu0 0.0
    %3476 = vmatpush2.xpose.msra.mxu0 0.0
    %3477 = vmatprep.subr.mxu0 0.0
    %3478 = vmatpush2.xpose.msra.mxu0 0.0
    %3479 = vmatprep.subr.mxu0 0.0
    %3480 = vmatpush2.xpose.msra.mxu0 0.0
    %3481 = vmatprep.subr.mxu0 0.0
    %3482 = vmatpush2.xpose.msra.mxu0 0.0
    %3483 = vmatprep.subr.mxu0 0.0
    %3484 = vmatpush2.xpose.msra.mxu0 0.0
    %3485 = vmatprep.subr.mxu0 0.0
    %3486 = vmatpush2.xpose.msra.mxu0 0.0
    %3487 = vmatprep.subr.mxu0 0.0
    %3488 = vmatpush2.xpose.msra.mxu0 0.0
    %3489 = vmatprep.subr.mxu0 0.0
    %3490 = vmatpush2.xpose.msra.mxu0 0.0
    %3491 = vmatprep.subr.mxu0 0.0
    %3492 = vmatpush2.xpose.msra.mxu0 0.0
    %3493 = vmatprep.subr.mxu0 0.0
    %3494 = vmatpush2.xpose.msra.mxu0 0.0
    %3495 = vmatprep.subr.mxu0 0.0
    %3496 = vmatpush2.xpose.msra.mxu0 0.0
    %3497 = vmatprep.subr.mxu0 0.0
    %3498 = vmatpush2.xpose.msra.mxu0 0.0
    %3499 = vmatprep.mubr.f32.mxu0 0.0
    %3500 = vmatmul.mubr.f32.gmra.mxu0 %v3427
    %v3501 = vpop.f32.mrf.mxu0
    %v3502 = vadd.f32 0.0, %v3501
    %v3503 = vpop.f32.mrf.mxu0
    %3504 = vmatprep.mubr.f32.mxu0 0.0
    %3505 = vmatmul.mubr.f32.gmra.mxu0 %v3429
    %v3506 = vpop.f32.mrf.mxu0
    %v3507 = vadd.f32 0.0, %v3506
    %v3508 = vpop.f32.mrf.mxu0
    %3509 = vdwg.mxu0
    %v3510 = vmul.f32 %v3411, 0.35355338
    %v3511 = vmul.f32 %v3416, 0.35355338
    %v3512 = vmul.f32 %v3502, 0.35355338
    %v3513 = vmul.f32 %v3507, 0.35355338
    %v3514 = vadd.f32 %v3510, %v528
    %v3515 = vadd.f32 %v3511, %v528
    %v3516 = vadd.f32 %v3512, %v532
    %v3517 = vadd.f32 %v3513, %v532
    %v3518 = vsel %vm539, %v3514, -inf
    %3519 = vmax.xlane.f32.xlu0 %v3518
    %v3520 = vpop.xlane.xlu0 %3519
    %v3521 = vsel %vm539, %v3515, -inf
    %3522 = vmax.xlane.f32.xlu0 %v3521
    %v3523 = vpop.xlane.xlu0 %3522
    %v3524 = vsel %vm539, %v3516, -inf
    %3525 = vmax.xlane.f32.xlu0 %v3524
    %v3526 = vpop.xlane.xlu0 %3525
    %v3527 = vsel %vm539, %v3517, -inf
    %3528 = vmax.xlane.f32.xlu0 %v3527
    %v3529 = vpop.xlane.xlu0 %3528
    %v3530 = vsub.f32 %v3514, %v3520
    %v3531 = vsub.f32 %v3515, %v3523
    %v3532 = vsub.f32 %v3516, %v3526
    %v3533 = vsub.f32 %v3517, %v3529
    %v3534 = vmul.f32 %v3530, 1.442695
    %v3535 = vpow.pop %v3534
    %v3536 = vmul.f32 %v3531, 1.442695
    %v3537 = vpow.pop %v3536
    %v3538 = vmul.f32 %v3532, 1.442695
    %v3539 = vpow.pop %v3538
    %v3540 = vmul.f32 %v3533, 1.442695
    %v3541 = vpow.pop %v3540
    %v3542 = vsel %vm539, %v3535, 0.0
    %3543 = vadd.xlane.f32.xlu0 %v3542
    %v3544 = vpop.xlane.xlu0 %3543
    %v3545 = vsel %vm539, %v3537, 0.0
    %3546 = vadd.xlane.f32.xlu0 %v3545
    %v3547 = vpop.xlane.xlu0 %3546
    %v3548 = vsel %vm539, %v3539, 0.0
    %3549 = vadd.xlane.f32.xlu0 %v3548
    %v3550 = vpop.xlane.xlu0 %3549
    %v3551 = vsel %vm539, %v3541, 0.0
    %3552 = vadd.xlane.f32.xlu0 %v3551
    %v3553 = vpop.xlane.xlu0 %3552
    %v3554 = vrcp.pop %v3544
    %v3555 = vmul.f32 %v3535, %v3554
    %v3556 = vrcp.pop %v3547
    %v3557 = vmul.f32 %v3537, %v3556
    %v3558 = vrcp.pop %v3550
    %v3559 = vmul.f32 %v3539, %v3558
    %v3560 = vrcp.pop %v3553
    %v3561 = vmul.f32 %v3541, %v3560
    %3562 = vrot.lane.b32.xlu0 %v320, 72
    %v3563 = vpop.permute.xlu0 %3562
    %3564 = vrot.lane.b32.xlu0 %v326, 72
    %v3565 = vpop.permute.xlu0 %3564
    %v3569 = vsel %vm539, %v3555, 0
    %v3572 = vsel %vm539, %v3557, 0
    %3574 = vmatprep.subr.mxu0 0.0
    %3575 = vmatpush1.msra.mxu0 0.0
    %3576 = vmatprep.subr.mxu0 0.0
    %3577 = vmatpush1.msra.mxu0 0.0
    %3578 = vmatprep.subr.mxu0 0.0
    %3579 = vmatpush1.msra.mxu0 0.0
    %3580 = vmatprep.subr.mxu0 0.0
    %3581 = vmatpush1.msra.mxu0 0.0
    %3582 = vmatprep.subr.mxu0 0.0
    %3583 = vmatpush1.msra.mxu0 0.0
    %3584 = vmatprep.subr.mxu0 0.0
    %3585 = vmatpush1.msra.mxu0 0.0
    %3586 = vmatprep.subr.mxu0 0.0
    %3587 = vmatpush1.msra.mxu0 0.0
    %3588 = vmatprep.subr.mxu0 0.0
    %3589 = vmatpush1.msra.mxu0 0.0
    %3590 = vmatprep.subr.mxu0 0.0
    %3591 = vmatpush1.msra.mxu0 0.0
    %3592 = vmatprep.subr.mxu0 0.0
    %3593 = vmatpush1.msra.mxu0 0.0
    %3594 = vmatprep.subr.mxu0 0.0
    %3595 = vmatpush1.msra.mxu0 0.0
    %3596 = vmatprep.subr.mxu0 0.0
    %3597 = vmatpush1.msra.mxu0 0.0
    %3598 = vmatprep.subr.mxu0 0.0
    %3599 = vmatpush1.msra.mxu0 0.0
    %3600 = vmatprep.subr.mxu0 0.0
    %3601 = vmatpush1.msra.mxu0 0.0
    %3602 = vmatprep.subr.mxu0 0.0
    %3603 = vmatpush1.msra.mxu0 %v3565
    %3604 = vmatprep.subr.mxu0 0.0
    %3605 = vmatpush1.msra.mxu0 %v3563
    %3606 = vmatprep.subr.mxu0 0.0
    %3607 = vmatpush2.msra.mxu0 0.0
    %3608 = vmatprep.subr.mxu0 0.0
    %3609 = vmatpush2.msra.mxu0 0.0
    %3610 = vmatprep.subr.mxu0 0.0
    %3611 = vmatpush2.msra.mxu0 0.0
    %3612 = vmatprep.subr.mxu0 0.0
    %3613 = vmatpush2.msra.mxu0 0.0
    %3614 = vmatprep.subr.mxu0 0.0
    %3615 = vmatpush2.msra.mxu0 0.0
    %3616 = vmatprep.subr.mxu0 0.0
    %3617 = vmatpush2.msra.mxu0 0.0
    %3618 = vmatprep.subr.mxu0 0.0
    %3619 = vmatpush2.msra.mxu0 0.0
    %3620 = vmatprep.subr.mxu0 0.0
    %3621 = vmatpush2.msra.mxu0 0.0
    %3622 = vmatprep.subr.mxu0 0.0
    %3623 = vmatpush2.msra.mxu0 0.0
    %3624 = vmatprep.subr.mxu0 0.0
    %3625 = vmatpush2.msra.mxu0 0.0
    %3626 = vmatprep.subr.mxu0 0.0
    %3627 = vmatpush2.msra.mxu0 0.0
    %3628 = vmatprep.subr.mxu0 0.0
    %3629 = vmatpush2.msra.mxu0 0.0
    %3630 = vmatprep.subr.mxu0 0.0
    %3631 = vmatpush2.msra.mxu0 0.0
    %3632 = vmatprep.subr.mxu0 0.0
    %3633 = vmatpush2.msra.mxu0 0.0
    %3634 = vmatprep.subr.mxu0 0.0
    %3635 = vmatpush2.msra.mxu0 0.0
    %3636 = vmatprep.subr.mxu0 0.0
    %3637 = vmatpush2.msra.mxu0 0.0
    %3638 = vmatprep.mubr.f32.mxu0 0.0
    %3639 = vmatmul.mubr.f32.gmra.mxu0 %v3569
    %v3640 = vpop.f32.mrf.mxu0
    %v3641 = vadd.f32 0.0, %v3640
    %v3642 = vpop.f32.mrf.mxu0
    %3643 = vmatprep.mubr.f32.mxu0 0.0
    %3644 = vmatmul.mubr.f32.gmra.mxu0 %v3572
    %v3645 = vpop.f32.mrf.mxu0
    %v3646 = vadd.f32 0.0, %v3645
    %v3647 = vpop.f32.mrf.mxu0
    %3648 = vdwg.mxu0
    %3649 = vrot.lane.b32.xlu0 %v332, 72
    %v3650 = vpop.permute.xlu0 %3649
    %3651 = vrot.lane.b32.xlu0 %v338, 72
    %v3652 = vpop.permute.xlu0 %3651
    %v3656 = vsel %vm539, %v3559, 0
    %v3659 = vsel %vm539, %v3561, 0
    %3661 = vmatprep.subr.mxu0 0.0
    %3662 = vmatpush1.msra.mxu0 0.0
    %3663 = vmatprep.subr.mxu0 0.0
    %3664 = vmatpush1.msra.mxu0 0.0
    %3665 = vmatprep.subr.mxu0 0.0
    %3666 = vmatpush1.msra.mxu0 0.0
    %3667 = vmatprep.subr.mxu0 0.0
    %3668 = vmatpush1.msra.mxu0 0.0
    %3669 = vmatprep.subr.mxu0 0.0
    %3670 = vmatpush1.msra.mxu0 0.0
    %3671 = vmatprep.subr.mxu0 0.0
    %3672 = vmatpush1.msra.mxu0 0.0
    %3673 = vmatprep.subr.mxu0 0.0
    %3674 = vmatpush1.msra.mxu0 0.0
    %3675 = vmatprep.subr.mxu0 0.0
    %3676 = vmatpush1.msra.mxu0 0.0
    %3677 = vmatprep.subr.mxu0 0.0
    %3678 = vmatpush1.msra.mxu0 0.0
    %3679 = vmatprep.subr.mxu0 0.0
    %3680 = vmatpush1.msra.mxu0 0.0
    %3681 = vmatprep.subr.mxu0 0.0
    %3682 = vmatpush1.msra.mxu0 0.0
    %3683 = vmatprep.subr.mxu0 0.0
    %3684 = vmatpush1.msra.mxu0 0.0
    %3685 = vmatprep.subr.mxu0 0.0
    %3686 = vmatpush1.msra.mxu0 0.0
    %3687 = vmatprep.subr.mxu0 0.0
    %3688 = vmatpush1.msra.mxu0 0.0
    %3689 = vmatprep.subr.mxu0 0.0
    %3690 = vmatpush1.msra.mxu0 %v3652
    %3691 = vmatprep.subr.mxu0 0.0
    %3692 = vmatpush1.msra.mxu0 %v3650
    %3693 = vmatprep.subr.mxu0 0.0
    %3694 = vmatpush2.msra.mxu0 0.0
    %3695 = vmatprep.subr.mxu0 0.0
    %3696 = vmatpush2.msra.mxu0 0.0
    %3697 = vmatprep.subr.mxu0 0.0
    %3698 = vmatpush2.msra.mxu0 0.0
    %3699 = vmatprep.subr.mxu0 0.0
    %3700 = vmatpush2.msra.mxu0 0.0
    %3701 = vmatprep.subr.mxu0 0.0
    %3702 = vmatpush2.msra.mxu0 0.0
    %3703 = vmatprep.subr.mxu0 0.0
    %3704 = vmatpush2.msra.mxu0 0.0
    %3705 = vmatprep.subr.mxu0 0.0
    %3706 = vmatpush2.msra.mxu0 0.0
    %3707 = vmatprep.subr.mxu0 0.0
    %3708 = vmatpush2.msra.mxu0 0.0
    %3709 = vmatprep.subr.mxu0 0.0
    %3710 = vmatpush2.msra.mxu0 0.0
    %3711 = vmatprep.subr.mxu0 0.0
    %3712 = vmatpush2.msra.mxu0 0.0
    %3713 = vmatprep.subr.mxu0 0.0
    %3714 = vmatpush2.msra.mxu0 0.0
    %3715 = vmatprep.subr.mxu0 0.0
    %3716 = vmatpush2.msra.mxu0 0.0
    %3717 = vmatprep.subr.mxu0 0.0
    %3718 = vmatpush2.msra.mxu0 0.0
    %3719 = vmatprep.subr.mxu0 0.0
    %3720 = vmatpush2.msra.mxu0 0.0
    %3721 = vmatprep.subr.mxu0 0.0
    %3722 = vmatpush2.msra.mxu0 0.0
    %3723 = vmatprep.subr.mxu0 0.0
    %3724 = vmatpush2.msra.mxu0 0.0
    %3725 = vmatprep.mubr.f32.mxu0 0.0
    %3726 = vmatmul.mubr.f32.gmra.mxu0 %v3656
    %v3727 = vpop.f32.mrf.mxu0
    %v3728 = vadd.f32 0.0, %v3727
    %v3729 = vpop.f32.mrf.mxu0
    %3730 = vmatprep.mubr.f32.mxu0 0.0
    %3731 = vmatmul.mubr.f32.gmra.mxu0 %v3659
    %v3732 = vpop.f32.mrf.mxu0
    %v3733 = vadd.f32 0.0, %v3732
    %v3734 = vpop.f32.mrf.mxu0
    %3735 = vdwg.mxu0
    %3740 = vrot.lane.b32.xlu0 %v3641, 56
    %v3741 = vpop.permute.xlu0 %3740
    %3742 = vrot.lane.b32.xlu0 %v3646, 56
    %v3743 = vpop.permute.xlu0 %3742
    %3744 = vrot.lane.b32.xlu0 %v3728, 56
    %v3745 = vpop.permute.xlu0 %3744
    %3746 = vrot.lane.b32.xlu0 %v3733, 56
    %v3747 = vpop.permute.xlu0 %3746
    %vm3752 = vcmask 523712
    %3753 = vst.msk [vmem:[#allocation2] sm:$0xff] %vm3752, %v3741
    %3754 = vst.msk [vmem:[#allocation2 + $0x8] sm:$0xff] %vm3752, %v3743
    %3755 = vst.msk [vmem:[#allocation2 + $0x10] sm:$0xff] %vm3752, %v3745
    %3756 = vst.msk [vmem:[#allocation2 + $0x18] sm:$0xff] %vm3752, %v3747
    %v3757 = vld [vmem:[#allocation2] sm:$0xff]
    %v3758 = vld [vmem:[#allocation2 + $0x8] sm:$0xff]
    %v3759 = vld [vmem:[#allocation2 + $0x10] sm:$0xff]
    %v3760 = vld [vmem:[#allocation2 + $0x18] sm:$0xff]
    %v3761 = vld [vmem:[%s6] sm:$0xff]
    %v3762 = vld [vmem:[%s6 + $0x8] sm:$0xff]
    %v3763 = vld [vmem:[%s6 + $0x10] sm:$0xff]
    %v3764 = vld [vmem:[%s6 + $0x18] sm:$0xff]
    %v3765 = vld [vmem:[%s6 + $0x20] sm:$0xff]
    %v3766 = vld [vmem:[%s6 + $0x28] sm:$0xff]
    %v3767 = vld [vmem:[%s6 + $0x30] sm:$0xff]
    %v3768 = vld [vmem:[%s6 + $0x38] sm:$0xff]
    %v3769 = vld [vmem:[%s7] sm:$0x1]
    %v3771 = vlaneseq
    %v3772 = vshrl.u32 %v3771, 7
    %v3773 = vsub.s32 0, %v3772
    %v3774 = vrot.slane %v3769, %v3773
    %v3777 = vsel %vm238, %v3757, 0
    %v3780 = vsel %vm238, %v3758, 0
    %v3783 = vsel %vm238, %v3759, 0
    %v3786 = vsel %vm238, %v3760, 0
    %3788 = vmatprep.subr.mxu0 0.0
    %3789 = vmatpush1.msra.mxu0 0.0
    %3790 = vmatprep.subr.mxu0 0.0
    %3791 = vmatpush1.msra.mxu0 0.0
    %3792 = vmatprep.subr.mxu0 0.0
    %3793 = vmatpush1.msra.mxu0 0.0
    %3794 = vmatprep.subr.mxu0 0.0
    %3795 = vmatpush1.msra.mxu0 0.0
    %3796 = vmatprep.subr.mxu0 0.0
    %3797 = vmatpush1.msra.mxu0 0.0
    %3798 = vmatprep.subr.mxu0 0.0
    %3799 = vmatpush1.msra.mxu0 0.0
    %3800 = vmatprep.subr.mxu0 0.0
    %3801 = vmatpush1.msra.mxu0 0.0
    %3802 = vmatprep.subr.mxu0 0.0
    %3803 = vmatpush1.msra.mxu0 0.0
    %3804 = vmatprep.subr.mxu0 0.0
    %3805 = vmatpush1.msra.mxu0 %v3768
    %3806 = vmatprep.subr.mxu0 0.0
    %3807 = vmatpush1.msra.mxu0 %v3767
    %3808 = vmatprep.subr.mxu0 0.0
    %3809 = vmatpush1.msra.mxu0 %v3766
    %3810 = vmatprep.subr.mxu0 0.0
    %3811 = vmatpush1.msra.mxu0 %v3765
    %3812 = vmatprep.subr.mxu0 0.0
    %3813 = vmatpush1.msra.mxu0 %v3764
    %3814 = vmatprep.subr.mxu0 0.0
    %3815 = vmatpush1.msra.mxu0 %v3763
    %3816 = vmatprep.subr.mxu0 0.0
    %3817 = vmatpush1.msra.mxu0 %v3762
    %3818 = vmatprep.subr.mxu0 0.0
    %3819 = vmatpush1.msra.mxu0 %v3761
    %3820 = vmatprep.subr.mxu0 0.0
    %3821 = vmatpush2.msra.mxu0 0.0
    %3822 = vmatprep.subr.mxu0 0.0
    %3823 = vmatpush2.msra.mxu0 0.0
    %3824 = vmatprep.subr.mxu0 0.0
    %3825 = vmatpush2.msra.mxu0 0.0
    %3826 = vmatprep.subr.mxu0 0.0
    %3827 = vmatpush2.msra.mxu0 0.0
    %3828 = vmatprep.subr.mxu0 0.0
    %3829 = vmatpush2.msra.mxu0 0.0
    %3830 = vmatprep.subr.mxu0 0.0
    %3831 = vmatpush2.msra.mxu0 0.0
    %3832 = vmatprep.subr.mxu0 0.0
    %3833 = vmatpush2.msra.mxu0 0.0
    %3834 = vmatprep.subr.mxu0 0.0
    %3835 = vmatpush2.msra.mxu0 0.0
    %3836 = vmatprep.subr.mxu0 0.0
    %3837 = vmatpush2.msra.mxu0 0.0
    %3838 = vmatprep.subr.mxu0 0.0
    %3839 = vmatpush2.msra.mxu0 0.0
    %3840 = vmatprep.subr.mxu0 0.0
    %3841 = vmatpush2.msra.mxu0 0.0
    %3842 = vmatprep.subr.mxu0 0.0
    %3843 = vmatpush2.msra.mxu0 0.0
    %3844 = vmatprep.subr.mxu0 0.0
    %3845 = vmatpush2.msra.mxu0 0.0
    %3846 = vmatprep.subr.mxu0 0.0
    %3847 = vmatpush2.msra.mxu0 0.0
    %3848 = vmatprep.subr.mxu0 0.0
    %3849 = vmatpush2.msra.mxu0 0.0
    %3850 = vmatprep.subr.mxu0 0.0
    %3851 = vmatpush2.msra.mxu0 0.0
    %3852 = vmatprep.mubr.f32.mxu0 0.0
    %3853 = vmatmul.mubr.f32.gmra.mxu0 %v3777
    %v3854 = vpop.f32.mrf.mxu0
    %v3855 = vadd.f32 %v3774, %v3854
    %v3856 = vpop.f32.mrf.mxu0
    %3857 = vmatprep.mubr.f32.mxu0 0.0
    %3858 = vmatmul.mubr.f32.gmra.mxu0 %v3780
    %v3859 = vpop.f32.mrf.mxu0
    %v3860 = vadd.f32 %v3774, %v3859
    %v3861 = vpop.f32.mrf.mxu0
    %3862 = vmatprep.mubr.f32.mxu0 0.0
    %3863 = vmatmul.mubr.f32.gmra.mxu0 %v3783
    %v3864 = vpop.f32.mrf.mxu0
    %v3865 = vadd.f32 %v3774, %v3864
    %v3866 = vpop.f32.mrf.mxu0
    %3867 = vmatprep.mubr.f32.mxu0 0.0
    %3868 = vmatmul.mubr.f32.gmra.mxu0 %v3786
    %v3869 = vpop.f32.mrf.mxu0
    %v3870 = vadd.f32 %v3774, %v3869
    %v3871 = vpop.f32.mrf.mxu0
    %3872 = vdwg.mxu0
    %v3873 = vadd.f32 %v202, %v3855
    %v3874 = vadd.f32 %v203, %v3860
    %v3875 = vadd.f32 %v204, %v3865
    %v3876 = vadd.f32 %v205, %v3870
    %v3877 = vld [vmem:[%s8] sm:$0x1]
    %v3878 = vld [vmem:[%s9] sm:$0x1]
    %v3879 = vsel %vm238, %v3873, 0.0
    %3880 = vadd.xlane.f32.xlu0 %v3879
    %v3881 = vpop.xlane.xlu0 %3880
    %v3882 = vsel %vm238, %v3874, 0.0
    %3883 = vadd.xlane.f32.xlu0 %v3882
    %v3884 = vpop.xlane.xlu0 %3883
    %v3885 = vsel %vm238, %v3875, 0.0
    %3886 = vadd.xlane.f32.xlu0 %v3885
    %v3887 = vpop.xlane.xlu0 %3886
    %v3888 = vsel %vm238, %v3876, 0.0
    %3889 = vadd.xlane.f32.xlu0 %v3888
    %v3890 = vpop.xlane.xlu0 %3889
    %v3891 = vrcp.pop 64.0
    %v3892 = vmul.f32 %v3881, %v3891
    %v3893 = vmul.f32 %v3884, %v3891
    %v3894 = vmul.f32 %v3887, %v3891
    %v3895 = vmul.f32 %v3890, %v3891
    %v3896 = vsub.f32 %v3873, %v3892
    %v3897 = vsub.f32 %v3874, %v3893
    %v3898 = vsub.f32 %v3875, %v3894
    %v3899 = vsub.f32 %v3876, %v3895
    %v3900 = vmul.f32 %v3896, %v3896
    %v3901 = vmul.f32 %v3897, %v3897
    %v3902 = vmul.f32 %v3898, %v3898
    %v3903 = vmul.f32 %v3899, %v3899
    %v3904 = vsel %vm238, %v3900, 0.0
    %3905 = vadd.xlane.f32.xlu0 %v3904
    %v3906 = vpop.xlane.xlu0 %3905
    %v3907 = vsel %vm238, %v3901, 0.0
    %3908 = vadd.xlane.f32.xlu0 %v3907
    %v3909 = vpop.xlane.xlu0 %3908
    %v3910 = vsel %vm238, %v3902, 0.0
    %3911 = vadd.xlane.f32.xlu0 %v3910
    %v3912 = vpop.xlane.xlu0 %3911
    %v3913 = vsel %vm238, %v3903, 0.0
    %3914 = vadd.xlane.f32.xlu0 %v3913
    %v3915 = vpop.xlane.xlu0 %3914
    %v3916 = vmul.f32 %v3906, %v3891
    %v3917 = vmul.f32 %v3909, %v3891
    %v3918 = vmul.f32 %v3912, %v3891
    %v3919 = vmul.f32 %v3915, %v3891
    %v3920 = vadd.f32 %v3916, 1e-05
    %v3921 = vadd.f32 %v3917, 1e-05
    %v3922 = vadd.f32 %v3918, 1e-05
    %v3923 = vadd.f32 %v3919, 1e-05
    %v3924 = vrsqrt.pop %v3920
    %v3925 = vrsqrt.pop %v3921
    %v3926 = vrsqrt.pop %v3922
    %v3927 = vrsqrt.pop %v3923
    %v3928 = vmul.f32 %v3896, %v3924
    %v3929 = vmul.f32 %v3897, %v3925
    %v3930 = vmul.f32 %v3898, %v3926
    %v3931 = vmul.f32 %v3899, %v3927
    %v3933 = vlaneseq
    %v3934 = vshrl.u32 %v3933, 7
    %v3935 = vsub.s32 0, %v3934
    %v3936 = vrot.slane %v3877, %v3935
    %v3938 = vmul.f32 %v3928, %v3936
    %v3939 = vmul.f32 %v3929, %v3936
    %v3940 = vmul.f32 %v3930, %v3936
    %v3941 = vmul.f32 %v3931, %v3936
    %v3943 = vlaneseq
    %v3944 = vshrl.u32 %v3943, 7
    %v3945 = vsub.s32 0, %v3944
    %v3946 = vrot.slane %v3878, %v3945
    %v3948 = vadd.f32 %v3938, %v3946
    %v3949 = vadd.f32 %v3939, %v3946
    %v3950 = vadd.f32 %v3940, %v3946
    %v3951 = vadd.f32 %v3941, %v3946
    %v3952 = vld [vmem:[%s10] sm:$0xff]
    %v3953 = vld [vmem:[%s10 + $0x8] sm:$0xff]
    %v3954 = vld [vmem:[%s10 + $0x10] sm:$0xff]
    %v3955 = vld [vmem:[%s10 + $0x18] sm:$0xff]
    %v3956 = vld [vmem:[%s10 + $0x20] sm:$0xff]
    %v3957 = vld [vmem:[%s10 + $0x28] sm:$0xff]
    %v3958 = vld [vmem:[%s10 + $0x30] sm:$0xff]
    %v3959 = vld [vmem:[%s10 + $0x38] sm:$0xff]
    %v3960 = vld [vmem:[%s11] sm:$0x1]
    %v3962 = vlaneseq
    %v3963 = vshrl.u32 %v3962, 7
    %v3964 = vsub.s32 0, %v3963
    %v3965 = vrot.slane %v3960, %v3964
    %v3968 = vsel %vm238, %v3948, 0
    %v3971 = vsel %vm238, %v3949, 0
    %v3974 = vsel %vm238, %v3950, 0
    %v3977 = vsel %vm238, %v3951, 0
    %3979 = vmatprep.subr.mxu0 0.0
    %3980 = vmatpush1.msra.mxu0 0.0
    %3981 = vmatprep.subr.mxu0 0.0
    %3982 = vmatpush1.msra.mxu0 0.0
    %3983 = vmatprep.subr.mxu0 0.0
    %3984 = vmatpush1.msra.mxu0 0.0
    %3985 = vmatprep.subr.mxu0 0.0
    %3986 = vmatpush1.msra.mxu0 0.0
    %3987 = vmatprep.subr.mxu0 0.0
    %3988 = vmatpush1.msra.mxu0 0.0
    %3989 = vmatprep.subr.mxu0 0.0
    %3990 = vmatpush1.msra.mxu0 0.0
    %3991 = vmatprep.subr.mxu0 0.0
    %3992 = vmatpush1.msra.mxu0 0.0
    %3993 = vmatprep.subr.mxu0 0.0
    %3994 = vmatpush1.msra.mxu0 0.0
    %3995 = vmatprep.subr.mxu0 0.0
    %3996 = vmatpush1.msra.mxu0 %v3959
    %3997 = vmatprep.subr.mxu0 0.0
    %3998 = vmatpush1.msra.mxu0 %v3958
    %3999 = vmatprep.subr.mxu0 0.0
    %4000 = vmatpush1.msra.mxu0 %v3957
    %4001 = vmatprep.subr.mxu0 0.0
    %4002 = vmatpush1.msra.mxu0 %v3956
    %4003 = vmatprep.subr.mxu0 0.0
    %4004 = vmatpush1.msra.mxu0 %v3955
    %4005 = vmatprep.subr.mxu0 0.0
    %4006 = vmatpush1.msra.mxu0 %v3954
    %4007 = vmatprep.subr.mxu0 0.0
    %4008 = vmatpush1.msra.mxu0 %v3953
    %4009 = vmatprep.subr.mxu0 0.0
    %4010 = vmatpush1.msra.mxu0 %v3952
    %4011 = vmatprep.subr.mxu0 0.0
    %4012 = vmatpush2.msra.mxu0 0.0
    %4013 = vmatprep.subr.mxu0 0.0
    %4014 = vmatpush2.msra.mxu0 0.0
    %4015 = vmatprep.subr.mxu0 0.0
    %4016 = vmatpush2.msra.mxu0 0.0
    %4017 = vmatprep.subr.mxu0 0.0
    %4018 = vmatpush2.msra.mxu0 0.0
    %4019 = vmatprep.subr.mxu0 0.0
    %4020 = vmatpush2.msra.mxu0 0.0
    %4021 = vmatprep.subr.mxu0 0.0
    %4022 = vmatpush2.msra.mxu0 0.0
    %4023 = vmatprep.subr.mxu0 0.0
    %4024 = vmatpush2.msra.mxu0 0.0
    %4025 = vmatprep.subr.mxu0 0.0
    %4026 = vmatpush2.msra.mxu0 0.0
    %4027 = vmatprep.subr.mxu0 0.0
    %4028 = vmatpush2.msra.mxu0 0.0
    %4029 = vmatprep.subr.mxu0 0.0
    %4030 = vmatpush2.msra.mxu0 0.0
    %4031 = vmatprep.subr.mxu0 0.0
    %4032 = vmatpush2.msra.mxu0 0.0
    %4033 = vmatprep.subr.mxu0 0.0
    %4034 = vmatpush2.msra.mxu0 0.0
    %4035 = vmatprep.subr.mxu0 0.0
    %4036 = vmatpush2.msra.mxu0 0.0
    %4037 = vmatprep.subr.mxu0 0.0
    %4038 = vmatpush2.msra.mxu0 0.0
    %4039 = vmatprep.subr.mxu0 0.0
    %4040 = vmatpush2.msra.mxu0 0.0
    %4041 = vmatprep.subr.mxu0 0.0
    %4042 = vmatpush2.msra.mxu0 0.0
    %4043 = vmatprep.mubr.f32.mxu0 0.0
    %4044 = vmatmul.mubr.f32.gmra.mxu0 %v3968
    %v4045 = vpop.f32.mrf.mxu0
    %v4046 = vadd.f32 %v3965, %v4045
    %v4047 = vpop.f32.mrf.mxu0
    %4048 = vmatprep.mubr.f32.mxu0 0.0
    %4049 = vmatmul.mubr.f32.gmra.mxu0 %v3971
    %v4050 = vpop.f32.mrf.mxu0
    %v4051 = vadd.f32 %v3965, %v4050
    %v4052 = vpop.f32.mrf.mxu0
    %4053 = vmatprep.mubr.f32.mxu0 0.0
    %4054 = vmatmul.mubr.f32.gmra.mxu0 %v3974
    %v4055 = vpop.f32.mrf.mxu0
    %v4056 = vadd.f32 %v3965, %v4055
    %v4057 = vpop.f32.mrf.mxu0
    %4058 = vmatprep.mubr.f32.mxu0 0.0
    %4059 = vmatmul.mubr.f32.gmra.mxu0 %v3977
    %v4060 = vpop.f32.mrf.mxu0
    %v4061 = vadd.f32 %v3965, %v4060
    %v4062 = vpop.f32.mrf.mxu0
    %4063 = vdwg.mxu0
    %v4064 = vmul.f32 %v4046, 0.5
    %v4065 = vmul.f32 %v4051, 0.5
    %v4066 = vmul.f32 %v4056, 0.5
    %v4067 = vmul.f32 %v4061, 0.5
    %v4068 = vmul.f32 %v4046, 0.70710677
    %v4069 = vmul.f32 %v4051, 0.70710677
    %v4070 = vmul.f32 %v4056, 0.70710677
    %v4071 = vmul.f32 %v4061, 0.70710677
    %vm4072 = vcmp.ge.f32.partialorder %v4068, 0.0
    %vm4073 = vcmp.ge.f32.partialorder %v4069, 0.0
    %vm4074 = vcmp.ge.f32.partialorder %v4070, 0.0
    %vm4075 = vcmp.ge.f32.partialorder %v4071, 0.0
    %v4076 = vsel %vm4072, 1.0, -1.0
    %v4077 = vsel %vm4073, 1.0, -1.0
    %v4078 = vsel %vm4074, 1.0, -1.0
    %v4079 = vsel %vm4075, 1.0, -1.0
    %v4080 = vand.u32 2147483647, %v4068
    %v4081 = vand.u32 2147483647, %v4069
    %v4082 = vand.u32 2147483647, %v4070
    %v4083 = vand.u32 2147483647, %v4071
    %v4084 = vmul.f32 %v4080, 0.3275911
    %v4085 = vmul.f32 %v4081, 0.3275911
    %v4086 = vmul.f32 %v4082, 0.3275911
    %v4087 = vmul.f32 %v4083, 0.3275911
    %v4088 = vadd.f32 %v4084, 1.0
    %v4089 = vadd.f32 %v4085, 1.0
    %v4090 = vadd.f32 %v4086, 1.0
    %v4091 = vadd.f32 %v4087, 1.0
    %v4092 = vrcp.pop %v4088
    %v4093 = vmul.f32 1.0, %v4092
    %v4094 = vrcp.pop %v4089
    %v4095 = vmul.f32 1.0, %v4094
    %v4096 = vrcp.pop %v4090
    %v4097 = vmul.f32 1.0, %v4096
    %v4098 = vrcp.pop %v4091
    %v4099 = vmul.f32 1.0, %v4098
    %v4100 = vmul.f32 %v4093, 1.0614054
    %v4101 = vmul.f32 %v4095, 1.0614054
    %v4102 = vmul.f32 %v4097, 1.0614054
    %v4103 = vmul.f32 %v4099, 1.0614054
    %v4104 = vadd.f32 %v4100, -1.4531521
    %v4105 = vadd.f32 %v4101, -1.4531521
    %v4106 = vadd.f32 %v4102, -1.4531521
    %v4107 = vadd.f32 %v4103, -1.4531521
    %v4108 = vmul.f32 %v4104, %v4093
    %v4109 = vmul.f32 %v4105, %v4095
    %v4110 = vmul.f32 %v4106, %v4097
    %v4111 = vmul.f32 %v4107, %v4099
    %v4112 = vadd.f32 %v4108, 1.4214138
    %v4113 = vadd.f32 %v4109, 1.4214138
    %v4114 = vadd.f32 %v4110, 1.4214138
    %v4115 = vadd.f32 %v4111, 1.4214138
    %v4116 = vmul.f32 %v4112, %v4093
    %v4117 = vmul.f32 %v4113, %v4095
    %v4118 = vmul.f32 %v4114, %v4097
    %v4119 = vmul.f32 %v4115, %v4099
    %v4120 = vadd.f32 %v4116, -0.28449672
    %v4121 = vadd.f32 %v4117, -0.28449672
    %v4122 = vadd.f32 %v4118, -0.28449672
    %v4123 = vadd.f32 %v4119, -0.28449672
    %v4124 = vmul.f32 %v4120, %v4093
    %v4125 = vmul.f32 %v4121, %v4095
    %v4126 = vmul.f32 %v4122, %v4097
    %v4127 = vmul.f32 %v4123, %v4099
    %v4128 = vadd.f32 %v4124, 0.2548296
    %v4129 = vadd.f32 %v4125, 0.2548296
    %v4130 = vadd.f32 %v4126, 0.2548296
    %v4131 = vadd.f32 %v4127, 0.2548296
    %v4132 = vmul.f32 %v4128, %v4093
    %v4133 = vmul.f32 %v4129, %v4095
    %v4134 = vmul.f32 %v4130, %v4097
    %v4135 = vmul.f32 %v4131, %v4099
    %v4136 = vsub.f32 0.0, %v4080
    %v4137 = vsub.f32 0.0, %v4081
    %v4138 = vsub.f32 0.0, %v4082
    %v4139 = vsub.f32 0.0, %v4083
    %v4140 = vmul.f32 %v4136, %v4080
    %v4141 = vmul.f32 %v4137, %v4081
    %v4142 = vmul.f32 %v4138, %v4082
    %v4143 = vmul.f32 %v4139, %v4083
    %v4144 = vmul.f32 %v4140, 1.442695
    %v4145 = vpow.pop %v4144
    %v4146 = vmul.f32 %v4141, 1.442695
    %v4147 = vpow.pop %v4146
    %v4148 = vmul.f32 %v4142, 1.442695
    %v4149 = vpow.pop %v4148
    %v4150 = vmul.f32 %v4143, 1.442695
    %v4151 = vpow.pop %v4150
    %v4152 = vmul.f32 %v4132, %v4145
    %v4153 = vmul.f32 %v4133, %v4147
    %v4154 = vmul.f32 %v4134, %v4149
    %v4155 = vmul.f32 %v4135, %v4151
    %v4156 = vsub.f32 1.0, %v4152
    %v4157 = vsub.f32 1.0, %v4153
    %v4158 = vsub.f32 1.0, %v4154
    %v4159 = vsub.f32 1.0, %v4155
    %v4160 = vmul.f32 %v4076, %v4156
    %v4161 = vmul.f32 %v4077, %v4157
    %v4162 = vmul.f32 %v4078, %v4158
    %v4163 = vmul.f32 %v4079, %v4159
    %v4164 = vadd.f32 %v4160, 1.0
    %v4165 = vadd.f32 %v4161, 1.0
    %v4166 = vadd.f32 %v4162, 1.0
    %v4167 = vadd.f32 %v4163, 1.0
    %v4168 = vmul.f32 %v4064, %v4164
    %v4169 = vmul.f32 %v4065, %v4165
    %v4170 = vmul.f32 %v4066, %v4166
    %v4171 = vmul.f32 %v4067, %v4167
    %v4172 = vld [vmem:[%s12] sm:$0xff]
    %v4173 = vld [vmem:[%s12 + $0x8] sm:$0xff]
    %v4174 = vld [vmem:[%s12 + $0x10] sm:$0xff]
    %v4175 = vld [vmem:[%s12 + $0x18] sm:$0xff]
    %v4176 = vld [vmem:[%s12 + $0x20] sm:$0xff]
    %v4177 = vld [vmem:[%s12 + $0x28] sm:$0xff]
    %v4178 = vld [vmem:[%s12 + $0x30] sm:$0xff]
    %v4179 = vld [vmem:[%s12 + $0x38] sm:$0xff]
    %v4180 = vld [vmem:[%s12 + $0x40] sm:$0xff]
    %v4181 = vld [vmem:[%s12 + $0x48] sm:$0xff]
    %v4182 = vld [vmem:[%s12 + $0x50] sm:$0xff]
    %v4183 = vld [vmem:[%s12 + $0x58] sm:$0xff]
    %v4184 = vld [vmem:[%s12 + $0x60] sm:$0xff]
    %v4185 = vld [vmem:[%s12 + $0x68] sm:$0xff]
    %v4186 = vld [vmem:[%s12 + $0x70] sm:$0xff]
    %v4187 = vld [vmem:[%s12 + $0x78] sm:$0xff]
    %v4188 = vld [vmem:[%s13] sm:$0x1]
    %v4190 = vlaneseq
    %v4191 = vshrl.u32 %v4190, 7
    %v4192 = vsub.s32 0, %v4191
    %v4193 = vrot.slane %v4188, %v4192
    %4195 = vmatprep.subr.mxu0 0.0
    %4196 = vmatpush1.msra.mxu0 %v4187
    %4197 = vmatprep.subr.mxu0 0.0
    %4198 = vmatpush1.msra.mxu0 %v4186
    %4199 = vmatprep.subr.mxu0 0.0
    %4200 = vmatpush1.msra.mxu0 %v4185
    %4201 = vmatprep.subr.mxu0 0.0
    %4202 = vmatpush1.msra.mxu0 %v4184
    %4203 = vmatprep.subr.mxu0 0.0
    %4204 = vmatpush1.msra.mxu0 %v4183
    %4205 = vmatprep.subr.mxu0 0.0
    %4206 = vmatpush1.msra.mxu0 %v4182
    %4207 = vmatprep.subr.mxu0 0.0
    %4208 = vmatpush1.msra.mxu0 %v4181
    %4209 = vmatprep.subr.mxu0 0.0
    %4210 = vmatpush1.msra.mxu0 %v4180
    %4211 = vmatprep.subr.mxu0 0.0
    %4212 = vmatpush1.msra.mxu0 %v4179
    %4213 = vmatprep.subr.mxu0 0.0
    %4214 = vmatpush1.msra.mxu0 %v4178
    %4215 = vmatprep.subr.mxu0 0.0
    %4216 = vmatpush1.msra.mxu0 %v4177
    %4217 = vmatprep.subr.mxu0 0.0
    %4218 = vmatpush1.msra.mxu0 %v4176
    %4219 = vmatprep.subr.mxu0 0.0
    %4220 = vmatpush1.msra.mxu0 %v4175
    %4221 = vmatprep.subr.mxu0 0.0
    %4222 = vmatpush1.msra.mxu0 %v4174
    %4223 = vmatprep.subr.mxu0 0.0
    %4224 = vmatpush1.msra.mxu0 %v4173
    %4225 = vmatprep.subr.mxu0 0.0
    %4226 = vmatpush1.msra.mxu0 %v4172
    %4227 = vmatprep.subr.mxu0 0.0
    %4228 = vmatpush2.msra.mxu0 0.0
    %4229 = vmatprep.subr.mxu0 0.0
    %4230 = vmatpush2.msra.mxu0 0.0
    %4231 = vmatprep.subr.mxu0 0.0
    %4232 = vmatpush2.msra.mxu0 0.0
    %4233 = vmatprep.subr.mxu0 0.0
    %4234 = vmatpush2.msra.mxu0 0.0
    %4235 = vmatprep.subr.mxu0 0.0
    %4236 = vmatpush2.msra.mxu0 0.0
    %4237 = vmatprep.subr.mxu0 0.0
    %4238 = vmatpush2.msra.mxu0 0.0
    %4239 = vmatprep.subr.mxu0 0.0
    %4240 = vmatpush2.msra.mxu0 0.0
    %4241 = vmatprep.subr.mxu0 0.0
    %4242 = vmatpush2.msra.mxu0 0.0
    %4243 = vmatprep.subr.mxu0 0.0
    %4244 = vmatpush2.msra.mxu0 0.0
    %4245 = vmatprep.subr.mxu0 0.0
    %4246 = vmatpush2.msra.mxu0 0.0
    %4247 = vmatprep.subr.mxu0 0.0
    %4248 = vmatpush2.msra.mxu0 0.0
    %4249 = vmatprep.subr.mxu0 0.0
    %4250 = vmatpush2.msra.mxu0 0.0
    %4251 = vmatprep.subr.mxu0 0.0
    %4252 = vmatpush2.msra.mxu0 0.0
    %4253 = vmatprep.subr.mxu0 0.0
    %4254 = vmatpush2.msra.mxu0 0.0
    %4255 = vmatprep.subr.mxu0 0.0
    %4256 = vmatpush2.msra.mxu0 0.0
    %4257 = vmatprep.subr.mxu0 0.0
    %4258 = vmatpush2.msra.mxu0 0.0
    %4259 = vmatprep.mubr.f32.mxu0 0.0
    %4260 = vmatmul.mubr.f32.gmra.mxu0 %v4168
    %v4261 = vpop.f32.mrf.mxu0
    %v4262 = vadd.f32 %v4193, %v4261
    %v4263 = vpop.f32.mrf.mxu0
    %4264 = vmatprep.mubr.f32.mxu0 0.0
    %4265 = vmatmul.mubr.f32.gmra.mxu0 %v4169
    %v4266 = vpop.f32.mrf.mxu0
    %v4267 = vadd.f32 %v4193, %v4266
    %v4268 = vpop.f32.mrf.mxu0
    %4269 = vmatprep.mubr.f32.mxu0 0.0
    %4270 = vmatmul.mubr.f32.gmra.mxu0 %v4170
    %v4271 = vpop.f32.mrf.mxu0
    %v4272 = vadd.f32 %v4193, %v4271
    %v4273 = vpop.f32.mrf.mxu0
    %4274 = vmatprep.mubr.f32.mxu0 0.0
    %4275 = vmatmul.mubr.f32.gmra.mxu0 %v4171
    %v4276 = vpop.f32.mrf.mxu0
    %v4277 = vadd.f32 %v4193, %v4276
    %v4278 = vpop.f32.mrf.mxu0
    %4279 = vdwg.mxu0
    %v4280 = vadd.f32 %v3948, %v4262
    %v4281 = vadd.f32 %v3949, %v4267
    %v4282 = vadd.f32 %v3950, %v4272
    %v4283 = vadd.f32 %v3951, %v4277
    %v4284 = vld [vmem:[%s14] sm:$0x1]
    %v4285 = vld [vmem:[%s15] sm:$0x1]
    %v4286 = vsel %vm238, %v4280, 0.0
    %4287 = vadd.xlane.f32.xlu0 %v4286
    %v4288 = vpop.xlane.xlu0 %4287
    %v4289 = vsel %vm238, %v4281, 0.0
    %4290 = vadd.xlane.f32.xlu0 %v4289
    %v4291 = vpop.xlane.xlu0 %4290
    %v4292 = vsel %vm238, %v4282, 0.0
    %4293 = vadd.xlane.f32.xlu0 %v4292
    %v4294 = vpop.xlane.xlu0 %4293
    %v4295 = vsel %vm238, %v4283, 0.0
    %4296 = vadd.xlane.f32.xlu0 %v4295
    %v4297 = vpop.xlane.xlu0 %4296
    %v4298 = vmul.f32 %v4288, %v3891
    %v4299 = vmul.f32 %v4291, %v3891
    %v4300 = vmul.f32 %v4294, %v3891
    %v4301 = vmul.f32 %v4297, %v3891
    %v4302 = vsub.f32 %v4280, %v4298
    %v4303 = vsub.f32 %v4281, %v4299
    %v4304 = vsub.f32 %v4282, %v4300
    %v4305 = vsub.f32 %v4283, %v4301
    %v4306 = vmul.f32 %v4302, %v4302
    %v4307 = vmul.f32 %v4303, %v4303
    %v4308 = vmul.f32 %v4304, %v4304
    %v4309 = vmul.f32 %v4305, %v4305
    %v4310 = vsel %vm238, %v4306, 0.0
    %4311 = vadd.xlane.f32.xlu0 %v4310
    %v4312 = vpop.xlane.xlu0 %4311
    %v4313 = vsel %vm238, %v4307, 0.0
    %4314 = vadd.xlane.f32.xlu0 %v4313
    %v4315 = vpop.xlane.xlu0 %4314
    %v4316 = vsel %vm238, %v4308, 0.0
    %4317 = vadd.xlane.f32.xlu0 %v4316
    %v4318 = vpop.xlane.xlu0 %4317
    %v4319 = vsel %vm238, %v4309, 0.0
    %4320 = vadd.xlane.f32.xlu0 %v4319
    %v4321 = vpop.xlane.xlu0 %4320
    %v4322 = vmul.f32 %v4312, %v3891
    %v4323 = vmul.f32 %v4315, %v3891
    %v4324 = vmul.f32 %v4318, %v3891
    %v4325 = vmul.f32 %v4321, %v3891
    %v4326 = vadd.f32 %v4322, 1e-05
    %v4327 = vadd.f32 %v4323, 1e-05
    %v4328 = vadd.f32 %v4324, 1e-05
    %v4329 = vadd.f32 %v4325, 1e-05
    %v4330 = vrsqrt.pop %v4326
    %v4331 = vrsqrt.pop %v4327
    %v4332 = vrsqrt.pop %v4328
    %v4333 = vrsqrt.pop %v4329
    %v4334 = vmul.f32 %v4302, %v4330
    %v4335 = vmul.f32 %v4303, %v4331
    %v4336 = vmul.f32 %v4304, %v4332
    %v4337 = vmul.f32 %v4305, %v4333
    %v4339 = vlaneseq
    %v4340 = vshrl.u32 %v4339, 7
    %v4341 = vsub.s32 0, %v4340
    %v4342 = vrot.slane %v4284, %v4341
    %v4344 = vmul.f32 %v4334, %v4342
    %v4345 = vmul.f32 %v4335, %v4342
    %v4346 = vmul.f32 %v4336, %v4342
    %v4347 = vmul.f32 %v4337, %v4342
    %v4349 = vlaneseq
    %v4350 = vshrl.u32 %v4349, 7
    %v4351 = vsub.s32 0, %v4350
    %v4352 = vrot.slane %v4285, %v4351
    %v4354 = vadd.f32 %v4344, %v4352
    %v4355 = vadd.f32 %v4345, %v4352
    %v4356 = vadd.f32 %v4346, %v4352
    %v4357 = vadd.f32 %v4347, %v4352
    %s4358 = scalar_lea.vmem %s4, 128
    %v4359 = vld [vmem:[%s4358] sm:$0xff]
    %v4360 = vld [vmem:[%s4358 + $0x8] sm:$0xff]
    %v4361 = vld [vmem:[%s4358 + $0x10] sm:$0xff]
    %v4362 = vld [vmem:[%s4358 + $0x18] sm:$0xff]
    %v4363 = vld [vmem:[%s4358 + $0x20] sm:$0xff]
    %v4364 = vld [vmem:[%s4358 + $0x28] sm:$0xff]
    %v4365 = vld [vmem:[%s4358 + $0x30] sm:$0xff]
    %v4366 = vld [vmem:[%s4358 + $0x38] sm:$0xff]
    %v4367 = vld [vmem:[%s4358 + $0x40] sm:$0xff]
    %v4368 = vld [vmem:[%s4358 + $0x48] sm:$0xff]
    %v4369 = vld [vmem:[%s4358 + $0x50] sm:$0xff]
    %v4370 = vld [vmem:[%s4358 + $0x58] sm:$0xff]
    %v4371 = vld [vmem:[%s4358 + $0x60] sm:$0xff]
    %v4372 = vld [vmem:[%s4358 + $0x68] sm:$0xff]
    %v4373 = vld [vmem:[%s4358 + $0x70] sm:$0xff]
    %v4374 = vld [vmem:[%s4358 + $0x78] sm:$0xff]
    %s4375 = scalar_lea.vmem %s5, 2
    %v4376 = vld [vmem:[%s4375] sm:$0x3]
    %v4378 = vlaneseq
    %v4379 = vshrl.u32 %v4378, 7
    %v4380 = vsub.s32 0, %v4379
    %v4381 = vrot.slane %v4376, %v4380
    %v4382 = vlaneseq
    %v4383 = vshrl.u32 %v4382, 7
    %v4384 = vsub.s32 1, %v4383
    %v4385 = vrot.slane %v4376, %v4384
    %v4389 = vsel %vm238, %v4354, 0
    %v4392 = vsel %vm238, %v4355, 0
    %v4395 = vsel %vm238, %v4356, 0
    %v4398 = vsel %vm238, %v4357, 0
    %4400 = vmatprep.subr.mxu0 0.0
    %4401 = vmatpush1.msra.mxu0 0.0
    %4402 = vmatprep.subr.mxu0 0.0
    %4403 = vmatpush1.msra.mxu0 0.0
    %4404 = vmatprep.subr.mxu0 0.0
    %4405 = vmatpush1.msra.mxu0 0.0
    %4406 = vmatprep.subr.mxu0 0.0
    %4407 = vmatpush1.msra.mxu0 0.0
    %4408 = vmatprep.subr.mxu0 0.0
    %4409 = vmatpush1.msra.mxu0 0.0
    %4410 = vmatprep.subr.mxu0 0.0
    %4411 = vmatpush1.msra.mxu0 0.0
    %4412 = vmatprep.subr.mxu0 0.0
    %4413 = vmatpush1.msra.mxu0 0.0
    %4414 = vmatprep.subr.mxu0 0.0
    %4415 = vmatpush1.msra.mxu0 0.0
    %4416 = vmatprep.subr.mxu0 %v4374
    %4417 = vmatpush1.msra.mxu0 %v4373
    %4418 = vmatprep.subr.mxu0 %v4372
    %4419 = vmatpush1.msra.mxu0 %v4371
    %4420 = vmatprep.subr.mxu0 %v4370
    %4421 = vmatpush1.msra.mxu0 %v4369
    %4422 = vmatprep.subr.mxu0 %v4368
    %4423 = vmatpush1.msra.mxu0 %v4367
    %4424 = vmatprep.subr.mxu0 %v4366
    %4425 = vmatpush1.msra.mxu0 %v4365
    %4426 = vmatprep.subr.mxu0 %v4364
    %4427 = vmatpush1.msra.mxu0 %v4363
    %4428 = vmatprep.subr.mxu0 %v4362
    %4429 = vmatpush1.msra.mxu0 %v4361
    %4430 = vmatprep.subr.mxu0 %v4360
    %4431 = vmatpush1.msra.mxu0 %v4359
    %4432 = vmatprep.subr.mxu0 0.0
    %4433 = vmatpush2.msra.mxu0 0.0
    %4434 = vmatprep.subr.mxu0 0.0
    %4435 = vmatpush2.msra.mxu0 0.0
    %4436 = vmatprep.subr.mxu0 0.0
    %4437 = vmatpush2.msra.mxu0 0.0
    %4438 = vmatprep.subr.mxu0 0.0
    %4439 = vmatpush2.msra.mxu0 0.0
    %4440 = vmatprep.subr.mxu0 0.0
    %4441 = vmatpush2.msra.mxu0 0.0
    %4442 = vmatprep.subr.mxu0 0.0
    %4443 = vmatpush2.msra.mxu0 0.0
    %4444 = vmatprep.subr.mxu0 0.0
    %4445 = vmatpush2.msra.mxu0 0.0
    %4446 = vmatprep.subr.mxu0 0.0
    %4447 = vmatpush2.msra.mxu0 0.0
    %4448 = vmatprep.subr.mxu0 0.0
    %4449 = vmatpush2.msra.mxu0 0.0
    %4450 = vmatprep.subr.mxu0 0.0
    %4451 = vmatpush2.msra.mxu0 0.0
    %4452 = vmatprep.subr.mxu0 0.0
    %4453 = vmatpush2.msra.mxu0 0.0
    %4454 = vmatprep.subr.mxu0 0.0
    %4455 = vmatpush2.msra.mxu0 0.0
    %4456 = vmatprep.subr.mxu0 0.0
    %4457 = vmatpush2.msra.mxu0 0.0
    %4458 = vmatprep.subr.mxu0 0.0
    %4459 = vmatpush2.msra.mxu0 0.0
    %4460 = vmatprep.subr.mxu0 0.0
    %4461 = vmatpush2.msra.mxu0 0.0
    %4462 = vmatprep.subr.mxu0 0.0
    %4463 = vmatpush2.msra.mxu0 0.0
    %4464 = vmatprep.mubr.f32.mxu0 0.0
    %4465 = vmatmul.mubr.f32.gmra.mxu0 %v4389
    %v4466 = vpop.f32.mrf.mxu0
    %v4467 = vadd.f32 %v4381, %v4466
    %v4468 = vpop.f32.mrf.mxu0
    %v4469 = vadd.f32 %v4385, %v4468
    %4470 = vmatprep.mubr.f32.mxu0 0.0
    %4471 = vmatmul.mubr.f32.gmra.mxu0 %v4392
    %v4472 = vpop.f32.mrf.mxu0
    %v4473 = vadd.f32 %v4381, %v4472
    %v4474 = vpop.f32.mrf.mxu0
    %v4475 = vadd.f32 %v4385, %v4474
    %4476 = vmatprep.mubr.f32.mxu0 0.0
    %4477 = vmatmul.mubr.f32.gmra.mxu0 %v4395
    %v4478 = vpop.f32.mrf.mxu0
    %v4479 = vadd.f32 %v4381, %v4478
    %v4480 = vpop.f32.mrf.mxu0
    %v4481 = vadd.f32 %v4385, %v4480
    %4482 = vmatprep.mubr.f32.mxu0 0.0
    %4483 = vmatmul.mubr.f32.gmra.mxu0 %v4398
    %v4484 = vpop.f32.mrf.mxu0
    %v4485 = vadd.f32 %v4381, %v4484
    %v4486 = vpop.f32.mrf.mxu0
    %v4487 = vadd.f32 %v4385, %v4486
    %4488 = vdwg.mxu0
    %4491 = vrot.lane.b32.xlu0 %v4467, 64
    %v4492 = vpop.permute.xlu0 %4491
    %4493 = vrot.lane.b32.xlu0 %v4473, 64
    %v4494 = vpop.permute.xlu0 %4493
    %v4495 = vsel %vm346, %v4467, 0
    %v4497 = vsel %vm346, %v4473, 0
    %v4499 = vsel %vm346, %v4492, 0
    %v4501 = vsel %vm346, %v4494, 0
    %4503 = vmatprep.subr.mxu0 0.0
    %4504 = vmatpush1.xpose.msra.mxu0 0.0
    %4505 = vmatprep.subr.mxu0 0.0
    %4506 = vmatpush1.xpose.msra.mxu0 0.0
    %4507 = vmatprep.subr.mxu0 0.0
    %4508 = vmatpush1.xpose.msra.mxu0 0.0
    %4509 = vmatprep.subr.mxu0 0.0
    %4510 = vmatpush1.xpose.msra.mxu0 0.0
    %4511 = vmatprep.subr.mxu0 0.0
    %4512 = vmatpush1.xpose.msra.mxu0 0.0
    %4513 = vmatprep.subr.mxu0 0.0
    %4514 = vmatpush1.xpose.msra.mxu0 0.0
    %4515 = vmatprep.subr.mxu0 0.0
    %4516 = vmatpush1.xpose.msra.mxu0 0.0
    %4517 = vmatprep.subr.mxu0 0.0
    %4518 = vmatpush1.xpose.msra.mxu0 0.0
    %4519 = vmatprep.subr.mxu0 0.0
    %4520 = vmatpush1.xpose.msra.mxu0 0.0
    %4521 = vmatprep.subr.mxu0 0.0
    %4522 = vmatpush1.xpose.msra.mxu0 0.0
    %4523 = vmatprep.subr.mxu0 0.0
    %4524 = vmatpush1.xpose.msra.mxu0 0.0
    %4525 = vmatprep.subr.mxu0 0.0
    %4526 = vmatpush1.xpose.msra.mxu0 0.0
    %4527 = vmatprep.subr.mxu0 0.0
    %4528 = vmatpush1.xpose.msra.mxu0 0.0
    %4529 = vmatprep.subr.mxu0 0.0
    %4530 = vmatpush1.xpose.msra.mxu0 0.0
    %4531 = vmatprep.subr.mxu0 0.0
    %4532 = vmatpush1.xpose.msra.mxu0 %v4501
    %4533 = vmatprep.subr.mxu0 0.0
    %4534 = vmatpush1.xpose.msra.mxu0 %v4499
    %4535 = vmatprep.subr.mxu0 0.0
    %4536 = vmatpush2.xpose.msra.mxu0 0.0
    %4537 = vmatprep.subr.mxu0 0.0
    %4538 = vmatpush2.xpose.msra.mxu0 0.0
    %4539 = vmatprep.subr.mxu0 0.0
    %4540 = vmatpush2.xpose.msra.mxu0 0.0
    %4541 = vmatprep.subr.mxu0 0.0
    %4542 = vmatpush2.xpose.msra.mxu0 0.0
    %4543 = vmatprep.subr.mxu0 0.0
    %4544 = vmatpush2.xpose.msra.mxu0 0.0
    %4545 = vmatprep.subr.mxu0 0.0
    %4546 = vmatpush2.xpose.msra.mxu0 0.0
    %4547 = vmatprep.subr.mxu0 0.0
    %4548 = vmatpush2.xpose.msra.mxu0 0.0
    %4549 = vmatprep.subr.mxu0 0.0
    %4550 = vmatpush2.xpose.msra.mxu0 0.0
    %4551 = vmatprep.subr.mxu0 0.0
    %4552 = vmatpush2.xpose.msra.mxu0 0.0
    %4553 = vmatprep.subr.mxu0 0.0
    %4554 = vmatpush2.xpose.msra.mxu0 0.0
    %4555 = vmatprep.subr.mxu0 0.0
    %4556 = vmatpush2.xpose.msra.mxu0 0.0
    %4557 = vmatprep.subr.mxu0 0.0
    %4558 = vmatpush2.xpose.msra.mxu0 0.0
    %4559 = vmatprep.subr.mxu0 0.0
    %4560 = vmatpush2.xpose.msra.mxu0 0.0
    %4561 = vmatprep.subr.mxu0 0.0
    %4562 = vmatpush2.xpose.msra.mxu0 0.0
    %4563 = vmatprep.subr.mxu0 0.0
    %4564 = vmatpush2.xpose.msra.mxu0 0.0
    %4565 = vmatprep.subr.mxu0 0.0
    %4566 = vmatpush2.xpose.msra.mxu0 0.0
    %4567 = vmatprep.mubr.f32.mxu0 0.0
    %4568 = vmatmul.mubr.f32.gmra.mxu0 %v4495
    %v4569 = vpop.f32.mrf.mxu0
    %v4570 = vadd.f32 0.0, %v4569
    %v4571 = vpop.f32.mrf.mxu0
    %4572 = vmatprep.mubr.f32.mxu0 0.0
    %4573 = vmatmul.mubr.f32.gmra.mxu0 %v4497
    %v4574 = vpop.f32.mrf.mxu0
    %v4575 = vadd.f32 0.0, %v4574
    %v4576 = vpop.f32.mrf.mxu0
    %4577 = vdwg.mxu0
    %4580 = vrot.lane.b32.xlu0 %v4479, 64
    %v4581 = vpop.permute.xlu0 %4580
    %4582 = vrot.lane.b32.xlu0 %v4485, 64
    %v4583 = vpop.permute.xlu0 %4582
    %v4584 = vsel %vm346, %v4479, 0
    %v4586 = vsel %vm346, %v4485, 0
    %v4588 = vsel %vm346, %v4581, 0
    %v4590 = vsel %vm346, %v4583, 0
    %4592 = vmatprep.subr.mxu0 0.0
    %4593 = vmatpush1.xpose.msra.mxu0 0.0
    %4594 = vmatprep.subr.mxu0 0.0
    %4595 = vmatpush1.xpose.msra.mxu0 0.0
    %4596 = vmatprep.subr.mxu0 0.0
    %4597 = vmatpush1.xpose.msra.mxu0 0.0
    %4598 = vmatprep.subr.mxu0 0.0
    %4599 = vmatpush1.xpose.msra.mxu0 0.0
    %4600 = vmatprep.subr.mxu0 0.0
    %4601 = vmatpush1.xpose.msra.mxu0 0.0
    %4602 = vmatprep.subr.mxu0 0.0
    %4603 = vmatpush1.xpose.msra.mxu0 0.0
    %4604 = vmatprep.subr.mxu0 0.0
    %4605 = vmatpush1.xpose.msra.mxu0 0.0
    %4606 = vmatprep.subr.mxu0 0.0
    %4607 = vmatpush1.xpose.msra.mxu0 0.0
    %4608 = vmatprep.subr.mxu0 0.0
    %4609 = vmatpush1.xpose.msra.mxu0 0.0
    %4610 = vmatprep.subr.mxu0 0.0
    %4611 = vmatpush1.xpose.msra.mxu0 0.0
    %4612 = vmatprep.subr.mxu0 0.0
    %4613 = vmatpush1.xpose.msra.mxu0 0.0
    %4614 = vmatprep.subr.mxu0 0.0
    %4615 = vmatpush1.xpose.msra.mxu0 0.0
    %4616 = vmatprep.subr.mxu0 0.0
    %4617 = vmatpush1.xpose.msra.mxu0 0.0
    %4618 = vmatprep.subr.mxu0 0.0
    %4619 = vmatpush1.xpose.msra.mxu0 0.0
    %4620 = vmatprep.subr.mxu0 0.0
    %4621 = vmatpush1.xpose.msra.mxu0 %v4590
    %4622 = vmatprep.subr.mxu0 0.0
    %4623 = vmatpush1.xpose.msra.mxu0 %v4588
    %4624 = vmatprep.subr.mxu0 0.0
    %4625 = vmatpush2.xpose.msra.mxu0 0.0
    %4626 = vmatprep.subr.mxu0 0.0
    %4627 = vmatpush2.xpose.msra.mxu0 0.0
    %4628 = vmatprep.subr.mxu0 0.0
    %4629 = vmatpush2.xpose.msra.mxu0 0.0
    %4630 = vmatprep.subr.mxu0 0.0
    %4631 = vmatpush2.xpose.msra.mxu0 0.0
    %4632 = vmatprep.subr.mxu0 0.0
    %4633 = vmatpush2.xpose.msra.mxu0 0.0
    %4634 = vmatprep.subr.mxu0 0.0
    %4635 = vmatpush2.xpose.msra.mxu0 0.0
    %4636 = vmatprep.subr.mxu0 0.0
    %4637 = vmatpush2.xpose.msra.mxu0 0.0
    %4638 = vmatprep.subr.mxu0 0.0
    %4639 = vmatpush2.xpose.msra.mxu0 0.0
    %4640 = vmatprep.subr.mxu0 0.0
    %4641 = vmatpush2.xpose.msra.mxu0 0.0
    %4642 = vmatprep.subr.mxu0 0.0
    %4643 = vmatpush2.xpose.msra.mxu0 0.0
    %4644 = vmatprep.subr.mxu0 0.0
    %4645 = vmatpush2.xpose.msra.mxu0 0.0
    %4646 = vmatprep.subr.mxu0 0.0
    %4647 = vmatpush2.xpose.msra.mxu0 0.0
    %4648 = vmatprep.subr.mxu0 0.0
    %4649 = vmatpush2.xpose.msra.mxu0 0.0
    %4650 = vmatprep.subr.mxu0 0.0
    %4651 = vmatpush2.xpose.msra.mxu0 0.0
    %4652 = vmatprep.subr.mxu0 0.0
    %4653 = vmatpush2.xpose.msra.mxu0 0.0
    %4654 = vmatprep.subr.mxu0 0.0
    %4655 = vmatpush2.xpose.msra.mxu0 0.0
    %4656 = vmatprep.mubr.f32.mxu0 0.0
    %4657 = vmatmul.mubr.f32.gmra.mxu0 %v4584
    %v4658 = vpop.f32.mrf.mxu0
    %v4659 = vadd.f32 0.0, %v4658
    %v4660 = vpop.f32.mrf.mxu0
    %4661 = vmatprep.mubr.f32.mxu0 0.0
    %4662 = vmatmul.mubr.f32.gmra.mxu0 %v4586
    %v4663 = vpop.f32.mrf.mxu0
    %v4664 = vadd.f32 0.0, %v4663
    %v4665 = vpop.f32.mrf.mxu0
    %4666 = vdwg.mxu0
    %v4667 = vmul.f32 %v4570, 0.35355338
    %v4668 = vmul.f32 %v4575, 0.35355338
    %v4669 = vmul.f32 %v4659, 0.35355338
    %v4670 = vmul.f32 %v4664, 0.35355338
    %v4671 = vadd.f32 %v4667, %v528
    %v4672 = vadd.f32 %v4668, %v528
    %v4673 = vadd.f32 %v4669, %v532
    %v4674 = vadd.f32 %v4670, %v532
    %v4675 = vsel %vm539, %v4671, -inf
    %4676 = vmax.xlane.f32.xlu0 %v4675
    %v4677 = vpop.xlane.xlu0 %4676
    %v4678 = vsel %vm539, %v4672, -inf
    %4679 = vmax.xlane.f32.xlu0 %v4678
    %v4680 = vpop.xlane.xlu0 %4679
    %v4681 = vsel %vm539, %v4673, -inf
    %4682 = vmax.xlane.f32.xlu0 %v4681
    %v4683 = vpop.xlane.xlu0 %4682
    %v4684 = vsel %vm539, %v4674, -inf
    %4685 = vmax.xlane.f32.xlu0 %v4684
    %v4686 = vpop.xlane.xlu0 %4685
    %v4687 = vsub.f32 %v4671, %v4677
    %v4688 = vsub.f32 %v4672, %v4680
    %v4689 = vsub.f32 %v4673, %v4683
    %v4690 = vsub.f32 %v4674, %v4686
    %v4691 = vmul.f32 %v4687, 1.442695
    %v4692 = vpow.pop %v4691
    %v4693 = vmul.f32 %v4688, 1.442695
    %v4694 = vpow.pop %v4693
    %v4695 = vmul.f32 %v4689, 1.442695
    %v4696 = vpow.pop %v4695
    %v4697 = vmul.f32 %v4690, 1.442695
    %v4698 = vpow.pop %v4697
    %v4699 = vsel %vm539, %v4692, 0.0
    %4700 = vadd.xlane.f32.xlu0 %v4699
    %v4701 = vpop.xlane.xlu0 %4700
    %v4702 = vsel %vm539, %v4694, 0.0
    %4703 = vadd.xlane.f32.xlu0 %v4702
    %v4704 = vpop.xlane.xlu0 %4703
    %v4705 = vsel %vm539, %v4696, 0.0
    %4706 = vadd.xlane.f32.xlu0 %v4705
    %v4707 = vpop.xlane.xlu0 %4706
    %v4708 = vsel %vm539, %v4698, 0.0
    %4709 = vadd.xlane.f32.xlu0 %v4708
    %v4710 = vpop.xlane.xlu0 %4709
    %v4711 = vrcp.pop %v4701
    %v4712 = vmul.f32 %v4692, %v4711
    %v4713 = vrcp.pop %v4704
    %v4714 = vmul.f32 %v4694, %v4713
    %v4715 = vrcp.pop %v4707
    %v4716 = vmul.f32 %v4696, %v4715
    %v4717 = vrcp.pop %v4710
    %v4718 = vmul.f32 %v4698, %v4717
    %v4720 = vsel %vm539, %v4712, 0
    %v4723 = vsel %vm539, %v4714, 0
    %4725 = vmatprep.subr.mxu0 0.0
    %4726 = vmatpush1.msra.mxu0 0.0
    %4727 = vmatprep.subr.mxu0 0.0
    %4728 = vmatpush1.msra.mxu0 0.0
    %4729 = vmatprep.subr.mxu0 0.0
    %4730 = vmatpush1.msra.mxu0 0.0
    %4731 = vmatprep.subr.mxu0 0.0
    %4732 = vmatpush1.msra.mxu0 0.0
    %4733 = vmatprep.subr.mxu0 0.0
    %4734 = vmatpush1.msra.mxu0 0.0
    %4735 = vmatprep.subr.mxu0 0.0
    %4736 = vmatpush1.msra.mxu0 0.0
    %4737 = vmatprep.subr.mxu0 0.0
    %4738 = vmatpush1.msra.mxu0 0.0
    %4739 = vmatprep.subr.mxu0 0.0
    %4740 = vmatpush1.msra.mxu0 0.0
    %4741 = vmatprep.subr.mxu0 0.0
    %4742 = vmatpush1.msra.mxu0 0.0
    %4743 = vmatprep.subr.mxu0 0.0
    %4744 = vmatpush1.msra.mxu0 0.0
    %4745 = vmatprep.subr.mxu0 0.0
    %4746 = vmatpush1.msra.mxu0 0.0
    %4747 = vmatprep.subr.mxu0 0.0
    %4748 = vmatpush1.msra.mxu0 0.0
    %4749 = vmatprep.subr.mxu0 0.0
    %4750 = vmatpush1.msra.mxu0 0.0
    %4751 = vmatprep.subr.mxu0 0.0
    %4752 = vmatpush1.msra.mxu0 0.0
    %4753 = vmatprep.subr.mxu0 0.0
    %4754 = vmatpush1.msra.mxu0 %v4475
    %4755 = vmatprep.subr.mxu0 0.0
    %4756 = vmatpush1.msra.mxu0 %v4469
    %4757 = vmatprep.subr.mxu0 0.0
    %4758 = vmatpush2.msra.mxu0 0.0
    %4759 = vmatprep.subr.mxu0 0.0
    %4760 = vmatpush2.msra.mxu0 0.0
    %4761 = vmatprep.subr.mxu0 0.0
    %4762 = vmatpush2.msra.mxu0 0.0
    %4763 = vmatprep.subr.mxu0 0.0
    %4764 = vmatpush2.msra.mxu0 0.0
    %4765 = vmatprep.subr.mxu0 0.0
    %4766 = vmatpush2.msra.mxu0 0.0
    %4767 = vmatprep.subr.mxu0 0.0
    %4768 = vmatpush2.msra.mxu0 0.0
    %4769 = vmatprep.subr.mxu0 0.0
    %4770 = vmatpush2.msra.mxu0 0.0
    %4771 = vmatprep.subr.mxu0 0.0
    %4772 = vmatpush2.msra.mxu0 0.0
    %4773 = vmatprep.subr.mxu0 0.0
    %4774 = vmatpush2.msra.mxu0 0.0
    %4775 = vmatprep.subr.mxu0 0.0
    %4776 = vmatpush2.msra.mxu0 0.0
    %4777 = vmatprep.subr.mxu0 0.0
    %4778 = vmatpush2.msra.mxu0 0.0
    %4779 = vmatprep.subr.mxu0 0.0
    %4780 = vmatpush2.msra.mxu0 0.0
    %4781 = vmatprep.subr.mxu0 0.0
    %4782 = vmatpush2.msra.mxu0 0.0
    %4783 = vmatprep.subr.mxu0 0.0
    %4784 = vmatpush2.msra.mxu0 0.0
    %4785 = vmatprep.subr.mxu0 0.0
    %4786 = vmatpush2.msra.mxu0 0.0
    %4787 = vmatprep.subr.mxu0 0.0
    %4788 = vmatpush2.msra.mxu0 0.0
    %4789 = vmatprep.mubr.f32.mxu0 0.0
    %4790 = vmatmul.mubr.f32.gmra.mxu0 %v4720
    %v4791 = vpop.f32.mrf.mxu0
    %v4792 = vadd.f32 0.0, %v4791
    %v4793 = vpop.f32.mrf.mxu0
    %4794 = vmatprep.mubr.f32.mxu0 0.0
    %4795 = vmatmul.mubr.f32.gmra.mxu0 %v4723
    %v4796 = vpop.f32.mrf.mxu0
    %v4797 = vadd.f32 0.0, %v4796
    %v4798 = vpop.f32.mrf.mxu0
    %4799 = vdwg.mxu0
    %v4801 = vsel %vm539, %v4716, 0
    %v4804 = vsel %vm539, %v4718, 0
    %4806 = vmatprep.subr.mxu0 0.0
    %4807 = vmatpush1.msra.mxu0 0.0
    %4808 = vmatprep.subr.mxu0 0.0
    %4809 = vmatpush1.msra.mxu0 0.0
    %4810 = vmatprep.subr.mxu0 0.0
    %4811 = vmatpush1.msra.mxu0 0.0
    %4812 = vmatprep.subr.mxu0 0.0
    %4813 = vmatpush1.msra.mxu0 0.0
    %4814 = vmatprep.subr.mxu0 0.0
    %4815 = vmatpush1.msra.mxu0 0.0
    %4816 = vmatprep.subr.mxu0 0.0
    %4817 = vmatpush1.msra.mxu0 0.0
    %4818 = vmatprep.subr.mxu0 0.0
    %4819 = vmatpush1.msra.mxu0 0.0
    %4820 = vmatprep.subr.mxu0 0.0
    %4821 = vmatpush1.msra.mxu0 0.0
    %4822 = vmatprep.subr.mxu0 0.0
    %4823 = vmatpush1.msra.mxu0 0.0
    %4824 = vmatprep.subr.mxu0 0.0
    %4825 = vmatpush1.msra.mxu0 0.0
    %4826 = vmatprep.subr.mxu0 0.0
    %4827 = vmatpush1.msra.mxu0 0.0
    %4828 = vmatprep.subr.mxu0 0.0
    %4829 = vmatpush1.msra.mxu0 0.0
    %4830 = vmatprep.subr.mxu0 0.0
    %4831 = vmatpush1.msra.mxu0 0.0
    %4832 = vmatprep.subr.mxu0 0.0
    %4833 = vmatpush1.msra.mxu0 0.0
    %4834 = vmatprep.subr.mxu0 0.0
    %4835 = vmatpush1.msra.mxu0 %v4487
    %4836 = vmatprep.subr.mxu0 0.0
    %4837 = vmatpush1.msra.mxu0 %v4481
    %4838 = vmatprep.subr.mxu0 0.0
    %4839 = vmatpush2.msra.mxu0 0.0
    %4840 = vmatprep.subr.mxu0 0.0
    %4841 = vmatpush2.msra.mxu0 0.0
    %4842 = vmatprep.subr.mxu0 0.0
    %4843 = vmatpush2.msra.mxu0 0.0
    %4844 = vmatprep.subr.mxu0 0.0
    %4845 = vmatpush2.msra.mxu0 0.0
    %4846 = vmatprep.subr.mxu0 0.0
    %4847 = vmatpush2.msra.mxu0 0.0
    %4848 = vmatprep.subr.mxu0 0.0
    %4849 = vmatpush2.msra.mxu0 0.0
    %4850 = vmatprep.subr.mxu0 0.0
    %4851 = vmatpush2.msra.mxu0 0.0
    %4852 = vmatprep.subr.mxu0 0.0
    %4853 = vmatpush2.msra.mxu0 0.0
    %4854 = vmatprep.subr.mxu0 0.0
    %4855 = vmatpush2.msra.mxu0 0.0
    %4856 = vmatprep.subr.mxu0 0.0
    %4857 = vmatpush2.msra.mxu0 0.0
    %4858 = vmatprep.subr.mxu0 0.0
    %4859 = vmatpush2.msra.mxu0 0.0
    %4860 = vmatprep.subr.mxu0 0.0
    %4861 = vmatpush2.msra.mxu0 0.0
    %4862 = vmatprep.subr.mxu0 0.0
    %4863 = vmatpush2.msra.mxu0 0.0
    %4864 = vmatprep.subr.mxu0 0.0
    %4865 = vmatpush2.msra.mxu0 0.0
    %4866 = vmatprep.subr.mxu0 0.0
    %4867 = vmatpush2.msra.mxu0 0.0
    %4868 = vmatprep.subr.mxu0 0.0
    %4869 = vmatpush2.msra.mxu0 0.0
    %4870 = vmatprep.mubr.f32.mxu0 0.0
    %4871 = vmatmul.mubr.f32.gmra.mxu0 %v4801
    %v4872 = vpop.f32.mrf.mxu0
    %v4873 = vadd.f32 0.0, %v4872
    %v4874 = vpop.f32.mrf.mxu0
    %4875 = vmatprep.mubr.f32.mxu0 0.0
    %4876 = vmatmul.mubr.f32.gmra.mxu0 %v4804
    %v4877 = vpop.f32.mrf.mxu0
    %v4878 = vadd.f32 0.0, %v4877
    %v4879 = vpop.f32.mrf.mxu0
    %4880 = vdwg.mxu0
    %4881 = vst.msk [vmem:[#allocation2] sm:$0xff] %vm346, %v4792
    %4882 = vst.msk [vmem:[#allocation2 + $0x8] sm:$0xff] %vm346, %v4797
    %4883 = vst.msk [vmem:[#allocation2 + $0x10] sm:$0xff] %vm346, %v4873
    %4884 = vst.msk [vmem:[#allocation2 + $0x18] sm:$0xff] %vm346, %v4878
    %4885 = vrot.lane.b32.xlu0 %v4467, 120
    %v4886 = vpop.permute.xlu0 %4885
    %4887 = vrot.lane.b32.xlu0 %v4473, 120
    %v4888 = vpop.permute.xlu0 %4887
    %4889 = vrot.lane.b32.xlu0 %v4467, 56
    %v4890 = vpop.permute.xlu0 %4889
    %4891 = vrot.lane.b32.xlu0 %v4473, 56
    %v4892 = vpop.permute.xlu0 %4891
    %v4893 = vsel %vm346, %v4886, 0
    %v4895 = vsel %vm346, %v4888, 0
    %v4897 = vsel %vm346, %v4890, 0
    %v4899 = vsel %vm346, %v4892, 0
    %4901 = vmatprep.subr.mxu0 0.0
    %4902 = vmatpush1.xpose.msra.mxu0 0.0
    %4903 = vmatprep.subr.mxu0 0.0
    %4904 = vmatpush1.xpose.msra.mxu0 0.0
    %4905 = vmatprep.subr.mxu0 0.0
    %4906 = vmatpush1.xpose.msra.mxu0 0.0
    %4907 = vmatprep.subr.mxu0 0.0
    %4908 = vmatpush1.xpose.msra.mxu0 0.0
    %4909 = vmatprep.subr.mxu0 0.0
    %4910 = vmatpush1.xpose.msra.mxu0 0.0
    %4911 = vmatprep.subr.mxu0 0.0
    %4912 = vmatpush1.xpose.msra.mxu0 0.0
    %4913 = vmatprep.subr.mxu0 0.0
    %4914 = vmatpush1.xpose.msra.mxu0 0.0
    %4915 = vmatprep.subr.mxu0 0.0
    %4916 = vmatpush1.xpose.msra.mxu0 0.0
    %4917 = vmatprep.subr.mxu0 0.0
    %4918 = vmatpush1.xpose.msra.mxu0 0.0
    %4919 = vmatprep.subr.mxu0 0.0
    %4920 = vmatpush1.xpose.msra.mxu0 0.0
    %4921 = vmatprep.subr.mxu0 0.0
    %4922 = vmatpush1.xpose.msra.mxu0 0.0
    %4923 = vmatprep.subr.mxu0 0.0
    %4924 = vmatpush1.xpose.msra.mxu0 0.0
    %4925 = vmatprep.subr.mxu0 0.0
    %4926 = vmatpush1.xpose.msra.mxu0 0.0
    %4927 = vmatprep.subr.mxu0 0.0
    %4928 = vmatpush1.xpose.msra.mxu0 0.0
    %4929 = vmatprep.subr.mxu0 0.0
    %4930 = vmatpush1.xpose.msra.mxu0 %v4899
    %4931 = vmatprep.subr.mxu0 0.0
    %4932 = vmatpush1.xpose.msra.mxu0 %v4897
    %4933 = vmatprep.subr.mxu0 0.0
    %4934 = vmatpush2.xpose.msra.mxu0 0.0
    %4935 = vmatprep.subr.mxu0 0.0
    %4936 = vmatpush2.xpose.msra.mxu0 0.0
    %4937 = vmatprep.subr.mxu0 0.0
    %4938 = vmatpush2.xpose.msra.mxu0 0.0
    %4939 = vmatprep.subr.mxu0 0.0
    %4940 = vmatpush2.xpose.msra.mxu0 0.0
    %4941 = vmatprep.subr.mxu0 0.0
    %4942 = vmatpush2.xpose.msra.mxu0 0.0
    %4943 = vmatprep.subr.mxu0 0.0
    %4944 = vmatpush2.xpose.msra.mxu0 0.0
    %4945 = vmatprep.subr.mxu0 0.0
    %4946 = vmatpush2.xpose.msra.mxu0 0.0
    %4947 = vmatprep.subr.mxu0 0.0
    %4948 = vmatpush2.xpose.msra.mxu0 0.0
    %4949 = vmatprep.subr.mxu0 0.0
    %4950 = vmatpush2.xpose.msra.mxu0 0.0
    %4951 = vmatprep.subr.mxu0 0.0
    %4952 = vmatpush2.xpose.msra.mxu0 0.0
    %4953 = vmatprep.subr.mxu0 0.0
    %4954 = vmatpush2.xpose.msra.mxu0 0.0
    %4955 = vmatprep.subr.mxu0 0.0
    %4956 = vmatpush2.xpose.msra.mxu0 0.0
    %4957 = vmatprep.subr.mxu0 0.0
    %4958 = vmatpush2.xpose.msra.mxu0 0.0
    %4959 = vmatprep.subr.mxu0 0.0
    %4960 = vmatpush2.xpose.msra.mxu0 0.0
    %4961 = vmatprep.subr.mxu0 0.0
    %4962 = vmatpush2.xpose.msra.mxu0 0.0
    %4963 = vmatprep.subr.mxu0 0.0
    %4964 = vmatpush2.xpose.msra.mxu0 0.0
    %4965 = vmatprep.mubr.f32.mxu0 0.0
    %4966 = vmatmul.mubr.f32.gmra.mxu0 %v4893
    %v4967 = vpop.f32.mrf.mxu0
    %v4968 = vadd.f32 0.0, %v4967
    %v4969 = vpop.f32.mrf.mxu0
    %4970 = vmatprep.mubr.f32.mxu0 0.0
    %4971 = vmatmul.mubr.f32.gmra.mxu0 %v4895
    %v4972 = vpop.f32.mrf.mxu0
    %v4973 = vadd.f32 0.0, %v4972
    %v4974 = vpop.f32.mrf.mxu0
    %4975 = vdwg.mxu0
    %4976 = vrot.lane.b32.xlu0 %v4479, 120
    %v4977 = vpop.permute.xlu0 %4976
    %4978 = vrot.lane.b32.xlu0 %v4485, 120
    %v4979 = vpop.permute.xlu0 %4978
    %4980 = vrot.lane.b32.xlu0 %v4479, 56
    %v4981 = vpop.permute.xlu0 %4980
    %4982 = vrot.lane.b32.xlu0 %v4485, 56
    %v4983 = vpop.permute.xlu0 %4982
    %v4984 = vsel %vm346, %v4977, 0
    %v4986 = vsel %vm346, %v4979, 0
    %v4988 = vsel %vm346, %v4981, 0
    %v4990 = vsel %vm346, %v4983, 0
    %4992 = vmatprep.subr.mxu0 0.0
    %4993 = vmatpush1.xpose.msra.mxu0 0.0
    %4994 = vmatprep.subr.mxu0 0.0
    %4995 = vmatpush1.xpose.msra.mxu0 0.0
    %4996 = vmatprep.subr.mxu0 0.0
    %4997 = vmatpush1.xpose.msra.mxu0 0.0
    %4998 = vmatprep.subr.mxu0 0.0
    %4999 = vmatpush1.xpose.msra.mxu0 0.0
    %5000 = vmatprep.subr.mxu0 0.0
    %5001 = vmatpush1.xpose.msra.mxu0 0.0
    %5002 = vmatprep.subr.mxu0 0.0
    %5003 = vmatpush1.xpose.msra.mxu0 0.0
    %5004 = vmatprep.subr.mxu0 0.0
    %5005 = vmatpush1.xpose.msra.mxu0 0.0
    %5006 = vmatprep.subr.mxu0 0.0
    %5007 = vmatpush1.xpose.msra.mxu0 0.0
    %5008 = vmatprep.subr.mxu0 0.0
    %5009 = vmatpush1.xpose.msra.mxu0 0.0
    %5010 = vmatprep.subr.mxu0 0.0
    %5011 = vmatpush1.xpose.msra.mxu0 0.0
    %5012 = vmatprep.subr.mxu0 0.0
    %5013 = vmatpush1.xpose.msra.mxu0 0.0
    %5014 = vmatprep.subr.mxu0 0.0
    %5015 = vmatpush1.xpose.msra.mxu0 0.0
    %5016 = vmatprep.subr.mxu0 0.0
    %5017 = vmatpush1.xpose.msra.mxu0 0.0
    %5018 = vmatprep.subr.mxu0 0.0
    %5019 = vmatpush1.xpose.msra.mxu0 0.0
    %5020 = vmatprep.subr.mxu0 0.0
    %5021 = vmatpush1.xpose.msra.mxu0 %v4990
    %5022 = vmatprep.subr.mxu0 0.0
    %5023 = vmatpush1.xpose.msra.mxu0 %v4988
    %5024 = vmatprep.subr.mxu0 0.0
    %5025 = vmatpush2.xpose.msra.mxu0 0.0
    %5026 = vmatprep.subr.mxu0 0.0
    %5027 = vmatpush2.xpose.msra.mxu0 0.0
    %5028 = vmatprep.subr.mxu0 0.0
    %5029 = vmatpush2.xpose.msra.mxu0 0.0
    %5030 = vmatprep.subr.mxu0 0.0
    %5031 = vmatpush2.xpose.msra.mxu0 0.0
    %5032 = vmatprep.subr.mxu0 0.0
    %5033 = vmatpush2.xpose.msra.mxu0 0.0
    %5034 = vmatprep.subr.mxu0 0.0
    %5035 = vmatpush2.xpose.msra.mxu0 0.0
    %5036 = vmatprep.subr.mxu0 0.0
    %5037 = vmatpush2.xpose.msra.mxu0 0.0
    %5038 = vmatprep.subr.mxu0 0.0
    %5039 = vmatpush2.xpose.msra.mxu0 0.0
    %5040 = vmatprep.subr.mxu0 0.0
    %5041 = vmatpush2.xpose.msra.mxu0 0.0
    %5042 = vmatprep.subr.mxu0 0.0
    %5043 = vmatpush2.xpose.msra.mxu0 0.0
    %5044 = vmatprep.subr.mxu0 0.0
    %5045 = vmatpush2.xpose.msra.mxu0 0.0
    %5046 = vmatprep.subr.mxu0 0.0
    %5047 = vmatpush2.xpose.msra.mxu0 0.0
    %5048 = vmatprep.subr.mxu0 0.0
    %5049 = vmatpush2.xpose.msra.mxu0 0.0
    %5050 = vmatprep.subr.mxu0 0.0
    %5051 = vmatpush2.xpose.msra.mxu0 0.0
    %5052 = vmatprep.subr.mxu0 0.0
    %5053 = vmatpush2.xpose.msra.mxu0 0.0
    %5054 = vmatprep.subr.mxu0 0.0
    %5055 = vmatpush2.xpose.msra.mxu0 0.0
    %5056 = vmatprep.mubr.f32.mxu0 0.0
    %5057 = vmatmul.mubr.f32.gmra.mxu0 %v4984
    %v5058 = vpop.f32.mrf.mxu0
    %v5059 = vadd.f32 0.0, %v5058
    %v5060 = vpop.f32.mrf.mxu0
    %5061 = vmatprep.mubr.f32.mxu0 0.0
    %5062 = vmatmul.mubr.f32.gmra.mxu0 %v4986
    %v5063 = vpop.f32.mrf.mxu0
    %v5064 = vadd.f32 0.0, %v5063
    %v5065 = vpop.f32.mrf.mxu0
    %5066 = vdwg.mxu0
    %v5067 = vmul.f32 %v4968, 0.35355338
    %v5068 = vmul.f32 %v4973, 0.35355338
    %v5069 = vmul.f32 %v5059, 0.35355338
    %v5070 = vmul.f32 %v5064, 0.35355338
    %v5071 = vadd.f32 %v5067, %v528
    %v5072 = vadd.f32 %v5068, %v528
    %v5073 = vadd.f32 %v5069, %v532
    %v5074 = vadd.f32 %v5070, %v532
    %v5075 = vsel %vm539, %v5071, -inf
    %5076 = vmax.xlane.f32.xlu0 %v5075
    %v5077 = vpop.xlane.xlu0 %5076
    %v5078 = vsel %vm539, %v5072, -inf
    %5079 = vmax.xlane.f32.xlu0 %v5078
    %v5080 = vpop.xlane.xlu0 %5079
    %v5081 = vsel %vm539, %v5073, -inf
    %5082 = vmax.xlane.f32.xlu0 %v5081
    %v5083 = vpop.xlane.xlu0 %5082
    %v5084 = vsel %vm539, %v5074, -inf
    %5085 = vmax.xlane.f32.xlu0 %v5084
    %v5086 = vpop.xlane.xlu0 %5085
    %v5087 = vsub.f32 %v5071, %v5077
    %v5088 = vsub.f32 %v5072, %v5080
    %v5089 = vsub.f32 %v5073, %v5083
    %v5090 = vsub.f32 %v5074, %v5086
    %v5091 = vmul.f32 %v5087, 1.442695
    %v5092 = vpow.pop %v5091
    %v5093 = vmul.f32 %v5088, 1.442695
    %v5094 = vpow.pop %v5093
    %v5095 = vmul.f32 %v5089, 1.442695
    %v5096 = vpow.pop %v5095
    %v5097 = vmul.f32 %v5090, 1.442695
    %v5098 = vpow.pop %v5097
    %v5099 = vsel %vm539, %v5092, 0.0
    %5100 = vadd.xlane.f32.xlu0 %v5099
    %v5101 = vpop.xlane.xlu0 %5100
    %v5102 = vsel %vm539, %v5094, 0.0
    %5103 = vadd.xlane.f32.xlu0 %v5102
    %v5104 = vpop.xlane.xlu0 %5103
    %v5105 = vsel %vm539, %v5096, 0.0
    %5106 = vadd.xlane.f32.xlu0 %v5105
    %v5107 = vpop.xlane.xlu0 %5106
    %v5108 = vsel %vm539, %v5098, 0.0
    %5109 = vadd.xlane.f32.xlu0 %v5108
    %v5110 = vpop.xlane.xlu0 %5109
    %v5111 = vrcp.pop %v5101
    %v5112 = vmul.f32 %v5092, %v5111
    %v5113 = vrcp.pop %v5104
    %v5114 = vmul.f32 %v5094, %v5113
    %v5115 = vrcp.pop %v5107
    %v5116 = vmul.f32 %v5096, %v5115
    %v5117 = vrcp.pop %v5110
    %v5118 = vmul.f32 %v5098, %v5117
    %5121 = vrot.lane.b32.xlu0 %v4469, 120
    %v5122 = vpop.permute.xlu0 %5121
    %5123 = vrot.lane.b32.xlu0 %v4475, 120
    %v5124 = vpop.permute.xlu0 %5123
    %v5128 = vsel %vm539, %v5112, 0
    %v5131 = vsel %vm539, %v5114, 0
    %5133 = vmatprep.subr.mxu0 0.0
    %5134 = vmatpush1.msra.mxu0 0.0
    %5135 = vmatprep.subr.mxu0 0.0
    %5136 = vmatpush1.msra.mxu0 0.0
    %5137 = vmatprep.subr.mxu0 0.0
    %5138 = vmatpush1.msra.mxu0 0.0
    %5139 = vmatprep.subr.mxu0 0.0
    %5140 = vmatpush1.msra.mxu0 0.0
    %5141 = vmatprep.subr.mxu0 0.0
    %5142 = vmatpush1.msra.mxu0 0.0
    %5143 = vmatprep.subr.mxu0 0.0
    %5144 = vmatpush1.msra.mxu0 0.0
    %5145 = vmatprep.subr.mxu0 0.0
    %5146 = vmatpush1.msra.mxu0 0.0
    %5147 = vmatprep.subr.mxu0 0.0
    %5148 = vmatpush1.msra.mxu0 0.0
    %5149 = vmatprep.subr.mxu0 0.0
    %5150 = vmatpush1.msra.mxu0 0.0
    %5151 = vmatprep.subr.mxu0 0.0
    %5152 = vmatpush1.msra.mxu0 0.0
    %5153 = vmatprep.subr.mxu0 0.0
    %5154 = vmatpush1.msra.mxu0 0.0
    %5155 = vmatprep.subr.mxu0 0.0
    %5156 = vmatpush1.msra.mxu0 0.0
    %5157 = vmatprep.subr.mxu0 0.0
    %5158 = vmatpush1.msra.mxu0 0.0
    %5159 = vmatprep.subr.mxu0 0.0
    %5160 = vmatpush1.msra.mxu0 0.0
    %5161 = vmatprep.subr.mxu0 0.0
    %5162 = vmatpush1.msra.mxu0 %v5124
    %5163 = vmatprep.subr.mxu0 0.0
    %5164 = vmatpush1.msra.mxu0 %v5122
    %5165 = vmatprep.subr.mxu0 0.0
    %5166 = vmatpush2.msra.mxu0 0.0
    %5167 = vmatprep.subr.mxu0 0.0
    %5168 = vmatpush2.msra.mxu0 0.0
    %5169 = vmatprep.subr.mxu0 0.0
    %5170 = vmatpush2.msra.mxu0 0.0
    %5171 = vmatprep.subr.mxu0 0.0
    %5172 = vmatpush2.msra.mxu0 0.0
    %5173 = vmatprep.subr.mxu0 0.0
    %5174 = vmatpush2.msra.mxu0 0.0
    %5175 = vmatprep.subr.mxu0 0.0
    %5176 = vmatpush2.msra.mxu0 0.0
    %5177 = vmatprep.subr.mxu0 0.0
    %5178 = vmatpush2.msra.mxu0 0.0
    %5179 = vmatprep.subr.mxu0 0.0
    %5180 = vmatpush2.msra.mxu0 0.0
    %5181 = vmatprep.subr.mxu0 0.0
    %5182 = vmatpush2.msra.mxu0 0.0
    %5183 = vmatprep.subr.mxu0 0.0
    %5184 = vmatpush2.msra.mxu0 0.0
    %5185 = vmatprep.subr.mxu0 0.0
    %5186 = vmatpush2.msra.mxu0 0.0
    %5187 = vmatprep.subr.mxu0 0.0
    %5188 = vmatpush2.msra.mxu0 0.0
    %5189 = vmatprep.subr.mxu0 0.0
    %5190 = vmatpush2.msra.mxu0 0.0
    %5191 = vmatprep.subr.mxu0 0.0
    %5192 = vmatpush2.msra.mxu0 0.0
    %5193 = vmatprep.subr.mxu0 0.0
    %5194 = vmatpush2.msra.mxu0 0.0
    %5195 = vmatprep.subr.mxu0 0.0
    %5196 = vmatpush2.msra.mxu0 0.0
    %5197 = vmatprep.mubr.f32.mxu0 0.0
    %5198 = vmatmul.mubr.f32.gmra.mxu0 %v5128
    %v5199 = vpop.f32.mrf.mxu0
    %v5200 = vadd.f32 0.0, %v5199
    %v5201 = vpop.f32.mrf.mxu0
    %5202 = vmatprep.mubr.f32.mxu0 0.0
    %5203 = vmatmul.mubr.f32.gmra.mxu0 %v5131
    %v5204 = vpop.f32.mrf.mxu0
    %v5205 = vadd.f32 0.0, %v5204
    %v5206 = vpop.f32.mrf.mxu0
    %5207 = vdwg.mxu0
    %5210 = vrot.lane.b32.xlu0 %v4481, 120
    %v5211 = vpop.permute.xlu0 %5210
    %5212 = vrot.lane.b32.xlu0 %v4487, 120
    %v5213 = vpop.permute.xlu0 %5212
    %v5217 = vsel %vm539, %v5116, 0
    %v5220 = vsel %vm539, %v5118, 0
    %5222 = vmatprep.subr.mxu0 0.0
    %5223 = vmatpush1.msra.mxu0 0.0
    %5224 = vmatprep.subr.mxu0 0.0
    %5225 = vmatpush1.msra.mxu0 0.0
    %5226 = vmatprep.subr.mxu0 0.0
    %5227 = vmatpush1.msra.mxu0 0.0
    %5228 = vmatprep.subr.mxu0 0.0
    %5229 = vmatpush1.msra.mxu0 0.0
    %5230 = vmatprep.subr.mxu0 0.0
    %5231 = vmatpush1.msra.mxu0 0.0
    %5232 = vmatprep.subr.mxu0 0.0
    %5233 = vmatpush1.msra.mxu0 0.0
    %5234 = vmatprep.subr.mxu0 0.0
    %5235 = vmatpush1.msra.mxu0 0.0
    %5236 = vmatprep.subr.mxu0 0.0
    %5237 = vmatpush1.msra.mxu0 0.0
    %5238 = vmatprep.subr.mxu0 0.0
    %5239 = vmatpush1.msra.mxu0 0.0
    %5240 = vmatprep.subr.mxu0 0.0
    %5241 = vmatpush1.msra.mxu0 0.0
    %5242 = vmatprep.subr.mxu0 0.0
    %5243 = vmatpush1.msra.mxu0 0.0
    %5244 = vmatprep.subr.mxu0 0.0
    %5245 = vmatpush1.msra.mxu0 0.0
    %5246 = vmatprep.subr.mxu0 0.0
    %5247 = vmatpush1.msra.mxu0 0.0
    %5248 = vmatprep.subr.mxu0 0.0
    %5249 = vmatpush1.msra.mxu0 0.0
    %5250 = vmatprep.subr.mxu0 0.0
    %5251 = vmatpush1.msra.mxu0 %v5213
    %5252 = vmatprep.subr.mxu0 0.0
    %5253 = vmatpush1.msra.mxu0 %v5211
    %5254 = vmatprep.subr.mxu0 0.0
    %5255 = vmatpush2.msra.mxu0 0.0
    %5256 = vmatprep.subr.mxu0 0.0
    %5257 = vmatpush2.msra.mxu0 0.0
    %5258 = vmatprep.subr.mxu0 0.0
    %5259 = vmatpush2.msra.mxu0 0.0
    %5260 = vmatprep.subr.mxu0 0.0
    %5261 = vmatpush2.msra.mxu0 0.0
    %5262 = vmatprep.subr.mxu0 0.0
    %5263 = vmatpush2.msra.mxu0 0.0
    %5264 = vmatprep.subr.mxu0 0.0
    %5265 = vmatpush2.msra.mxu0 0.0
    %5266 = vmatprep.subr.mxu0 0.0
    %5267 = vmatpush2.msra.mxu0 0.0
    %5268 = vmatprep.subr.mxu0 0.0
    %5269 = vmatpush2.msra.mxu0 0.0
    %5270 = vmatprep.subr.mxu0 0.0
    %5271 = vmatpush2.msra.mxu0 0.0
    %5272 = vmatprep.subr.mxu0 0.0
    %5273 = vmatpush2.msra.mxu0 0.0
    %5274 = vmatprep.subr.mxu0 0.0
    %5275 = vmatpush2.msra.mxu0 0.0
    %5276 = vmatprep.subr.mxu0 0.0
    %5277 = vmatpush2.msra.mxu0 0.0
    %5278 = vmatprep.subr.mxu0 0.0
    %5279 = vmatpush2.msra.mxu0 0.0
    %5280 = vmatprep.subr.mxu0 0.0
    %5281 = vmatpush2.msra.mxu0 0.0
    %5282 = vmatprep.subr.mxu0 0.0
    %5283 = vmatpush2.msra.mxu0 0.0
    %5284 = vmatprep.subr.mxu0 0.0
    %5285 = vmatpush2.msra.mxu0 0.0
    %5286 = vmatprep.mubr.f32.mxu0 0.0
    %5287 = vmatmul.mubr.f32.gmra.mxu0 %v5217
    %v5288 = vpop.f32.mrf.mxu0
    %v5289 = vadd.f32 0.0, %v5288
    %v5290 = vpop.f32.mrf.mxu0
    %5291 = vmatprep.mubr.f32.mxu0 0.0
    %5292 = vmatmul.mubr.f32.gmra.mxu0 %v5220
    %v5293 = vpop.f32.mrf.mxu0
    %v5294 = vadd.f32 0.0, %v5293
    %v5295 = vpop.f32.mrf.mxu0
    %5296 = vdwg.mxu0
    %5301 = vrot.lane.b32.xlu0 %v5200, 8
    %v5302 = vpop.permute.xlu0 %5301
    %5303 = vrot.lane.b32.xlu0 %v5205, 8
    %v5304 = vpop.permute.xlu0 %5303
    %5305 = vrot.lane.b32.xlu0 %v5289, 8
    %v5306 = vpop.permute.xlu0 %5305
    %5307 = vrot.lane.b32.xlu0 %v5294, 8
    %v5308 = vpop.permute.xlu0 %5307
    %5313 = vst.msk [vmem:[#allocation2] sm:$0xff] %vm1178, %v5302
    %5314 = vst.msk [vmem:[#allocation2 + $0x8] sm:$0xff] %vm1178, %v5304
    %5315 = vst.msk [vmem:[#allocation2 + $0x10] sm:$0xff] %vm1178, %v5306
    %5316 = vst.msk [vmem:[#allocation2 + $0x18] sm:$0xff] %vm1178, %v5308
    %5317 = vrot.lane.b32.xlu0 %v4467, 112
    %v5318 = vpop.permute.xlu0 %5317
    %5319 = vrot.lane.b32.xlu0 %v4473, 112
    %v5320 = vpop.permute.xlu0 %5319
    %5321 = vrot.lane.b32.xlu0 %v4467, 48
    %v5322 = vpop.permute.xlu0 %5321
    %5323 = vrot.lane.b32.xlu0 %v4473, 48
    %v5324 = vpop.permute.xlu0 %5323
    %v5325 = vsel %vm346, %v5318, 0
    %v5327 = vsel %vm346, %v5320, 0
    %v5329 = vsel %vm346, %v5322, 0
    %v5331 = vsel %vm346, %v5324, 0
    %5333 = vmatprep.subr.mxu0 0.0
    %5334 = vmatpush1.xpose.msra.mxu0 0.0
    %5335 = vmatprep.subr.mxu0 0.0
    %5336 = vmatpush1.xpose.msra.mxu0 0.0
    %5337 = vmatprep.subr.mxu0 0.0
    %5338 = vmatpush1.xpose.msra.mxu0 0.0
    %5339 = vmatprep.subr.mxu0 0.0
    %5340 = vmatpush1.xpose.msra.mxu0 0.0
    %5341 = vmatprep.subr.mxu0 0.0
    %5342 = vmatpush1.xpose.msra.mxu0 0.0
    %5343 = vmatprep.subr.mxu0 0.0
    %5344 = vmatpush1.xpose.msra.mxu0 0.0
    %5345 = vmatprep.subr.mxu0 0.0
    %5346 = vmatpush1.xpose.msra.mxu0 0.0
    %5347 = vmatprep.subr.mxu0 0.0
    %5348 = vmatpush1.xpose.msra.mxu0 0.0
    %5349 = vmatprep.subr.mxu0 0.0
    %5350 = vmatpush1.xpose.msra.mxu0 0.0
    %5351 = vmatprep.subr.mxu0 0.0
    %5352 = vmatpush1.xpose.msra.mxu0 0.0
    %5353 = vmatprep.subr.mxu0 0.0
    %5354 = vmatpush1.xpose.msra.mxu0 0.0
    %5355 = vmatprep.subr.mxu0 0.0
    %5356 = vmatpush1.xpose.msra.mxu0 0.0
    %5357 = vmatprep.subr.mxu0 0.0
    %5358 = vmatpush1.xpose.msra.mxu0 0.0
    %5359 = vmatprep.subr.mxu0 0.0
    %5360 = vmatpush1.xpose.msra.mxu0 0.0
    %5361 = vmatprep.subr.mxu0 0.0
    %5362 = vmatpush1.xpose.msra.mxu0 %v5331
    %5363 = vmatprep.subr.mxu0 0.0
    %5364 = vmatpush1.xpose.msra.mxu0 %v5329
    %5365 = vmatprep.subr.mxu0 0.0
    %5366 = vmatpush2.xpose.msra.mxu0 0.0
    %5367 = vmatprep.subr.mxu0 0.0
    %5368 = vmatpush2.xpose.msra.mxu0 0.0
    %5369 = vmatprep.subr.mxu0 0.0
    %5370 = vmatpush2.xpose.msra.mxu0 0.0
    %5371 = vmatprep.subr.mxu0 0.0
    %5372 = vmatpush2.xpose.msra.mxu0 0.0
    %5373 = vmatprep.subr.mxu0 0.0
    %5374 = vmatpush2.xpose.msra.mxu0 0.0
    %5375 = vmatprep.subr.mxu0 0.0
    %5376 = vmatpush2.xpose.msra.mxu0 0.0
    %5377 = vmatprep.subr.mxu0 0.0
    %5378 = vmatpush2.xpose.msra.mxu0 0.0
    %5379 = vmatprep.subr.mxu0 0.0
    %5380 = vmatpush2.xpose.msra.mxu0 0.0
    %5381 = vmatprep.subr.mxu0 0.0
    %5382 = vmatpush2.xpose.msra.mxu0 0.0
    %5383 = vmatprep.subr.mxu0 0.0
    %5384 = vmatpush2.xpose.msra.mxu0 0.0
    %5385 = vmatprep.subr.mxu0 0.0
    %5386 = vmatpush2.xpose.msra.mxu0 0.0
    %5387 = vmatprep.subr.mxu0 0.0
    %5388 = vmatpush2.xpose.msra.mxu0 0.0
    %5389 = vmatprep.subr.mxu0 0.0
    %5390 = vmatpush2.xpose.msra.mxu0 0.0
    %5391 = vmatprep.subr.mxu0 0.0
    %5392 = vmatpush2.xpose.msra.mxu0 0.0
    %5393 = vmatprep.subr.mxu0 0.0
    %5394 = vmatpush2.xpose.msra.mxu0 0.0
    %5395 = vmatprep.subr.mxu0 0.0
    %5396 = vmatpush2.xpose.msra.mxu0 0.0
    %5397 = vmatprep.mubr.f32.mxu0 0.0
    %5398 = vmatmul.mubr.f32.gmra.mxu0 %v5325
    %v5399 = vpop.f32.mrf.mxu0
    %v5400 = vadd.f32 0.0, %v5399
    %v5401 = vpop.f32.mrf.mxu0
    %5402 = vmatprep.mubr.f32.mxu0 0.0
    %5403 = vmatmul.mubr.f32.gmra.mxu0 %v5327
    %v5404 = vpop.f32.mrf.mxu0
    %v5405 = vadd.f32 0.0, %v5404
    %v5406 = vpop.f32.mrf.mxu0
    %5407 = vdwg.mxu0
    %5408 = vrot.lane.b32.xlu0 %v4479, 112
    %v5409 = vpop.permute.xlu0 %5408
    %5410 = vrot.lane.b32.xlu0 %v4485, 112
    %v5411 = vpop.permute.xlu0 %5410
    %5412 = vrot.lane.b32.xlu0 %v4479, 48
    %v5413 = vpop.permute.xlu0 %5412
    %5414 = vrot.lane.b32.xlu0 %v4485, 48
    %v5415 = vpop.permute.xlu0 %5414
    %v5416 = vsel %vm346, %v5409, 0
    %v5418 = vsel %vm346, %v5411, 0
    %v5420 = vsel %vm346, %v5413, 0
    %v5422 = vsel %vm346, %v5415, 0
    %5424 = vmatprep.subr.mxu0 0.0
    %5425 = vmatpush1.xpose.msra.mxu0 0.0
    %5426 = vmatprep.subr.mxu0 0.0
    %5427 = vmatpush1.xpose.msra.mxu0 0.0
    %5428 = vmatprep.subr.mxu0 0.0
    %5429 = vmatpush1.xpose.msra.mxu0 0.0
    %5430 = vmatprep.subr.mxu0 0.0
    %5431 = vmatpush1.xpose.msra.mxu0 0.0
    %5432 = vmatprep.subr.mxu0 0.0
    %5433 = vmatpush1.xpose.msra.mxu0 0.0
    %5434 = vmatprep.subr.mxu0 0.0
    %5435 = vmatpush1.xpose.msra.mxu0 0.0
    %5436 = vmatprep.subr.mxu0 0.0
    %5437 = vmatpush1.xpose.msra.mxu0 0.0
    %5438 = vmatprep.subr.mxu0 0.0
    %5439 = vmatpush1.xpose.msra.mxu0 0.0
    %5440 = vmatprep.subr.mxu0 0.0
    %5441 = vmatpush1.xpose.msra.mxu0 0.0
    %5442 = vmatprep.subr.mxu0 0.0
    %5443 = vmatpush1.xpose.msra.mxu0 0.0
    %5444 = vmatprep.subr.mxu0 0.0
    %5445 = vmatpush1.xpose.msra.mxu0 0.0
    %5446 = vmatprep.subr.mxu0 0.0
    %5447 = vmatpush1.xpose.msra.mxu0 0.0
    %5448 = vmatprep.subr.mxu0 0.0
    %5449 = vmatpush1.xpose.msra.mxu0 0.0
    %5450 = vmatprep.subr.mxu0 0.0
    %5451 = vmatpush1.xpose.msra.mxu0 0.0
    %5452 = vmatprep.subr.mxu0 0.0
    %5453 = vmatpush1.xpose.msra.mxu0 %v5422
    %5454 = vmatprep.subr.mxu0 0.0
    %5455 = vmatpush1.xpose.msra.mxu0 %v5420
    %5456 = vmatprep.subr.mxu0 0.0
    %5457 = vmatpush2.xpose.msra.mxu0 0.0
    %5458 = vmatprep.subr.mxu0 0.0
    %5459 = vmatpush2.xpose.msra.mxu0 0.0
    %5460 = vmatprep.subr.mxu0 0.0
    %5461 = vmatpush2.xpose.msra.mxu0 0.0
    %5462 = vmatprep.subr.mxu0 0.0
    %5463 = vmatpush2.xpose.msra.mxu0 0.0
    %5464 = vmatprep.subr.mxu0 0.0
    %5465 = vmatpush2.xpose.msra.mxu0 0.0
    %5466 = vmatprep.subr.mxu0 0.0
    %5467 = vmatpush2.xpose.msra.mxu0 0.0
    %5468 = vmatprep.subr.mxu0 0.0
    %5469 = vmatpush2.xpose.msra.mxu0 0.0
    %5470 = vmatprep.subr.mxu0 0.0
    %5471 = vmatpush2.xpose.msra.mxu0 0.0
    %5472 = vmatprep.subr.mxu0 0.0
    %5473 = vmatpush2.xpose.msra.mxu0 0.0
    %5474 = vmatprep.subr.mxu0 0.0
    %5475 = vmatpush2.xpose.msra.mxu0 0.0
    %5476 = vmatprep.subr.mxu0 0.0
    %5477 = vmatpush2.xpose.msra.mxu0 0.0
    %5478 = vmatprep.subr.mxu0 0.0
    %5479 = vmatpush2.xpose.msra.mxu0 0.0
    %5480 = vmatprep.subr.mxu0 0.0
    %5481 = vmatpush2.xpose.msra.mxu0 0.0
    %5482 = vmatprep.subr.mxu0 0.0
    %5483 = vmatpush2.xpose.msra.mxu0 0.0
    %5484 = vmatprep.subr.mxu0 0.0
    %5485 = vmatpush2.xpose.msra.mxu0 0.0
    %5486 = vmatprep.subr.mxu0 0.0
    %5487 = vmatpush2.xpose.msra.mxu0 0.0
    %5488 = vmatprep.mubr.f32.mxu0 0.0
    %5489 = vmatmul.mubr.f32.gmra.mxu0 %v5416
    %v5490 = vpop.f32.mrf.mxu0
    %v5491 = vadd.f32 0.0, %v5490
    %v5492 = vpop.f32.mrf.mxu0
    %5493 = vmatprep.mubr.f32.mxu0 0.0
    %5494 = vmatmul.mubr.f32.gmra.mxu0 %v5418
    %v5495 = vpop.f32.mrf.mxu0
    %v5496 = vadd.f32 0.0, %v5495
    %v5497 = vpop.f32.mrf.mxu0
    %5498 = vdwg.mxu0
    %v5499 = vmul.f32 %v5400, 0.35355338
    %v5500 = vmul.f32 %v5405, 0.35355338
    %v5501 = vmul.f32 %v5491, 0.35355338
    %v5502 = vmul.f32 %v5496, 0.35355338
    %v5503 = vadd.f32 %v5499, %v528
    %v5504 = vadd.f32 %v5500, %v528
    %v5505 = vadd.f32 %v5501, %v532
    %v5506 = vadd.f32 %v5502, %v532
    %v5507 = vsel %vm539, %v5503, -inf
    %5508 = vmax.xlane.f32.xlu0 %v5507
    %v5509 = vpop.xlane.xlu0 %5508
    %v5510 = vsel %vm539, %v5504, -inf
    %5511 = vmax.xlane.f32.xlu0 %v5510
    %v5512 = vpop.xlane.xlu0 %5511
    %v5513 = vsel %vm539, %v5505, -inf
    %5514 = vmax.xlane.f32.xlu0 %v5513
    %v5515 = vpop.xlane.xlu0 %5514
    %v5516 = vsel %vm539, %v5506, -inf
    %5517 = vmax.xlane.f32.xlu0 %v5516
    %v5518 = vpop.xlane.xlu0 %5517
    %v5519 = vsub.f32 %v5503, %v5509
    %v5520 = vsub.f32 %v5504, %v5512
    %v5521 = vsub.f32 %v5505, %v5515
    %v5522 = vsub.f32 %v5506, %v5518
    %v5523 = vmul.f32 %v5519, 1.442695
    %v5524 = vpow.pop %v5523
    %v5525 = vmul.f32 %v5520, 1.442695
    %v5526 = vpow.pop %v5525
    %v5527 = vmul.f32 %v5521, 1.442695
    %v5528 = vpow.pop %v5527
    %v5529 = vmul.f32 %v5522, 1.442695
    %v5530 = vpow.pop %v5529
    %v5531 = vsel %vm539, %v5524, 0.0
    %5532 = vadd.xlane.f32.xlu0 %v5531
    %v5533 = vpop.xlane.xlu0 %5532
    %v5534 = vsel %vm539, %v5526, 0.0
    %5535 = vadd.xlane.f32.xlu0 %v5534
    %v5536 = vpop.xlane.xlu0 %5535
    %v5537 = vsel %vm539, %v5528, 0.0
    %5538 = vadd.xlane.f32.xlu0 %v5537
    %v5539 = vpop.xlane.xlu0 %5538
    %v5540 = vsel %vm539, %v5530, 0.0
    %5541 = vadd.xlane.f32.xlu0 %v5540
    %v5542 = vpop.xlane.xlu0 %5541
    %v5543 = vrcp.pop %v5533
    %v5544 = vmul.f32 %v5524, %v5543
    %v5545 = vrcp.pop %v5536
    %v5546 = vmul.f32 %v5526, %v5545
    %v5547 = vrcp.pop %v5539
    %v5548 = vmul.f32 %v5528, %v5547
    %v5549 = vrcp.pop %v5542
    %v5550 = vmul.f32 %v5530, %v5549
    %5551 = vrot.lane.b32.xlu0 %v4469, 112
    %v5552 = vpop.permute.xlu0 %5551
    %5553 = vrot.lane.b32.xlu0 %v4475, 112
    %v5554 = vpop.permute.xlu0 %5553
    %v5558 = vsel %vm539, %v5544, 0
    %v5561 = vsel %vm539, %v5546, 0
    %5563 = vmatprep.subr.mxu0 0.0
    %5564 = vmatpush1.msra.mxu0 0.0
    %5565 = vmatprep.subr.mxu0 0.0
    %5566 = vmatpush1.msra.mxu0 0.0
    %5567 = vmatprep.subr.mxu0 0.0
    %5568 = vmatpush1.msra.mxu0 0.0
    %5569 = vmatprep.subr.mxu0 0.0
    %5570 = vmatpush1.msra.mxu0 0.0
    %5571 = vmatprep.subr.mxu0 0.0
    %5572 = vmatpush1.msra.mxu0 0.0
    %5573 = vmatprep.subr.mxu0 0.0
    %5574 = vmatpush1.msra.mxu0 0.0
    %5575 = vmatprep.subr.mxu0 0.0
    %5576 = vmatpush1.msra.mxu0 0.0
    %5577 = vmatprep.subr.mxu0 0.0
    %5578 = vmatpush1.msra.mxu0 0.0
    %5579 = vmatprep.subr.mxu0 0.0
    %5580 = vmatpush1.msra.mxu0 0.0
    %5581 = vmatprep.subr.mxu0 0.0
    %5582 = vmatpush1.msra.mxu0 0.0
    %5583 = vmatprep.subr.mxu0 0.0
    %5584 = vmatpush1.msra.mxu0 0.0
    %5585 = vmatprep.subr.mxu0 0.0
    %5586 = vmatpush1.msra.mxu0 0.0
    %5587 = vmatprep.subr.mxu0 0.0
    %5588 = vmatpush1.msra.mxu0 0.0
    %5589 = vmatprep.subr.mxu0 0.0
    %5590 = vmatpush1.msra.mxu0 0.0
    %5591 = vmatprep.subr.mxu0 0.0
    %5592 = vmatpush1.msra.mxu0 %v5554
    %5593 = vmatprep.subr.mxu0 0.0
    %5594 = vmatpush1.msra.mxu0 %v5552
    %5595 = vmatprep.subr.mxu0 0.0
    %5596 = vmatpush2.msra.mxu0 0.0
    %5597 = vmatprep.subr.mxu0 0.0
    %5598 = vmatpush2.msra.mxu0 0.0
    %5599 = vmatprep.subr.mxu0 0.0
    %5600 = vmatpush2.msra.mxu0 0.0
    %5601 = vmatprep.subr.mxu0 0.0
    %5602 = vmatpush2.msra.mxu0 0.0
    %5603 = vmatprep.subr.mxu0 0.0
    %5604 = vmatpush2.msra.mxu0 0.0
    %5605 = vmatprep.subr.mxu0 0.0
    %5606 = vmatpush2.msra.mxu0 0.0
    %5607 = vmatprep.subr.mxu0 0.0
    %5608 = vmatpush2.msra.mxu0 0.0
    %5609 = vmatprep.subr.mxu0 0.0
    %5610 = vmatpush2.msra.mxu0 0.0
    %5611 = vmatprep.subr.mxu0 0.0
    %5612 = vmatpush2.msra.mxu0 0.0
    %5613 = vmatprep.subr.mxu0 0.0
    %5614 = vmatpush2.msra.mxu0 0.0
    %5615 = vmatprep.subr.mxu0 0.0
    %5616 = vmatpush2.msra.mxu0 0.0
    %5617 = vmatprep.subr.mxu0 0.0
    %5618 = vmatpush2.msra.mxu0 0.0
    %5619 = vmatprep.subr.mxu0 0.0
    %5620 = vmatpush2.msra.mxu0 0.0
    %5621 = vmatprep.subr.mxu0 0.0
    %5622 = vmatpush2.msra.mxu0 0.0
    %5623 = vmatprep.subr.mxu0 0.0
    %5624 = vmatpush2.msra.mxu0 0.0
    %5625 = vmatprep.subr.mxu0 0.0
    %5626 = vmatpush2.msra.mxu0 0.0
    %5627 = vmatprep.mubr.f32.mxu0 0.0
    %5628 = vmatmul.mubr.f32.gmra.mxu0 %v5558
    %v5629 = vpop.f32.mrf.mxu0
    %v5630 = vadd.f32 0.0, %v5629
    %v5631 = vpop.f32.mrf.mxu0
    %5632 = vmatprep.mubr.f32.mxu0 0.0
    %5633 = vmatmul.mubr.f32.gmra.mxu0 %v5561
    %v5634 = vpop.f32.mrf.mxu0
    %v5635 = vadd.f32 0.0, %v5634
    %v5636 = vpop.f32.mrf.mxu0
    %5637 = vdwg.mxu0
    %5638 = vrot.lane.b32.xlu0 %v4481, 112
    %v5639 = vpop.permute.xlu0 %5638
    %5640 = vrot.lane.b32.xlu0 %v4487, 112
    %v5641 = vpop.permute.xlu0 %5640
    %v5645 = vsel %vm539, %v5548, 0
    %v5648 = vsel %vm539, %v5550, 0
    %5650 = vmatprep.subr.mxu0 0.0
    %5651 = vmatpush1.msra.mxu0 0.0
    %5652 = vmatprep.subr.mxu0 0.0
    %5653 = vmatpush1.msra.mxu0 0.0
    %5654 = vmatprep.subr.mxu0 0.0
    %5655 = vmatpush1.msra.mxu0 0.0
    %5656 = vmatprep.subr.mxu0 0.0
    %5657 = vmatpush1.msra.mxu0 0.0
    %5658 = vmatprep.subr.mxu0 0.0
    %5659 = vmatpush1.msra.mxu0 0.0
    %5660 = vmatprep.subr.mxu0 0.0
    %5661 = vmatpush1.msra.mxu0 0.0
    %5662 = vmatprep.subr.mxu0 0.0
    %5663 = vmatpush1.msra.mxu0 0.0
    %5664 = vmatprep.subr.mxu0 0.0
    %5665 = vmatpush1.msra.mxu0 0.0
    %5666 = vmatprep.subr.mxu0 0.0
    %5667 = vmatpush1.msra.mxu0 0.0
    %5668 = vmatprep.subr.mxu0 0.0
    %5669 = vmatpush1.msra.mxu0 0.0
    %5670 = vmatprep.subr.mxu0 0.0
    %5671 = vmatpush1.msra.mxu0 0.0
    %5672 = vmatprep.subr.mxu0 0.0
    %5673 = vmatpush1.msra.mxu0 0.0
    %5674 = vmatprep.subr.mxu0 0.0
    %5675 = vmatpush1.msra.mxu0 0.0
    %5676 = vmatprep.subr.mxu0 0.0
    %5677 = vmatpush1.msra.mxu0 0.0
    %5678 = vmatprep.subr.mxu0 0.0
    %5679 = vmatpush1.msra.mxu0 %v5641
    %5680 = vmatprep.subr.mxu0 0.0
    %5681 = vmatpush1.msra.mxu0 %v5639
    %5682 = vmatprep.subr.mxu0 0.0
    %5683 = vmatpush2.msra.mxu0 0.0
    %5684 = vmatprep.subr.mxu0 0.0
    %5685 = vmatpush2.msra.mxu0 0.0
    %5686 = vmatprep.subr.mxu0 0.0
    %5687 = vmatpush2.msra.mxu0 0.0
    %5688 = vmatprep.subr.mxu0 0.0
    %5689 = vmatpush2.msra.mxu0 0.0
    %5690 = vmatprep.subr.mxu0 0.0
    %5691 = vmatpush2.msra.mxu0 0.0
    %5692 = vmatprep.subr.mxu0 0.0
    %5693 = vmatpush2.msra.mxu0 0.0
    %5694 = vmatprep.subr.mxu0 0.0
    %5695 = vmatpush2.msra.mxu0 0.0
    %5696 = vmatprep.subr.mxu0 0.0
    %5697 = vmatpush2.msra.mxu0 0.0
    %5698 = vmatprep.subr.mxu0 0.0
    %5699 = vmatpush2.msra.mxu0 0.0
    %5700 = vmatprep.subr.mxu0 0.0
    %5701 = vmatpush2.msra.mxu0 0.0
    %5702 = vmatprep.subr.mxu0 0.0
    %5703 = vmatpush2.msra.mxu0 0.0
    %5704 = vmatprep.subr.mxu0 0.0
    %5705 = vmatpush2.msra.mxu0 0.0
    %5706 = vmatprep.subr.mxu0 0.0
    %5707 = vmatpush2.msra.mxu0 0.0
    %5708 = vmatprep.subr.mxu0 0.0
    %5709 = vmatpush2.msra.mxu0 0.0
    %5710 = vmatprep.subr.mxu0 0.0
    %5711 = vmatpush2.msra.mxu0 0.0
    %5712 = vmatprep.subr.mxu0 0.0
    %5713 = vmatpush2.msra.mxu0 0.0
    %5714 = vmatprep.mubr.f32.mxu0 0.0
    %5715 = vmatmul.mubr.f32.gmra.mxu0 %v5645
    %v5716 = vpop.f32.mrf.mxu0
    %v5717 = vadd.f32 0.0, %v5716
    %v5718 = vpop.f32.mrf.mxu0
    %5719 = vmatprep.mubr.f32.mxu0 0.0
    %5720 = vmatmul.mubr.f32.gmra.mxu0 %v5648
    %v5721 = vpop.f32.mrf.mxu0
    %v5722 = vadd.f32 0.0, %v5721
    %v5723 = vpop.f32.mrf.mxu0
    %5724 = vdwg.mxu0
    %5729 = vrot.lane.b32.xlu0 %v5630, 16
    %v5730 = vpop.permute.xlu0 %5729
    %5731 = vrot.lane.b32.xlu0 %v5635, 16
    %v5732 = vpop.permute.xlu0 %5731
    %5733 = vrot.lane.b32.xlu0 %v5717, 16
    %v5734 = vpop.permute.xlu0 %5733
    %5735 = vrot.lane.b32.xlu0 %v5722, 16
    %v5736 = vpop.permute.xlu0 %5735
    %5741 = vst.msk [vmem:[#allocation2] sm:$0xff] %vm1607, %v5730
    %5742 = vst.msk [vmem:[#allocation2 + $0x8] sm:$0xff] %vm1607, %v5732
    %5743 = vst.msk [vmem:[#allocation2 + $0x10] sm:$0xff] %vm1607, %v5734
    %5744 = vst.msk [vmem:[#allocation2 + $0x18] sm:$0xff] %vm1607, %v5736
    %5745 = vrot.lane.b32.xlu0 %v4467, 104
    %v5746 = vpop.permute.xlu0 %5745
    %5747 = vrot.lane.b32.xlu0 %v4473, 104
    %v5748 = vpop.permute.xlu0 %5747
    %5749 = vrot.lane.b32.xlu0 %v4467, 40
    %v5750 = vpop.permute.xlu0 %5749
    %5751 = vrot.lane.b32.xlu0 %v4473, 40
    %v5752 = vpop.permute.xlu0 %5751
    %v5753 = vsel %vm346, %v5746, 0
    %v5755 = vsel %vm346, %v5748, 0
    %v5757 = vsel %vm346, %v5750, 0
    %v5759 = vsel %vm346, %v5752, 0
    %5761 = vmatprep.subr.mxu0 0.0
    %5762 = vmatpush1.xpose.msra.mxu0 0.0
    %5763 = vmatprep.subr.mxu0 0.0
    %5764 = vmatpush1.xpose.msra.mxu0 0.0
    %5765 = vmatprep.subr.mxu0 0.0
    %5766 = vmatpush1.xpose.msra.mxu0 0.0
    %5767 = vmatprep.subr.mxu0 0.0
    %5768 = vmatpush1.xpose.msra.mxu0 0.0
    %5769 = vmatprep.subr.mxu0 0.0
    %5770 = vmatpush1.xpose.msra.mxu0 0.0
    %5771 = vmatprep.subr.mxu0 0.0
    %5772 = vmatpush1.xpose.msra.mxu0 0.0
    %5773 = vmatprep.subr.mxu0 0.0
    %5774 = vmatpush1.xpose.msra.mxu0 0.0
    %5775 = vmatprep.subr.mxu0 0.0
    %5776 = vmatpush1.xpose.msra.mxu0 0.0
    %5777 = vmatprep.subr.mxu0 0.0
    %5778 = vmatpush1.xpose.msra.mxu0 0.0
    %5779 = vmatprep.subr.mxu0 0.0
    %5780 = vmatpush1.xpose.msra.mxu0 0.0
    %5781 = vmatprep.subr.mxu0 0.0
    %5782 = vmatpush1.xpose.msra.mxu0 0.0
    %5783 = vmatprep.subr.mxu0 0.0
    %5784 = vmatpush1.xpose.msra.mxu0 0.0
    %5785 = vmatprep.subr.mxu0 0.0
    %5786 = vmatpush1.xpose.msra.mxu0 0.0
    %5787 = vmatprep.subr.mxu0 0.0
    %5788 = vmatpush1.xpose.msra.mxu0 0.0
    %5789 = vmatprep.subr.mxu0 0.0
    %5790 = vmatpush1.xpose.msra.mxu0 %v5759
    %5791 = vmatprep.subr.mxu0 0.0
    %5792 = vmatpush1.xpose.msra.mxu0 %v5757
    %5793 = vmatprep.subr.mxu0 0.0
    %5794 = vmatpush2.xpose.msra.mxu0 0.0
    %5795 = vmatprep.subr.mxu0 0.0
    %5796 = vmatpush2.xpose.msra.mxu0 0.0
    %5797 = vmatprep.subr.mxu0 0.0
    %5798 = vmatpush2.xpose.msra.mxu0 0.0
    %5799 = vmatprep.subr.mxu0 0.0
    %5800 = vmatpush2.xpose.msra.mxu0 0.0
    %5801 = vmatprep.subr.mxu0 0.0
    %5802 = vmatpush2.xpose.msra.mxu0 0.0
    %5803 = vmatprep.subr.mxu0 0.0
    %5804 = vmatpush2.xpose.msra.mxu0 0.0
    %5805 = vmatprep.subr.mxu0 0.0
    %5806 = vmatpush2.xpose.msra.mxu0 0.0
    %5807 = vmatprep.subr.mxu0 0.0
    %5808 = vmatpush2.xpose.msra.mxu0 0.0
    %5809 = vmatprep.subr.mxu0 0.0
    %5810 = vmatpush2.xpose.msra.mxu0 0.0
    %5811 = vmatprep.subr.mxu0 0.0
    %5812 = vmatpush2.xpose.msra.mxu0 0.0
    %5813 = vmatprep.subr.mxu0 0.0
    %5814 = vmatpush2.xpose.msra.mxu0 0.0
    %5815 = vmatprep.subr.mxu0 0.0
    %5816 = vmatpush2.xpose.msra.mxu0 0.0
    %5817 = vmatprep.subr.mxu0 0.0
    %5818 = vmatpush2.xpose.msra.mxu0 0.0
    %5819 = vmatprep.subr.mxu0 0.0
    %5820 = vmatpush2.xpose.msra.mxu0 0.0
    %5821 = vmatprep.subr.mxu0 0.0
    %5822 = vmatpush2.xpose.msra.mxu0 0.0
    %5823 = vmatprep.subr.mxu0 0.0
    %5824 = vmatpush2.xpose.msra.mxu0 0.0
    %5825 = vmatprep.mubr.f32.mxu0 0.0
    %5826 = vmatmul.mubr.f32.gmra.mxu0 %v5753
    %v5827 = vpop.f32.mrf.mxu0
    %v5828 = vadd.f32 0.0, %v5827
    %v5829 = vpop.f32.mrf.mxu0
    %5830 = vmatprep.mubr.f32.mxu0 0.0
    %5831 = vmatmul.mubr.f32.gmra.mxu0 %v5755
    %v5832 = vpop.f32.mrf.mxu0
    %v5833 = vadd.f32 0.0, %v5832
    %v5834 = vpop.f32.mrf.mxu0
    %5835 = vdwg.mxu0
    %5836 = vrot.lane.b32.xlu0 %v4479, 104
    %v5837 = vpop.permute.xlu0 %5836
    %5838 = vrot.lane.b32.xlu0 %v4485, 104
    %v5839 = vpop.permute.xlu0 %5838
    %5840 = vrot.lane.b32.xlu0 %v4479, 40
    %v5841 = vpop.permute.xlu0 %5840
    %5842 = vrot.lane.b32.xlu0 %v4485, 40
    %v5843 = vpop.permute.xlu0 %5842
    %v5844 = vsel %vm346, %v5837, 0
    %v5846 = vsel %vm346, %v5839, 0
    %v5848 = vsel %vm346, %v5841, 0
    %v5850 = vsel %vm346, %v5843, 0
    %5852 = vmatprep.subr.mxu0 0.0
    %5853 = vmatpush1.xpose.msra.mxu0 0.0
    %5854 = vmatprep.subr.mxu0 0.0
    %5855 = vmatpush1.xpose.msra.mxu0 0.0
    %5856 = vmatprep.subr.mxu0 0.0
    %5857 = vmatpush1.xpose.msra.mxu0 0.0
    %5858 = vmatprep.subr.mxu0 0.0
    %5859 = vmatpush1.xpose.msra.mxu0 0.0
    %5860 = vmatprep.subr.mxu0 0.0
    %5861 = vmatpush1.xpose.msra.mxu0 0.0
    %5862 = vmatprep.subr.mxu0 0.0
    %5863 = vmatpush1.xpose.msra.mxu0 0.0
    %5864 = vmatprep.subr.mxu0 0.0
    %5865 = vmatpush1.xpose.msra.mxu0 0.0
    %5866 = vmatprep.subr.mxu0 0.0
    %5867 = vmatpush1.xpose.msra.mxu0 0.0
    %5868 = vmatprep.subr.mxu0 0.0
    %5869 = vmatpush1.xpose.msra.mxu0 0.0
    %5870 = vmatprep.subr.mxu0 0.0
    %5871 = vmatpush1.xpose.msra.mxu0 0.0
    %5872 = vmatprep.subr.mxu0 0.0
    %5873 = vmatpush1.xpose.msra.mxu0 0.0
    %5874 = vmatprep.subr.mxu0 0.0
    %5875 = vmatpush1.xpose.msra.mxu0 0.0
    %5876 = vmatprep.subr.mxu0 0.0
    %5877 = vmatpush1.xpose.msra.mxu0 0.0
    %5878 = vmatprep.subr.mxu0 0.0
    %5879 = vmatpush1.xpose.msra.mxu0 0.0
    %5880 = vmatprep.subr.mxu0 0.0
    %5881 = vmatpush1.xpose.msra.mxu0 %v5850
    %5882 = vmatprep.subr.mxu0 0.0
    %5883 = vmatpush1.xpose.msra.mxu0 %v5848
    %5884 = vmatprep.subr.mxu0 0.0
    %5885 = vmatpush2.xpose.msra.mxu0 0.0
    %5886 = vmatprep.subr.mxu0 0.0
    %5887 = vmatpush2.xpose.msra.mxu0 0.0
    %5888 = vmatprep.subr.mxu0 0.0
    %5889 = vmatpush2.xpose.msra.mxu0 0.0
    %5890 = vmatprep.subr.mxu0 0.0
    %5891 = vmatpush2.xpose.msra.mxu0 0.0
    %5892 = vmatprep.subr.mxu0 0.0
    %5893 = vmatpush2.xpose.msra.mxu0 0.0
    %5894 = vmatprep.subr.mxu0 0.0
    %5895 = vmatpush2.xpose.msra.mxu0 0.0
    %5896 = vmatprep.subr.mxu0 0.0
    %5897 = vmatpush2.xpose.msra.mxu0 0.0
    %5898 = vmatprep.subr.mxu0 0.0
    %5899 = vmatpush2.xpose.msra.mxu0 0.0
    %5900 = vmatprep.subr.mxu0 0.0
    %5901 = vmatpush2.xpose.msra.mxu0 0.0
    %5902 = vmatprep.subr.mxu0 0.0
    %5903 = vmatpush2.xpose.msra.mxu0 0.0
    %5904 = vmatprep.subr.mxu0 0.0
    %5905 = vmatpush2.xpose.msra.mxu0 0.0
    %5906 = vmatprep.subr.mxu0 0.0
    %5907 = vmatpush2.xpose.msra.mxu0 0.0
    %5908 = vmatprep.subr.mxu0 0.0
    %5909 = vmatpush2.xpose.msra.mxu0 0.0
    %5910 = vmatprep.subr.mxu0 0.0
    %5911 = vmatpush2.xpose.msra.mxu0 0.0
    %5912 = vmatprep.subr.mxu0 0.0
    %5913 = vmatpush2.xpose.msra.mxu0 0.0
    %5914 = vmatprep.subr.mxu0 0.0
    %5915 = vmatpush2.xpose.msra.mxu0 0.0
    %5916 = vmatprep.mubr.f32.mxu0 0.0
    %5917 = vmatmul.mubr.f32.gmra.mxu0 %v5844
    %v5918 = vpop.f32.mrf.mxu0
    %v5919 = vadd.f32 0.0, %v5918
    %v5920 = vpop.f32.mrf.mxu0
    %5921 = vmatprep.mubr.f32.mxu0 0.0
    %5922 = vmatmul.mubr.f32.gmra.mxu0 %v5846
    %v5923 = vpop.f32.mrf.mxu0
    %v5924 = vadd.f32 0.0, %v5923
    %v5925 = vpop.f32.mrf.mxu0
    %5926 = vdwg.mxu0
    %v5927 = vmul.f32 %v5828, 0.35355338
    %v5928 = vmul.f32 %v5833, 0.35355338
    %v5929 = vmul.f32 %v5919, 0.35355338
    %v5930 = vmul.f32 %v5924, 0.35355338
    %v5931 = vadd.f32 %v5927, %v528
    %v5932 = vadd.f32 %v5928, %v528
    %v5933 = vadd.f32 %v5929, %v532
    %v5934 = vadd.f32 %v5930, %v532
    %v5935 = vsel %vm539, %v5931, -inf
    %5936 = vmax.xlane.f32.xlu0 %v5935
    %v5937 = vpop.xlane.xlu0 %5936
    %v5938 = vsel %vm539, %v5932, -inf
    %5939 = vmax.xlane.f32.xlu0 %v5938
    %v5940 = vpop.xlane.xlu0 %5939
    %v5941 = vsel %vm539, %v5933, -inf
    %5942 = vmax.xlane.f32.xlu0 %v5941
    %v5943 = vpop.xlane.xlu0 %5942
    %v5944 = vsel %vm539, %v5934, -inf
    %5945 = vmax.xlane.f32.xlu0 %v5944
    %v5946 = vpop.xlane.xlu0 %5945
    %v5947 = vsub.f32 %v5931, %v5937
    %v5948 = vsub.f32 %v5932, %v5940
    %v5949 = vsub.f32 %v5933, %v5943
    %v5950 = vsub.f32 %v5934, %v5946
    %v5951 = vmul.f32 %v5947, 1.442695
    %v5952 = vpow.pop %v5951
    %v5953 = vmul.f32 %v5948, 1.442695
    %v5954 = vpow.pop %v5953
    %v5955 = vmul.f32 %v5949, 1.442695
    %v5956 = vpow.pop %v5955
    %v5957 = vmul.f32 %v5950, 1.442695
    %v5958 = vpow.pop %v5957
    %v5959 = vsel %vm539, %v5952, 0.0
    %5960 = vadd.xlane.f32.xlu0 %v5959
    %v5961 = vpop.xlane.xlu0 %5960
    %v5962 = vsel %vm539, %v5954, 0.0
    %5963 = vadd.xlane.f32.xlu0 %v5962
    %v5964 = vpop.xlane.xlu0 %5963
    %v5965 = vsel %vm539, %v5956, 0.0
    %5966 = vadd.xlane.f32.xlu0 %v5965
    %v5967 = vpop.xlane.xlu0 %5966
    %v5968 = vsel %vm539, %v5958, 0.0
    %5969 = vadd.xlane.f32.xlu0 %v5968
    %v5970 = vpop.xlane.xlu0 %5969
    %v5971 = vrcp.pop %v5961
    %v5972 = vmul.f32 %v5952, %v5971
    %v5973 = vrcp.pop %v5964
    %v5974 = vmul.f32 %v5954, %v5973
    %v5975 = vrcp.pop %v5967
    %v5976 = vmul.f32 %v5956, %v5975
    %v5977 = vrcp.pop %v5970
    %v5978 = vmul.f32 %v5958, %v5977
    %5979 = vrot.lane.b32.xlu0 %v4469, 104
    %v5980 = vpop.permute.xlu0 %5979
    %5981 = vrot.lane.b32.xlu0 %v4475, 104
    %v5982 = vpop.permute.xlu0 %5981
    %v5986 = vsel %vm539, %v5972, 0
    %v5989 = vsel %vm539, %v5974, 0
    %5991 = vmatprep.subr.mxu0 0.0
    %5992 = vmatpush1.msra.mxu0 0.0
    %5993 = vmatprep.subr.mxu0 0.0
    %5994 = vmatpush1.msra.mxu0 0.0
    %5995 = vmatprep.subr.mxu0 0.0
    %5996 = vmatpush1.msra.mxu0 0.0
    %5997 = vmatprep.subr.mxu0 0.0
    %5998 = vmatpush1.msra.mxu0 0.0
    %5999 = vmatprep.subr.mxu0 0.0
    %6000 = vmatpush1.msra.mxu0 0.0
    %6001 = vmatprep.subr.mxu0 0.0
    %6002 = vmatpush1.msra.mxu0 0.0
    %6003 = vmatprep.subr.mxu0 0.0
    %6004 = vmatpush1.msra.mxu0 0.0
    %6005 = vmatprep.subr.mxu0 0.0
    %6006 = vmatpush1.msra.mxu0 0.0
    %6007 = vmatprep.subr.mxu0 0.0
    %6008 = vmatpush1.msra.mxu0 0.0
    %6009 = vmatprep.subr.mxu0 0.0
    %6010 = vmatpush1.msra.mxu0 0.0
    %6011 = vmatprep.subr.mxu0 0.0
    %6012 = vmatpush1.msra.mxu0 0.0
    %6013 = vmatprep.subr.mxu0 0.0
    %6014 = vmatpush1.msra.mxu0 0.0
    %6015 = vmatprep.subr.mxu0 0.0
    %6016 = vmatpush1.msra.mxu0 0.0
    %6017 = vmatprep.subr.mxu0 0.0
    %6018 = vmatpush1.msra.mxu0 0.0
    %6019 = vmatprep.subr.mxu0 0.0
    %6020 = vmatpush1.msra.mxu0 %v5982
    %6021 = vmatprep.subr.mxu0 0.0
    %6022 = vmatpush1.msra.mxu0 %v5980
    %6023 = vmatprep.subr.mxu0 0.0
    %6024 = vmatpush2.msra.mxu0 0.0
    %6025 = vmatprep.subr.mxu0 0.0
    %6026 = vmatpush2.msra.mxu0 0.0
    %6027 = vmatprep.subr.mxu0 0.0
    %6028 = vmatpush2.msra.mxu0 0.0
    %6029 = vmatprep.subr.mxu0 0.0
    %6030 = vmatpush2.msra.mxu0 0.0
    %6031 = vmatprep.subr.mxu0 0.0
    %6032 = vmatpush2.msra.mxu0 0.0
    %6033 = vmatprep.subr.mxu0 0.0
    %6034 = vmatpush2.msra.mxu0 0.0
    %6035 = vmatprep.subr.mxu0 0.0
    %6036 = vmatpush2.msra.mxu0 0.0
    %6037 = vmatprep.subr.mxu0 0.0
    %6038 = vmatpush2.msra.mxu0 0.0
    %6039 = vmatprep.subr.mxu0 0.0
    %6040 = vmatpush2.msra.mxu0 0.0
    %6041 = vmatprep.subr.mxu0 0.0
    %6042 = vmatpush2.msra.mxu0 0.0
    %6043 = vmatprep.subr.mxu0 0.0
    %6044 = vmatpush2.msra.mxu0 0.0
    %6045 = vmatprep.subr.mxu0 0.0
    %6046 = vmatpush2.msra.mxu0 0.0
    %6047 = vmatprep.subr.mxu0 0.0
    %6048 = vmatpush2.msra.mxu0 0.0
    %6049 = vmatprep.subr.mxu0 0.0
    %6050 = vmatpush2.msra.mxu0 0.0
    %6051 = vmatprep.subr.mxu0 0.0
    %6052 = vmatpush2.msra.mxu0 0.0
    %6053 = vmatprep.subr.mxu0 0.0
    %6054 = vmatpush2.msra.mxu0 0.0
    %6055 = vmatprep.mubr.f32.mxu0 0.0
    %6056 = vmatmul.mubr.f32.gmra.mxu0 %v5986
    %v6057 = vpop.f32.mrf.mxu0
    %v6058 = vadd.f32 0.0, %v6057
    %v6059 = vpop.f32.mrf.mxu0
    %6060 = vmatprep.mubr.f32.mxu0 0.0
    %6061 = vmatmul.mubr.f32.gmra.mxu0 %v5989
    %v6062 = vpop.f32.mrf.mxu0
    %v6063 = vadd.f32 0.0, %v6062
    %v6064 = vpop.f32.mrf.mxu0
    %6065 = vdwg.mxu0
    %6066 = vrot.lane.b32.xlu0 %v4481, 104
    %v6067 = vpop.permute.xlu0 %6066
    %6068 = vrot.lane.b32.xlu0 %v4487, 104
    %v6069 = vpop.permute.xlu0 %6068
    %v6073 = vsel %vm539, %v5976, 0
    %v6076 = vsel %vm539, %v5978, 0
    %6078 = vmatprep.subr.mxu0 0.0
    %6079 = vmatpush1.msra.mxu0 0.0
    %6080 = vmatprep.subr.mxu0 0.0
    %6081 = vmatpush1.msra.mxu0 0.0
    %6082 = vmatprep.subr.mxu0 0.0
    %6083 = vmatpush1.msra.mxu0 0.0
    %6084 = vmatprep.subr.mxu0 0.0
    %6085 = vmatpush1.msra.mxu0 0.0
    %6086 = vmatprep.subr.mxu0 0.0
    %6087 = vmatpush1.msra.mxu0 0.0
    %6088 = vmatprep.subr.mxu0 0.0
    %6089 = vmatpush1.msra.mxu0 0.0
    %6090 = vmatprep.subr.mxu0 0.0
    %6091 = vmatpush1.msra.mxu0 0.0
    %6092 = vmatprep.subr.mxu0 0.0
    %6093 = vmatpush1.msra.mxu0 0.0
    %6094 = vmatprep.subr.mxu0 0.0
    %6095 = vmatpush1.msra.mxu0 0.0
    %6096 = vmatprep.subr.mxu0 0.0
    %6097 = vmatpush1.msra.mxu0 0.0
    %6098 = vmatprep.subr.mxu0 0.0
    %6099 = vmatpush1.msra.mxu0 0.0
    %6100 = vmatprep.subr.mxu0 0.0
    %6101 = vmatpush1.msra.mxu0 0.0
    %6102 = vmatprep.subr.mxu0 0.0
    %6103 = vmatpush1.msra.mxu0 0.0
    %6104 = vmatprep.subr.mxu0 0.0
    %6105 = vmatpush1.msra.mxu0 0.0
    %6106 = vmatprep.subr.mxu0 0.0
    %6107 = vmatpush1.msra.mxu0 %v6069
    %6108 = vmatprep.subr.mxu0 0.0
    %6109 = vmatpush1.msra.mxu0 %v6067
    %6110 = vmatprep.subr.mxu0 0.0
    %6111 = vmatpush2.msra.mxu0 0.0
    %6112 = vmatprep.subr.mxu0 0.0
    %6113 = vmatpush2.msra.mxu0 0.0
    %6114 = vmatprep.subr.mxu0 0.0
    %6115 = vmatpush2.msra.mxu0 0.0
    %6116 = vmatprep.subr.mxu0 0.0
    %6117 = vmatpush2.msra.mxu0 0.0
    %6118 = vmatprep.subr.mxu0 0.0
    %6119 = vmatpush2.msra.mxu0 0.0
    %6120 = vmatprep.subr.mxu0 0.0
    %6121 = vmatpush2.msra.mxu0 0.0
    %6122 = vmatprep.subr.mxu0 0.0
    %6123 = vmatpush2.msra.mxu0 0.0
    %6124 = vmatprep.subr.mxu0 0.0
    %6125 = vmatpush2.msra.mxu0 0.0
    %6126 = vmatprep.subr.mxu0 0.0
    %6127 = vmatpush2.msra.mxu0 0.0
    %6128 = vmatprep.subr.mxu0 0.0
    %6129 = vmatpush2.msra.mxu0 0.0
    %6130 = vmatprep.subr.mxu0 0.0
    %6131 = vmatpush2.msra.mxu0 0.0
    %6132 = vmatprep.subr.mxu0 0.0
    %6133 = vmatpush2.msra.mxu0 0.0
    %6134 = vmatprep.subr.mxu0 0.0
    %6135 = vmatpush2.msra.mxu0 0.0
    %6136 = vmatprep.subr.mxu0 0.0
    %6137 = vmatpush2.msra.mxu0 0.0
    %6138 = vmatprep.subr.mxu0 0.0
    %6139 = vmatpush2.msra.mxu0 0.0
    %6140 = vmatprep.subr.mxu0 0.0
    %6141 = vmatpush2.msra.mxu0 0.0
    %6142 = vmatprep.mubr.f32.mxu0 0.0
    %6143 = vmatmul.mubr.f32.gmra.mxu0 %v6073
    %v6144 = vpop.f32.mrf.mxu0
    %v6145 = vadd.f32 0.0, %v6144
    %v6146 = vpop.f32.mrf.mxu0
    %6147 = vmatprep.mubr.f32.mxu0 0.0
    %6148 = vmatmul.mubr.f32.gmra.mxu0 %v6076
    %v6149 = vpop.f32.mrf.mxu0
    %v6150 = vadd.f32 0.0, %v6149
    %v6151 = vpop.f32.mrf.mxu0
    %6152 = vdwg.mxu0
    %6157 = vrot.lane.b32.xlu0 %v6058, 24
    %v6158 = vpop.permute.xlu0 %6157
    %6159 = vrot.lane.b32.xlu0 %v6063, 24
    %v6160 = vpop.permute.xlu0 %6159
    %6161 = vrot.lane.b32.xlu0 %v6145, 24
    %v6162 = vpop.permute.xlu0 %6161
    %6163 = vrot.lane.b32.xlu0 %v6150, 24
    %v6164 = vpop.permute.xlu0 %6163
    %6169 = vst.msk [vmem:[#allocation2] sm:$0xff] %vm2036, %v6158
    %6170 = vst.msk [vmem:[#allocation2 + $0x8] sm:$0xff] %vm2036, %v6160
    %6171 = vst.msk [vmem:[#allocation2 + $0x10] sm:$0xff] %vm2036, %v6162
    %6172 = vst.msk [vmem:[#allocation2 + $0x18] sm:$0xff] %vm2036, %v6164
    %6173 = vrot.lane.b32.xlu0 %v4467, 96
    %v6174 = vpop.permute.xlu0 %6173
    %6175 = vrot.lane.b32.xlu0 %v4473, 96
    %v6176 = vpop.permute.xlu0 %6175
    %6177 = vrot.lane.b32.xlu0 %v4467, 32
    %v6178 = vpop.permute.xlu0 %6177
    %6179 = vrot.lane.b32.xlu0 %v4473, 32
    %v6180 = vpop.permute.xlu0 %6179
    %v6181 = vsel %vm346, %v6174, 0
    %v6183 = vsel %vm346, %v6176, 0
    %v6185 = vsel %vm346, %v6178, 0
    %v6187 = vsel %vm346, %v6180, 0
    %6189 = vmatprep.subr.mxu0 0.0
    %6190 = vmatpush1.xpose.msra.mxu0 0.0
    %6191 = vmatprep.subr.mxu0 0.0
    %6192 = vmatpush1.xpose.msra.mxu0 0.0
    %6193 = vmatprep.subr.mxu0 0.0
    %6194 = vmatpush1.xpose.msra.mxu0 0.0
    %6195 = vmatprep.subr.mxu0 0.0
    %6196 = vmatpush1.xpose.msra.mxu0 0.0
    %6197 = vmatprep.subr.mxu0 0.0
    %6198 = vmatpush1.xpose.msra.mxu0 0.0
    %6199 = vmatprep.subr.mxu0 0.0
    %6200 = vmatpush1.xpose.msra.mxu0 0.0
    %6201 = vmatprep.subr.mxu0 0.0
    %6202 = vmatpush1.xpose.msra.mxu0 0.0
    %6203 = vmatprep.subr.mxu0 0.0
    %6204 = vmatpush1.xpose.msra.mxu0 0.0
    %6205 = vmatprep.subr.mxu0 0.0
    %6206 = vmatpush1.xpose.msra.mxu0 0.0
    %6207 = vmatprep.subr.mxu0 0.0
    %6208 = vmatpush1.xpose.msra.mxu0 0.0
    %6209 = vmatprep.subr.mxu0 0.0
    %6210 = vmatpush1.xpose.msra.mxu0 0.0
    %6211 = vmatprep.subr.mxu0 0.0
    %6212 = vmatpush1.xpose.msra.mxu0 0.0
    %6213 = vmatprep.subr.mxu0 0.0
    %6214 = vmatpush1.xpose.msra.mxu0 0.0
    %6215 = vmatprep.subr.mxu0 0.0
    %6216 = vmatpush1.xpose.msra.mxu0 0.0
    %6217 = vmatprep.subr.mxu0 0.0
    %6218 = vmatpush1.xpose.msra.mxu0 %v6187
    %6219 = vmatprep.subr.mxu0 0.0
    %6220 = vmatpush1.xpose.msra.mxu0 %v6185
    %6221 = vmatprep.subr.mxu0 0.0
    %6222 = vmatpush2.xpose.msra.mxu0 0.0
    %6223 = vmatprep.subr.mxu0 0.0
    %6224 = vmatpush2.xpose.msra.mxu0 0.0
    %6225 = vmatprep.subr.mxu0 0.0
    %6226 = vmatpush2.xpose.msra.mxu0 0.0
    %6227 = vmatprep.subr.mxu0 0.0
    %6228 = vmatpush2.xpose.msra.mxu0 0.0
    %6229 = vmatprep.subr.mxu0 0.0
    %6230 = vmatpush2.xpose.msra.mxu0 0.0
    %6231 = vmatprep.subr.mxu0 0.0
    %6232 = vmatpush2.xpose.msra.mxu0 0.0
    %6233 = vmatprep.subr.mxu0 0.0
    %6234 = vmatpush2.xpose.msra.mxu0 0.0
    %6235 = vmatprep.subr.mxu0 0.0
    %6236 = vmatpush2.xpose.msra.mxu0 0.0
    %6237 = vmatprep.subr.mxu0 0.0
    %6238 = vmatpush2.xpose.msra.mxu0 0.0
    %6239 = vmatprep.subr.mxu0 0.0
    %6240 = vmatpush2.xpose.msra.mxu0 0.0
    %6241 = vmatprep.subr.mxu0 0.0
    %6242 = vmatpush2.xpose.msra.mxu0 0.0
    %6243 = vmatprep.subr.mxu0 0.0
    %6244 = vmatpush2.xpose.msra.mxu0 0.0
    %6245 = vmatprep.subr.mxu0 0.0
    %6246 = vmatpush2.xpose.msra.mxu0 0.0
    %6247 = vmatprep.subr.mxu0 0.0
    %6248 = vmatpush2.xpose.msra.mxu0 0.0
    %6249 = vmatprep.subr.mxu0 0.0
    %6250 = vmatpush2.xpose.msra.mxu0 0.0
    %6251 = vmatprep.subr.mxu0 0.0
    %6252 = vmatpush2.xpose.msra.mxu0 0.0
    %6253 = vmatprep.mubr.f32.mxu0 0.0
    %6254 = vmatmul.mubr.f32.gmra.mxu0 %v6181
    %v6255 = vpop.f32.mrf.mxu0
    %v6256 = vadd.f32 0.0, %v6255
    %v6257 = vpop.f32.mrf.mxu0
    %6258 = vmatprep.mubr.f32.mxu0 0.0
    %6259 = vmatmul.mubr.f32.gmra.mxu0 %v6183
    %v6260 = vpop.f32.mrf.mxu0
    %v6261 = vadd.f32 0.0, %v6260
    %v6262 = vpop.f32.mrf.mxu0
    %6263 = vdwg.mxu0
    %6264 = vrot.lane.b32.xlu0 %v4479, 96
    %v6265 = vpop.permute.xlu0 %6264
    %6266 = vrot.lane.b32.xlu0 %v4485, 96
    %v6267 = vpop.permute.xlu0 %6266
    %6268 = vrot.lane.b32.xlu0 %v4479, 32
    %v6269 = vpop.permute.xlu0 %6268
    %6270 = vrot.lane.b32.xlu0 %v4485, 32
    %v6271 = vpop.permute.xlu0 %6270
    %v6272 = vsel %vm346, %v6265, 0
    %v6274 = vsel %vm346, %v6267, 0
    %v6276 = vsel %vm346, %v6269, 0
    %v6278 = vsel %vm346, %v6271, 0
    %6280 = vmatprep.subr.mxu0 0.0
    %6281 = vmatpush1.xpose.msra.mxu0 0.0
    %6282 = vmatprep.subr.mxu0 0.0
    %6283 = vmatpush1.xpose.msra.mxu0 0.0
    %6284 = vmatprep.subr.mxu0 0.0
    %6285 = vmatpush1.xpose.msra.mxu0 0.0
    %6286 = vmatprep.subr.mxu0 0.0
    %6287 = vmatpush1.xpose.msra.mxu0 0.0
    %6288 = vmatprep.subr.mxu0 0.0
    %6289 = vmatpush1.xpose.msra.mxu0 0.0
    %6290 = vmatprep.subr.mxu0 0.0
    %6291 = vmatpush1.xpose.msra.mxu0 0.0
    %6292 = vmatprep.subr.mxu0 0.0
    %6293 = vmatpush1.xpose.msra.mxu0 0.0
    %6294 = vmatprep.subr.mxu0 0.0
    %6295 = vmatpush1.xpose.msra.mxu0 0.0
    %6296 = vmatprep.subr.mxu0 0.0
    %6297 = vmatpush1.xpose.msra.mxu0 0.0
    %6298 = vmatprep.subr.mxu0 0.0
    %6299 = vmatpush1.xpose.msra.mxu0 0.0
    %6300 = vmatprep.subr.mxu0 0.0
    %6301 = vmatpush1.xpose.msra.mxu0 0.0
    %6302 = vmatprep.subr.mxu0 0.0
    %6303 = vmatpush1.xpose.msra.mxu0 0.0
    %6304 = vmatprep.subr.mxu0 0.0
    %6305 = vmatpush1.xpose.msra.mxu0 0.0
    %6306 = vmatprep.subr.mxu0 0.0
    %6307 = vmatpush1.xpose.msra.mxu0 0.0
    %6308 = vmatprep.subr.mxu0 0.0
    %6309 = vmatpush1.xpose.msra.mxu0 %v6278
    %6310 = vmatprep.subr.mxu0 0.0
    %6311 = vmatpush1.xpose.msra.mxu0 %v6276
    %6312 = vmatprep.subr.mxu0 0.0
    %6313 = vmatpush2.xpose.msra.mxu0 0.0
    %6314 = vmatprep.subr.mxu0 0.0
    %6315 = vmatpush2.xpose.msra.mxu0 0.0
    %6316 = vmatprep.subr.mxu0 0.0
    %6317 = vmatpush2.xpose.msra.mxu0 0.0
    %6318 = vmatprep.subr.mxu0 0.0
    %6319 = vmatpush2.xpose.msra.mxu0 0.0
    %6320 = vmatprep.subr.mxu0 0.0
    %6321 = vmatpush2.xpose.msra.mxu0 0.0
    %6322 = vmatprep.subr.mxu0 0.0
    %6323 = vmatpush2.xpose.msra.mxu0 0.0
    %6324 = vmatprep.subr.mxu0 0.0
    %6325 = vmatpush2.xpose.msra.mxu0 0.0
    %6326 = vmatprep.subr.mxu0 0.0
    %6327 = vmatpush2.xpose.msra.mxu0 0.0
    %6328 = vmatprep.subr.mxu0 0.0
    %6329 = vmatpush2.xpose.msra.mxu0 0.0
    %6330 = vmatprep.subr.mxu0 0.0
    %6331 = vmatpush2.xpose.msra.mxu0 0.0
    %6332 = vmatprep.subr.mxu0 0.0
    %6333 = vmatpush2.xpose.msra.mxu0 0.0
    %6334 = vmatprep.subr.mxu0 0.0
    %6335 = vmatpush2.xpose.msra.mxu0 0.0
    %6336 = vmatprep.subr.mxu0 0.0
    %6337 = vmatpush2.xpose.msra.mxu0 0.0
    %6338 = vmatprep.subr.mxu0 0.0
    %6339 = vmatpush2.xpose.msra.mxu0 0.0
    %6340 = vmatprep.subr.mxu0 0.0
    %6341 = vmatpush2.xpose.msra.mxu0 0.0
    %6342 = vmatprep.subr.mxu0 0.0
    %6343 = vmatpush2.xpose.msra.mxu0 0.0
    %6344 = vmatprep.mubr.f32.mxu0 0.0
    %6345 = vmatmul.mubr.f32.gmra.mxu0 %v6272
    %v6346 = vpop.f32.mrf.mxu0
    %v6347 = vadd.f32 0.0, %v6346
    %v6348 = vpop.f32.mrf.mxu0
    %6349 = vmatprep.mubr.f32.mxu0 0.0
    %6350 = vmatmul.mubr.f32.gmra.mxu0 %v6274
    %v6351 = vpop.f32.mrf.mxu0
    %v6352 = vadd.f32 0.0, %v6351
    %v6353 = vpop.f32.mrf.mxu0
    %6354 = vdwg.mxu0
    %v6355 = vmul.f32 %v6256, 0.35355338
    %v6356 = vmul.f32 %v6261, 0.35355338
    %v6357 = vmul.f32 %v6347, 0.35355338
    %v6358 = vmul.f32 %v6352, 0.35355338
    %v6359 = vadd.f32 %v6355, %v528
    %v6360 = vadd.f32 %v6356, %v528
    %v6361 = vadd.f32 %v6357, %v532
    %v6362 = vadd.f32 %v6358, %v532
    %v6363 = vsel %vm539, %v6359, -inf
    %6364 = vmax.xlane.f32.xlu0 %v6363
    %v6365 = vpop.xlane.xlu0 %6364
    %v6366 = vsel %vm539, %v6360, -inf
    %6367 = vmax.xlane.f32.xlu0 %v6366
    %v6368 = vpop.xlane.xlu0 %6367
    %v6369 = vsel %vm539, %v6361, -inf
    %6370 = vmax.xlane.f32.xlu0 %v6369
    %v6371 = vpop.xlane.xlu0 %6370
    %v6372 = vsel %vm539, %v6362, -inf
    %6373 = vmax.xlane.f32.xlu0 %v6372
    %v6374 = vpop.xlane.xlu0 %6373
    %v6375 = vsub.f32 %v6359, %v6365
    %v6376 = vsub.f32 %v6360, %v6368
    %v6377 = vsub.f32 %v6361, %v6371
    %v6378 = vsub.f32 %v6362, %v6374
    %v6379 = vmul.f32 %v6375, 1.442695
    %v6380 = vpow.pop %v6379
    %v6381 = vmul.f32 %v6376, 1.442695
    %v6382 = vpow.pop %v6381
    %v6383 = vmul.f32 %v6377, 1.442695
    %v6384 = vpow.pop %v6383
    %v6385 = vmul.f32 %v6378, 1.442695
    %v6386 = vpow.pop %v6385
    %v6387 = vsel %vm539, %v6380, 0.0
    %6388 = vadd.xlane.f32.xlu0 %v6387
    %v6389 = vpop.xlane.xlu0 %6388
    %v6390 = vsel %vm539, %v6382, 0.0
    %6391 = vadd.xlane.f32.xlu0 %v6390
    %v6392 = vpop.xlane.xlu0 %6391
    %v6393 = vsel %vm539, %v6384, 0.0
    %6394 = vadd.xlane.f32.xlu0 %v6393
    %v6395 = vpop.xlane.xlu0 %6394
    %v6396 = vsel %vm539, %v6386, 0.0
    %6397 = vadd.xlane.f32.xlu0 %v6396
    %v6398 = vpop.xlane.xlu0 %6397
    %v6399 = vrcp.pop %v6389
    %v6400 = vmul.f32 %v6380, %v6399
    %v6401 = vrcp.pop %v6392
    %v6402 = vmul.f32 %v6382, %v6401
    %v6403 = vrcp.pop %v6395
    %v6404 = vmul.f32 %v6384, %v6403
    %v6405 = vrcp.pop %v6398
    %v6406 = vmul.f32 %v6386, %v6405
    %6407 = vrot.lane.b32.xlu0 %v4469, 96
    %v6408 = vpop.permute.xlu0 %6407
    %6409 = vrot.lane.b32.xlu0 %v4475, 96
    %v6410 = vpop.permute.xlu0 %6409
    %v6414 = vsel %vm539, %v6400, 0
    %v6417 = vsel %vm539, %v6402, 0
    %6419 = vmatprep.subr.mxu0 0.0
    %6420 = vmatpush1.msra.mxu0 0.0
    %6421 = vmatprep.subr.mxu0 0.0
    %6422 = vmatpush1.msra.mxu0 0.0
    %6423 = vmatprep.subr.mxu0 0.0
    %6424 = vmatpush1.msra.mxu0 0.0
    %6425 = vmatprep.subr.mxu0 0.0
    %6426 = vmatpush1.msra.mxu0 0.0
    %6427 = vmatprep.subr.mxu0 0.0
    %6428 = vmatpush1.msra.mxu0 0.0
    %6429 = vmatprep.subr.mxu0 0.0
    %6430 = vmatpush1.msra.mxu0 0.0
    %6431 = vmatprep.subr.mxu0 0.0
    %6432 = vmatpush1.msra.mxu0 0.0
    %6433 = vmatprep.subr.mxu0 0.0
    %6434 = vmatpush1.msra.mxu0 0.0
    %6435 = vmatprep.subr.mxu0 0.0
    %6436 = vmatpush1.msra.mxu0 0.0
    %6437 = vmatprep.subr.mxu0 0.0
    %6438 = vmatpush1.msra.mxu0 0.0
    %6439 = vmatprep.subr.mxu0 0.0
    %6440 = vmatpush1.msra.mxu0 0.0
    %6441 = vmatprep.subr.mxu0 0.0
    %6442 = vmatpush1.msra.mxu0 0.0
    %6443 = vmatprep.subr.mxu0 0.0
    %6444 = vmatpush1.msra.mxu0 0.0
    %6445 = vmatprep.subr.mxu0 0.0
    %6446 = vmatpush1.msra.mxu0 0.0
    %6447 = vmatprep.subr.mxu0 0.0
    %6448 = vmatpush1.msra.mxu0 %v6410
    %6449 = vmatprep.subr.mxu0 0.0
    %6450 = vmatpush1.msra.mxu0 %v6408
    %6451 = vmatprep.subr.mxu0 0.0
    %6452 = vmatpush2.msra.mxu0 0.0
    %6453 = vmatprep.subr.mxu0 0.0
    %6454 = vmatpush2.msra.mxu0 0.0
    %6455 = vmatprep.subr.mxu0 0.0
    %6456 = vmatpush2.msra.mxu0 0.0
    %6457 = vmatprep.subr.mxu0 0.0
    %6458 = vmatpush2.msra.mxu0 0.0
    %6459 = vmatprep.subr.mxu0 0.0
    %6460 = vmatpush2.msra.mxu0 0.0
    %6461 = vmatprep.subr.mxu0 0.0
    %6462 = vmatpush2.msra.mxu0 0.0
    %6463 = vmatprep.subr.mxu0 0.0
    %6464 = vmatpush2.msra.mxu0 0.0
    %6465 = vmatprep.subr.mxu0 0.0
    %6466 = vmatpush2.msra.mxu0 0.0
    %6467 = vmatprep.subr.mxu0 0.0
    %6468 = vmatpush2.msra.mxu0 0.0
    %6469 = vmatprep.subr.mxu0 0.0
    %6470 = vmatpush2.msra.mxu0 0.0
    %6471 = vmatprep.subr.mxu0 0.0
    %6472 = vmatpush2.msra.mxu0 0.0
    %6473 = vmatprep.subr.mxu0 0.0
    %6474 = vmatpush2.msra.mxu0 0.0
    %6475 = vmatprep.subr.mxu0 0.0
    %6476 = vmatpush2.msra.mxu0 0.0
    %6477 = vmatprep.subr.mxu0 0.0
    %6478 = vmatpush2.msra.mxu0 0.0
    %6479 = vmatprep.subr.mxu0 0.0
    %6480 = vmatpush2.msra.mxu0 0.0
    %6481 = vmatprep.subr.mxu0 0.0
    %6482 = vmatpush2.msra.mxu0 0.0
    %6483 = vmatprep.mubr.f32.mxu0 0.0
    %6484 = vmatmul.mubr.f32.gmra.mxu0 %v6414
    %v6485 = vpop.f32.mrf.mxu0
    %v6486 = vadd.f32 0.0, %v6485
    %v6487 = vpop.f32.mrf.mxu0
    %6488 = vmatprep.mubr.f32.mxu0 0.0
    %6489 = vmatmul.mubr.f32.gmra.mxu0 %v6417
    %v6490 = vpop.f32.mrf.mxu0
    %v6491 = vadd.f32 0.0, %v6490
    %v6492 = vpop.f32.mrf.mxu0
    %6493 = vdwg.mxu0
    %6494 = vrot.lane.b32.xlu0 %v4481, 96
    %v6495 = vpop.permute.xlu0 %6494
    %6496 = vrot.lane.b32.xlu0 %v4487, 96
    %v6497 = vpop.permute.xlu0 %6496
    %v6501 = vsel %vm539, %v6404, 0
    %v6504 = vsel %vm539, %v6406, 0
    %6506 = vmatprep.subr.mxu0 0.0
    %6507 = vmatpush1.msra.mxu0 0.0
    %6508 = vmatprep.subr.mxu0 0.0
    %6509 = vmatpush1.msra.mxu0 0.0
    %6510 = vmatprep.subr.mxu0 0.0
    %6511 = vmatpush1.msra.mxu0 0.0
    %6512 = vmatprep.subr.mxu0 0.0
    %6513 = vmatpush1.msra.mxu0 0.0
    %6514 = vmatprep.subr.mxu0 0.0
    %6515 = vmatpush1.msra.mxu0 0.0
    %6516 = vmatprep.subr.mxu0 0.0
    %6517 = vmatpush1.msra.mxu0 0.0
    %6518 = vmatprep.subr.mxu0 0.0
    %6519 = vmatpush1.msra.mxu0 0.0
    %6520 = vmatprep.subr.mxu0 0.0
    %6521 = vmatpush1.msra.mxu0 0.0
    %6522 = vmatprep.subr.mxu0 0.0
    %6523 = vmatpush1.msra.mxu0 0.0
    %6524 = vmatprep.subr.mxu0 0.0
    %6525 = vmatpush1.msra.mxu0 0.0
    %6526 = vmatprep.subr.mxu0 0.0
    %6527 = vmatpush1.msra.mxu0 0.0
    %6528 = vmatprep.subr.mxu0 0.0
    %6529 = vmatpush1.msra.mxu0 0.0
    %6530 = vmatprep.subr.mxu0 0.0
    %6531 = vmatpush1.msra.mxu0 0.0
    %6532 = vmatprep.subr.mxu0 0.0
    %6533 = vmatpush1.msra.mxu0 0.0
    %6534 = vmatprep.subr.mxu0 0.0
    %6535 = vmatpush1.msra.mxu0 %v6497
    %6536 = vmatprep.subr.mxu0 0.0
    %6537 = vmatpush1.msra.mxu0 %v6495
    %6538 = vmatprep.subr.mxu0 0.0
    %6539 = vmatpush2.msra.mxu0 0.0
    %6540 = vmatprep.subr.mxu0 0.0
    %6541 = vmatpush2.msra.mxu0 0.0
    %6542 = vmatprep.subr.mxu0 0.0
    %6543 = vmatpush2.msra.mxu0 0.0
    %6544 = vmatprep.subr.mxu0 0.0
    %6545 = vmatpush2.msra.mxu0 0.0
    %6546 = vmatprep.subr.mxu0 0.0
    %6547 = vmatpush2.msra.mxu0 0.0
    %6548 = vmatprep.subr.mxu0 0.0
    %6549 = vmatpush2.msra.mxu0 0.0
    %6550 = vmatprep.subr.mxu0 0.0
    %6551 = vmatpush2.msra.mxu0 0.0
    %6552 = vmatprep.subr.mxu0 0.0
    %6553 = vmatpush2.msra.mxu0 0.0
    %6554 = vmatprep.subr.mxu0 0.0
    %6555 = vmatpush2.msra.mxu0 0.0
    %6556 = vmatprep.subr.mxu0 0.0
    %6557 = vmatpush2.msra.mxu0 0.0
    %6558 = vmatprep.subr.mxu0 0.0
    %6559 = vmatpush2.msra.mxu0 0.0
    %6560 = vmatprep.subr.mxu0 0.0
    %6561 = vmatpush2.msra.mxu0 0.0
    %6562 = vmatprep.subr.mxu0 0.0
    %6563 = vmatpush2.msra.mxu0 0.0
    %6564 = vmatprep.subr.mxu0 0.0
    %6565 = vmatpush2.msra.mxu0 0.0
    %6566 = vmatprep.subr.mxu0 0.0
    %6567 = vmatpush2.msra.mxu0 0.0
    %6568 = vmatprep.subr.mxu0 0.0
    %6569 = vmatpush2.msra.mxu0 0.0
    %6570 = vmatprep.mubr.f32.mxu0 0.0
    %6571 = vmatmul.mubr.f32.gmra.mxu0 %v6501
    %v6572 = vpop.f32.mrf.mxu0
    %v6573 = vadd.f32 0.0, %v6572
    %v6574 = vpop.f32.mrf.mxu0
    %6575 = vmatprep.mubr.f32.mxu0 0.0
    %6576 = vmatmul.mubr.f32.gmra.mxu0 %v6504
    %v6577 = vpop.f32.mrf.mxu0
    %v6578 = vadd.f32 0.0, %v6577
    %v6579 = vpop.f32.mrf.mxu0
    %6580 = vdwg.mxu0
    %6585 = vrot.lane.b32.xlu0 %v6486, 32
    %v6586 = vpop.permute.xlu0 %6585
    %6587 = vrot.lane.b32.xlu0 %v6491, 32
    %v6588 = vpop.permute.xlu0 %6587
    %6589 = vrot.lane.b32.xlu0 %v6573, 32
    %v6590 = vpop.permute.xlu0 %6589
    %6591 = vrot.lane.b32.xlu0 %v6578, 32
    %v6592 = vpop.permute.xlu0 %6591
    %6597 = vst.msk [vmem:[#allocation2] sm:$0xff] %vm2465, %v6586
    %6598 = vst.msk [vmem:[#allocation2 + $0x8] sm:$0xff] %vm2465, %v6588
    %6599 = vst.msk [vmem:[#allocation2 + $0x10] sm:$0xff] %vm2465, %v6590
    %6600 = vst.msk [vmem:[#allocation2 + $0x18] sm:$0xff] %vm2465, %v6592
    %6601 = vrot.lane.b32.xlu0 %v4467, 88
    %v6602 = vpop.permute.xlu0 %6601
    %6603 = vrot.lane.b32.xlu0 %v4473, 88
    %v6604 = vpop.permute.xlu0 %6603
    %6605 = vrot.lane.b32.xlu0 %v4467, 24
    %v6606 = vpop.permute.xlu0 %6605
    %6607 = vrot.lane.b32.xlu0 %v4473, 24
    %v6608 = vpop.permute.xlu0 %6607
    %v6609 = vsel %vm346, %v6602, 0
    %v6611 = vsel %vm346, %v6604, 0
    %v6613 = vsel %vm346, %v6606, 0
    %v6615 = vsel %vm346, %v6608, 0
    %6617 = vmatprep.subr.mxu0 0.0
    %6618 = vmatpush1.xpose.msra.mxu0 0.0
    %6619 = vmatprep.subr.mxu0 0.0
    %6620 = vmatpush1.xpose.msra.mxu0 0.0
    %6621 = vmatprep.subr.mxu0 0.0
    %6622 = vmatpush1.xpose.msra.mxu0 0.0
    %6623 = vmatprep.subr.mxu0 0.0
    %6624 = vmatpush1.xpose.msra.mxu0 0.0
    %6625 = vmatprep.subr.mxu0 0.0
    %6626 = vmatpush1.xpose.msra.mxu0 0.0
    %6627 = vmatprep.subr.mxu0 0.0
    %6628 = vmatpush1.xpose.msra.mxu0 0.0
    %6629 = vmatprep.subr.mxu0 0.0
    %6630 = vmatpush1.xpose.msra.mxu0 0.0
    %6631 = vmatprep.subr.mxu0 0.0
    %6632 = vmatpush1.xpose.msra.mxu0 0.0
    %6633 = vmatprep.subr.mxu0 0.0
    %6634 = vmatpush1.xpose.msra.mxu0 0.0
    %6635 = vmatprep.subr.mxu0 0.0
    %6636 = vmatpush1.xpose.msra.mxu0 0.0
    %6637 = vmatprep.subr.mxu0 0.0
    %6638 = vmatpush1.xpose.msra.mxu0 0.0
    %6639 = vmatprep.subr.mxu0 0.0
    %6640 = vmatpush1.xpose.msra.mxu0 0.0
    %6641 = vmatprep.subr.mxu0 0.0
    %6642 = vmatpush1.xpose.msra.mxu0 0.0
    %6643 = vmatprep.subr.mxu0 0.0
    %6644 = vmatpush1.xpose.msra.mxu0 0.0
    %6645 = vmatprep.subr.mxu0 0.0
    %6646 = vmatpush1.xpose.msra.mxu0 %v6615
    %6647 = vmatprep.subr.mxu0 0.0
    %6648 = vmatpush1.xpose.msra.mxu0 %v6613
    %6649 = vmatprep.subr.mxu0 0.0
    %6650 = vmatpush2.xpose.msra.mxu0 0.0
    %6651 = vmatprep.subr.mxu0 0.0
    %6652 = vmatpush2.xpose.msra.mxu0 0.0
    %6653 = vmatprep.subr.mxu0 0.0
    %6654 = vmatpush2.xpose.msra.mxu0 0.0
    %6655 = vmatprep.subr.mxu0 0.0
    %6656 = vmatpush2.xpose.msra.mxu0 0.0
    %6657 = vmatprep.subr.mxu0 0.0
    %6658 = vmatpush2.xpose.msra.mxu0 0.0
    %6659 = vmatprep.subr.mxu0 0.0
    %6660 = vmatpush2.xpose.msra.mxu0 0.0
    %6661 = vmatprep.subr.mxu0 0.0
    %6662 = vmatpush2.xpose.msra.mxu0 0.0
    %6663 = vmatprep.subr.mxu0 0.0
    %6664 = vmatpush2.xpose.msra.mxu0 0.0
    %6665 = vmatprep.subr.mxu0 0.0
    %6666 = vmatpush2.xpose.msra.mxu0 0.0
    %6667 = vmatprep.subr.mxu0 0.0
    %6668 = vmatpush2.xpose.msra.mxu0 0.0
    %6669 = vmatprep.subr.mxu0 0.0
    %6670 = vmatpush2.xpose.msra.mxu0 0.0
    %6671 = vmatprep.subr.mxu0 0.0
    %6672 = vmatpush2.xpose.msra.mxu0 0.0
    %6673 = vmatprep.subr.mxu0 0.0
    %6674 = vmatpush2.xpose.msra.mxu0 0.0
    %6675 = vmatprep.subr.mxu0 0.0
    %6676 = vmatpush2.xpose.msra.mxu0 0.0
    %6677 = vmatprep.subr.mxu0 0.0
    %6678 = vmatpush2.xpose.msra.mxu0 0.0
    %6679 = vmatprep.subr.mxu0 0.0
    %6680 = vmatpush2.xpose.msra.mxu0 0.0
    %6681 = vmatprep.mubr.f32.mxu0 0.0
    %6682 = vmatmul.mubr.f32.gmra.mxu0 %v6609
    %v6683 = vpop.f32.mrf.mxu0
    %v6684 = vadd.f32 0.0, %v6683
    %v6685 = vpop.f32.mrf.mxu0
    %6686 = vmatprep.mubr.f32.mxu0 0.0
    %6687 = vmatmul.mubr.f32.gmra.mxu0 %v6611
    %v6688 = vpop.f32.mrf.mxu0
    %v6689 = vadd.f32 0.0, %v6688
    %v6690 = vpop.f32.mrf.mxu0
    %6691 = vdwg.mxu0
    %6692 = vrot.lane.b32.xlu0 %v4479, 88
    %v6693 = vpop.permute.xlu0 %6692
    %6694 = vrot.lane.b32.xlu0 %v4485, 88
    %v6695 = vpop.permute.xlu0 %6694
    %6696 = vrot.lane.b32.xlu0 %v4479, 24
    %v6697 = vpop.permute.xlu0 %6696
    %6698 = vrot.lane.b32.xlu0 %v4485, 24
    %v6699 = vpop.permute.xlu0 %6698
    %v6700 = vsel %vm346, %v6693, 0
    %v6702 = vsel %vm346, %v6695, 0
    %v6704 = vsel %vm346, %v6697, 0
    %v6706 = vsel %vm346, %v6699, 0
    %6708 = vmatprep.subr.mxu0 0.0
    %6709 = vmatpush1.xpose.msra.mxu0 0.0
    %6710 = vmatprep.subr.mxu0 0.0
    %6711 = vmatpush1.xpose.msra.mxu0 0.0
    %6712 = vmatprep.subr.mxu0 0.0
    %6713 = vmatpush1.xpose.msra.mxu0 0.0
    %6714 = vmatprep.subr.mxu0 0.0
    %6715 = vmatpush1.xpose.msra.mxu0 0.0
    %6716 = vmatprep.subr.mxu0 0.0
    %6717 = vmatpush1.xpose.msra.mxu0 0.0
    %6718 = vmatprep.subr.mxu0 0.0
    %6719 = vmatpush1.xpose.msra.mxu0 0.0
    %6720 = vmatprep.subr.mxu0 0.0
    %6721 = vmatpush1.xpose.msra.mxu0 0.0
    %6722 = vmatprep.subr.mxu0 0.0
    %6723 = vmatpush1.xpose.msra.mxu0 0.0
    %6724 = vmatprep.subr.mxu0 0.0
    %6725 = vmatpush1.xpose.msra.mxu0 0.0
    %6726 = vmatprep.subr.mxu0 0.0
    %6727 = vmatpush1.xpose.msra.mxu0 0.0
    %6728 = vmatprep.subr.mxu0 0.0
    %6729 = vmatpush1.xpose.msra.mxu0 0.0
    %6730 = vmatprep.subr.mxu0 0.0
    %6731 = vmatpush1.xpose.msra.mxu0 0.0
    %6732 = vmatprep.subr.mxu0 0.0
    %6733 = vmatpush1.xpose.msra.mxu0 0.0
    %6734 = vmatprep.subr.mxu0 0.0
    %6735 = vmatpush1.xpose.msra.mxu0 0.0
    %6736 = vmatprep.subr.mxu0 0.0
    %6737 = vmatpush1.xpose.msra.mxu0 %v6706
    %6738 = vmatprep.subr.mxu0 0.0
    %6739 = vmatpush1.xpose.msra.mxu0 %v6704
    %6740 = vmatprep.subr.mxu0 0.0
    %6741 = vmatpush2.xpose.msra.mxu0 0.0
    %6742 = vmatprep.subr.mxu0 0.0
    %6743 = vmatpush2.xpose.msra.mxu0 0.0
    %6744 = vmatprep.subr.mxu0 0.0
    %6745 = vmatpush2.xpose.msra.mxu0 0.0
    %6746 = vmatprep.subr.mxu0 0.0
    %6747 = vmatpush2.xpose.msra.mxu0 0.0
    %6748 = vmatprep.subr.mxu0 0.0
    %6749 = vmatpush2.xpose.msra.mxu0 0.0
    %6750 = vmatprep.subr.mxu0 0.0
    %6751 = vmatpush2.xpose.msra.mxu0 0.0
    %6752 = vmatprep.subr.mxu0 0.0
    %6753 = vmatpush2.xpose.msra.mxu0 0.0
    %6754 = vmatprep.subr.mxu0 0.0
    %6755 = vmatpush2.xpose.msra.mxu0 0.0
    %6756 = vmatprep.subr.mxu0 0.0
    %6757 = vmatpush2.xpose.msra.mxu0 0.0
    %6758 = vmatprep.subr.mxu0 0.0
    %6759 = vmatpush2.xpose.msra.mxu0 0.0
    %6760 = vmatprep.subr.mxu0 0.0
    %6761 = vmatpush2.xpose.msra.mxu0 0.0
    %6762 = vmatprep.subr.mxu0 0.0
    %6763 = vmatpush2.xpose.msra.mxu0 0.0
    %6764 = vmatprep.subr.mxu0 0.0
    %6765 = vmatpush2.xpose.msra.mxu0 0.0
    %6766 = vmatprep.subr.mxu0 0.0
    %6767 = vmatpush2.xpose.msra.mxu0 0.0
    %6768 = vmatprep.subr.mxu0 0.0
    %6769 = vmatpush2.xpose.msra.mxu0 0.0
    %6770 = vmatprep.subr.mxu0 0.0
    %6771 = vmatpush2.xpose.msra.mxu0 0.0
    %6772 = vmatprep.mubr.f32.mxu0 0.0
    %6773 = vmatmul.mubr.f32.gmra.mxu0 %v6700
    %v6774 = vpop.f32.mrf.mxu0
    %v6775 = vadd.f32 0.0, %v6774
    %v6776 = vpop.f32.mrf.mxu0
    %6777 = vmatprep.mubr.f32.mxu0 0.0
    %6778 = vmatmul.mubr.f32.gmra.mxu0 %v6702
    %v6779 = vpop.f32.mrf.mxu0
    %v6780 = vadd.f32 0.0, %v6779
    %v6781 = vpop.f32.mrf.mxu0
    %6782 = vdwg.mxu0
    %v6783 = vmul.f32 %v6684, 0.35355338
    %v6784 = vmul.f32 %v6689, 0.35355338
    %v6785 = vmul.f32 %v6775, 0.35355338
    %v6786 = vmul.f32 %v6780, 0.35355338
    %v6787 = vadd.f32 %v6783, %v528
    %v6788 = vadd.f32 %v6784, %v528
    %v6789 = vadd.f32 %v6785, %v532
    %v6790 = vadd.f32 %v6786, %v532
    %v6791 = vsel %vm539, %v6787, -inf
    %6792 = vmax.xlane.f32.xlu0 %v6791
    %v6793 = vpop.xlane.xlu0 %6792
    %v6794 = vsel %vm539, %v6788, -inf
    %6795 = vmax.xlane.f32.xlu0 %v6794
    %v6796 = vpop.xlane.xlu0 %6795
    %v6797 = vsel %vm539, %v6789, -inf
    %6798 = vmax.xlane.f32.xlu0 %v6797
    %v6799 = vpop.xlane.xlu0 %6798
    %v6800 = vsel %vm539, %v6790, -inf
    %6801 = vmax.xlane.f32.xlu0 %v6800
    %v6802 = vpop.xlane.xlu0 %6801
    %v6803 = vsub.f32 %v6787, %v6793
    %v6804 = vsub.f32 %v6788, %v6796
    %v6805 = vsub.f32 %v6789, %v6799
    %v6806 = vsub.f32 %v6790, %v6802
    %v6807 = vmul.f32 %v6803, 1.442695
    %v6808 = vpow.pop %v6807
    %v6809 = vmul.f32 %v6804, 1.442695
    %v6810 = vpow.pop %v6809
    %v6811 = vmul.f32 %v6805, 1.442695
    %v6812 = vpow.pop %v6811
    %v6813 = vmul.f32 %v6806, 1.442695
    %v6814 = vpow.pop %v6813
    %v6815 = vsel %vm539, %v6808, 0.0
    %6816 = vadd.xlane.f32.xlu0 %v6815
    %v6817 = vpop.xlane.xlu0 %6816
    %v6818 = vsel %vm539, %v6810, 0.0
    %6819 = vadd.xlane.f32.xlu0 %v6818
    %v6820 = vpop.xlane.xlu0 %6819
    %v6821 = vsel %vm539, %v6812, 0.0
    %6822 = vadd.xlane.f32.xlu0 %v6821
    %v6823 = vpop.xlane.xlu0 %6822
    %v6824 = vsel %vm539, %v6814, 0.0
    %6825 = vadd.xlane.f32.xlu0 %v6824
    %v6826 = vpop.xlane.xlu0 %6825
    %v6827 = vrcp.pop %v6817
    %v6828 = vmul.f32 %v6808, %v6827
    %v6829 = vrcp.pop %v6820
    %v6830 = vmul.f32 %v6810, %v6829
    %v6831 = vrcp.pop %v6823
    %v6832 = vmul.f32 %v6812, %v6831
    %v6833 = vrcp.pop %v6826
    %v6834 = vmul.f32 %v6814, %v6833
    %6835 = vrot.lane.b32.xlu0 %v4469, 88
    %v6836 = vpop.permute.xlu0 %6835
    %6837 = vrot.lane.b32.xlu0 %v4475, 88
    %v6838 = vpop.permute.xlu0 %6837
    %v6842 = vsel %vm539, %v6828, 0
    %v6845 = vsel %vm539, %v6830, 0
    %6847 = vmatprep.subr.mxu0 0.0
    %6848 = vmatpush1.msra.mxu0 0.0
    %6849 = vmatprep.subr.mxu0 0.0
    %6850 = vmatpush1.msra.mxu0 0.0
    %6851 = vmatprep.subr.mxu0 0.0
    %6852 = vmatpush1.msra.mxu0 0.0
    %6853 = vmatprep.subr.mxu0 0.0
    %6854 = vmatpush1.msra.mxu0 0.0
    %6855 = vmatprep.subr.mxu0 0.0
    %6856 = vmatpush1.msra.mxu0 0.0
    %6857 = vmatprep.subr.mxu0 0.0
    %6858 = vmatpush1.msra.mxu0 0.0
    %6859 = vmatprep.subr.mxu0 0.0
    %6860 = vmatpush1.msra.mxu0 0.0
    %6861 = vmatprep.subr.mxu0 0.0
    %6862 = vmatpush1.msra.mxu0 0.0
    %6863 = vmatprep.subr.mxu0 0.0
    %6864 = vmatpush1.msra.mxu0 0.0
    %6865 = vmatprep.subr.mxu0 0.0
    %6866 = vmatpush1.msra.mxu0 0.0
    %6867 = vmatprep.subr.mxu0 0.0
    %6868 = vmatpush1.msra.mxu0 0.0
    %6869 = vmatprep.subr.mxu0 0.0
    %6870 = vmatpush1.msra.mxu0 0.0
    %6871 = vmatprep.subr.mxu0 0.0
    %6872 = vmatpush1.msra.mxu0 0.0
    %6873 = vmatprep.subr.mxu0 0.0
    %6874 = vmatpush1.msra.mxu0 0.0
    %6875 = vmatprep.subr.mxu0 0.0
    %6876 = vmatpush1.msra.mxu0 %v6838
    %6877 = vmatprep.subr.mxu0 0.0
    %6878 = vmatpush1.msra.mxu0 %v6836
    %6879 = vmatprep.subr.mxu0 0.0
    %6880 = vmatpush2.msra.mxu0 0.0
    %6881 = vmatprep.subr.mxu0 0.0
    %6882 = vmatpush2.msra.mxu0 0.0
    %6883 = vmatprep.subr.mxu0 0.0
    %6884 = vmatpush2.msra.mxu0 0.0
    %6885 = vmatprep.subr.mxu0 0.0
    %6886 = vmatpush2.msra.mxu0 0.0
    %6887 = vmatprep.subr.mxu0 0.0
    %6888 = vmatpush2.msra.mxu0 0.0
    %6889 = vmatprep.subr.mxu0 0.0
    %6890 = vmatpush2.msra.mxu0 0.0
    %6891 = vmatprep.subr.mxu0 0.0
    %6892 = vmatpush2.msra.mxu0 0.0
    %6893 = vmatprep.subr.mxu0 0.0
    %6894 = vmatpush2.msra.mxu0 0.0
    %6895 = vmatprep.subr.mxu0 0.0
    %6896 = vmatpush2.msra.mxu0 0.0
    %6897 = vmatprep.subr.mxu0 0.0
    %6898 = vmatpush2.msra.mxu0 0.0
    %6899 = vmatprep.subr.mxu0 0.0
    %6900 = vmatpush2.msra.mxu0 0.0
    %6901 = vmatprep.subr.mxu0 0.0
    %6902 = vmatpush2.msra.mxu0 0.0
    %6903 = vmatprep.subr.mxu0 0.0
    %6904 = vmatpush2.msra.mxu0 0.0
    %6905 = vmatprep.subr.mxu0 0.0
    %6906 = vmatpush2.msra.mxu0 0.0
    %6907 = vmatprep.subr.mxu0 0.0
    %6908 = vmatpush2.msra.mxu0 0.0
    %6909 = vmatprep.subr.mxu0 0.0
    %6910 = vmatpush2.msra.mxu0 0.0
    %6911 = vmatprep.mubr.f32.mxu0 0.0
    %6912 = vmatmul.mubr.f32.gmra.mxu0 %v6842
    %v6913 = vpop.f32.mrf.mxu0
    %v6914 = vadd.f32 0.0, %v6913
    %v6915 = vpop.f32.mrf.mxu0
    %6916 = vmatprep.mubr.f32.mxu0 0.0
    %6917 = vmatmul.mubr.f32.gmra.mxu0 %v6845
    %v6918 = vpop.f32.mrf.mxu0
    %v6919 = vadd.f32 0.0, %v6918
    %v6920 = vpop.f32.mrf.mxu0
    %6921 = vdwg.mxu0
    %6922 = vrot.lane.b32.xlu0 %v4481, 88
    %v6923 = vpop.permute.xlu0 %6922
    %6924 = vrot.lane.b32.xlu0 %v4487, 88
    %v6925 = vpop.permute.xlu0 %6924
    %v6929 = vsel %vm539, %v6832, 0
    %v6932 = vsel %vm539, %v6834, 0
    %6934 = vmatprep.subr.mxu0 0.0
    %6935 = vmatpush1.msra.mxu0 0.0
    %6936 = vmatprep.subr.mxu0 0.0
    %6937 = vmatpush1.msra.mxu0 0.0
    %6938 = vmatprep.subr.mxu0 0.0
    %6939 = vmatpush1.msra.mxu0 0.0
    %6940 = vmatprep.subr.mxu0 0.0
    %6941 = vmatpush1.msra.mxu0 0.0
    %6942 = vmatprep.subr.mxu0 0.0
    %6943 = vmatpush1.msra.mxu0 0.0
    %6944 = vmatprep.subr.mxu0 0.0
    %6945 = vmatpush1.msra.mxu0 0.0
    %6946 = vmatprep.subr.mxu0 0.0
    %6947 = vmatpush1.msra.mxu0 0.0
    %6948 = vmatprep.subr.mxu0 0.0
    %6949 = vmatpush1.msra.mxu0 0.0
    %6950 = vmatprep.subr.mxu0 0.0
    %6951 = vmatpush1.msra.mxu0 0.0
    %6952 = vmatprep.subr.mxu0 0.0
    %6953 = vmatpush1.msra.mxu0 0.0
    %6954 = vmatprep.subr.mxu0 0.0
    %6955 = vmatpush1.msra.mxu0 0.0
    %6956 = vmatprep.subr.mxu0 0.0
    %6957 = vmatpush1.msra.mxu0 0.0
    %6958 = vmatprep.subr.mxu0 0.0
    %6959 = vmatpush1.msra.mxu0 0.0
    %6960 = vmatprep.subr.mxu0 0.0
    %6961 = vmatpush1.msra.mxu0 0.0
    %6962 = vmatprep.subr.mxu0 0.0
    %6963 = vmatpush1.msra.mxu0 %v6925
    %6964 = vmatprep.subr.mxu0 0.0
    %6965 = vmatpush1.msra.mxu0 %v6923
    %6966 = vmatprep.subr.mxu0 0.0
    %6967 = vmatpush2.msra.mxu0 0.0
    %6968 = vmatprep.subr.mxu0 0.0
    %6969 = vmatpush2.msra.mxu0 0.0
    %6970 = vmatprep.subr.mxu0 0.0
    %6971 = vmatpush2.msra.mxu0 0.0
    %6972 = vmatprep.subr.mxu0 0.0
    %6973 = vmatpush2.msra.mxu0 0.0
    %6974 = vmatprep.subr.mxu0 0.0
    %6975 = vmatpush2.msra.mxu0 0.0
    %6976 = vmatprep.subr.mxu0 0.0
    %6977 = vmatpush2.msra.mxu0 0.0
    %6978 = vmatprep.subr.mxu0 0.0
    %6979 = vmatpush2.msra.mxu0 0.0
    %6980 = vmatprep.subr.mxu0 0.0
    %6981 = vmatpush2.msra.mxu0 0.0
    %6982 = vmatprep.subr.mxu0 0.0
    %6983 = vmatpush2.msra.mxu0 0.0
    %6984 = vmatprep.subr.mxu0 0.0
    %6985 = vmatpush2.msra.mxu0 0.0
    %6986 = vmatprep.subr.mxu0 0.0
    %6987 = vmatpush2.msra.mxu0 0.0
    %6988 = vmatprep.subr.mxu0 0.0
    %6989 = vmatpush2.msra.mxu0 0.0
    %6990 = vmatprep.subr.mxu0 0.0
    %6991 = vmatpush2.msra.mxu0 0.0
    %6992 = vmatprep.subr.mxu0 0.0
    %6993 = vmatpush2.msra.mxu0 0.0
    %6994 = vmatprep.subr.mxu0 0.0
    %6995 = vmatpush2.msra.mxu0 0.0
    %6996 = vmatprep.subr.mxu0 0.0
    %6997 = vmatpush2.msra.mxu0 0.0
    %6998 = vmatprep.mubr.f32.mxu0 0.0
    %6999 = vmatmul.mubr.f32.gmra.mxu0 %v6929
    %v7000 = vpop.f32.mrf.mxu0
    %v7001 = vadd.f32 0.0, %v7000
    %v7002 = vpop.f32.mrf.mxu0
    %7003 = vmatprep.mubr.f32.mxu0 0.0
    %7004 = vmatmul.mubr.f32.gmra.mxu0 %v6932
    %v7005 = vpop.f32.mrf.mxu0
    %v7006 = vadd.f32 0.0, %v7005
    %v7007 = vpop.f32.mrf.mxu0
    %7008 = vdwg.mxu0
    %7013 = vrot.lane.b32.xlu0 %v6914, 40
    %v7014 = vpop.permute.xlu0 %7013
    %7015 = vrot.lane.b32.xlu0 %v6919, 40
    %v7016 = vpop.permute.xlu0 %7015
    %7017 = vrot.lane.b32.xlu0 %v7001, 40
    %v7018 = vpop.permute.xlu0 %7017
    %7019 = vrot.lane.b32.xlu0 %v7006, 40
    %v7020 = vpop.permute.xlu0 %7019
    %7025 = vst.msk [vmem:[#allocation2] sm:$0xff] %vm2894, %v7014
    %7026 = vst.msk [vmem:[#allocation2 + $0x8] sm:$0xff] %vm2894, %v7016
    %7027 = vst.msk [vmem:[#allocation2 + $0x10] sm:$0xff] %vm2894, %v7018
    %7028 = vst.msk [vmem:[#allocation2 + $0x18] sm:$0xff] %vm2894, %v7020
    %7029 = vrot.lane.b32.xlu0 %v4467, 80
    %v7030 = vpop.permute.xlu0 %7029
    %7031 = vrot.lane.b32.xlu0 %v4473, 80
    %v7032 = vpop.permute.xlu0 %7031
    %7033 = vrot.lane.b32.xlu0 %v4467, 16
    %v7034 = vpop.permute.xlu0 %7033
    %7035 = vrot.lane.b32.xlu0 %v4473, 16
    %v7036 = vpop.permute.xlu0 %7035
    %v7037 = vsel %vm346, %v7030, 0
    %v7039 = vsel %vm346, %v7032, 0
    %v7041 = vsel %vm346, %v7034, 0
    %v7043 = vsel %vm346, %v7036, 0
    %7045 = vmatprep.subr.mxu0 0.0
    %7046 = vmatpush1.xpose.msra.mxu0 0.0
    %7047 = vmatprep.subr.mxu0 0.0
    %7048 = vmatpush1.xpose.msra.mxu0 0.0
    %7049 = vmatprep.subr.mxu0 0.0
    %7050 = vmatpush1.xpose.msra.mxu0 0.0
    %7051 = vmatprep.subr.mxu0 0.0
    %7052 = vmatpush1.xpose.msra.mxu0 0.0
    %7053 = vmatprep.subr.mxu0 0.0
    %7054 = vmatpush1.xpose.msra.mxu0 0.0
    %7055 = vmatprep.subr.mxu0 0.0
    %7056 = vmatpush1.xpose.msra.mxu0 0.0
    %7057 = vmatprep.subr.mxu0 0.0
    %7058 = vmatpush1.xpose.msra.mxu0 0.0
    %7059 = vmatprep.subr.mxu0 0.0
    %7060 = vmatpush1.xpose.msra.mxu0 0.0
    %7061 = vmatprep.subr.mxu0 0.0
    %7062 = vmatpush1.xpose.msra.mxu0 0.0
    %7063 = vmatprep.subr.mxu0 0.0
    %7064 = vmatpush1.xpose.msra.mxu0 0.0
    %7065 = vmatprep.subr.mxu0 0.0
    %7066 = vmatpush1.xpose.msra.mxu0 0.0
    %7067 = vmatprep.subr.mxu0 0.0
    %7068 = vmatpush1.xpose.msra.mxu0 0.0
    %7069 = vmatprep.subr.mxu0 0.0
    %7070 = vmatpush1.xpose.msra.mxu0 0.0
    %7071 = vmatprep.subr.mxu0 0.0
    %7072 = vmatpush1.xpose.msra.mxu0 0.0
    %7073 = vmatprep.subr.mxu0 0.0
    %7074 = vmatpush1.xpose.msra.mxu0 %v7043
    %7075 = vmatprep.subr.mxu0 0.0
    %7076 = vmatpush1.xpose.msra.mxu0 %v7041
    %7077 = vmatprep.subr.mxu0 0.0
    %7078 = vmatpush2.xpose.msra.mxu0 0.0
    %7079 = vmatprep.subr.mxu0 0.0
    %7080 = vmatpush2.xpose.msra.mxu0 0.0
    %7081 = vmatprep.subr.mxu0 0.0
    %7082 = vmatpush2.xpose.msra.mxu0 0.0
    %7083 = vmatprep.subr.mxu0 0.0
    %7084 = vmatpush2.xpose.msra.mxu0 0.0
    %7085 = vmatprep.subr.mxu0 0.0
    %7086 = vmatpush2.xpose.msra.mxu0 0.0
    %7087 = vmatprep.subr.mxu0 0.0
    %7088 = vmatpush2.xpose.msra.mxu0 0.0
    %7089 = vmatprep.subr.mxu0 0.0
    %7090 = vmatpush2.xpose.msra.mxu0 0.0
    %7091 = vmatprep.subr.mxu0 0.0
    %7092 = vmatpush2.xpose.msra.mxu0 0.0
    %7093 = vmatprep.subr.mxu0 0.0
    %7094 = vmatpush2.xpose.msra.mxu0 0.0
    %7095 = vmatprep.subr.mxu0 0.0
    %7096 = vmatpush2.xpose.msra.mxu0 0.0
    %7097 = vmatprep.subr.mxu0 0.0
    %7098 = vmatpush2.xpose.msra.mxu0 0.0
    %7099 = vmatprep.subr.mxu0 0.0
    %7100 = vmatpush2.xpose.msra.mxu0 0.0
    %7101 = vmatprep.subr.mxu0 0.0
    %7102 = vmatpush2.xpose.msra.mxu0 0.0
    %7103 = vmatprep.subr.mxu0 0.0
    %7104 = vmatpush2.xpose.msra.mxu0 0.0
    %7105 = vmatprep.subr.mxu0 0.0
    %7106 = vmatpush2.xpose.msra.mxu0 0.0
    %7107 = vmatprep.subr.mxu0 0.0
    %7108 = vmatpush2.xpose.msra.mxu0 0.0
    %7109 = vmatprep.mubr.f32.mxu0 0.0
    %7110 = vmatmul.mubr.f32.gmra.mxu0 %v7037
    %v7111 = vpop.f32.mrf.mxu0
    %v7112 = vadd.f32 0.0, %v7111
    %v7113 = vpop.f32.mrf.mxu0
    %7114 = vmatprep.mubr.f32.mxu0 0.0
    %7115 = vmatmul.mubr.f32.gmra.mxu0 %v7039
    %v7116 = vpop.f32.mrf.mxu0
    %v7117 = vadd.f32 0.0, %v7116
    %v7118 = vpop.f32.mrf.mxu0
    %7119 = vdwg.mxu0
    %7120 = vrot.lane.b32.xlu0 %v4479, 80
    %v7121 = vpop.permute.xlu0 %7120
    %7122 = vrot.lane.b32.xlu0 %v4485, 80
    %v7123 = vpop.permute.xlu0 %7122
    %7124 = vrot.lane.b32.xlu0 %v4479, 16
    %v7125 = vpop.permute.xlu0 %7124
    %7126 = vrot.lane.b32.xlu0 %v4485, 16
    %v7127 = vpop.permute.xlu0 %7126
    %v7128 = vsel %vm346, %v7121, 0
    %v7130 = vsel %vm346, %v7123, 0
    %v7132 = vsel %vm346, %v7125, 0
    %v7134 = vsel %vm346, %v7127, 0
    %7136 = vmatprep.subr.mxu0 0.0
    %7137 = vmatpush1.xpose.msra.mxu0 0.0
    %7138 = vmatprep.subr.mxu0 0.0
    %7139 = vmatpush1.xpose.msra.mxu0 0.0
    %7140 = vmatprep.subr.mxu0 0.0
    %7141 = vmatpush1.xpose.msra.mxu0 0.0
    %7142 = vmatprep.subr.mxu0 0.0
    %7143 = vmatpush1.xpose.msra.mxu0 0.0
    %7144 = vmatprep.subr.mxu0 0.0
    %7145 = vmatpush1.xpose.msra.mxu0 0.0
    %7146 = vmatprep.subr.mxu0 0.0
    %7147 = vmatpush1.xpose.msra.mxu0 0.0
    %7148 = vmatprep.subr.mxu0 0.0
    %7149 = vmatpush1.xpose.msra.mxu0 0.0
    %7150 = vmatprep.subr.mxu0 0.0
    %7151 = vmatpush1.xpose.msra.mxu0 0.0
    %7152 = vmatprep.subr.mxu0 0.0
    %7153 = vmatpush1.xpose.msra.mxu0 0.0
    %7154 = vmatprep.subr.mxu0 0.0
    %7155 = vmatpush1.xpose.msra.mxu0 0.0
    %7156 = vmatprep.subr.mxu0 0.0
    %7157 = vmatpush1.xpose.msra.mxu0 0.0
    %7158 = vmatprep.subr.mxu0 0.0
    %7159 = vmatpush1.xpose.msra.mxu0 0.0
    %7160 = vmatprep.subr.mxu0 0.0
    %7161 = vmatpush1.xpose.msra.mxu0 0.0
    %7162 = vmatprep.subr.mxu0 0.0
    %7163 = vmatpush1.xpose.msra.mxu0 0.0
    %7164 = vmatprep.subr.mxu0 0.0
    %7165 = vmatpush1.xpose.msra.mxu0 %v7134
    %7166 = vmatprep.subr.mxu0 0.0
    %7167 = vmatpush1.xpose.msra.mxu0 %v7132
    %7168 = vmatprep.subr.mxu0 0.0
    %7169 = vmatpush2.xpose.msra.mxu0 0.0
    %7170 = vmatprep.subr.mxu0 0.0
    %7171 = vmatpush2.xpose.msra.mxu0 0.0
    %7172 = vmatprep.subr.mxu0 0.0
    %7173 = vmatpush2.xpose.msra.mxu0 0.0
    %7174 = vmatprep.subr.mxu0 0.0
    %7175 = vmatpush2.xpose.msra.mxu0 0.0
    %7176 = vmatprep.subr.mxu0 0.0
    %7177 = vmatpush2.xpose.msra.mxu0 0.0
    %7178 = vmatprep.subr.mxu0 0.0
    %7179 = vmatpush2.xpose.msra.mxu0 0.0
    %7180 = vmatprep.subr.mxu0 0.0
    %7181 = vmatpush2.xpose.msra.mxu0 0.0
    %7182 = vmatprep.subr.mxu0 0.0
    %7183 = vmatpush2.xpose.msra.mxu0 0.0
    %7184 = vmatprep.subr.mxu0 0.0
    %7185 = vmatpush2.xpose.msra.mxu0 0.0
    %7186 = vmatprep.subr.mxu0 0.0
    %7187 = vmatpush2.xpose.msra.mxu0 0.0
    %7188 = vmatprep.subr.mxu0 0.0
    %7189 = vmatpush2.xpose.msra.mxu0 0.0
    %7190 = vmatprep.subr.mxu0 0.0
    %7191 = vmatpush2.xpose.msra.mxu0 0.0
    %7192 = vmatprep.subr.mxu0 0.0
    %7193 = vmatpush2.xpose.msra.mxu0 0.0
    %7194 = vmatprep.subr.mxu0 0.0
    %7195 = vmatpush2.xpose.msra.mxu0 0.0
    %7196 = vmatprep.subr.mxu0 0.0
    %7197 = vmatpush2.xpose.msra.mxu0 0.0
    %7198 = vmatprep.subr.mxu0 0.0
    %7199 = vmatpush2.xpose.msra.mxu0 0.0
    %7200 = vmatprep.mubr.f32.mxu0 0.0
    %7201 = vmatmul.mubr.f32.gmra.mxu0 %v7128
    %v7202 = vpop.f32.mrf.mxu0
    %v7203 = vadd.f32 0.0, %v7202
    %v7204 = vpop.f32.mrf.mxu0
    %7205 = vmatprep.mubr.f32.mxu0 0.0
    %7206 = vmatmul.mubr.f32.gmra.mxu0 %v7130
    %v7207 = vpop.f32.mrf.mxu0
    %v7208 = vadd.f32 0.0, %v7207
    %v7209 = vpop.f32.mrf.mxu0
    %7210 = vdwg.mxu0
    %v7211 = vmul.f32 %v7112, 0.35355338
    %v7212 = vmul.f32 %v7117, 0.35355338
    %v7213 = vmul.f32 %v7203, 0.35355338
    %v7214 = vmul.f32 %v7208, 0.35355338
    %v7215 = vadd.f32 %v7211, %v528
    %v7216 = vadd.f32 %v7212, %v528
    %v7217 = vadd.f32 %v7213, %v532
    %v7218 = vadd.f32 %v7214, %v532
    %v7219 = vsel %vm539, %v7215, -inf
    %7220 = vmax.xlane.f32.xlu0 %v7219
    %v7221 = vpop.xlane.xlu0 %7220
    %v7222 = vsel %vm539, %v7216, -inf
    %7223 = vmax.xlane.f32.xlu0 %v7222
    %v7224 = vpop.xlane.xlu0 %7223
    %v7225 = vsel %vm539, %v7217, -inf
    %7226 = vmax.xlane.f32.xlu0 %v7225
    %v7227 = vpop.xlane.xlu0 %7226
    %v7228 = vsel %vm539, %v7218, -inf
    %7229 = vmax.xlane.f32.xlu0 %v7228
    %v7230 = vpop.xlane.xlu0 %7229
    %v7231 = vsub.f32 %v7215, %v7221
    %v7232 = vsub.f32 %v7216, %v7224
    %v7233 = vsub.f32 %v7217, %v7227
    %v7234 = vsub.f32 %v7218, %v7230
    %v7235 = vmul.f32 %v7231, 1.442695
    %v7236 = vpow.pop %v7235
    %v7237 = vmul.f32 %v7232, 1.442695
    %v7238 = vpow.pop %v7237
    %v7239 = vmul.f32 %v7233, 1.442695
    %v7240 = vpow.pop %v7239
    %v7241 = vmul.f32 %v7234, 1.442695
    %v7242 = vpow.pop %v7241
    %v7243 = vsel %vm539, %v7236, 0.0
    %7244 = vadd.xlane.f32.xlu0 %v7243
    %v7245 = vpop.xlane.xlu0 %7244
    %v7246 = vsel %vm539, %v7238, 0.0
    %7247 = vadd.xlane.f32.xlu0 %v7246
    %v7248 = vpop.xlane.xlu0 %7247
    %v7249 = vsel %vm539, %v7240, 0.0
    %7250 = vadd.xlane.f32.xlu0 %v7249
    %v7251 = vpop.xlane.xlu0 %7250
    %v7252 = vsel %vm539, %v7242, 0.0
    %7253 = vadd.xlane.f32.xlu0 %v7252
    %v7254 = vpop.xlane.xlu0 %7253
    %v7255 = vrcp.pop %v7245
    %v7256 = vmul.f32 %v7236, %v7255
    %v7257 = vrcp.pop %v7248
    %v7258 = vmul.f32 %v7238, %v7257
    %v7259 = vrcp.pop %v7251
    %v7260 = vmul.f32 %v7240, %v7259
    %v7261 = vrcp.pop %v7254
    %v7262 = vmul.f32 %v7242, %v7261
    %7263 = vrot.lane.b32.xlu0 %v4469, 80
    %v7264 = vpop.permute.xlu0 %7263
    %7265 = vrot.lane.b32.xlu0 %v4475, 80
    %v7266 = vpop.permute.xlu0 %7265
    %v7270 = vsel %vm539, %v7256, 0
    %v7273 = vsel %vm539, %v7258, 0
    %7275 = vmatprep.subr.mxu0 0.0
    %7276 = vmatpush1.msra.mxu0 0.0
    %7277 = vmatprep.subr.mxu0 0.0
    %7278 = vmatpush1.msra.mxu0 0.0
    %7279 = vmatprep.subr.mxu0 0.0
    %7280 = vmatpush1.msra.mxu0 0.0
    %7281 = vmatprep.subr.mxu0 0.0
    %7282 = vmatpush1.msra.mxu0 0.0
    %7283 = vmatprep.subr.mxu0 0.0
    %7284 = vmatpush1.msra.mxu0 0.0
    %7285 = vmatprep.subr.mxu0 0.0
    %7286 = vmatpush1.msra.mxu0 0.0
    %7287 = vmatprep.subr.mxu0 0.0
    %7288 = vmatpush1.msra.mxu0 0.0
    %7289 = vmatprep.subr.mxu0 0.0
    %7290 = vmatpush1.msra.mxu0 0.0
    %7291 = vmatprep.subr.mxu0 0.0
    %7292 = vmatpush1.msra.mxu0 0.0
    %7293 = vmatprep.subr.mxu0 0.0
    %7294 = vmatpush1.msra.mxu0 0.0
    %7295 = vmatprep.subr.mxu0 0.0
    %7296 = vmatpush1.msra.mxu0 0.0
    %7297 = vmatprep.subr.mxu0 0.0
    %7298 = vmatpush1.msra.mxu0 0.0
    %7299 = vmatprep.subr.mxu0 0.0
    %7300 = vmatpush1.msra.mxu0 0.0
    %7301 = vmatprep.subr.mxu0 0.0
    %7302 = vmatpush1.msra.mxu0 0.0
    %7303 = vmatprep.subr.mxu0 0.0
    %7304 = vmatpush1.msra.mxu0 %v7266
    %7305 = vmatprep.subr.mxu0 0.0
    %7306 = vmatpush1.msra.mxu0 %v7264
    %7307 = vmatprep.subr.mxu0 0.0
    %7308 = vmatpush2.msra.mxu0 0.0
    %7309 = vmatprep.subr.mxu0 0.0
    %7310 = vmatpush2.msra.mxu0 0.0
    %7311 = vmatprep.subr.mxu0 0.0
    %7312 = vmatpush2.msra.mxu0 0.0
    %7313 = vmatprep.subr.mxu0 0.0
    %7314 = vmatpush2.msra.mxu0 0.0
    %7315 = vmatprep.subr.mxu0 0.0
    %7316 = vmatpush2.msra.mxu0 0.0
    %7317 = vmatprep.subr.mxu0 0.0
    %7318 = vmatpush2.msra.mxu0 0.0
    %7319 = vmatprep.subr.mxu0 0.0
    %7320 = vmatpush2.msra.mxu0 0.0
    %7321 = vmatprep.subr.mxu0 0.0
    %7322 = vmatpush2.msra.mxu0 0.0
    %7323 = vmatprep.subr.mxu0 0.0
    %7324 = vmatpush2.msra.mxu0 0.0
    %7325 = vmatprep.subr.mxu0 0.0
    %7326 = vmatpush2.msra.mxu0 0.0
    %7327 = vmatprep.subr.mxu0 0.0
    %7328 = vmatpush2.msra.mxu0 0.0
    %7329 = vmatprep.subr.mxu0 0.0
    %7330 = vmatpush2.msra.mxu0 0.0
    %7331 = vmatprep.subr.mxu0 0.0
    %7332 = vmatpush2.msra.mxu0 0.0
    %7333 = vmatprep.subr.mxu0 0.0
    %7334 = vmatpush2.msra.mxu0 0.0
    %7335 = vmatprep.subr.mxu0 0.0
    %7336 = vmatpush2.msra.mxu0 0.0
    %7337 = vmatprep.subr.mxu0 0.0
    %7338 = vmatpush2.msra.mxu0 0.0
    %7339 = vmatprep.mubr.f32.mxu0 0.0
    %7340 = vmatmul.mubr.f32.gmra.mxu0 %v7270
    %v7341 = vpop.f32.mrf.mxu0
    %v7342 = vadd.f32 0.0, %v7341
    %v7343 = vpop.f32.mrf.mxu0
    %7344 = vmatprep.mubr.f32.mxu0 0.0
    %7345 = vmatmul.mubr.f32.gmra.mxu0 %v7273
    %v7346 = vpop.f32.mrf.mxu0
    %v7347 = vadd.f32 0.0, %v7346
    %v7348 = vpop.f32.mrf.mxu0
    %7349 = vdwg.mxu0
    %7350 = vrot.lane.b32.xlu0 %v4481, 80
    %v7351 = vpop.permute.xlu0 %7350
    %7352 = vrot.lane.b32.xlu0 %v4487, 80
    %v7353 = vpop.permute.xlu0 %7352
    %v7357 = vsel %vm539, %v7260, 0
    %v7360 = vsel %vm539, %v7262, 0
    %7362 = vmatprep.subr.mxu0 0.0
    %7363 = vmatpush1.msra.mxu0 0.0
    %7364 = vmatprep.subr.mxu0 0.0
    %7365 = vmatpush1.msra.mxu0 0.0
    %7366 = vmatprep.subr.mxu0 0.0
    %7367 = vmatpush1.msra.mxu0 0.0
    %7368 = vmatprep.subr.mxu0 0.0
    %7369 = vmatpush1.msra.mxu0 0.0
    %7370 = vmatprep.subr.mxu0 0.0
    %7371 = vmatpush1.msra.mxu0 0.0
    %7372 = vmatprep.subr.mxu0 0.0
    %7373 = vmatpush1.msra.mxu0 0.0
    %7374 = vmatprep.subr.mxu0 0.0
    %7375 = vmatpush1.msra.mxu0 0.0
    %7376 = vmatprep.subr.mxu0 0.0
    %7377 = vmatpush1.msra.mxu0 0.0
    %7378 = vmatprep.subr.mxu0 0.0
    %7379 = vmatpush1.msra.mxu0 0.0
    %7380 = vmatprep.subr.mxu0 0.0
    %7381 = vmatpush1.msra.mxu0 0.0
    %7382 = vmatprep.subr.mxu0 0.0
    %7383 = vmatpush1.msra.mxu0 0.0
    %7384 = vmatprep.subr.mxu0 0.0
    %7385 = vmatpush1.msra.mxu0 0.0
    %7386 = vmatprep.subr.mxu0 0.0
    %7387 = vmatpush1.msra.mxu0 0.0
    %7388 = vmatprep.subr.mxu0 0.0
    %7389 = vmatpush1.msra.mxu0 0.0
    %7390 = vmatprep.subr.mxu0 0.0
    %7391 = vmatpush1.msra.mxu0 %v7353
    %7392 = vmatprep.subr.mxu0 0.0
    %7393 = vmatpush1.msra.mxu0 %v7351
    %7394 = vmatprep.subr.mxu0 0.0
    %7395 = vmatpush2.msra.mxu0 0.0
    %7396 = vmatprep.subr.mxu0 0.0
    %7397 = vmatpush2.msra.mxu0 0.0
    %7398 = vmatprep.subr.mxu0 0.0
    %7399 = vmatpush2.msra.mxu0 0.0
    %7400 = vmatprep.subr.mxu0 0.0
    %7401 = vmatpush2.msra.mxu0 0.0
    %7402 = vmatprep.subr.mxu0 0.0
    %7403 = vmatpush2.msra.mxu0 0.0
    %7404 = vmatprep.subr.mxu0 0.0
    %7405 = vmatpush2.msra.mxu0 0.0
    %7406 = vmatprep.subr.mxu0 0.0
    %7407 = vmatpush2.msra.mxu0 0.0
    %7408 = vmatprep.subr.mxu0 0.0
    %7409 = vmatpush2.msra.mxu0 0.0
    %7410 = vmatprep.subr.mxu0 0.0
    %7411 = vmatpush2.msra.mxu0 0.0
    %7412 = vmatprep.subr.mxu0 0.0
    %7413 = vmatpush2.msra.mxu0 0.0
    %7414 = vmatprep.subr.mxu0 0.0
    %7415 = vmatpush2.msra.mxu0 0.0
    %7416 = vmatprep.subr.mxu0 0.0
    %7417 = vmatpush2.msra.mxu0 0.0
    %7418 = vmatprep.subr.mxu0 0.0
    %7419 = vmatpush2.msra.mxu0 0.0
    %7420 = vmatprep.subr.mxu0 0.0
    %7421 = vmatpush2.msra.mxu0 0.0
    %7422 = vmatprep.subr.mxu0 0.0
    %7423 = vmatpush2.msra.mxu0 0.0
    %7424 = vmatprep.subr.mxu0 0.0
    %7425 = vmatpush2.msra.mxu0 0.0
    %7426 = vmatprep.mubr.f32.mxu0 0.0
    %7427 = vmatmul.mubr.f32.gmra.mxu0 %v7357
    %v7428 = vpop.f32.mrf.mxu0
    %v7429 = vadd.f32 0.0, %v7428
    %v7430 = vpop.f32.mrf.mxu0
    %7431 = vmatprep.mubr.f32.mxu0 0.0
    %7432 = vmatmul.mubr.f32.gmra.mxu0 %v7360
    %v7433 = vpop.f32.mrf.mxu0
    %v7434 = vadd.f32 0.0, %v7433
    %v7435 = vpop.f32.mrf.mxu0
    %7436 = vdwg.mxu0
    %7441 = vrot.lane.b32.xlu0 %v7342, 48
    %v7442 = vpop.permute.xlu0 %7441
    %7443 = vrot.lane.b32.xlu0 %v7347, 48
    %v7444 = vpop.permute.xlu0 %7443
    %7445 = vrot.lane.b32.xlu0 %v7429, 48
    %v7446 = vpop.permute.xlu0 %7445
    %7447 = vrot.lane.b32.xlu0 %v7434, 48
    %v7448 = vpop.permute.xlu0 %7447
    %7453 = vst.msk [vmem:[#allocation2] sm:$0xff] %vm3323, %v7442
    %7454 = vst.msk [vmem:[#allocation2 + $0x8] sm:$0xff] %vm3323, %v7444
    %7455 = vst.msk [vmem:[#allocation2 + $0x10] sm:$0xff] %vm3323, %v7446
    %7456 = vst.msk [vmem:[#allocation2 + $0x18] sm:$0xff] %vm3323, %v7448
    %7457 = vrot.lane.b32.xlu0 %v4467, 72
    %v7458 = vpop.permute.xlu0 %7457
    %7459 = vrot.lane.b32.xlu0 %v4473, 72
    %v7460 = vpop.permute.xlu0 %7459
    %7461 = vrot.lane.b32.xlu0 %v4467, 8
    %v7462 = vpop.permute.xlu0 %7461
    %7463 = vrot.lane.b32.xlu0 %v4473, 8
    %v7464 = vpop.permute.xlu0 %7463
    %v7465 = vsel %vm346, %v7458, 0
    %v7467 = vsel %vm346, %v7460, 0
    %v7469 = vsel %vm346, %v7462, 0
    %v7471 = vsel %vm346, %v7464, 0
    %7473 = vmatprep.subr.mxu0 0.0
    %7474 = vmatpush1.xpose.msra.mxu0 0.0
    %7475 = vmatprep.subr.mxu0 0.0
    %7476 = vmatpush1.xpose.msra.mxu0 0.0
    %7477 = vmatprep.subr.mxu0 0.0
    %7478 = vmatpush1.xpose.msra.mxu0 0.0
    %7479 = vmatprep.subr.mxu0 0.0
    %7480 = vmatpush1.xpose.msra.mxu0 0.0
    %7481 = vmatprep.subr.mxu0 0.0
    %7482 = vmatpush1.xpose.msra.mxu0 0.0
    %7483 = vmatprep.subr.mxu0 0.0
    %7484 = vmatpush1.xpose.msra.mxu0 0.0
    %7485 = vmatprep.subr.mxu0 0.0
    %7486 = vmatpush1.xpose.msra.mxu0 0.0
    %7487 = vmatprep.subr.mxu0 0.0
    %7488 = vmatpush1.xpose.msra.mxu0 0.0
    %7489 = vmatprep.subr.mxu0 0.0
    %7490 = vmatpush1.xpose.msra.mxu0 0.0
    %7491 = vmatprep.subr.mxu0 0.0
    %7492 = vmatpush1.xpose.msra.mxu0 0.0
    %7493 = vmatprep.subr.mxu0 0.0
    %7494 = vmatpush1.xpose.msra.mxu0 0.0
    %7495 = vmatprep.subr.mxu0 0.0
    %7496 = vmatpush1.xpose.msra.mxu0 0.0
    %7497 = vmatprep.subr.mxu0 0.0
    %7498 = vmatpush1.xpose.msra.mxu0 0.0
    %7499 = vmatprep.subr.mxu0 0.0
    %7500 = vmatpush1.xpose.msra.mxu0 0.0
    %7501 = vmatprep.subr.mxu0 0.0
    %7502 = vmatpush1.xpose.msra.mxu0 %v7471
    %7503 = vmatprep.subr.mxu0 0.0
    %7504 = vmatpush1.xpose.msra.mxu0 %v7469
    %7505 = vmatprep.subr.mxu0 0.0
    %7506 = vmatpush2.xpose.msra.mxu0 0.0
    %7507 = vmatprep.subr.mxu0 0.0
    %7508 = vmatpush2.xpose.msra.mxu0 0.0
    %7509 = vmatprep.subr.mxu0 0.0
    %7510 = vmatpush2.xpose.msra.mxu0 0.0
    %7511 = vmatprep.subr.mxu0 0.0
    %7512 = vmatpush2.xpose.msra.mxu0 0.0
    %7513 = vmatprep.subr.mxu0 0.0
    %7514 = vmatpush2.xpose.msra.mxu0 0.0
    %7515 = vmatprep.subr.mxu0 0.0
    %7516 = vmatpush2.xpose.msra.mxu0 0.0
    %7517 = vmatprep.subr.mxu0 0.0
    %7518 = vmatpush2.xpose.msra.mxu0 0.0
    %7519 = vmatprep.subr.mxu0 0.0
    %7520 = vmatpush2.xpose.msra.mxu0 0.0
    %7521 = vmatprep.subr.mxu0 0.0
    %7522 = vmatpush2.xpose.msra.mxu0 0.0
    %7523 = vmatprep.subr.mxu0 0.0
    %7524 = vmatpush2.xpose.msra.mxu0 0.0
    %7525 = vmatprep.subr.mxu0 0.0
    %7526 = vmatpush2.xpose.msra.mxu0 0.0
    %7527 = vmatprep.subr.mxu0 0.0
    %7528 = vmatpush2.xpose.msra.mxu0 0.0
    %7529 = vmatprep.subr.mxu0 0.0
    %7530 = vmatpush2.xpose.msra.mxu0 0.0
    %7531 = vmatprep.subr.mxu0 0.0
    %7532 = vmatpush2.xpose.msra.mxu0 0.0
    %7533 = vmatprep.subr.mxu0 0.0
    %7534 = vmatpush2.xpose.msra.mxu0 0.0
    %7535 = vmatprep.subr.mxu0 0.0
    %7536 = vmatpush2.xpose.msra.mxu0 0.0
    %7537 = vmatprep.mubr.f32.mxu0 0.0
    %7538 = vmatmul.mubr.f32.gmra.mxu0 %v7465
    %v7539 = vpop.f32.mrf.mxu0
    %v7540 = vadd.f32 0.0, %v7539
    %v7541 = vpop.f32.mrf.mxu0
    %7542 = vmatprep.mubr.f32.mxu0 0.0
    %7543 = vmatmul.mubr.f32.gmra.mxu0 %v7467
    %v7544 = vpop.f32.mrf.mxu0
    %v7545 = vadd.f32 0.0, %v7544
    %v7546 = vpop.f32.mrf.mxu0
    %7547 = vdwg.mxu0
    %7548 = vrot.lane.b32.xlu0 %v4479, 72
    %v7549 = vpop.permute.xlu0 %7548
    %7550 = vrot.lane.b32.xlu0 %v4485, 72
    %v7551 = vpop.permute.xlu0 %7550
    %7552 = vrot.lane.b32.xlu0 %v4479, 8
    %v7553 = vpop.permute.xlu0 %7552
    %7554 = vrot.lane.b32.xlu0 %v4485, 8
    %v7555 = vpop.permute.xlu0 %7554
    %v7556 = vsel %vm346, %v7549, 0
    %v7558 = vsel %vm346, %v7551, 0
    %v7560 = vsel %vm346, %v7553, 0
    %v7562 = vsel %vm346, %v7555, 0
    %7564 = vmatprep.subr.mxu0 0.0
    %7565 = vmatpush1.xpose.msra.mxu0 0.0
    %7566 = vmatprep.subr.mxu0 0.0
    %7567 = vmatpush1.xpose.msra.mxu0 0.0
    %7568 = vmatprep.subr.mxu0 0.0
    %7569 = vmatpush1.xpose.msra.mxu0 0.0
    %7570 = vmatprep.subr.mxu0 0.0
    %7571 = vmatpush1.xpose.msra.mxu0 0.0
    %7572 = vmatprep.subr.mxu0 0.0
    %7573 = vmatpush1.xpose.msra.mxu0 0.0
    %7574 = vmatprep.subr.mxu0 0.0
    %7575 = vmatpush1.xpose.msra.mxu0 0.0
    %7576 = vmatprep.subr.mxu0 0.0
    %7577 = vmatpush1.xpose.msra.mxu0 0.0
    %7578 = vmatprep.subr.mxu0 0.0
    %7579 = vmatpush1.xpose.msra.mxu0 0.0
    %7580 = vmatprep.subr.mxu0 0.0
    %7581 = vmatpush1.xpose.msra.mxu0 0.0
    %7582 = vmatprep.subr.mxu0 0.0
    %7583 = vmatpush1.xpose.msra.mxu0 0.0
    %7584 = vmatprep.subr.mxu0 0.0
    %7585 = vmatpush1.xpose.msra.mxu0 0.0
    %7586 = vmatprep.subr.mxu0 0.0
    %7587 = vmatpush1.xpose.msra.mxu0 0.0
    %7588 = vmatprep.subr.mxu0 0.0
    %7589 = vmatpush1.xpose.msra.mxu0 0.0
    %7590 = vmatprep.subr.mxu0 0.0
    %7591 = vmatpush1.xpose.msra.mxu0 0.0
    %7592 = vmatprep.subr.mxu0 0.0
    %7593 = vmatpush1.xpose.msra.mxu0 %v7562
    %7594 = vmatprep.subr.mxu0 0.0
    %7595 = vmatpush1.xpose.msra.mxu0 %v7560
    %7596 = vmatprep.subr.mxu0 0.0
    %7597 = vmatpush2.xpose.msra.mxu0 0.0
    %7598 = vmatprep.subr.mxu0 0.0
    %7599 = vmatpush2.xpose.msra.mxu0 0.0
    %7600 = vmatprep.subr.mxu0 0.0
    %7601 = vmatpush2.xpose.msra.mxu0 0.0
    %7602 = vmatprep.subr.mxu0 0.0
    %7603 = vmatpush2.xpose.msra.mxu0 0.0
    %7604 = vmatprep.subr.mxu0 0.0
    %7605 = vmatpush2.xpose.msra.mxu0 0.0
    %7606 = vmatprep.subr.mxu0 0.0
    %7607 = vmatpush2.xpose.msra.mxu0 0.0
    %7608 = vmatprep.subr.mxu0 0.0
    %7609 = vmatpush2.xpose.msra.mxu0 0.0
    %7610 = vmatprep.subr.mxu0 0.0
    %7611 = vmatpush2.xpose.msra.mxu0 0.0
    %7612 = vmatprep.subr.mxu0 0.0
    %7613 = vmatpush2.xpose.msra.mxu0 0.0
    %7614 = vmatprep.subr.mxu0 0.0
    %7615 = vmatpush2.xpose.msra.mxu0 0.0
    %7616 = vmatprep.subr.mxu0 0.0
    %7617 = vmatpush2.xpose.msra.mxu0 0.0
    %7618 = vmatprep.subr.mxu0 0.0
    %7619 = vmatpush2.xpose.msra.mxu0 0.0
    %7620 = vmatprep.subr.mxu0 0.0
    %7621 = vmatpush2.xpose.msra.mxu0 0.0
    %7622 = vmatprep.subr.mxu0 0.0
    %7623 = vmatpush2.xpose.msra.mxu0 0.0
    %7624 = vmatprep.subr.mxu0 0.0
    %7625 = vmatpush2.xpose.msra.mxu0 0.0
    %7626 = vmatprep.subr.mxu0 0.0
    %7627 = vmatpush2.xpose.msra.mxu0 0.0
    %7628 = vmatprep.mubr.f32.mxu0 0.0
    %7629 = vmatmul.mubr.f32.gmra.mxu0 %v7556
    %v7630 = vpop.f32.mrf.mxu0
    %v7631 = vadd.f32 0.0, %v7630
    %v7632 = vpop.f32.mrf.mxu0
    %7633 = vmatprep.mubr.f32.mxu0 0.0
    %7634 = vmatmul.mubr.f32.gmra.mxu0 %v7558
    %v7635 = vpop.f32.mrf.mxu0
    %v7636 = vadd.f32 0.0, %v7635
    %v7637 = vpop.f32.mrf.mxu0
    %7638 = vdwg.mxu0
    %v7639 = vmul.f32 %v7540, 0.35355338
    %v7640 = vmul.f32 %v7545, 0.35355338
    %v7641 = vmul.f32 %v7631, 0.35355338
    %v7642 = vmul.f32 %v7636, 0.35355338
    %v7643 = vadd.f32 %v7639, %v528
    %v7644 = vadd.f32 %v7640, %v528
    %v7645 = vadd.f32 %v7641, %v532
    %v7646 = vadd.f32 %v7642, %v532
    %v7647 = vsel %vm539, %v7643, -inf
    %7648 = vmax.xlane.f32.xlu0 %v7647
    %v7649 = vpop.xlane.xlu0 %7648
    %v7650 = vsel %vm539, %v7644, -inf
    %7651 = vmax.xlane.f32.xlu0 %v7650
    %v7652 = vpop.xlane.xlu0 %7651
    %v7653 = vsel %vm539, %v7645, -inf
    %7654 = vmax.xlane.f32.xlu0 %v7653
    %v7655 = vpop.xlane.xlu0 %7654
    %v7656 = vsel %vm539, %v7646, -inf
    %7657 = vmax.xlane.f32.xlu0 %v7656
    %v7658 = vpop.xlane.xlu0 %7657
    %v7659 = vsub.f32 %v7643, %v7649
    %v7660 = vsub.f32 %v7644, %v7652
    %v7661 = vsub.f32 %v7645, %v7655
    %v7662 = vsub.f32 %v7646, %v7658
    %v7663 = vmul.f32 %v7659, 1.442695
    %v7664 = vpow.pop %v7663
    %v7665 = vmul.f32 %v7660, 1.442695
    %v7666 = vpow.pop %v7665
    %v7667 = vmul.f32 %v7661, 1.442695
    %v7668 = vpow.pop %v7667
    %v7669 = vmul.f32 %v7662, 1.442695
    %v7670 = vpow.pop %v7669
    %v7671 = vsel %vm539, %v7664, 0.0
    %7672 = vadd.xlane.f32.xlu0 %v7671
    %v7673 = vpop.xlane.xlu0 %7672
    %v7674 = vsel %vm539, %v7666, 0.0
    %7675 = vadd.xlane.f32.xlu0 %v7674
    %v7676 = vpop.xlane.xlu0 %7675
    %v7677 = vsel %vm539, %v7668, 0.0
    %7678 = vadd.xlane.f32.xlu0 %v7677
    %v7679 = vpop.xlane.xlu0 %7678
    %v7680 = vsel %vm539, %v7670, 0.0
    %7681 = vadd.xlane.f32.xlu0 %v7680
    %v7682 = vpop.xlane.xlu0 %7681
    %v7683 = vrcp.pop %v7673
    %v7684 = vmul.f32 %v7664, %v7683
    %v7685 = vrcp.pop %v7676
    %v7686 = vmul.f32 %v7666, %v7685
    %v7687 = vrcp.pop %v7679
    %v7688 = vmul.f32 %v7668, %v7687
    %v7689 = vrcp.pop %v7682
    %v7690 = vmul.f32 %v7670, %v7689
    %7691 = vrot.lane.b32.xlu0 %v4469, 72
    %v7692 = vpop.permute.xlu0 %7691
    %7693 = vrot.lane.b32.xlu0 %v4475, 72
    %v7694 = vpop.permute.xlu0 %7693
    %v7698 = vsel %vm539, %v7684, 0
    %v7701 = vsel %vm539, %v7686, 0
    %7703 = vmatprep.subr.mxu0 0.0
    %7704 = vmatpush1.msra.mxu0 0.0
    %7705 = vmatprep.subr.mxu0 0.0
    %7706 = vmatpush1.msra.mxu0 0.0
    %7707 = vmatprep.subr.mxu0 0.0
    %7708 = vmatpush1.msra.mxu0 0.0
    %7709 = vmatprep.subr.mxu0 0.0
    %7710 = vmatpush1.msra.mxu0 0.0
    %7711 = vmatprep.subr.mxu0 0.0
    %7712 = vmatpush1.msra.mxu0 0.0
    %7713 = vmatprep.subr.mxu0 0.0
    %7714 = vmatpush1.msra.mxu0 0.0
    %7715 = vmatprep.subr.mxu0 0.0
    %7716 = vmatpush1.msra.mxu0 0.0
    %7717 = vmatprep.subr.mxu0 0.0
    %7718 = vmatpush1.msra.mxu0 0.0
    %7719 = vmatprep.subr.mxu0 0.0
    %7720 = vmatpush1.msra.mxu0 0.0
    %7721 = vmatprep.subr.mxu0 0.0
    %7722 = vmatpush1.msra.mxu0 0.0
    %7723 = vmatprep.subr.mxu0 0.0
    %7724 = vmatpush1.msra.mxu0 0.0
    %7725 = vmatprep.subr.mxu0 0.0
    %7726 = vmatpush1.msra.mxu0 0.0
    %7727 = vmatprep.subr.mxu0 0.0
    %7728 = vmatpush1.msra.mxu0 0.0
    %7729 = vmatprep.subr.mxu0 0.0
    %7730 = vmatpush1.msra.mxu0 0.0
    %7731 = vmatprep.subr.mxu0 0.0
    %7732 = vmatpush1.msra.mxu0 %v7694
    %7733 = vmatprep.subr.mxu0 0.0
    %7734 = vmatpush1.msra.mxu0 %v7692
    %7735 = vmatprep.subr.mxu0 0.0
    %7736 = vmatpush2.msra.mxu0 0.0
    %7737 = vmatprep.subr.mxu0 0.0
    %7738 = vmatpush2.msra.mxu0 0.0
    %7739 = vmatprep.subr.mxu0 0.0
    %7740 = vmatpush2.msra.mxu0 0.0
    %7741 = vmatprep.subr.mxu0 0.0
    %7742 = vmatpush2.msra.mxu0 0.0
    %7743 = vmatprep.subr.mxu0 0.0
    %7744 = vmatpush2.msra.mxu0 0.0
    %7745 = vmatprep.subr.mxu0 0.0
    %7746 = vmatpush2.msra.mxu0 0.0
    %7747 = vmatprep.subr.mxu0 0.0
    %7748 = vmatpush2.msra.mxu0 0.0
    %7749 = vmatprep.subr.mxu0 0.0
    %7750 = vmatpush2.msra.mxu0 0.0
    %7751 = vmatprep.subr.mxu0 0.0
    %7752 = vmatpush2.msra.mxu0 0.0
    %7753 = vmatprep.subr.mxu0 0.0
    %7754 = vmatpush2.msra.mxu0 0.0
    %7755 = vmatprep.subr.mxu0 0.0
    %7756 = vmatpush2.msra.mxu0 0.0
    %7757 = vmatprep.subr.mxu0 0.0
    %7758 = vmatpush2.msra.mxu0 0.0
    %7759 = vmatprep.subr.mxu0 0.0
    %7760 = vmatpush2.msra.mxu0 0.0
    %7761 = vmatprep.subr.mxu0 0.0
    %7762 = vmatpush2.msra.mxu0 0.0
    %7763 = vmatprep.subr.mxu0 0.0
    %7764 = vmatpush2.msra.mxu0 0.0
    %7765 = vmatprep.subr.mxu0 0.0
    %7766 = vmatpush2.msra.mxu0 0.0
    %7767 = vmatprep.mubr.f32.mxu0 0.0
    %7768 = vmatmul.mubr.f32.gmra.mxu0 %v7698
    %v7769 = vpop.f32.mrf.mxu0
    %v7770 = vadd.f32 0.0, %v7769
    %v7771 = vpop.f32.mrf.mxu0
    %7772 = vmatprep.mubr.f32.mxu0 0.0
    %7773 = vmatmul.mubr.f32.gmra.mxu0 %v7701
    %v7774 = vpop.f32.mrf.mxu0
    %v7775 = vadd.f32 0.0, %v7774
    %v7776 = vpop.f32.mrf.mxu0
    %7777 = vdwg.mxu0
    %7778 = vrot.lane.b32.xlu0 %v4481, 72
    %v7779 = vpop.permute.xlu0 %7778
    %7780 = vrot.lane.b32.xlu0 %v4487, 72
    %v7781 = vpop.permute.xlu0 %7780
    %v7785 = vsel %vm539, %v7688, 0
    %v7788 = vsel %vm539, %v7690, 0
    %7790 = vmatprep.subr.mxu0 0.0
    %7791 = vmatpush1.msra.mxu0 0.0
    %7792 = vmatprep.subr.mxu0 0.0
    %7793 = vmatpush1.msra.mxu0 0.0
    %7794 = vmatprep.subr.mxu0 0.0
    %7795 = vmatpush1.msra.mxu0 0.0
    %7796 = vmatprep.subr.mxu0 0.0
    %7797 = vmatpush1.msra.mxu0 0.0
    %7798 = vmatprep.subr.mxu0 0.0
    %7799 = vmatpush1.msra.mxu0 0.0
    %7800 = vmatprep.subr.mxu0 0.0
    %7801 = vmatpush1.msra.mxu0 0.0
    %7802 = vmatprep.subr.mxu0 0.0
    %7803 = vmatpush1.msra.mxu0 0.0
    %7804 = vmatprep.subr.mxu0 0.0
    %7805 = vmatpush1.msra.mxu0 0.0
    %7806 = vmatprep.subr.mxu0 0.0
    %7807 = vmatpush1.msra.mxu0 0.0
    %7808 = vmatprep.subr.mxu0 0.0
    %7809 = vmatpush1.msra.mxu0 0.0
    %7810 = vmatprep.subr.mxu0 0.0
    %7811 = vmatpush1.msra.mxu0 0.0
    %7812 = vmatprep.subr.mxu0 0.0
    %7813 = vmatpush1.msra.mxu0 0.0
    %7814 = vmatprep.subr.mxu0 0.0
    %7815 = vmatpush1.msra.mxu0 0.0
    %7816 = vmatprep.subr.mxu0 0.0
    %7817 = vmatpush1.msra.mxu0 0.0
    %7818 = vmatprep.subr.mxu0 0.0
    %7819 = vmatpush1.msra.mxu0 %v7781
    %7820 = vmatprep.subr.mxu0 0.0
    %7821 = vmatpush1.msra.mxu0 %v7779
    %7822 = vmatprep.subr.mxu0 0.0
    %7823 = vmatpush2.msra.mxu0 0.0
    %7824 = vmatprep.subr.mxu0 0.0
    %7825 = vmatpush2.msra.mxu0 0.0
    %7826 = vmatprep.subr.mxu0 0.0
    %7827 = vmatpush2.msra.mxu0 0.0
    %7828 = vmatprep.subr.mxu0 0.0
    %7829 = vmatpush2.msra.mxu0 0.0
    %7830 = vmatprep.subr.mxu0 0.0
    %7831 = vmatpush2.msra.mxu0 0.0
    %7832 = vmatprep.subr.mxu0 0.0
    %7833 = vmatpush2.msra.mxu0 0.0
    %7834 = vmatprep.subr.mxu0 0.0
    %7835 = vmatpush2.msra.mxu0 0.0
    %7836 = vmatprep.subr.mxu0 0.0
    %7837 = vmatpush2.msra.mxu0 0.0
    %7838 = vmatprep.subr.mxu0 0.0
    %7839 = vmatpush2.msra.mxu0 0.0
    %7840 = vmatprep.subr.mxu0 0.0
    %7841 = vmatpush2.msra.mxu0 0.0
    %7842 = vmatprep.subr.mxu0 0.0
    %7843 = vmatpush2.msra.mxu0 0.0
    %7844 = vmatprep.subr.mxu0 0.0
    %7845 = vmatpush2.msra.mxu0 0.0
    %7846 = vmatprep.subr.mxu0 0.0
    %7847 = vmatpush2.msra.mxu0 0.0
    %7848 = vmatprep.subr.mxu0 0.0
    %7849 = vmatpush2.msra.mxu0 0.0
    %7850 = vmatprep.subr.mxu0 0.0
    %7851 = vmatpush2.msra.mxu0 0.0
    %7852 = vmatprep.subr.mxu0 0.0
    %7853 = vmatpush2.msra.mxu0 0.0
    %7854 = vmatprep.mubr.f32.mxu0 0.0
    %7855 = vmatmul.mubr.f32.gmra.mxu0 %v7785
    %v7856 = vpop.f32.mrf.mxu0
    %v7857 = vadd.f32 0.0, %v7856
    %v7858 = vpop.f32.mrf.mxu0
    %7859 = vmatprep.mubr.f32.mxu0 0.0
    %7860 = vmatmul.mubr.f32.gmra.mxu0 %v7788
    %v7861 = vpop.f32.mrf.mxu0
    %v7862 = vadd.f32 0.0, %v7861
    %v7863 = vpop.f32.mrf.mxu0
    %7864 = vdwg.mxu0
    %7869 = vrot.lane.b32.xlu0 %v7770, 56
    %v7870 = vpop.permute.xlu0 %7869
    %7871 = vrot.lane.b32.xlu0 %v7775, 56
    %v7872 = vpop.permute.xlu0 %7871
    %7873 = vrot.lane.b32.xlu0 %v7857, 56
    %v7874 = vpop.permute.xlu0 %7873
    %7875 = vrot.lane.b32.xlu0 %v7862, 56
    %v7876 = vpop.permute.xlu0 %7875
    %7881 = vst.msk [vmem:[#allocation2] sm:$0xff] %vm3752, %v7870
    %7882 = vst.msk [vmem:[#allocation2 + $0x8] sm:$0xff] %vm3752, %v7872
    %7883 = vst.msk [vmem:[#allocation2 + $0x10] sm:$0xff] %vm3752, %v7874
    %7884 = vst.msk [vmem:[#allocation2 + $0x18] sm:$0xff] %vm3752, %v7876
    %v7885 = vld [vmem:[#allocation2] sm:$0xff]
    %v7886 = vld [vmem:[#allocation2 + $0x8] sm:$0xff]
    %v7887 = vld [vmem:[#allocation2 + $0x10] sm:$0xff]
    %v7888 = vld [vmem:[#allocation2 + $0x18] sm:$0xff]
    %s7889 = scalar_lea.vmem %s6, 64
    %v7890 = vld [vmem:[%s7889] sm:$0xff]
    %v7891 = vld [vmem:[%s7889 + $0x8] sm:$0xff]
    %v7892 = vld [vmem:[%s7889 + $0x10] sm:$0xff]
    %v7893 = vld [vmem:[%s7889 + $0x18] sm:$0xff]
    %v7894 = vld [vmem:[%s7889 + $0x20] sm:$0xff]
    %v7895 = vld [vmem:[%s7889 + $0x28] sm:$0xff]
    %v7896 = vld [vmem:[%s7889 + $0x30] sm:$0xff]
    %v7897 = vld [vmem:[%s7889 + $0x38] sm:$0xff]
    %s7898 = scalar_lea.vmem %s7, 1
    %v7899 = vld [vmem:[%s7898] sm:$0x1]
    %v7901 = vlaneseq
    %v7902 = vshrl.u32 %v7901, 7
    %v7903 = vsub.s32 0, %v7902
    %v7904 = vrot.slane %v7899, %v7903
    %v7907 = vsel %vm238, %v7885, 0
    %v7910 = vsel %vm238, %v7886, 0
    %v7913 = vsel %vm238, %v7887, 0
    %v7916 = vsel %vm238, %v7888, 0
    %7918 = vmatprep.subr.mxu0 0.0
    %7919 = vmatpush1.msra.mxu0 0.0
    %7920 = vmatprep.subr.mxu0 0.0
    %7921 = vmatpush1.msra.mxu0 0.0
    %7922 = vmatprep.subr.mxu0 0.0
    %7923 = vmatpush1.msra.mxu0 0.0
    %7924 = vmatprep.subr.mxu0 0.0
    %7925 = vmatpush1.msra.mxu0 0.0
    %7926 = vmatprep.subr.mxu0 0.0
    %7927 = vmatpush1.msra.mxu0 0.0
    %7928 = vmatprep.subr.mxu0 0.0
    %7929 = vmatpush1.msra.mxu0 0.0
    %7930 = vmatprep.subr.mxu0 0.0
    %7931 = vmatpush1.msra.mxu0 0.0
    %7932 = vmatprep.subr.mxu0 0.0
    %7933 = vmatpush1.msra.mxu0 0.0
    %7934 = vmatprep.subr.mxu0 0.0
    %7935 = vmatpush1.msra.mxu0 %v7897
    %7936 = vmatprep.subr.mxu0 0.0
    %7937 = vmatpush1.msra.mxu0 %v7896
    %7938 = vmatprep.subr.mxu0 0.0
    %7939 = vmatpush1.msra.mxu0 %v7895
    %7940 = vmatprep.subr.mxu0 0.0
    %7941 = vmatpush1.msra.mxu0 %v7894
    %7942 = vmatprep.subr.mxu0 0.0
    %7943 = vmatpush1.msra.mxu0 %v7893
    %7944 = vmatprep.subr.mxu0 0.0
    %7945 = vmatpush1.msra.mxu0 %v7892
    %7946 = vmatprep.subr.mxu0 0.0
    %7947 = vmatpush1.msra.mxu0 %v7891
    %7948 = vmatprep.subr.mxu0 0.0
    %7949 = vmatpush1.msra.mxu0 %v7890
    %7950 = vmatprep.subr.mxu0 0.0
    %7951 = vmatpush2.msra.mxu0 0.0
    %7952 = vmatprep.subr.mxu0 0.0
    %7953 = vmatpush2.msra.mxu0 0.0
    %7954 = vmatprep.subr.mxu0 0.0
    %7955 = vmatpush2.msra.mxu0 0.0
    %7956 = vmatprep.subr.mxu0 0.0
    %7957 = vmatpush2.msra.mxu0 0.0
    %7958 = vmatprep.subr.mxu0 0.0
    %7959 = vmatpush2.msra.mxu0 0.0
    %7960 = vmatprep.subr.mxu0 0.0
    %7961 = vmatpush2.msra.mxu0 0.0
    %7962 = vmatprep.subr.mxu0 0.0
    %7963 = vmatpush2.msra.mxu0 0.0
    %7964 = vmatprep.subr.mxu0 0.0
    %7965 = vmatpush2.msra.mxu0 0.0
    %7966 = vmatprep.subr.mxu0 0.0
    %7967 = vmatpush2.msra.mxu0 0.0
    %7968 = vmatprep.subr.mxu0 0.0
    %7969 = vmatpush2.msra.mxu0 0.0
    %7970 = vmatprep.subr.mxu0 0.0
    %7971 = vmatpush2.msra.mxu0 0.0
    %7972 = vmatprep.subr.mxu0 0.0
    %7973 = vmatpush2.msra.mxu0 0.0
    %7974 = vmatprep.subr.mxu0 0.0
    %7975 = vmatpush2.msra.mxu0 0.0
    %7976 = vmatprep.subr.mxu0 0.0
    %7977 = vmatpush2.msra.mxu0 0.0
    %7978 = vmatprep.subr.mxu0 0.0
    %7979 = vmatpush2.msra.mxu0 0.0
    %7980 = vmatprep.subr.mxu0 0.0
    %7981 = vmatpush2.msra.mxu0 0.0
    %7982 = vmatprep.mubr.f32.mxu0 0.0
    %7983 = vmatmul.mubr.f32.gmra.mxu0 %v7907
    %v7984 = vpop.f32.mrf.mxu0
    %v7985 = vadd.f32 %v7904, %v7984
    %v7986 = vpop.f32.mrf.mxu0
    %7987 = vmatprep.mubr.f32.mxu0 0.0
    %7988 = vmatmul.mubr.f32.gmra.mxu0 %v7910
    %v7989 = vpop.f32.mrf.mxu0
    %v7990 = vadd.f32 %v7904, %v7989
    %v7991 = vpop.f32.mrf.mxu0
    %7992 = vmatprep.mubr.f32.mxu0 0.0
    %7993 = vmatmul.mubr.f32.gmra.mxu0 %v7913
    %v7994 = vpop.f32.mrf.mxu0
    %v7995 = vadd.f32 %v7904, %v7994
    %v7996 = vpop.f32.mrf.mxu0
    %7997 = vmatprep.mubr.f32.mxu0 0.0
    %7998 = vmatmul.mubr.f32.gmra.mxu0 %v7916
    %v7999 = vpop.f32.mrf.mxu0
    %v8000 = vadd.f32 %v7904, %v7999
    %v8001 = vpop.f32.mrf.mxu0
    %8002 = vdwg.mxu0
    %v8003 = vadd.f32 %v4354, %v7985
    %v8004 = vadd.f32 %v4355, %v7990
    %v8005 = vadd.f32 %v4356, %v7995
    %v8006 = vadd.f32 %v4357, %v8000
    %s8007 = scalar_lea.vmem %s8, 1
    %v8008 = vld [vmem:[%s8007] sm:$0x1]
    %s8009 = scalar_lea.vmem %s9, 1
    %v8010 = vld [vmem:[%s8009] sm:$0x1]
    %v8011 = vsel %vm238, %v8003, 0.0
    %8012 = vadd.xlane.f32.xlu0 %v8011
    %v8013 = vpop.xlane.xlu0 %8012
    %v8014 = vsel %vm238, %v8004, 0.0
    %8015 = vadd.xlane.f32.xlu0 %v8014
    %v8016 = vpop.xlane.xlu0 %8015
    %v8017 = vsel %vm238, %v8005, 0.0
    %8018 = vadd.xlane.f32.xlu0 %v8017
    %v8019 = vpop.xlane.xlu0 %8018
    %v8020 = vsel %vm238, %v8006, 0.0
    %8021 = vadd.xlane.f32.xlu0 %v8020
    %v8022 = vpop.xlane.xlu0 %8021
    %v8023 = vmul.f32 %v8013, %v3891
    %v8024 = vmul.f32 %v8016, %v3891
    %v8025 = vmul.f32 %v8019, %v3891
    %v8026 = vmul.f32 %v8022, %v3891
    %v8027 = vsub.f32 %v8003, %v8023
    %v8028 = vsub.f32 %v8004, %v8024
    %v8029 = vsub.f32 %v8005, %v8025
    %v8030 = vsub.f32 %v8006, %v8026
    %v8031 = vmul.f32 %v8027, %v8027
    %v8032 = vmul.f32 %v8028, %v8028
    %v8033 = vmul.f32 %v8029, %v8029
    %v8034 = vmul.f32 %v8030, %v8030
    %v8035 = vsel %vm238, %v8031, 0.0
    %8036 = vadd.xlane.f32.xlu0 %v8035
    %v8037 = vpop.xlane.xlu0 %8036
    %v8038 = vsel %vm238, %v8032, 0.0
    %8039 = vadd.xlane.f32.xlu0 %v8038
    %v8040 = vpop.xlane.xlu0 %8039
    %v8041 = vsel %vm238, %v8033, 0.0
    %8042 = vadd.xlane.f32.xlu0 %v8041
    %v8043 = vpop.xlane.xlu0 %8042
    %v8044 = vsel %vm238, %v8034, 0.0
    %8045 = vadd.xlane.f32.xlu0 %v8044
    %v8046 = vpop.xlane.xlu0 %8045
    %v8047 = vmul.f32 %v8037, %v3891
    %v8048 = vmul.f32 %v8040, %v3891
    %v8049 = vmul.f32 %v8043, %v3891
    %v8050 = vmul.f32 %v8046, %v3891
    %v8051 = vadd.f32 %v8047, 1e-05
    %v8052 = vadd.f32 %v8048, 1e-05
    %v8053 = vadd.f32 %v8049, 1e-05
    %v8054 = vadd.f32 %v8050, 1e-05
    %v8055 = vrsqrt.pop %v8051
    %v8056 = vrsqrt.pop %v8052
    %v8057 = vrsqrt.pop %v8053
    %v8058 = vrsqrt.pop %v8054
    %v8059 = vmul.f32 %v8027, %v8055
    %v8060 = vmul.f32 %v8028, %v8056
    %v8061 = vmul.f32 %v8029, %v8057
    %v8062 = vmul.f32 %v8030, %v8058
    %v8064 = vlaneseq
    %v8065 = vshrl.u32 %v8064, 7
    %v8066 = vsub.s32 0, %v8065
    %v8067 = vrot.slane %v8008, %v8066
    %v8069 = vmul.f32 %v8059, %v8067
    %v8070 = vmul.f32 %v8060, %v8067
    %v8071 = vmul.f32 %v8061, %v8067
    %v8072 = vmul.f32 %v8062, %v8067
    %v8074 = vlaneseq
    %v8075 = vshrl.u32 %v8074, 7
    %v8076 = vsub.s32 0, %v8075
    %v8077 = vrot.slane %v8010, %v8076
    %v8079 = vadd.f32 %v8069, %v8077
    %v8080 = vadd.f32 %v8070, %v8077
    %v8081 = vadd.f32 %v8071, %v8077
    %v8082 = vadd.f32 %v8072, %v8077
    %s8083 = scalar_lea.vmem %s10, 64
    %v8084 = vld [vmem:[%s8083] sm:$0xff]
    %v8085 = vld [vmem:[%s8083 + $0x8] sm:$0xff]
    %v8086 = vld [vmem:[%s8083 + $0x10] sm:$0xff]
    %v8087 = vld [vmem:[%s8083 + $0x18] sm:$0xff]
    %v8088 = vld [vmem:[%s8083 + $0x20] sm:$0xff]
    %v8089 = vld [vmem:[%s8083 + $0x28] sm:$0xff]
    %v8090 = vld [vmem:[%s8083 + $0x30] sm:$0xff]
    %v8091 = vld [vmem:[%s8083 + $0x38] sm:$0xff]
    %s8092 = scalar_lea.vmem %s11, 1
    %v8093 = vld [vmem:[%s8092] sm:$0x1]
    %v8095 = vlaneseq
    %v8096 = vshrl.u32 %v8095, 7
    %v8097 = vsub.s32 0, %v8096
    %v8098 = vrot.slane %v8093, %v8097
    %v8101 = vsel %vm238, %v8079, 0
    %v8104 = vsel %vm238, %v8080, 0
    %v8107 = vsel %vm238, %v8081, 0
    %v8110 = vsel %vm238, %v8082, 0
    %8112 = vmatprep.subr.mxu0 0.0
    %8113 = vmatpush1.msra.mxu0 0.0
    %8114 = vmatprep.subr.mxu0 0.0
    %8115 = vmatpush1.msra.mxu0 0.0
    %8116 = vmatprep.subr.mxu0 0.0
    %8117 = vmatpush1.msra.mxu0 0.0
    %8118 = vmatprep.subr.mxu0 0.0
    %8119 = vmatpush1.msra.mxu0 0.0
    %8120 = vmatprep.subr.mxu0 0.0
    %8121 = vmatpush1.msra.mxu0 0.0
    %8122 = vmatprep.subr.mxu0 0.0
    %8123 = vmatpush1.msra.mxu0 0.0
    %8124 = vmatprep.subr.mxu0 0.0
    %8125 = vmatpush1.msra.mxu0 0.0
    %8126 = vmatprep.subr.mxu0 0.0
    %8127 = vmatpush1.msra.mxu0 0.0
    %8128 = vmatprep.subr.mxu0 0.0
    %8129 = vmatpush1.msra.mxu0 %v8091
    %8130 = vmatprep.subr.mxu0 0.0
    %8131 = vmatpush1.msra.mxu0 %v8090
    %8132 = vmatprep.subr.mxu0 0.0
    %8133 = vmatpush1.msra.mxu0 %v8089
    %8134 = vmatprep.subr.mxu0 0.0
    %8135 = vmatpush1.msra.mxu0 %v8088
    %8136 = vmatprep.subr.mxu0 0.0
    %8137 = vmatpush1.msra.mxu0 %v8087
    %8138 = vmatprep.subr.mxu0 0.0
    %8139 = vmatpush1.msra.mxu0 %v8086
    %8140 = vmatprep.subr.mxu0 0.0
    %8141 = vmatpush1.msra.mxu0 %v8085
    %8142 = vmatprep.subr.mxu0 0.0
    %8143 = vmatpush1.msra.mxu0 %v8084
    %8144 = vmatprep.subr.mxu0 0.0
    %8145 = vmatpush2.msra.mxu0 0.0
    %8146 = vmatprep.subr.mxu0 0.0
    %8147 = vmatpush2.msra.mxu0 0.0
    %8148 = vmatprep.subr.mxu0 0.0
    %8149 = vmatpush2.msra.mxu0 0.0
    %8150 = vmatprep.subr.mxu0 0.0
    %8151 = vmatpush2.msra.mxu0 0.0
    %8152 = vmatprep.subr.mxu0 0.0
    %8153 = vmatpush2.msra.mxu0 0.0
    %8154 = vmatprep.subr.mxu0 0.0
    %8155 = vmatpush2.msra.mxu0 0.0
    %8156 = vmatprep.subr.mxu0 0.0
    %8157 = vmatpush2.msra.mxu0 0.0
    %8158 = vmatprep.subr.mxu0 0.0
    %8159 = vmatpush2.msra.mxu0 0.0
    %8160 = vmatprep.subr.mxu0 0.0
    %8161 = vmatpush2.msra.mxu0 0.0
    %8162 = vmatprep.subr.mxu0 0.0
    %8163 = vmatpush2.msra.mxu0 0.0
    %8164 = vmatprep.subr.mxu0 0.0
    %8165 = vmatpush2.msra.mxu0 0.0
    %8166 = vmatprep.subr.mxu0 0.0
    %8167 = vmatpush2.msra.mxu0 0.0
    %8168 = vmatprep.subr.mxu0 0.0
    %8169 = vmatpush2.msra.mxu0 0.0
    %8170 = vmatprep.subr.mxu0 0.0
    %8171 = vmatpush2.msra.mxu0 0.0
    %8172 = vmatprep.subr.mxu0 0.0
    %8173 = vmatpush2.msra.mxu0 0.0
    %8174 = vmatprep.subr.mxu0 0.0
    %8175 = vmatpush2.msra.mxu0 0.0
    %8176 = vmatprep.mubr.f32.mxu0 0.0
    %8177 = vmatmul.mubr.f32.gmra.mxu0 %v8101
    %v8178 = vpop.f32.mrf.mxu0
    %v8179 = vadd.f32 %v8098, %v8178
    %v8180 = vpop.f32.mrf.mxu0
    %8181 = vmatprep.mubr.f32.mxu0 0.0
    %8182 = vmatmul.mubr.f32.gmra.mxu0 %v8104
    %v8183 = vpop.f32.mrf.mxu0
    %v8184 = vadd.f32 %v8098, %v8183
    %v8185 = vpop.f32.mrf.mxu0
    %8186 = vmatprep.mubr.f32.mxu0 0.0
    %8187 = vmatmul.mubr.f32.gmra.mxu0 %v8107
    %v8188 = vpop.f32.mrf.mxu0
    %v8189 = vadd.f32 %v8098, %v8188
    %v8190 = vpop.f32.mrf.mxu0
    %8191 = vmatprep.mubr.f32.mxu0 0.0
    %8192 = vmatmul.mubr.f32.gmra.mxu0 %v8110
    %v8193 = vpop.f32.mrf.mxu0
    %v8194 = vadd.f32 %v8098, %v8193
    %v8195 = vpop.f32.mrf.mxu0
    %8196 = vdwg.mxu0
    %v8197 = vmul.f32 %v8179, 0.5
    %v8198 = vmul.f32 %v8184, 0.5
    %v8199 = vmul.f32 %v8189, 0.5
    %v8200 = vmul.f32 %v8194, 0.5
    %v8201 = vmul.f32 %v8179, 0.70710677
    %v8202 = vmul.f32 %v8184, 0.70710677
    %v8203 = vmul.f32 %v8189, 0.70710677
    %v8204 = vmul.f32 %v8194, 0.70710677
    %vm8205 = vcmp.ge.f32.partialorder %v8201, 0.0
    %vm8206 = vcmp.ge.f32.partialorder %v8202, 0.0
    %vm8207 = vcmp.ge.f32.partialorder %v8203, 0.0
    %vm8208 = vcmp.ge.f32.partialorder %v8204, 0.0
    %v8209 = vsel %vm8205, 1.0, -1.0
    %v8210 = vsel %vm8206, 1.0, -1.0
    %v8211 = vsel %vm8207, 1.0, -1.0
    %v8212 = vsel %vm8208, 1.0, -1.0
    %v8213 = vand.u32 2147483647, %v8201
    %v8214 = vand.u32 2147483647, %v8202
    %v8215 = vand.u32 2147483647, %v8203
    %v8216 = vand.u32 2147483647, %v8204
    %v8217 = vmul.f32 %v8213, 0.3275911
    %v8218 = vmul.f32 %v8214, 0.3275911
    %v8219 = vmul.f32 %v8215, 0.3275911
    %v8220 = vmul.f32 %v8216, 0.3275911
    %v8221 = vadd.f32 %v8217, 1.0
    %v8222 = vadd.f32 %v8218, 1.0
    %v8223 = vadd.f32 %v8219, 1.0
    %v8224 = vadd.f32 %v8220, 1.0
    %v8225 = vrcp.pop %v8221
    %v8226 = vmul.f32 1.0, %v8225
    %v8227 = vrcp.pop %v8222
    %v8228 = vmul.f32 1.0, %v8227
    %v8229 = vrcp.pop %v8223
    %v8230 = vmul.f32 1.0, %v8229
    %v8231 = vrcp.pop %v8224
    %v8232 = vmul.f32 1.0, %v8231
    %v8233 = vmul.f32 %v8226, 1.0614054
    %v8234 = vmul.f32 %v8228, 1.0614054
    %v8235 = vmul.f32 %v8230, 1.0614054
    %v8236 = vmul.f32 %v8232, 1.0614054
    %v8237 = vadd.f32 %v8233, -1.4531521
    %v8238 = vadd.f32 %v8234, -1.4531521
    %v8239 = vadd.f32 %v8235, -1.4531521
    %v8240 = vadd.f32 %v8236, -1.4531521
    %v8241 = vmul.f32 %v8237, %v8226
    %v8242 = vmul.f32 %v8238, %v8228
    %v8243 = vmul.f32 %v8239, %v8230
    %v8244 = vmul.f32 %v8240, %v8232
    %v8245 = vadd.f32 %v8241, 1.4214138
    %v8246 = vadd.f32 %v8242, 1.4214138
    %v8247 = vadd.f32 %v8243, 1.4214138
    %v8248 = vadd.f32 %v8244, 1.4214138
    %v8249 = vmul.f32 %v8245, %v8226
    %v8250 = vmul.f32 %v8246, %v8228
    %v8251 = vmul.f32 %v8247, %v8230
    %v8252 = vmul.f32 %v8248, %v8232
    %v8253 = vadd.f32 %v8249, -0.28449672
    %v8254 = vadd.f32 %v8250, -0.28449672
    %v8255 = vadd.f32 %v8251, -0.28449672
    %v8256 = vadd.f32 %v8252, -0.28449672
    %v8257 = vmul.f32 %v8253, %v8226
    %v8258 = vmul.f32 %v8254, %v8228
    %v8259 = vmul.f32 %v8255, %v8230
    %v8260 = vmul.f32 %v8256, %v8232
    %v8261 = vadd.f32 %v8257, 0.2548296
    %v8262 = vadd.f32 %v8258, 0.2548296
    %v8263 = vadd.f32 %v8259, 0.2548296
    %v8264 = vadd.f32 %v8260, 0.2548296
    %v8265 = vmul.f32 %v8261, %v8226
    %v8266 = vmul.f32 %v8262, %v8228
    %v8267 = vmul.f32 %v8263, %v8230
    %v8268 = vmul.f32 %v8264, %v8232
    %v8269 = vsub.f32 0.0, %v8213
    %v8270 = vsub.f32 0.0, %v8214
    %v8271 = vsub.f32 0.0, %v8215
    %v8272 = vsub.f32 0.0, %v8216
    %v8273 = vmul.f32 %v8269, %v8213
    %v8274 = vmul.f32 %v8270, %v8214
    %v8275 = vmul.f32 %v8271, %v8215
    %v8276 = vmul.f32 %v8272, %v8216
    %v8277 = vmul.f32 %v8273, 1.442695
    %v8278 = vpow.pop %v8277
    %v8279 = vmul.f32 %v8274, 1.442695
    %v8280 = vpow.pop %v8279
    %v8281 = vmul.f32 %v8275, 1.442695
    %v8282 = vpow.pop %v8281
    %v8283 = vmul.f32 %v8276, 1.442695
    %v8284 = vpow.pop %v8283
    %v8285 = vmul.f32 %v8265, %v8278
    %v8286 = vmul.f32 %v8266, %v8280
    %v8287 = vmul.f32 %v8267, %v8282
    %v8288 = vmul.f32 %v8268, %v8284
    %v8289 = vsub.f32 1.0, %v8285
    %v8290 = vsub.f32 1.0, %v8286
    %v8291 = vsub.f32 1.0, %v8287
    %v8292 = vsub.f32 1.0, %v8288
    %v8293 = vmul.f32 %v8209, %v8289
    %v8294 = vmul.f32 %v8210, %v8290
    %v8295 = vmul.f32 %v8211, %v8291
    %v8296 = vmul.f32 %v8212, %v8292
    %v8297 = vadd.f32 %v8293, 1.0
    %v8298 = vadd.f32 %v8294, 1.0
    %v8299 = vadd.f32 %v8295, 1.0
    %v8300 = vadd.f32 %v8296, 1.0
    %v8301 = vmul.f32 %v8197, %v8297
    %v8302 = vmul.f32 %v8198, %v8298
    %v8303 = vmul.f32 %v8199, %v8299
    %v8304 = vmul.f32 %v8200, %v8300
    %s8305 = scalar_lea.vmem %s12, 128
    %v8306 = vld [vmem:[%s8305] sm:$0xff]
    %v8307 = vld [vmem:[%s8305 + $0x8] sm:$0xff]
    %v8308 = vld [vmem:[%s8305 + $0x10] sm:$0xff]
    %v8309 = vld [vmem:[%s8305 + $0x18] sm:$0xff]
    %v8310 = vld [vmem:[%s8305 + $0x20] sm:$0xff]
    %v8311 = vld [vmem:[%s8305 + $0x28] sm:$0xff]
    %v8312 = vld [vmem:[%s8305 + $0x30] sm:$0xff]
    %v8313 = vld [vmem:[%s8305 + $0x38] sm:$0xff]
    %v8314 = vld [vmem:[%s8305 + $0x40] sm:$0xff]
    %v8315 = vld [vmem:[%s8305 + $0x48] sm:$0xff]
    %v8316 = vld [vmem:[%s8305 + $0x50] sm:$0xff]
    %v8317 = vld [vmem:[%s8305 + $0x58] sm:$0xff]
    %v8318 = vld [vmem:[%s8305 + $0x60] sm:$0xff]
    %v8319 = vld [vmem:[%s8305 + $0x68] sm:$0xff]
    %v8320 = vld [vmem:[%s8305 + $0x70] sm:$0xff]
    %v8321 = vld [vmem:[%s8305 + $0x78] sm:$0xff]
    %s8322 = scalar_lea.vmem %s13, 1
    %v8323 = vld [vmem:[%s8322] sm:$0x1]
    %v8325 = vlaneseq
    %v8326 = vshrl.u32 %v8325, 7
    %v8327 = vsub.s32 0, %v8326
    %v8328 = vrot.slane %v8323, %v8327
    %8330 = vmatprep.subr.mxu0 0.0
    %8331 = vmatpush1.msra.mxu0 %v8321
    %8332 = vmatprep.subr.mxu0 0.0
    %8333 = vmatpush1.msra.mxu0 %v8320
    %8334 = vmatprep.subr.mxu0 0.0
    %8335 = vmatpush1.msra.mxu0 %v8319
    %8336 = vmatprep.subr.mxu0 0.0
    %8337 = vmatpush1.msra.mxu0 %v8318
    %8338 = vmatprep.subr.mxu0 0.0
    %8339 = vmatpush1.msra.mxu0 %v8317
    %8340 = vmatprep.subr.mxu0 0.0
    %8341 = vmatpush1.msra.mxu0 %v8316
    %8342 = vmatprep.subr.mxu0 0.0
    %8343 = vmatpush1.msra.mxu0 %v8315
    %8344 = vmatprep.subr.mxu0 0.0
    %8345 = vmatpush1.msra.mxu0 %v8314
    %8346 = vmatprep.subr.mxu0 0.0
    %8347 = vmatpush1.msra.mxu0 %v8313
    %8348 = vmatprep.subr.mxu0 0.0
    %8349 = vmatpush1.msra.mxu0 %v8312
    %8350 = vmatprep.subr.mxu0 0.0
    %8351 = vmatpush1.msra.mxu0 %v8311
    %8352 = vmatprep.subr.mxu0 0.0
    %8353 = vmatpush1.msra.mxu0 %v8310
    %8354 = vmatprep.subr.mxu0 0.0
    %8355 = vmatpush1.msra.mxu0 %v8309
    %8356 = vmatprep.subr.mxu0 0.0
    %8357 = vmatpush1.msra.mxu0 %v8308
    %8358 = vmatprep.subr.mxu0 0.0
    %8359 = vmatpush1.msra.mxu0 %v8307
    %8360 = vmatprep.subr.mxu0 0.0
    %8361 = vmatpush1.msra.mxu0 %v8306
    %8362 = vmatprep.subr.mxu0 0.0
    %8363 = vmatpush2.msra.mxu0 0.0
    %8364 = vmatprep.subr.mxu0 0.0
    %8365 = vmatpush2.msra.mxu0 0.0
    %8366 = vmatprep.subr.mxu0 0.0
    %8367 = vmatpush2.msra.mxu0 0.0
    %8368 = vmatprep.subr.mxu0 0.0
    %8369 = vmatpush2.msra.mxu0 0.0
    %8370 = vmatprep.subr.mxu0 0.0
    %8371 = vmatpush2.msra.mxu0 0.0
    %8372 = vmatprep.subr.mxu0 0.0
    %8373 = vmatpush2.msra.mxu0 0.0
    %8374 = vmatprep.subr.mxu0 0.0
    %8375 = vmatpush2.msra.mxu0 0.0
    %8376 = vmatprep.subr.mxu0 0.0
    %8377 = vmatpush2.msra.mxu0 0.0
    %8378 = vmatprep.subr.mxu0 0.0
    %8379 = vmatpush2.msra.mxu0 0.0
    %8380 = vmatprep.subr.mxu0 0.0
    %8381 = vmatpush2.msra.mxu0 0.0
    %8382 = vmatprep.subr.mxu0 0.0
    %8383 = vmatpush2.msra.mxu0 0.0
    %8384 = vmatprep.subr.mxu0 0.0
    %8385 = vmatpush2.msra.mxu0 0.0
    %8386 = vmatprep.subr.mxu0 0.0
    %8387 = vmatpush2.msra.mxu0 0.0
    %8388 = vmatprep.subr.mxu0 0.0
    %8389 = vmatpush2.msra.mxu0 0.0
    %8390 = vmatprep.subr.mxu0 0.0
    %8391 = vmatpush2.msra.mxu0 0.0
    %8392 = vmatprep.subr.mxu0 0.0
    %8393 = vmatpush2.msra.mxu0 0.0
    %8394 = vmatprep.mubr.f32.mxu0 0.0
    %8395 = vmatmul.mubr.f32.gmra.mxu0 %v8301
    %v8396 = vpop.f32.mrf.mxu0
    %v8397 = vpop.f32.mrf.mxu0
    %8398 = vmatprep.mubr.f32.mxu0 0.0
    %8399 = vmatmul.mubr.f32.gmra.mxu0 %v8302
    %v8400 = vpop.f32.mrf.mxu0
    %v8401 = vadd.f32 %v8328, %v8400
    %v8402 = vpop.f32.mrf.mxu0
    %8403 = vmatprep.mubr.f32.mxu0 0.0
    %8404 = vmatmul.mubr.f32.gmra.mxu0 %v8303
    %v8405 = vpop.f32.mrf.mxu0
    %v8406 = vpop.f32.mrf.mxu0
    %8407 = vmatprep.mubr.f32.mxu0 0.0
    %8408 = vmatmul.mubr.f32.gmra.mxu0 %v8304
    %v8409 = vpop.f32.mrf.mxu0
    %v8410 = vadd.f32 %v8328, %v8409
    %v8411 = vpop.f32.mrf.mxu0
    %8412 = vdwg.mxu0
    %v8413 = vadd.f32 %v8080, %v8401
    %v8414 = vadd.f32 %v8082, %v8410
    %s8415 = scalar_lea.vmem %s14, 1
    %v8416 = vld [vmem:[%s8415] sm:$0x1]
    %s8417 = scalar_lea.vmem %s15, 1
    %v8418 = vld [vmem:[%s8417] sm:$0x1]
    %v8419 = vsel %vm238, %v8413, 0.0
    %8420 = vadd.xlane.f32.xlu0 %v8419
    %v8421 = vpop.xlane.xlu0 %8420
    %v8422 = vsel %vm238, %v8414, 0.0
    %8423 = vadd.xlane.f32.xlu0 %v8422
    %v8424 = vpop.xlane.xlu0 %8423
    %v8425 = vmul.f32 %v8421, %v3891
    %v8426 = vmul.f32 %v8424, %v3891
    %v8427 = vsub.f32 %v8413, %v8425
    %v8428 = vsub.f32 %v8414, %v8426
    %v8429 = vmul.f32 %v8427, %v8427
    %v8430 = vmul.f32 %v8428, %v8428
    %v8431 = vsel %vm238, %v8429, 0.0
    %8432 = vadd.xlane.f32.xlu0 %v8431
    %v8433 = vpop.xlane.xlu0 %8432
    %v8434 = vsel %vm238, %v8430, 0.0
    %8435 = vadd.xlane.f32.xlu0 %v8434
    %v8436 = vpop.xlane.xlu0 %8435
    %v8437 = vmul.f32 %v8433, %v3891
    %v8438 = vmul.f32 %v8436, %v3891
    %v8439 = vadd.f32 %v8437, 1e-05
    %v8440 = vadd.f32 %v8438, 1e-05
    %v8441 = vrsqrt.pop %v8439
    %v8442 = vrsqrt.pop %v8440
    %v8443 = vmul.f32 %v8427, %v8441
    %v8444 = vmul.f32 %v8428, %v8442
    %v8446 = vlaneseq
    %v8447 = vshrl.u32 %v8446, 7
    %v8448 = vsub.s32 0, %v8447
    %v8449 = vrot.slane %v8416, %v8448
    %v8451 = vmul.f32 %v8443, %v8449
    %v8452 = vmul.f32 %v8444, %v8449
    %v8454 = vlaneseq
    %v8455 = vshrl.u32 %v8454, 7
    %v8456 = vsub.s32 0, %v8455
    %v8457 = vrot.slane %v8418, %v8456
    %v8459 = vadd.f32 %v8451, %v8457
    %v8460 = vadd.f32 %v8452, %v8457
    %v8461 = vld [vmem:[%s16] sm:$0xff]
    %v8462 = vld [vmem:[%s16 + $0x8] sm:$0xff]
    %v8463 = vld [vmem:[%s16 + $0x10] sm:$0xff]
    %v8464 = vld [vmem:[%s16 + $0x18] sm:$0xff]
    %v8465 = vld [vmem:[%s16 + $0x20] sm:$0xff]
    %v8466 = vld [vmem:[%s16 + $0x28] sm:$0xff]
    %v8467 = vld [vmem:[%s16 + $0x30] sm:$0xff]
    %v8468 = vld [vmem:[%s16 + $0x38] sm:$0xff]
    %v8469 = vld [vmem:[%s16 + $0x40] sm:$0xff]
    %v8470 = vld [vmem:[%s16 + $0x48] sm:$0xff]
    %v8471 = vld [vmem:[%s16 + $0x50] sm:$0xff]
    %v8472 = vld [vmem:[%s16 + $0x58] sm:$0xff]
    %v8473 = vld [vmem:[%s16 + $0x60] sm:$0xff]
    %v8474 = vld [vmem:[%s16 + $0x68] sm:$0xff]
    %v8475 = vld [vmem:[%s16 + $0x70] sm:$0xff]
    %v8476 = vld [vmem:[%s16 + $0x78] sm:$0xff]
    %v8477 = vld [vmem:[%s17] sm:$0x3]
    %v8479 = vlaneseq
    %v8480 = vshrl.u32 %v8479, 7
    %v8481 = vsub.s32 0, %v8480
    %v8482 = vrot.slane %v8477, %v8481
    %v8483 = vlaneseq
    %v8484 = vshrl.u32 %v8483, 7
    %v8485 = vsub.s32 1, %v8484
    %v8486 = vrot.slane %v8477, %v8485
    %v8491 = vrot.slane %v8459, 7
    %v8492 = vrot.slane %v8460, 6
    %vm8493 = vcmask 1041409
    %v8494 = vsel %vm8493, %v8492, %v8491
    %v8495 = vsel %vm238, %v8494, 0
    %8497 = vmatprep.subr.mxu0 0.0
    %8498 = vmatpush1.msra.mxu0 0.0
    %8499 = vmatprep.subr.mxu0 0.0
    %8500 = vmatpush1.msra.mxu0 0.0
    %8501 = vmatprep.subr.mxu0 0.0
    %8502 = vmatpush1.msra.mxu0 0.0
    %8503 = vmatprep.subr.mxu0 0.0
    %8504 = vmatpush1.msra.mxu0 0.0
    %8505 = vmatprep.subr.mxu0 0.0
    %8506 = vmatpush1.msra.mxu0 0.0
    %8507 = vmatprep.subr.mxu0 0.0
    %8508 = vmatpush1.msra.mxu0 0.0
    %8509 = vmatprep.subr.mxu0 0.0
    %8510 = vmatpush1.msra.mxu0 0.0
    %8511 = vmatprep.subr.mxu0 0.0
    %8512 = vmatpush1.msra.mxu0 0.0
    %8513 = vmatprep.subr.mxu0 %v8476
    %8514 = vmatpush1.msra.mxu0 %v8475
    %8515 = vmatprep.subr.mxu0 %v8474
    %8516 = vmatpush1.msra.mxu0 %v8473
    %8517 = vmatprep.subr.mxu0 %v8472
    %8518 = vmatpush1.msra.mxu0 %v8471
    %8519 = vmatprep.subr.mxu0 %v8470
    %8520 = vmatpush1.msra.mxu0 %v8469
    %8521 = vmatprep.subr.mxu0 %v8468
    %8522 = vmatpush1.msra.mxu0 %v8467
    %8523 = vmatprep.subr.mxu0 %v8466
    %8524 = vmatpush1.msra.mxu0 %v8465
    %8525 = vmatprep.subr.mxu0 %v8464
    %8526 = vmatpush1.msra.mxu0 %v8463
    %8527 = vmatprep.subr.mxu0 %v8462
    %8528 = vmatpush1.msra.mxu0 %v8461
    %8529 = vmatprep.subr.mxu0 0.0
    %8530 = vmatpush2.msra.mxu0 0.0
    %8531 = vmatprep.subr.mxu0 0.0
    %8532 = vmatpush2.msra.mxu0 0.0
    %8533 = vmatprep.subr.mxu0 0.0
    %8534 = vmatpush2.msra.mxu0 0.0
    %8535 = vmatprep.subr.mxu0 0.0
    %8536 = vmatpush2.msra.mxu0 0.0
    %8537 = vmatprep.subr.mxu0 0.0
    %8538 = vmatpush2.msra.mxu0 0.0
    %8539 = vmatprep.subr.mxu0 0.0
    %8540 = vmatpush2.msra.mxu0 0.0
    %8541 = vmatprep.subr.mxu0 0.0
    %8542 = vmatpush2.msra.mxu0 0.0
    %8543 = vmatprep.subr.mxu0 0.0
    %8544 = vmatpush2.msra.mxu0 0.0
    %8545 = vmatprep.subr.mxu0 0.0
    %8546 = vmatpush2.msra.mxu0 0.0
    %8547 = vmatprep.subr.mxu0 0.0
    %8548 = vmatpush2.msra.mxu0 0.0
    %8549 = vmatprep.subr.mxu0 0.0
    %8550 = vmatpush2.msra.mxu0 0.0
    %8551 = vmatprep.subr.mxu0 0.0
    %8552 = vmatpush2.msra.mxu0 0.0
    %8553 = vmatprep.subr.mxu0 0.0
    %8554 = vmatpush2.msra.mxu0 0.0
    %8555 = vmatprep.subr.mxu0 0.0
    %8556 = vmatpush2.msra.mxu0 0.0
    %8557 = vmatprep.subr.mxu0 0.0
    %8558 = vmatpush2.msra.mxu0 0.0
    %8559 = vmatprep.subr.mxu0 0.0
    %8560 = vmatpush2.msra.mxu0 0.0
    %8561 = vmatprep.mubr.f32.mxu0 0.0
    %8562 = vmatmul.mubr.f32.gmra.mxu0 %v8495
    %v8563 = vpop.f32.mrf.mxu0
    %v8564 = vadd.f32 %v8482, %v8563
    %v8565 = vpop.f32.mrf.mxu0
    %v8566 = vadd.f32 %v8486, %v8565
    %8567 = vdwg.mxu0
    %v8568 = vmax.f32 %v8564, 0.0
    %v8569 = vmax.f32 %v8566, 0.0
    %v8570 = vld [vmem:[%s18] sm:$0xff]
    %v8571 = vld [vmem:[%s18 + $0x8] sm:$0xff]
    %v8572 = vld [vmem:[%s18 + $0x10] sm:$0xff]
    %v8573 = vld [vmem:[%s18 + $0x18] sm:$0xff]
    %v8574 = vld [vmem:[%s18 + $0x20] sm:$0xff]
    %v8575 = vld [vmem:[%s18 + $0x28] sm:$0xff]
    %v8576 = vld [vmem:[%s18 + $0x30] sm:$0xff]
    %v8577 = vld [vmem:[%s18 + $0x38] sm:$0xff]
    %v8578 = vld [vmem:[%s18 + $0x40] sm:$0xff]
    %v8579 = vld [vmem:[%s18 + $0x48] sm:$0xff]
    %v8580 = vld [vmem:[%s18 + $0x50] sm:$0xff]
    %v8581 = vld [vmem:[%s18 + $0x58] sm:$0xff]
    %v8582 = vld [vmem:[%s18 + $0x60] sm:$0xff]
    %v8583 = vld [vmem:[%s18 + $0x68] sm:$0xff]
    %v8584 = vld [vmem:[%s18 + $0x70] sm:$0xff]
    %v8585 = vld [vmem:[%s18 + $0x78] sm:$0xff]
    %v8586 = vld [vmem:[%s18 + $0x80] sm:$0xff]
    %v8587 = vld [vmem:[%s18 + $0x88] sm:$0xff]
    %v8588 = vld [vmem:[%s18 + $0x90] sm:$0xff]
    %v8589 = vld [vmem:[%s18 + $0x98] sm:$0xff]
    %v8590 = vld [vmem:[%s18 + $0xa0] sm:$0xff]
    %v8591 = vld [vmem:[%s18 + $0xa8] sm:$0xff]
    %v8592 = vld [vmem:[%s18 + $0xb0] sm:$0xff]
    %v8593 = vld [vmem:[%s18 + $0xb8] sm:$0xff]
    %v8594 = vld [vmem:[%s18 + $0xc0] sm:$0xff]
    %v8595 = vld [vmem:[%s18 + $0xc8] sm:$0xff]
    %v8596 = vld [vmem:[%s18 + $0xd0] sm:$0xff]
    %v8597 = vld [vmem:[%s18 + $0xd8] sm:$0xff]
    %v8598 = vld [vmem:[%s18 + $0xe0] sm:$0xff]
    %v8599 = vld [vmem:[%s18 + $0xe8] sm:$0xff]
    %v8600 = vld [vmem:[%s18 + $0xf0] sm:$0xff]
    %v8601 = vld [vmem:[%s18 + $0xf8] sm:$0xff]
    %v8602 = vld [vmem:[%s19] sm:$0x1]
    %v8604 = vlaneseq
    %v8605 = vshrl.u32 %v8604, 7
    %v8606 = vsub.s32 0, %v8605
    %v8607 = vrot.slane %v8602, %v8606
    %8609 = vmatprep.subr.mxu0 0.0
    %8610 = vmatpush1.msra.mxu0 %v8585
    %8611 = vmatprep.subr.mxu0 0.0
    %8612 = vmatpush1.msra.mxu0 %v8584
    %8613 = vmatprep.subr.mxu0 0.0
    %8614 = vmatpush1.msra.mxu0 %v8583
    %8615 = vmatprep.subr.mxu0 0.0
    %8616 = vmatpush1.msra.mxu0 %v8582
    %8617 = vmatprep.subr.mxu0 0.0
    %8618 = vmatpush1.msra.mxu0 %v8581
    %8619 = vmatprep.subr.mxu0 0.0
    %8620 = vmatpush1.msra.mxu0 %v8580
    %8621 = vmatprep.subr.mxu0 0.0
    %8622 = vmatpush1.msra.mxu0 %v8579
    %8623 = vmatprep.subr.mxu0 0.0
    %8624 = vmatpush1.msra.mxu0 %v8578
    %8625 = vmatprep.subr.mxu0 0.0
    %8626 = vmatpush1.msra.mxu0 %v8577
    %8627 = vmatprep.subr.mxu0 0.0
    %8628 = vmatpush1.msra.mxu0 %v8576
    %8629 = vmatprep.subr.mxu0 0.0
    %8630 = vmatpush1.msra.mxu0 %v8575
    %8631 = vmatprep.subr.mxu0 0.0
    %8632 = vmatpush1.msra.mxu0 %v8574
    %8633 = vmatprep.subr.mxu0 0.0
    %8634 = vmatpush1.msra.mxu0 %v8573
    %8635 = vmatprep.subr.mxu0 0.0
    %8636 = vmatpush1.msra.mxu0 %v8572
    %8637 = vmatprep.subr.mxu0 0.0
    %8638 = vmatpush1.msra.mxu0 %v8571
    %8639 = vmatprep.subr.mxu0 0.0
    %8640 = vmatpush1.msra.mxu0 %v8570
    %8641 = vmatprep.subr.mxu0 0.0
    %8642 = vmatpush2.msra.mxu0 %v8601
    %8643 = vmatprep.subr.mxu0 0.0
    %8644 = vmatpush2.msra.mxu0 %v8600
    %8645 = vmatprep.subr.mxu0 0.0
    %8646 = vmatpush2.msra.mxu0 %v8599
    %8647 = vmatprep.subr.mxu0 0.0
    %8648 = vmatpush2.msra.mxu0 %v8598
    %8649 = vmatprep.subr.mxu0 0.0
    %8650 = vmatpush2.msra.mxu0 %v8597
    %8651 = vmatprep.subr.mxu0 0.0
    %8652 = vmatpush2.msra.mxu0 %v8596
    %8653 = vmatprep.subr.mxu0 0.0
    %8654 = vmatpush2.msra.mxu0 %v8595
    %8655 = vmatprep.subr.mxu0 0.0
    %8656 = vmatpush2.msra.mxu0 %v8594
    %8657 = vmatprep.subr.mxu0 0.0
    %8658 = vmatpush2.msra.mxu0 %v8593
    %8659 = vmatprep.subr.mxu0 0.0
    %8660 = vmatpush2.msra.mxu0 %v8592
    %8661 = vmatprep.subr.mxu0 0.0
    %8662 = vmatpush2.msra.mxu0 %v8591
    %8663 = vmatprep.subr.mxu0 0.0
    %8664 = vmatpush2.msra.mxu0 %v8590
    %8665 = vmatprep.subr.mxu0 0.0
    %8666 = vmatpush2.msra.mxu0 %v8589
    %8667 = vmatprep.subr.mxu0 0.0
    %8668 = vmatpush2.msra.mxu0 %v8588
    %8669 = vmatprep.subr.mxu0 0.0
    %8670 = vmatpush2.msra.mxu0 %v8587
    %8671 = vmatprep.subr.mxu0 0.0
    %8672 = vmatpush2.msra.mxu0 %v8586
    %8673 = vmatprep.mubr.f32.mxu0 %v8569
    %8674 = vmatmul.mubr.f32.gmra.mxu0 %v8568
    %v8675 = vpop.f32.mrf.mxu0
    %v8676 = vadd.f32 %v8607, %v8675
    %v8677 = vpop.f32.mrf.mxu0
    %8678 = vdwg.mxu0
    %vm8679 = vcmask 58368
    %8680 = vst.msk [vmem:[#allocation3] sm:$0x3] %vm8679, %v8676
    %v8681 = vsel %vm8679, %v8676, -inf
    %8682 = vmax.xlane.f32.xlu0 %v8681
    %v8683 = vpop.xlane.xlu0 %8682
    %v8684 = vsub.f32 %v8676, %v8683
    %v8685 = vmul.f32 %v8684, 1.442695
    %v8686 = vpow.pop %v8685
    %v8687 = vsel %vm8679, %v8686, 0.0
    %8688 = vadd.xlane.f32.xlu0 %v8687
    %v8689 = vpop.xlane.xlu0 %8688
    %v8690 = vrcp.pop %v8689
    %v8691 = vmul.f32 %v8686, %v8690
    %8692 = vst.msk [vmem:[#allocation5] sm:$0x3] %vm8679, %v8691
    // Predicated region
    $region82: #{transformer_forward.1} parent=1 // pred_check
      _
    $region83: #{transformer_forward.1} parent=1 // pred_check_branch
      %8694 = sbr.rel (0) target = $region85
    $region84: #{transformer_forward.1} parent=1 // pred_region
      %s8696 = ssub.s32 32, 32
      %8697 = vsyncadd [#allocation4], %s8696
      %s8699 = sshll.u32 [#allocation3], 4
      %s8700 = int_to_ptr.vmem [resolvable:$true] %s8699
      %8702 = dma.vmem_to_hbm [thread:$0]  %s8700, 32, %s20, [#allocation4]
    $region85: #{transformer_forward.1} parent=1 // pred_fallthru
      _
    // Predicated region
    $region86: #{transformer_forward.1} parent=1 // pred_check
      _
    $region87: #{transformer_forward.1} parent=1 // pred_check_branch
      %8704 = sbr.rel (0) target = $region89
    $region88: #{transformer_forward.1} parent=1 // pred_region
      %s8706 = ssub.s32 32, 32
      %8707 = vsyncadd [#allocation6], %s8706
      %s8709 = sshll.u32 [#allocation5], 4
      %s8710 = int_to_ptr.vmem [resolvable:$true] %s8709
      %8712 = dma.vmem_to_hbm [thread:$0]  %s8710, 32, %s21, [#allocation6]
    $region89: #{transformer_forward.1} parent=1 // pred_fallthru
      _
    // Predicated region
    $region90: #{transformer_forward.1} parent=1 // pred_check
      _
    $region91: #{transformer_forward.1} parent=1 // pred_check_branch
      %8714 = sbr.rel (0) target = $region93
    $region92: #{transformer_forward.1} parent=1 // pred_region
      %8715 = dma.done [#allocation4], 32
    $region93: #{transformer_forward.1} parent=1 // pred_fallthru
      _
    // Predicated region
    $region94: #{transformer_forward.1} parent=1 // pred_check
      _
    $region95: #{transformer_forward.1} parent=1 // pred_check_branch
      %8717 = sbr.rel (0) target = $region97
    $region96: #{transformer_forward.1} parent=1 // pred_region
      %8718 = dma.done [#allocation6], 32
    $region97: #{transformer_forward.1} parent=1 // pred_fallthru
      _
    %8719 = vsyncpa [#allocation4], 1
    %8720 = vsyncpa [#allocation6], 1

</llo_original>
